<compile_context>
chip_gen: v7x
topology: tpu7x:2x2x1
jax: 0.10.0
libtpu: 0.0.40
codegen_flags: <defaults>
</compile_context>

<pallas_src>
import math

import numpy as np
import jax
import jax.numpy as jnp
from jax.experimental import pallas as pl
from jax.experimental.pallas import tpu as pltpu

# ----------------------------- config (small) --------------------------------
IDIM = 16           # input feature dim (C of x)
D_MODEL = 64        # encoder_output_size
N_HEAD = 4
D_K = D_MODEL // N_HEAD
D_FF = 128          # linear_units
NUM_BLOCKS = 2
CNN_KERNEL = 7
LORDER = CNN_KERNEL - 1
VOCAB = 50
VOCAB_PAD = 128     # lane-dense CTC head (pad logits live at -1e30)
T_IN = 19           # raw chunk frames -> 4 frames after 4x subsampling
CACHE_T = 16        # required_cache_size / cache_t1
MAX_POS = 512
LN_EPS = 1e-5
BN_EPS = 1e-5

# derived Conv2dSubsampling4 geometry (two 3x3 stride-2 convs)
H1 = (T_IN - 3) // 2 + 1          # 9  conv1 output time
W1 = (IDIM - 3) // 2 + 1          # 7  conv1 output freq
T_SUB = (H1 - 3) // 2 + 1         # 4  chunk length after subsampling
F_SUB = (W1 - 3) // 2 + 1         # 3  freq bins after subsampling
CNT = ((H1 + 1) // 2, H1 // 2)    # conv1 rows per time-parity group (reordered layout)
OFF = (0, W1 * CNT[0])            # offsets of the two parity groups
XSCALE = math.sqrt(D_MODEL)
ATT_SCALE = 1.0 / math.sqrt(D_K)


# --------------------- conv1 patch layout (wrapper-side) ---------------------
def _conv1_row_perm():
    # Reorder conv1 output rows as (time-parity, freq, time//2) so that every conv2
    # tap/frequency needs a CONTIGUOUS run of T_SUB rows inside the kernel
    # (no strided / gather reads from VMEM).
    perm = []
    for p in (0, 1):
        for j in range(W1):
            i = p
            while i < H1:
                perm.append(i * W1 + j)
                i += 2
    return np.asarray(perm, dtype=np.int32)


_PERM1 = _conv1_row_perm()


def _conv1_patches(x):
    # x: (1, T_IN, IDIM) -> im2col patches for the first 3x3/stride-2 conv,
    # rows permuted with _PERM1 (features ordered (ki, kj) like torch Conv2d, Cin=1).
    img = x[0]
    cols = []
    for ki in range(3):
        for kj in range(3):
            cols.append(img[ki:ki + 2 * (H1 - 1) + 1:2, kj:kj + 2 * (W1 - 1) + 1:2])
    patches = jnp.stack(cols, axis=-1).reshape(H1 * W1, 9)
    return patches[_PERM1]


# ----------------------------- in-kernel helpers ------------------------------
def _mm(a, b):
    return jnp.dot(a, b, preferred_element_type=jnp.float32)


def _ln(x, g, b):
    mu = jnp.mean(x, axis=-1, keepdims=True)
    xc = x - mu
    var = jnp.mean(xc * xc, axis=-1, keepdims=True)
    return xc * jax.lax.rsqrt(var + LN_EPS) * g + b


def _silu(x):
    return x * jax.nn.sigmoid(x)


# --------------------------------- forward -----------------------------------
def forward(prep, x, offset, required_cache_size, attn_cache, conv_cache, attn_mask):
    """Equivalent of OnnxModel.forward (N == 1), fused into one pallas_call.

    required_cache_size is a static Python int in this JAX port (it determines the
    output cache shapes, which must be static).
    """
    cache_t1 = attn_cache.shape[2]
    key_size = cache_t1 + T_SUB

    if required_cache_size < 0:
        next_cache_start = 0
    elif required_cache_size == 0:
        next_cache_start = key_size
    else:
        next_cache_start = max(key_size - required_cache_size, 0)
    att_out_t = key_size - next_cache_start

    # tiny wrapper-side glue (everything heavy happens inside the single kernel)
    patches1 = _conv1_patches(x)                                        # (H1*W1, 9)
    start = (offset - cache_t1).astype(jnp.int32)
    pos_emb = jax.lax.dynamic_slice_in_dim(prep['pe'], start, key_size, axis=0)
    mask_i = attn_mask[0].astype(jnp.int32)                             # (1, key_size)
    cnn_cache_tm = jnp.transpose(conv_cache[:, 0], (0, 2, 1))           # (blocks, LORDER, D) time-major

    kin = {
        'data': {
            'patches1': patches1,
            'pos_emb': pos_emb,
            'mask': mask_i,
            'att_cache': attn_cache,        # (blocks, H, cache_t1, 2*dk)
            'cnn_cache': cnn_cache_tm,      # (blocks, LORDER, D)
        },
        'glob': prep['glob'],
        'layers': prep['layers'],
    }
    leaves, treedef = jax.tree_util.tree_flatten(kin)
    n_in = len(leaves)

    def kernel(*refs):
        d = jax.tree_util.tree_unflatten(treedef, refs[:n_in])
        logp_ref, att_out_ref, cnn_out_ref = refs[n_in:]
        gl = d['glob']
        ly = d['layers']
        dat = d['data']

        mask = dat['mask'][...] > 0                                     # (1, key_size)
        pos = dat['pos_emb'][...]                                       # (key_size, D)

        # -------- Conv2dSubsampling4: conv1+relu, conv2+relu, linear, xscale -----
        h1 = jnp.maximum(_mm(dat['patches1'][...], gl['w1r'][...]) + gl['b1'][...], 0.0)
        xs = jnp.zeros((T_SUB, D_MODEL), jnp.float32)
        for f2 in range(F_SUB):
            acc = jnp.zeros((T_SUB, D_MODEL), jnp.float32)
            for kh in range(3):
                par = kh % 2
                for kw in range(3):
                    base = OFF[par] + (2 * f2 + kw) * CNT[par] + kh // 2
                    acc = acc + _mm(h1[base:base + T_SUB, :], gl['w2_taps'][kh * 3 + kw])
            h2 = jnp.maximum(acc + gl['b2'][...], 0.0)
            xs = xs + _mm(h2, gl['sub_w_f'][f2])
        xs = (xs + gl['sub_b'][...]) * XSCALE                           # RelPositionalEncoding xscale

        # -------- conformer blocks ----------------------------------------------
        for i in range(NUM_BLOCKS):
            # macaron feed-forward (half-step residual)
            y = _ln(xs, ly['norm_ff_macaron_g'][i], ly['norm_ff_macaron_b'][i])
            y = _silu(_mm(y, ly['ffm_w1'][i]) + ly['ffm_b1'][i])
            y = _mm(y, ly['ffm_w2'][i]) + ly['ffm_b2'][i]
            xs = xs + 0.5 * y

            # relative-position multi-head self-attention with kv cache
            res = xs
            y = _ln(xs, ly['norm_mha_g'][i], ly['norm_mha_b'][i])
            q = _mm(y, ly['wq'][i]) + ly['bq'][i]
            k = _mm(y, ly['wk'][i]) + ly['bk'][i]
            v = _mm(y, ly['wv'][i]) + ly['bv'][i]
            ppos = _mm(pos, ly['wpos'][i])                              # linear_pos: no bias
            cache_i = dat['att_cache'][i]                               # (H, cache_t1, 2*dk)
            pbu = ly['pos_bias_u'][i]                                   # (H, dk)
            pbv = ly['pos_bias_v'][i]
            dn = (((1,), (1,)), ((), ()))
            head_outs = []
            new_cache = []
            for h in range(N_HEAD):
                lo, hi = h * D_K, (h + 1) * D_K
                q_h = q[:, lo:hi]
                kc = jnp.concatenate([cache_i[h, :, :D_K], k[:, lo:hi]], axis=0)   # (key, dk)
                vc = jnp.concatenate([cache_i[h, :, D_K:], v[:, lo:hi]], axis=0)
                ac = jax.lax.dot_general(q_h + pbu[h:h + 1, :], kc, dn,
                                         preferred_element_type=jnp.float32)
                bd = jax.lax.dot_general(q_h + pbv[h:h + 1, :], ppos[:, lo:hi], dn,
                                         preferred_element_type=jnp.float32)
                s = (ac + bd) * ATT_SCALE
                s = jnp.where(mask, s, -1e30)                           # masked_fill(-inf)
                mmax = jnp.max(s, axis=-1, keepdims=True)
                e = jnp.exp(s - mmax)
                e = jnp.where(mask, e, 0.0)                             # masked_fill(0.0)
                attn = e * pl.reciprocal(jnp.sum(e, axis=-1, keepdims=True), approx=True)
                head_outs.append(_mm(attn, vc))                         # (T_SUB, dk)
                new_cache.append(jnp.concatenate([kc, vc], axis=1)[next_cache_start:, :])
            att_out_ref[i] = jnp.stack(new_cache, axis=0)               # (H, att_out_t, 2*dk)
            att_o = jnp.concatenate(head_outs, axis=1)                  # (T_SUB, D)
            xs = res + _mm(att_o, ly['wo'][i]) + ly['bo'][i]

            # convolution module (causal depthwise conv, cached left context, time-major)
            res = xs
            y = _ln(xs, ly['norm_conv_g'][i], ly['norm_conv_b'][i])
            x_cat = jnp.concatenate([dat['cnn_cache'][i], y], axis=0)   # (T_SUB+LORDER, D)
            cnn_out_ref[i] = x_cat[T_SUB:, :]                           # last LORDER frames
            z = _mm(x_cat, ly['pw1_w'][i]) + ly['pw1_b'][i]             # pointwise_conv1
            glu = z[:, :D_MODEL] * jax.nn.sigmoid(z[:, D_MODEL:])       # GLU over channels
            dw = ly['dw_w'][i]                                          # (K, D)
            acc = jnp.zeros((T_SUB, D_MODEL), jnp.float32)
            for j in range(CNN_KERNEL):                                 # causal depthwise conv
                acc = acc + glu[j:j + T_SUB, :] * dw[j:j + 1, :]
            y = acc + ly['dw_b'][i]
            y = y * ly['bn_scale'][i] + ly['bn_shift'][i]               # BatchNorm1d (eval, folded)
            y = _silu(y)
            y = _mm(y, ly['pw2_w'][i]) + ly['pw2_b'][i]                 # pointwise_conv2
            xs = res + y

            # feed-forward (half-step residual)
            y = _ln(xs, ly['norm_ff_g'][i], ly['norm_ff_b'][i])
            y = _silu(_mm(y, ly['ff_w1'][i]) + ly['ff_b1'][i])
            y = _mm(y, ly['ff_w2'][i]) + ly['ff_b2'][i]
            xs = xs + 0.5 * y

            xs = _ln(xs, ly['norm_final_g'][i], ly['norm_final_b'][i])

        # -------- after_norm + ctc_lo + log_softmax (128-lane padded head) --------
        hfin = _ln(xs, gl['after_norm_g'][...], gl['after_norm_b'][...])
        logits = _mm(hfin, gl['ctc_w'][...]) + gl['ctc_b'][...]         # (T_SUB, VOCAB_PAD)
        mrow = jnp.max(logits, axis=-1, keepdims=True)
        lse = jnp.log(jnp.sum(jnp.exp(logits - mrow), axis=-1, keepdims=True))
        logp_ref[...] = logits - mrow - lse

    out_shape = (
        jax.ShapeDtypeStruct((T_SUB, VOCAB_PAD), jnp.float32),
        jax.ShapeDtypeStruct((NUM_BLOCKS, N_HEAD, att_out_t, 2 * D_K), jnp.float32),
        jax.ShapeDtypeStruct((NUM_BLOCKS, LORDER, D_MODEL), jnp.float32),
    )
    logp_pad, next_att_cache, next_cnn_tm = pl.pallas_call(
        kernel,
        out_shape=out_shape,
        compiler_params=pltpu.CompilerParams(vmem_limit_bytes=32 * 1024 * 1024),
    )(*leaves)

    log_probs = logp_pad[:, :VOCAB][None]                               # (1, T_SUB, VOCAB)
    next_conv_cache = jnp.transpose(next_cnn_tm, (0, 2, 1))[:, None, :, :]
    return log_probs, next_att_cache, next_conv_cache


# ----------------------------- parameter handling -----------------------------
def sinusoidal_pe(max_len, d):
    pos = jnp.arange(max_len, dtype=jnp.float32)[:, None]
    div = jnp.exp(jnp.arange(0, d, 2, dtype=jnp.float32) * -(math.log(10000.0) / d))
    pe = jnp.zeros((max_len, d), jnp.float32)
    pe = pe.at[:, 0::2].set(jnp.sin(pos * div))
    pe = pe.at[:, 1::2].set(jnp.cos(pos * div))
    return pe


def init_params(key):
    keys = iter(jax.random.split(key, 256))

    def nrm(shape, scale=0.1):
        return scale * jax.random.normal(next(keys), shape, dtype=jnp.float32)

    p = {}
    p['conv1_w'] = nrm((D_MODEL, 1, 3, 3))
    p['conv1_b'] = nrm((D_MODEL,))
    p['conv2_w'] = nrm((D_MODEL, D_MODEL, 3, 3))
    p['conv2_b'] = nrm((D_MODEL,))
    p['sub_out_w'] = nrm((D_MODEL * F_SUB, D_MODEL))
    p['sub_out_b'] = nrm((D_MODEL,))

    layers = []
    for _ in range(NUM_BLOCKS):
        lp = {}
        for name in ['norm_ff_macaron', 'norm_mha', 'norm_conv', 'norm_ff', 'norm_final']:
            lp[name + '_g'] = jnp.ones((D_MODEL,), jnp.float32) + nrm((D_MODEL,), 0.01)
            lp[name + '_b'] = nrm((D_MODEL,), 0.01)
        lp['ffm_w1'] = nrm((D_MODEL, D_FF)); lp['ffm_b1'] = nrm((D_FF,))
        lp['ffm_w2'] = nrm((D_FF, D_MODEL)); lp['ffm_b2'] = nrm((D_MODEL,))
        lp['ff_w1'] = nrm((D_MODEL, D_FF)); lp['ff_b1'] = nrm((D_FF,))
        lp['ff_w2'] = nrm((D_FF, D_MODEL)); lp['ff_b2'] = nrm((D_MODEL,))
        for n in ['q', 'k', 'v', 'o']:
            lp['w' + n] = nrm((D_MODEL, D_MODEL)); lp['b' + n] = nrm((D_MODEL,))
        lp['wpos'] = nrm((D_MODEL, D_MODEL))
        lp['pos_bias_u'] = nrm((N_HEAD, D_K))
        lp['pos_bias_v'] = nrm((N_HEAD, D_K))
        lp['pw1_w'] = nrm((D_MODEL, 2 * D_MODEL)); lp['pw1_b'] = nrm((2 * D_MODEL,))
        lp['dw_w'] = nrm((CNN_KERNEL, D_MODEL)); lp['dw_b'] = nrm((D_MODEL,))
        lp['pw2_w'] = nrm((D_MODEL, D_MODEL)); lp['pw2_b'] = nrm((D_MODEL,))
        bn_g = jnp.ones((D_MODEL,), jnp.float32) + nrm((D_MODEL,), 0.01)
        bn_b = nrm((D_MODEL,), 0.01)
        bn_rm = nrm((D_MODEL,), 0.01)
        bn_rv = jnp.ones((D_MODEL,), jnp.float32) + jnp.abs(nrm((D_MODEL,), 0.01))
        lp['bn_scale'] = bn_g / jnp.sqrt(bn_rv + BN_EPS)
        lp['bn_shift'] = bn_b - bn_rm * lp['bn_scale']
        layers.append(lp)
    p['layers'] = layers

    p['after_norm_g'] = jnp.ones((D_MODEL,), jnp.float32)
    p['after_norm_b'] = jnp.zeros((D_MODEL,), jnp.float32)
    p['ctc_w'] = nrm((D_MODEL, VOCAB)); p['ctc_b'] = nrm((VOCAB,))
    p['pe'] = sinusoidal_pe(MAX_POS, D_MODEL)
    return p


def prepare_params(p):
    """One-time repack of torch-layout weights into kernel-ready layout (done outside jit)."""
    glob = {
        'w1r': p['conv1_w'].reshape(D_MODEL, 9).T,                                  # (9, D)
        'b1': p['conv1_b'].reshape(1, D_MODEL),
        'w2_taps': jnp.transpose(p['conv2_w'], (2, 3, 1, 0)).reshape(9, D_MODEL, D_MODEL),
        'b2': p['conv2_b'].reshape(1, D_MODEL),
        'sub_w_f': jnp.stack([p['sub_out_w'][f::F_SUB] for f in range(F_SUB)], axis=0),
        'sub_b': p['sub_out_b'].reshape(1, D_MODEL),
        'after_norm_g': p['after_norm_g'].reshape(1, D_MODEL),
        'after_norm_b': p['after_norm_b'].reshape(1, D_MODEL),
        # CTC head padded to 128 lanes; pad logits pinned at -1e30 so log_softmax is exact.
        'ctc_w': jnp.zeros((D_MODEL, VOCAB_PAD), jnp.float32).at[:, :VOCAB].set(p['ctc_w']),
        'ctc_b': jnp.full((1, VOCAB_PAD), -1e30, jnp.float32).at[0, :VOCAB].set(p['ctc_b']),
    }
    layers = {}
    for name in p['layers'][0]:
        vals = []
        for i in range(NUM_BLOCKS):
            v = p['layers'][i][name]
            if v.ndim == 1:
                v = v.reshape(1, -1)
            vals.append(v)
        layers[name] = jnp.stack(vals, axis=0)      # leading layer axis
    return {'glob': glob, 'layers': layers, 'pe': p['pe']}


# ----------------------------------- main -------------------------------------
if __name__ == "__main__":
    key = jax.random.PRNGKey(0)
    pkey, xkey, ackey, cckey = jax.random.split(key, 4)

    params = init_params(pkey)
    prep = prepare_params(params)

    x = jax.random.normal(xkey, (1, T_IN, IDIM), dtype=jnp.float32)
    # TODO(synk): torch uses int64 scalars for offset/required_cache_size; offset is int32
    # here and required_cache_size is a static Python int (needed for static cache shapes).
    offset = jnp.array(CACHE_T, dtype=jnp.int32)
    required_cache_size = CACHE_T
    attn_cache = 0.1 * jax.random.normal(
        ackey, (NUM_BLOCKS, N_HEAD, CACHE_T, 2 * D_K), dtype=jnp.float32)
    conv_cache = 0.1 * jax.random.normal(
        cckey, (NUM_BLOCKS, 1, D_MODEL, LORDER), dtype=jnp.float32)
    attn_mask = jnp.ones((1, 1, CACHE_T + T_SUB), dtype=jnp.bool_)

    fwd = jax.jit(forward, static_argnums=(3,))
    log_probs, next_att_cache, next_conv_cache = fwd(
        prep, x, offset, required_cache_size, attn_cache, conv_cache, attn_mask)
    jax.block_until_ready((log_probs, next_att_cache, next_conv_cache))

    assert log_probs.shape == (1, T_SUB, VOCAB)
    assert next_att_cache.shape == attn_cache.shape
    assert next_conv_cache.shape == conv_cache.shape
    assert bool(jnp.all(jnp.isfinite(log_probs)))
    # log_softmax sanity: probabilities sum to 1 per frame
    assert bool(jnp.allclose(jnp.sum(jnp.exp(log_probs), axis=-1), 1.0, atol=1e-4))

    print("KERNEL_OK")
</pallas_src>

<mosaic_0001>
module attributes {stable_mosaic.version = 11 : i64} {
  func.func @kernel(%arg0: memref<2x4x16x32xf32, #tpu.memory_space<vmem>>, %arg1: memref<2x6x64xf32, #tpu.memory_space<vmem>>, %arg2: memref<1x20xi32, #tpu.memory_space<vmem>>, %arg3: memref<63x9xf32, #tpu.memory_space<vmem>>, %arg4: memref<20x64xf32, #tpu.memory_space<vmem>>, %arg5: memref<1x64xf32, #tpu.memory_space<vmem>>, %arg6: memref<1x64xf32, #tpu.memory_space<vmem>>, %arg7: memref<1x64xf32, #tpu.memory_space<vmem>>, %arg8: memref<1x64xf32, #tpu.memory_space<vmem>>, %arg9: memref<1x128xf32, #tpu.memory_space<vmem>>, %arg10: memref<64x128xf32, #tpu.memory_space<vmem>>, %arg11: memref<1x64xf32, #tpu.memory_space<vmem>>, %arg12: memref<3x64x64xf32, #tpu.memory_space<vmem>>, %arg13: memref<9x64xf32, #tpu.memory_space<vmem>>, %arg14: memref<9x64x64xf32, #tpu.memory_space<vmem>>, %arg15: memref<2x1x64xf32, #tpu.memory_space<vmem>>, %arg16: memref<2x1x64xf32, #tpu.memory_space<vmem>>, %arg17: memref<2x1x64xf32, #tpu.memory_space<vmem>>, %arg18: memref<2x1x64xf32, #tpu.memory_space<vmem>>, %arg19: memref<2x1x64xf32, #tpu.memory_space<vmem>>, %arg20: memref<2x1x64xf32, #tpu.memory_space<vmem>>, %arg21: memref<2x1x64xf32, #tpu.memory_space<vmem>>, %arg22: memref<2x7x64xf32, #tpu.memory_space<vmem>>, %arg23: memref<2x1x128xf32, #tpu.memory_space<vmem>>, %arg24: memref<2x1x64xf32, #tpu.memory_space<vmem>>, %arg25: memref<2x64x128xf32, #tpu.memory_space<vmem>>, %arg26: memref<2x128x64xf32, #tpu.memory_space<vmem>>, %arg27: memref<2x1x128xf32, #tpu.memory_space<vmem>>, %arg28: memref<2x1x64xf32, #tpu.memory_space<vmem>>, %arg29: memref<2x64x128xf32, #tpu.memory_space<vmem>>, %arg30: memref<2x128x64xf32, #tpu.memory_space<vmem>>, %arg31: memref<2x1x64xf32, #tpu.memory_space<vmem>>, %arg32: memref<2x1x64xf32, #tpu.memory_space<vmem>>, %arg33: memref<2x1x64xf32, #tpu.memory_space<vmem>>, %arg34: memref<2x1x64xf32, #tpu.memory_space<vmem>>, %arg35: memref<2x1x64xf32, #tpu.memory_space<vmem>>, %arg36: memref<2x1x64xf32, #tpu.memory_space<vmem>>, %arg37: memref<2x1x64xf32, #tpu.memory_space<vmem>>, %arg38: memref<2x1x64xf32, #tpu.memory_space<vmem>>, %arg39: memref<2x1x64xf32, #tpu.memory_space<vmem>>, %arg40: memref<2x1x64xf32, #tpu.memory_space<vmem>>, %arg41: memref<2x4x16xf32, #tpu.memory_space<vmem>>, %arg42: memref<2x4x16xf32, #tpu.memory_space<vmem>>, %arg43: memref<2x1x128xf32, #tpu.memory_space<vmem>>, %arg44: memref<2x64x128xf32, #tpu.memory_space<vmem>>, %arg45: memref<2x1x64xf32, #tpu.memory_space<vmem>>, %arg46: memref<2x64x64xf32, #tpu.memory_space<vmem>>, %arg47: memref<2x64x64xf32, #tpu.memory_space<vmem>>, %arg48: memref<2x64x64xf32, #tpu.memory_space<vmem>>, %arg49: memref<2x64x64xf32, #tpu.memory_space<vmem>>, %arg50: memref<2x64x64xf32, #tpu.memory_space<vmem>>, %arg51: memref<2x64x64xf32, #tpu.memory_space<vmem>>, %arg52: memref<4x128xf32, #tpu.memory_space<vmem>>, %arg53: memref<2x4x16x32xf32, #tpu.memory_space<vmem>>, %arg54: memref<2x6x64xf32, #tpu.memory_space<vmem>>) attributes {dimension_semantics = [], scalar_prefetch = 0 : i64, scratch_operands = 0 : i64, tpu.core_type = #tpu.core_type<tc>} {
    %c0 = arith.constant 0 : index
    %c0_0 = arith.constant 0 : index
    %0 = vector.load %arg2[%c0, %c0_0] : memref<1x20xi32, #tpu.memory_space<vmem>>, vector<1x20xi32>
    %c0_i32 = arith.constant 0 : i32
    %1 = vector.broadcast %c0_i32 : i32 to vector<1x20xi32>
    %2 = arith.cmpi sgt, %0, %1 : vector<1x20xi32>
    %c0_1 = arith.constant 0 : index
    %c0_2 = arith.constant 0 : index
    %3 = vector.load %arg4[%c0_1, %c0_2] : memref<20x64xf32, #tpu.memory_space<vmem>>, vector<20x64xf32>
    %c0_3 = arith.constant 0 : index
    %c0_4 = arith.constant 0 : index
    %4 = vector.load %arg3[%c0_3, %c0_4] : memref<63x9xf32, #tpu.memory_space<vmem>>, vector<63x9xf32>
    %c0_5 = arith.constant 0 : index
    %c0_6 = arith.constant 0 : index
    %5 = vector.load %arg13[%c0_5, %c0_6] : memref<9x64xf32, #tpu.memory_space<vmem>>, vector<9x64xf32>
    %cst = arith.constant dense<0.000000e+00> : vector<63x64xf32>
    %6 = tpu.matmul %4, %5, %cst {dimension_numbers = #tpu.dot_dimension_numbers<[1], [0], [0], [1], [0, 0, 1, 1], [], []>} : vector<63x9xf32>, vector<9x64xf32>, vector<63x64xf32> -> vector<63x64xf32>
    %c0_7 = arith.constant 0 : index
    %c0_8 = arith.constant 0 : index
    %7 = vector.load %arg7[%c0_7, %c0_8] : memref<1x64xf32, #tpu.memory_space<vmem>>, vector<1x64xf32>
    %8 = vector.broadcast %7 : vector<1x64xf32> to vector<63x64xf32>
    %9 = arith.addf %6, %8 : vector<63x64xf32>
    %cst_9 = arith.constant 0.000000e+00 : f32
    %10 = vector.broadcast %cst_9 : f32 to vector<63x64xf32>
    %11 = arith.maximumf %9, %10 : vector<63x64xf32>
    %cst_10 = arith.constant 0.000000e+00 : f32
    %12 = vector.broadcast %cst_10 : f32 to vector<4x64xf32>
    %cst_11 = arith.constant 0.000000e+00 : f32
    %13 = vector.broadcast %cst_11 : f32 to vector<4x64xf32>
    %14 = vector.extract_strided_slice %11 {offsets = [0, 0], sizes = [4, 64], strides = [1, 1]} : vector<63x64xf32> to vector<4x64xf32>
    %c0_12 = arith.constant 0 : index
    %c0_13 = arith.constant 0 : index
    %c0_14 = arith.constant 0 : index
    %15 = vector.load %arg14[%c0_12, %c0_13, %c0_14] : memref<9x64x64xf32, #tpu.memory_space<vmem>>, vector<1x64x64xf32>
    %16 = vector.shape_cast %15 : vector<1x64x64xf32> to vector<64x64xf32>
    %cst_15 = arith.constant dense<0.000000e+00> : vector<4x64xf32>
    %17 = tpu.matmul %14, %16, %cst_15 {dimension_numbers = #tpu.dot_dimension_numbers<[1], [0], [0], [1], [0, 0, 1, 1], [], []>} : vector<4x64xf32>, vector<64x64xf32>, vector<4x64xf32> -> vector<4x64xf32>
    %18 = arith.addf %13, %17 : vector<4x64xf32>
    %19 = vector.extract_strided_slice %11 {offsets = [5, 0], sizes = [4, 64], strides = [1, 1]} : vector<63x64xf32> to vector<4x64xf32>
    %c1 = arith.constant 1 : index
    %c0_16 = arith.constant 0 : index
    %c0_17 = arith.constant 0 : index
    %20 = vector.load %arg14[%c1, %c0_16, %c0_17] : memref<9x64x64xf32, #tpu.memory_space<vmem>>, vector<1x64x64xf32>
    %21 = vector.shape_cast %20 : vector<1x64x64xf32> to vector<64x64xf32>
    %cst_18 = arith.constant dense<0.000000e+00> : vector<4x64xf32>
    %22 = tpu.matmul %19, %21, %cst_18 {dimension_numbers = #tpu.dot_dimension_numbers<[1], [0], [0], [1], [0, 0, 1, 1], [], []>} : vector<4x64xf32>, vector<64x64xf32>, vector<4x64xf32> -> vector<4x64xf32>
    %23 = arith.addf %18, %22 : vector<4x64xf32>
    %24 = vector.extract_strided_slice %11 {offsets = [10, 0], sizes = [4, 64], strides = [1, 1]} : vector<63x64xf32> to vector<4x64xf32>
    %c2 = arith.constant 2 : index
    %c0_19 = arith.constant 0 : index
    %c0_20 = arith.constant 0 : index
    %25 = vector.load %arg14[%c2, %c0_19, %c0_20] : memref<9x64x64xf32, #tpu.memory_space<vmem>>, vector<1x64x64xf32>
    %26 = vector.shape_cast %25 : vector<1x64x64xf32> to vector<64x64xf32>
    %cst_21 = arith.constant dense<0.000000e+00> : vector<4x64xf32>
    %27 = tpu.matmul %24, %26, %cst_21 {dimension_numbers = #tpu.dot_dimension_numbers<[1], [0], [0], [1], [0, 0, 1, 1], [], []>} : vector<4x64xf32>, vector<64x64xf32>, vector<4x64xf32> -> vector<4x64xf32>
    %28 = arith.addf %23, %27 : vector<4x64xf32>
    %29 = vector.extract_strided_slice %11 {offsets = [35, 0], sizes = [4, 64], strides = [1, 1]} : vector<63x64xf32> to vector<4x64xf32>
    %c3 = arith.constant 3 : index
    %c0_22 = arith.constant 0 : index
    %c0_23 = arith.constant 0 : index
    %30 = vector.load %arg14[%c3, %c0_22, %c0_23] : memref<9x64x64xf32, #tpu.memory_space<vmem>>, vector<1x64x64xf32>
    %31 = vector.shape_cast %30 : vector<1x64x64xf32> to vector<64x64xf32>
    %cst_24 = arith.constant dense<0.000000e+00> : vector<4x64xf32>
    %32 = tpu.matmul %29, %31, %cst_24 {dimension_numbers = #tpu.dot_dimension_numbers<[1], [0], [0], [1], [0, 0, 1, 1], [], []>} : vector<4x64xf32>, vector<64x64xf32>, vector<4x64xf32> -> vector<4x64xf32>
    %33 = arith.addf %28, %32 : vector<4x64xf32>
    %34 = vector.extract_strided_slice %11 {offsets = [39, 0], sizes = [4, 64], strides = [1, 1]} : vector<63x64xf32> to vector<4x64xf32>
    %c4 = arith.constant 4 : index
    %c0_25 = arith.constant 0 : index
    %c0_26 = arith.constant 0 : index
    %35 = vector.load %arg14[%c4, %c0_25, %c0_26] : memref<9x64x64xf32, #tpu.memory_space<vmem>>, vector<1x64x64xf32>
    %36 = vector.shape_cast %35 : vector<1x64x64xf32> to vector<64x64xf32>
    %cst_27 = arith.constant dense<0.000000e+00> : vector<4x64xf32>
    %37 = tpu.matmul %34, %36, %cst_27 {dimension_numbers = #tpu.dot_dimension_numbers<[1], [0], [0], [1], [0, 0, 1, 1], [], []>} : vector<4x64xf32>, vector<64x64xf32>, vector<4x64xf32> -> vector<4x64xf32>
    %38 = arith.addf %33, %37 : vector<4x64xf32>
    %39 = vector.extract_strided_slice %11 {offsets = [43, 0], sizes = [4, 64], strides = [1, 1]} : vector<63x64xf32> to vector<4x64xf32>
    %c5 = arith.constant 5 : index
    %c0_28 = arith.constant 0 : index
    %c0_29 = arith.constant 0 : index
    %40 = vector.load %arg14[%c5, %c0_28, %c0_29] : memref<9x64x64xf32, #tpu.memory_space<vmem>>, vector<1x64x64xf32>
    %41 = vector.shape_cast %40 : vector<1x64x64xf32> to vector<64x64xf32>
    %cst_30 = arith.constant dense<0.000000e+00> : vector<4x64xf32>
    %42 = tpu.matmul %39, %41, %cst_30 {dimension_numbers = #tpu.dot_dimension_numbers<[1], [0], [0], [1], [0, 0, 1, 1], [], []>} : vector<4x64xf32>, vector<64x64xf32>, vector<4x64xf32> -> vector<4x64xf32>
    %43 = arith.addf %38, %42 : vector<4x64xf32>
    %44 = vector.extract_strided_slice %11 {offsets = [1, 0], sizes = [4, 64], strides = [1, 1]} : vector<63x64xf32> to vector<4x64xf32>
    %c6 = arith.constant 6 : index
    %c0_31 = arith.constant 0 : index
    %c0_32 = arith.constant 0 : index
    %45 = vector.load %arg14[%c6, %c0_31, %c0_32] : memref<9x64x64xf32, #tpu.memory_space<vmem>>, vector<1x64x64xf32>
    %46 = vector.shape_cast %45 : vector<1x64x64xf32> to vector<64x64xf32>
    %cst_33 = arith.constant dense<0.000000e+00> : vector<4x64xf32>
    %47 = tpu.matmul %44, %46, %cst_33 {dimension_numbers = #tpu.dot_dimension_numbers<[1], [0], [0], [1], [0, 0, 1, 1], [], []>} : vector<4x64xf32>, vector<64x64xf32>, vector<4x64xf32> -> vector<4x64xf32>
    %48 = arith.addf %43, %47 : vector<4x64xf32>
    %49 = vector.extract_strided_slice %11 {offsets = [6, 0], sizes = [4, 64], strides = [1, 1]} : vector<63x64xf32> to vector<4x64xf32>
    %c7 = arith.constant 7 : index
    %c0_34 = arith.constant 0 : index
    %c0_35 = arith.constant 0 : index
    %50 = vector.load %arg14[%c7, %c0_34, %c0_35] : memref<9x64x64xf32, #tpu.memory_space<vmem>>, vector<1x64x64xf32>
    %51 = vector.shape_cast %50 : vector<1x64x64xf32> to vector<64x64xf32>
    %cst_36 = arith.constant dense<0.000000e+00> : vector<4x64xf32>
    %52 = tpu.matmul %49, %51, %cst_36 {dimension_numbers = #tpu.dot_dimension_numbers<[1], [0], [0], [1], [0, 0, 1, 1], [], []>} : vector<4x64xf32>, vector<64x64xf32>, vector<4x64xf32> -> vector<4x64xf32>
    %53 = arith.addf %48, %52 : vector<4x64xf32>
    %54 = vector.extract_strided_slice %11 {offsets = [11, 0], sizes = [4, 64], strides = [1, 1]} : vector<63x64xf32> to vector<4x64xf32>
    %c8 = arith.constant 8 : index
    %c0_37 = arith.constant 0 : index
    %c0_38 = arith.constant 0 : index
    %55 = vector.load %arg14[%c8, %c0_37, %c0_38] : memref<9x64x64xf32, #tpu.memory_space<vmem>>, vector<1x64x64xf32>
    %56 = vector.shape_cast %55 : vector<1x64x64xf32> to vector<64x64xf32>
    %cst_39 = arith.constant dense<0.000000e+00> : vector<4x64xf32>
    %57 = tpu.matmul %54, %56, %cst_39 {dimension_numbers = #tpu.dot_dimension_numbers<[1], [0], [0], [1], [0, 0, 1, 1], [], []>} : vector<4x64xf32>, vector<64x64xf32>, vector<4x64xf32> -> vector<4x64xf32>
    %58 = arith.addf %53, %57 : vector<4x64xf32>
    %c0_40 = arith.constant 0 : index
    %c0_41 = arith.constant 0 : index
    %59 = vector.load %arg8[%c0_40, %c0_41] : memref<1x64xf32, #tpu.memory_space<vmem>>, vector<1x64xf32>
    %60 = vector.broadcast %59 : vector<1x64xf32> to vector<4x64xf32>
    %61 = arith.addf %58, %60 : vector<4x64xf32>
    %cst_42 = arith.constant 0.000000e+00 : f32
    %62 = vector.broadcast %cst_42 : f32 to vector<4x64xf32>
    %63 = arith.maximumf %61, %62 : vector<4x64xf32>
    %c0_43 = arith.constant 0 : index
    %c0_44 = arith.constant 0 : index
    %c0_45 = arith.constant 0 : index
    %64 = vector.load %arg12[%c0_43, %c0_44, %c0_45] : memref<3x64x64xf32, #tpu.memory_space<vmem>>, vector<1x64x64xf32>
    %65 = vector.shape_cast %64 : vector<1x64x64xf32> to vector<64x64xf32>
    %cst_46 = arith.constant dense<0.000000e+00> : vector<4x64xf32>
    %66 = tpu.matmul %63, %65, %cst_46 {dimension_numbers = #tpu.dot_dimension_numbers<[1], [0], [0], [1], [0, 0, 1, 1], [], []>} : vector<4x64xf32>, vector<64x64xf32>, vector<4x64xf32> -> vector<4x64xf32>
    %67 = arith.addf %12, %66 : vector<4x64xf32>
    %cst_47 = arith.constant 0.000000e+00 : f32
    %68 = vector.broadcast %cst_47 : f32 to vector<4x64xf32>
    %69 = vector.extract_strided_slice %11 {offsets = [10, 0], sizes = [4, 64], strides = [1, 1]} : vector<63x64xf32> to vector<4x64xf32>
    %c0_48 = arith.constant 0 : index
    %c0_49 = arith.constant 0 : index
    %c0_50 = arith.constant 0 : index
    %70 = vector.load %arg14[%c0_48, %c0_49, %c0_50] : memref<9x64x64xf32, #tpu.memory_space<vmem>>, vector<1x64x64xf32>
    %71 = vector.shape_cast %70 : vector<1x64x64xf32> to vector<64x64xf32>
    %cst_51 = arith.constant dense<0.000000e+00> : vector<4x64xf32>
    %72 = tpu.matmul %69, %71, %cst_51 {dimension_numbers = #tpu.dot_dimension_numbers<[1], [0], [0], [1], [0, 0, 1, 1], [], []>} : vector<4x64xf32>, vector<64x64xf32>, vector<4x64xf32> -> vector<4x64xf32>
    %73 = arith.addf %68, %72 : vector<4x64xf32>
    %74 = vector.extract_strided_slice %11 {offsets = [15, 0], sizes = [4, 64], strides = [1, 1]} : vector<63x64xf32> to vector<4x64xf32>
    %c1_52 = arith.constant 1 : index
    %c0_53 = arith.constant 0 : index
    %c0_54 = arith.constant 0 : index
    %75 = vector.load %arg14[%c1_52, %c0_53, %c0_54] : memref<9x64x64xf32, #tpu.memory_space<vmem>>, vector<1x64x64xf32>
    %76 = vector.shape_cast %75 : vector<1x64x64xf32> to vector<64x64xf32>
    %cst_55 = arith.constant dense<0.000000e+00> : vector<4x64xf32>
    %77 = tpu.matmul %74, %76, %cst_55 {dimension_numbers = #tpu.dot_dimension_numbers<[1], [0], [0], [1], [0, 0, 1, 1], [], []>} : vector<4x64xf32>, vector<64x64xf32>, vector<4x64xf32> -> vector<4x64xf32>
    %78 = arith.addf %73, %77 : vector<4x64xf32>
    %79 = vector.extract_strided_slice %11 {offsets = [20, 0], sizes = [4, 64], strides = [1, 1]} : vector<63x64xf32> to vector<4x64xf32>
    %c2_56 = arith.constant 2 : index
    %c0_57 = arith.constant 0 : index
    %c0_58 = arith.constant 0 : index
    %80 = vector.load %arg14[%c2_56, %c0_57, %c0_58] : memref<9x64x64xf32, #tpu.memory_space<vmem>>, vector<1x64x64xf32>
    %81 = vector.shape_cast %80 : vector<1x64x64xf32> to vector<64x64xf32>
    %cst_59 = arith.constant dense<0.000000e+00> : vector<4x64xf32>
    %82 = tpu.matmul %79, %81, %cst_59 {dimension_numbers = #tpu.dot_dimension_numbers<[1], [0], [0], [1], [0, 0, 1, 1], [], []>} : vector<4x64xf32>, vector<64x64xf32>, vector<4x64xf32> -> vector<4x64xf32>
    %83 = arith.addf %78, %82 : vector<4x64xf32>
    %84 = vector.extract_strided_slice %11 {offsets = [43, 0], sizes = [4, 64], strides = [1, 1]} : vector<63x64xf32> to vector<4x64xf32>
    %c3_60 = arith.constant 3 : index
    %c0_61 = arith.constant 0 : index
    %c0_62 = arith.constant 0 : index
    %85 = vector.load %arg14[%c3_60, %c0_61, %c0_62] : memref<9x64x64xf32, #tpu.memory_space<vmem>>, vector<1x64x64xf32>
    %86 = vector.shape_cast %85 : vector<1x64x64xf32> to vector<64x64xf32>
    %cst_63 = arith.constant dense<0.000000e+00> : vector<4x64xf32>
    %87 = tpu.matmul %84, %86, %cst_63 {dimension_numbers = #tpu.dot_dimension_numbers<[1], [0], [0], [1], [0, 0, 1, 1], [], []>} : vector<4x64xf32>, vector<64x64xf32>, vector<4x64xf32> -> vector<4x64xf32>
    %88 = arith.addf %83, %87 : vector<4x64xf32>
    %89 = vector.extract_strided_slice %11 {offsets = [47, 0], sizes = [4, 64], strides = [1, 1]} : vector<63x64xf32> to vector<4x64xf32>
    %c4_64 = arith.constant 4 : index
    %c0_65 = arith.constant 0 : index
    %c0_66 = arith.constant 0 : index
    %90 = vector.load %arg14[%c4_64, %c0_65, %c0_66] : memref<9x64x64xf32, #tpu.memory_space<vmem>>, vector<1x64x64xf32>
    %91 = vector.shape_cast %90 : vector<1x64x64xf32> to vector<64x64xf32>
    %cst_67 = arith.constant dense<0.000000e+00> : vector<4x64xf32>
    %92 = tpu.matmul %89, %91, %cst_67 {dimension_numbers = #tpu.dot_dimension_numbers<[1], [0], [0], [1], [0, 0, 1, 1], [], []>} : vector<4x64xf32>, vector<64x64xf32>, vector<4x64xf32> -> vector<4x64xf32>
    %93 = arith.addf %88, %92 : vector<4x64xf32>
    %94 = vector.extract_strided_slice %11 {offsets = [51, 0], sizes = [4, 64], strides = [1, 1]} : vector<63x64xf32> to vector<4x64xf32>
    %c5_68 = arith.constant 5 : index
    %c0_69 = arith.constant 0 : index
    %c0_70 = arith.constant 0 : index
    %95 = vector.load %arg14[%c5_68, %c0_69, %c0_70] : memref<9x64x64xf32, #tpu.memory_space<vmem>>, vector<1x64x64xf32>
    %96 = vector.shape_cast %95 : vector<1x64x64xf32> to vector<64x64xf32>
    %cst_71 = arith.constant dense<0.000000e+00> : vector<4x64xf32>
    %97 = tpu.matmul %94, %96, %cst_71 {dimension_numbers = #tpu.dot_dimension_numbers<[1], [0], [0], [1], [0, 0, 1, 1], [], []>} : vector<4x64xf32>, vector<64x64xf32>, vector<4x64xf32> -> vector<4x64xf32>
    %98 = arith.addf %93, %97 : vector<4x64xf32>
    %99 = vector.extract_strided_slice %11 {offsets = [11, 0], sizes = [4, 64], strides = [1, 1]} : vector<63x64xf32> to vector<4x64xf32>
    %c6_72 = arith.constant 6 : index
    %c0_73 = arith.constant 0 : index
    %c0_74 = arith.constant 0 : index
    %100 = vector.load %arg14[%c6_72, %c0_73, %c0_74] : memref<9x64x64xf32, #tpu.memory_space<vmem>>, vector<1x64x64xf32>
    %101 = vector.shape_cast %100 : vector<1x64x64xf32> to vector<64x64xf32>
    %cst_75 = arith.constant dense<0.000000e+00> : vector<4x64xf32>
    %102 = tpu.matmul %99, %101, %cst_75 {dimension_numbers = #tpu.dot_dimension_numbers<[1], [0], [0], [1], [0, 0, 1, 1], [], []>} : vector<4x64xf32>, vector<64x64xf32>, vector<4x64xf32> -> vector<4x64xf32>
    %103 = arith.addf %98, %102 : vector<4x64xf32>
    %104 = vector.extract_strided_slice %11 {offsets = [16, 0], sizes = [4, 64], strides = [1, 1]} : vector<63x64xf32> to vector<4x64xf32>
    %c7_76 = arith.constant 7 : index
    %c0_77 = arith.constant 0 : index
    %c0_78 = arith.constant 0 : index
    %105 = vector.load %arg14[%c7_76, %c0_77, %c0_78] : memref<9x64x64xf32, #tpu.memory_space<vmem>>, vector<1x64x64xf32>
    %106 = vector.shape_cast %105 : vector<1x64x64xf32> to vector<64x64xf32>
    %cst_79 = arith.constant dense<0.000000e+00> : vector<4x64xf32>
    %107 = tpu.matmul %104, %106, %cst_79 {dimension_numbers = #tpu.dot_dimension_numbers<[1], [0], [0], [1], [0, 0, 1, 1], [], []>} : vector<4x64xf32>, vector<64x64xf32>, vector<4x64xf32> -> vector<4x64xf32>
    %108 = arith.addf %103, %107 : vector<4x64xf32>
    %109 = vector.extract_strided_slice %11 {offsets = [21, 0], sizes = [4, 64], strides = [1, 1]} : vector<63x64xf32> to vector<4x64xf32>
    %c8_80 = arith.constant 8 : index
    %c0_81 = arith.constant 0 : index
    %c0_82 = arith.constant 0 : index
    %110 = vector.load %arg14[%c8_80, %c0_81, %c0_82] : memref<9x64x64xf32, #tpu.memory_space<vmem>>, vector<1x64x64xf32>
    %111 = vector.shape_cast %110 : vector<1x64x64xf32> to vector<64x64xf32>
    %cst_83 = arith.constant dense<0.000000e+00> : vector<4x64xf32>
    %112 = tpu.matmul %109, %111, %cst_83 {dimension_numbers = #tpu.dot_dimension_numbers<[1], [0], [0], [1], [0, 0, 1, 1], [], []>} : vector<4x64xf32>, vector<64x64xf32>, vector<4x64xf32> -> vector<4x64xf32>
    %113 = arith.addf %108, %112 : vector<4x64xf32>
    %c0_84 = arith.constant 0 : index
    %c0_85 = arith.constant 0 : index
    %114 = vector.load %arg8[%c0_84, %c0_85] : memref<1x64xf32, #tpu.memory_space<vmem>>, vector<1x64xf32>
    %115 = vector.broadcast %114 : vector<1x64xf32> to vector<4x64xf32>
    %116 = arith.addf %113, %115 : vector<4x64xf32>
    %cst_86 = arith.constant 0.000000e+00 : f32
    %117 = vector.broadcast %cst_86 : f32 to vector<4x64xf32>
    %118 = arith.maximumf %116, %117 : vector<4x64xf32>
    %c1_87 = arith.constant 1 : index
    %c0_88 = arith.constant 0 : index
    %c0_89 = arith.constant 0 : index
    %119 = vector.load %arg12[%c1_87, %c0_88, %c0_89] : memref<3x64x64xf32, #tpu.memory_space<vmem>>, vector<1x64x64xf32>
    %120 = vector.shape_cast %119 : vector<1x64x64xf32> to vector<64x64xf32>
    %cst_90 = arith.constant dense<0.000000e+00> : vector<4x64xf32>
    %121 = tpu.matmul %118, %120, %cst_90 {dimension_numbers = #tpu.dot_dimension_numbers<[1], [0], [0], [1], [0, 0, 1, 1], [], []>} : vector<4x64xf32>, vector<64x64xf32>, vector<4x64xf32> -> vector<4x64xf32>
    %122 = arith.addf %67, %121 : vector<4x64xf32>
    %cst_91 = arith.constant 0.000000e+00 : f32
    %123 = vector.broadcast %cst_91 : f32 to vector<4x64xf32>
    %124 = vector.extract_strided_slice %11 {offsets = [20, 0], sizes = [4, 64], strides = [1, 1]} : vector<63x64xf32> to vector<4x64xf32>
    %c0_92 = arith.constant 0 : index
    %c0_93 = arith.constant 0 : index
    %c0_94 = arith.constant 0 : index
    %125 = vector.load %arg14[%c0_92, %c0_93, %c0_94] : memref<9x64x64xf32, #tpu.memory_space<vmem>>, vector<1x64x64xf32>
    %126 = vector.shape_cast %125 : vector<1x64x64xf32> to vector<64x64xf32>
    %cst_95 = arith.constant dense<0.000000e+00> : vector<4x64xf32>
    %127 = tpu.matmul %124, %126, %cst_95 {dimension_numbers = #tpu.dot_dimension_numbers<[1], [0], [0], [1], [0, 0, 1, 1], [], []>} : vector<4x64xf32>, vector<64x64xf32>, vector<4x64xf32> -> vector<4x64xf32>
    %128 = arith.addf %123, %127 : vector<4x64xf32>
    %129 = vector.extract_strided_slice %11 {offsets = [25, 0], sizes = [4, 64], strides = [1, 1]} : vector<63x64xf32> to vector<4x64xf32>
    %c1_96 = arith.constant 1 : index
    %c0_97 = arith.constant 0 : index
    %c0_98 = arith.constant 0 : index
    %130 = vector.load %arg14[%c1_96, %c0_97, %c0_98] : memref<9x64x64xf32, #tpu.memory_space<vmem>>, vector<1x64x64xf32>
    %131 = vector.shape_cast %130 : vector<1x64x64xf32> to vector<64x64xf32>
    %cst_99 = arith.constant dense<0.000000e+00> : vector<4x64xf32>
    %132 = tpu.matmul %129, %131, %cst_99 {dimension_numbers = #tpu.dot_dimension_numbers<[1], [0], [0], [1], [0, 0, 1, 1], [], []>} : vector<4x64xf32>, vector<64x64xf32>, vector<4x64xf32> -> vector<4x64xf32>
    %133 = arith.addf %128, %132 : vector<4x64xf32>
    %134 = vector.extract_strided_slice %11 {offsets = [30, 0], sizes = [4, 64], strides = [1, 1]} : vector<63x64xf32> to vector<4x64xf32>
    %c2_100 = arith.constant 2 : index
    %c0_101 = arith.constant 0 : index
    %c0_102 = arith.constant 0 : index
    %135 = vector.load %arg14[%c2_100, %c0_101, %c0_102] : memref<9x64x64xf32, #tpu.memory_space<vmem>>, vector<1x64x64xf32>
    %136 = vector.shape_cast %135 : vector<1x64x64xf32> to vector<64x64xf32>
    %cst_103 = arith.constant dense<0.000000e+00> : vector<4x64xf32>
    %137 = tpu.matmul %134, %136, %cst_103 {dimension_numbers = #tpu.dot_dimension_numbers<[1], [0], [0], [1], [0, 0, 1, 1], [], []>} : vector<4x64xf32>, vector<64x64xf32>, vector<4x64xf32> -> vector<4x64xf32>
    %138 = arith.addf %133, %137 : vector<4x64xf32>
    %139 = vector.extract_strided_slice %11 {offsets = [51, 0], sizes = [4, 64], strides = [1, 1]} : vector<63x64xf32> to vector<4x64xf32>
    %c3_104 = arith.constant 3 : index
    %c0_105 = arith.constant 0 : index
    %c0_106 = arith.constant 0 : index
    %140 = vector.load %arg14[%c3_104, %c0_105, %c0_106] : memref<9x64x64xf32, #tpu.memory_space<vmem>>, vector<1x64x64xf32>
    %141 = vector.shape_cast %140 : vector<1x64x64xf32> to vector<64x64xf32>
    %cst_107 = arith.constant dense<0.000000e+00> : vector<4x64xf32>
    %142 = tpu.matmul %139, %141, %cst_107 {dimension_numbers = #tpu.dot_dimension_numbers<[1], [0], [0], [1], [0, 0, 1, 1], [], []>} : vector<4x64xf32>, vector<64x64xf32>, vector<4x64xf32> -> vector<4x64xf32>
    %143 = arith.addf %138, %142 : vector<4x64xf32>
    %144 = vector.extract_strided_slice %11 {offsets = [55, 0], sizes = [4, 64], strides = [1, 1]} : vector<63x64xf32> to vector<4x64xf32>
    %c4_108 = arith.constant 4 : index
    %c0_109 = arith.constant 0 : index
    %c0_110 = arith.constant 0 : index
    %145 = vector.load %arg14[%c4_108, %c0_109, %c0_110] : memref<9x64x64xf32, #tpu.memory_space<vmem>>, vector<1x64x64xf32>
    %146 = vector.shape_cast %145 : vector<1x64x64xf32> to vector<64x64xf32>
    %cst_111 = arith.constant dense<0.000000e+00> : vector<4x64xf32>
    %147 = tpu.matmul %144, %146, %cst_111 {dimension_numbers = #tpu.dot_dimension_numbers<[1], [0], [0], [1], [0, 0, 1, 1], [], []>} : vector<4x64xf32>, vector<64x64xf32>, vector<4x64xf32> -> vector<4x64xf32>
    %148 = arith.addf %143, %147 : vector<4x64xf32>
    %149 = vector.extract_strided_slice %11 {offsets = [59, 0], sizes = [4, 64], strides = [1, 1]} : vector<63x64xf32> to vector<4x64xf32>
    %c5_112 = arith.constant 5 : index
    %c0_113 = arith.constant 0 : index
    %c0_114 = arith.constant 0 : index
    %150 = vector.load %arg14[%c5_112, %c0_113, %c0_114] : memref<9x64x64xf32, #tpu.memory_space<vmem>>, vector<1x64x64xf32>
    %151 = vector.shape_cast %150 : vector<1x64x64xf32> to vector<64x64xf32>
    %cst_115 = arith.constant dense<0.000000e+00> : vector<4x64xf32>
    %152 = tpu.matmul %149, %151, %cst_115 {dimension_numbers = #tpu.dot_dimension_numbers<[1], [0], [0], [1], [0, 0, 1, 1], [], []>} : vector<4x64xf32>, vector<64x64xf32>, vector<4x64xf32> -> vector<4x64xf32>
    %153 = arith.addf %148, %152 : vector<4x64xf32>
    %154 = vector.extract_strided_slice %11 {offsets = [21, 0], sizes = [4, 64], strides = [1, 1]} : vector<63x64xf32> to vector<4x64xf32>
    %c6_116 = arith.constant 6 : index
    %c0_117 = arith.constant 0 : index
    %c0_118 = arith.constant 0 : index
    %155 = vector.load %arg14[%c6_116, %c0_117, %c0_118] : memref<9x64x64xf32, #tpu.memory_space<vmem>>, vector<1x64x64xf32>
    %156 = vector.shape_cast %155 : vector<1x64x64xf32> to vector<64x64xf32>
    %cst_119 = arith.constant dense<0.000000e+00> : vector<4x64xf32>
    %157 = tpu.matmul %154, %156, %cst_119 {dimension_numbers = #tpu.dot_dimension_numbers<[1], [0], [0], [1], [0, 0, 1, 1], [], []>} : vector<4x64xf32>, vector<64x64xf32>, vector<4x64xf32> -> vector<4x64xf32>
    %158 = arith.addf %153, %157 : vector<4x64xf32>
    %159 = vector.extract_strided_slice %11 {offsets = [26, 0], sizes = [4, 64], strides = [1, 1]} : vector<63x64xf32> to vector<4x64xf32>
    %c7_120 = arith.constant 7 : index
    %c0_121 = arith.constant 0 : index
    %c0_122 = arith.constant 0 : index
    %160 = vector.load %arg14[%c7_120, %c0_121, %c0_122] : memref<9x64x64xf32, #tpu.memory_space<vmem>>, vector<1x64x64xf32>
    %161 = vector.shape_cast %160 : vector<1x64x64xf32> to vector<64x64xf32>
    %cst_123 = arith.constant dense<0.000000e+00> : vector<4x64xf32>
    %162 = tpu.matmul %159, %161, %cst_123 {dimension_numbers = #tpu.dot_dimension_numbers<[1], [0], [0], [1], [0, 0, 1, 1], [], []>} : vector<4x64xf32>, vector<64x64xf32>, vector<4x64xf32> -> vector<4x64xf32>
    %163 = arith.addf %158, %162 : vector<4x64xf32>
    %164 = vector.extract_strided_slice %11 {offsets = [31, 0], sizes = [4, 64], strides = [1, 1]} : vector<63x64xf32> to vector<4x64xf32>
    %c8_124 = arith.constant 8 : index
    %c0_125 = arith.constant 0 : index
    %c0_126 = arith.constant 0 : index
    %165 = vector.load %arg14[%c8_124, %c0_125, %c0_126] : memref<9x64x64xf32, #tpu.memory_space<vmem>>, vector<1x64x64xf32>
    %166 = vector.shape_cast %165 : vector<1x64x64xf32> to vector<64x64xf32>
    %cst_127 = arith.constant dense<0.000000e+00> : vector<4x64xf32>
    %167 = tpu.matmul %164, %166, %cst_127 {dimension_numbers = #tpu.dot_dimension_numbers<[1], [0], [0], [1], [0, 0, 1, 1], [], []>} : vector<4x64xf32>, vector<64x64xf32>, vector<4x64xf32> -> vector<4x64xf32>
    %168 = arith.addf %163, %167 : vector<4x64xf32>
    %c0_128 = arith.constant 0 : index
    %c0_129 = arith.constant 0 : index
    %169 = vector.load %arg8[%c0_128, %c0_129] : memref<1x64xf32, #tpu.memory_space<vmem>>, vector<1x64xf32>
    %170 = vector.broadcast %169 : vector<1x64xf32> to vector<4x64xf32>
    %171 = arith.addf %168, %170 : vector<4x64xf32>
    %cst_130 = arith.constant 0.000000e+00 : f32
    %172 = vector.broadcast %cst_130 : f32 to vector<4x64xf32>
    %173 = arith.maximumf %171, %172 : vector<4x64xf32>
    %c2_131 = arith.constant 2 : index
    %c0_132 = arith.constant 0 : index
    %c0_133 = arith.constant 0 : index
    %174 = vector.load %arg12[%c2_131, %c0_132, %c0_133] : memref<3x64x64xf32, #tpu.memory_space<vmem>>, vector<1x64x64xf32>
    %175 = vector.shape_cast %174 : vector<1x64x64xf32> to vector<64x64xf32>
    %cst_134 = arith.constant dense<0.000000e+00> : vector<4x64xf32>
    %176 = tpu.matmul %173, %175, %cst_134 {dimension_numbers = #tpu.dot_dimension_numbers<[1], [0], [0], [1], [0, 0, 1, 1], [], []>} : vector<4x64xf32>, vector<64x64xf32>, vector<4x64xf32> -> vector<4x64xf32>
    %177 = arith.addf %122, %176 : vector<4x64xf32>
    %c0_135 = arith.constant 0 : index
    %c0_136 = arith.constant 0 : index
    %178 = vector.load %arg11[%c0_135, %c0_136] : memref<1x64xf32, #tpu.memory_space<vmem>>, vector<1x64xf32>
    %179 = vector.broadcast %178 : vector<1x64xf32> to vector<4x64xf32>
    %180 = arith.addf %177, %179 : vector<4x64xf32>
    %cst_137 = arith.constant 8.000000e+00 : f32
    %181 = vector.broadcast %cst_137 : f32 to vector<4x64xf32>
    %182 = arith.mulf %180, %181 : vector<4x64xf32>
    %c0_138 = arith.constant 0 : index
    %c0_139 = arith.constant 0 : index
    %c0_140 = arith.constant 0 : index
    %183 = vector.load %arg36[%c0_138, %c0_139, %c0_140] : memref<2x1x64xf32, #tpu.memory_space<vmem>>, vector<1x1x64xf32>
    %184 = vector.shape_cast %183 : vector<1x1x64xf32> to vector<1x64xf32>
    %c0_141 = arith.constant 0 : index
    %c0_142 = arith.constant 0 : index
    %c0_143 = arith.constant 0 : index
    %185 = vector.load %arg35[%c0_141, %c0_142, %c0_143] : memref<2x1x64xf32, #tpu.memory_space<vmem>>, vector<1x1x64xf32>
    %186 = vector.shape_cast %185 : vector<1x1x64xf32> to vector<1x64xf32>
    %cst_144 = arith.constant dense<0.000000e+00> : vector<4xf32>
    %187 = vector.multi_reduction <add>, %182, %cst_144 [1] : vector<4x64xf32> to vector<4xf32>
    %188 = vector.shape_cast %187 : vector<4xf32> to vector<4x1xf32>
    %cst_145 = arith.constant 6.400000e+01 : f32
    %189 = vector.broadcast %cst_145 : f32 to vector<4x1xf32>
    %190 = arith.divf %188, %189 : vector<4x1xf32>
    %191 = vector.broadcast %190 : vector<4x1xf32> to vector<4x64xf32>
    %192 = arith.subf %182, %191 : vector<4x64xf32>
    %193 = arith.mulf %192, %192 : vector<4x64xf32>
    %cst_146 = arith.constant dense<0.000000e+00> : vector<4xf32>
    %194 = vector.multi_reduction <add>, %193, %cst_146 [1] : vector<4x64xf32> to vector<4xf32>
    %195 = vector.shape_cast %194 : vector<4xf32> to vector<4x1xf32>
    %cst_147 = arith.constant 6.400000e+01 : f32
    %196 = vector.broadcast %cst_147 : f32 to vector<4x1xf32>
    %197 = arith.divf %195, %196 : vector<4x1xf32>
    %cst_148 = arith.constant 9.99999974E-6 : f32
    %198 = vector.broadcast %cst_148 : f32 to vector<4x1xf32>
    %199 = arith.addf %197, %198 : vector<4x1xf32>
    %200 = math.rsqrt %199 : vector<4x1xf32>
    %201 = vector.broadcast %200 : vector<4x1xf32> to vector<4x64xf32>
    %202 = arith.mulf %192, %201 : vector<4x64xf32>
    %203 = vector.broadcast %184 : vector<1x64xf32> to vector<4x64xf32>
    %204 = arith.mulf %202, %203 : vector<4x64xf32>
    %205 = vector.broadcast %186 : vector<1x64xf32> to vector<4x64xf32>
    %206 = arith.addf %204, %205 : vector<4x64xf32>
    %c0_149 = arith.constant 0 : index
    %c0_150 = arith.constant 0 : index
    %c0_151 = arith.constant 0 : index
    %207 = vector.load %arg29[%c0_149, %c0_150, %c0_151] : memref<2x64x128xf32, #tpu.memory_space<vmem>>, vector<1x64x128xf32>
    %208 = vector.shape_cast %207 : vector<1x64x128xf32> to vector<64x128xf32>
    %cst_152 = arith.constant dense<0.000000e+00> : vector<4x128xf32>
    %209 = tpu.matmul %206, %208, %cst_152 {dimension_numbers = #tpu.dot_dimension_numbers<[1], [0], [0], [1], [0, 0, 1, 1], [], []>} : vector<4x64xf32>, vector<64x128xf32>, vector<4x128xf32> -> vector<4x128xf32>
    %c0_153 = arith.constant 0 : index
    %c0_154 = arith.constant 0 : index
    %c0_155 = arith.constant 0 : index
    %210 = vector.load %arg27[%c0_153, %c0_154, %c0_155] : memref<2x1x128xf32, #tpu.memory_space<vmem>>, vector<1x1x128xf32>
    %211 = vector.shape_cast %210 : vector<1x1x128xf32> to vector<1x128xf32>
    %212 = vector.broadcast %211 : vector<1x128xf32> to vector<4x128xf32>
    %213 = arith.addf %209, %212 : vector<4x128xf32>
    %214 = arith.negf %213 : vector<4x128xf32>
    %215 = math.exp %214 : vector<4x128xf32>
    %cst_156 = arith.constant 1.000000e+00 : f32
    %216 = vector.broadcast %cst_156 : f32 to vector<4x128xf32>
    %217 = arith.addf %216, %215 : vector<4x128xf32>
    %218 = arith.divf %216, %217 : vector<4x128xf32>
    %219 = arith.mulf %213, %218 : vector<4x128xf32>
    %c0_157 = arith.constant 0 : index
    %c0_158 = arith.constant 0 : index
    %c0_159 = arith.constant 0 : index
    %220 = vector.load %arg30[%c0_157, %c0_158, %c0_159] : memref<2x128x64xf32, #tpu.memory_space<vmem>>, vector<1x128x64xf32>
    %221 = vector.shape_cast %220 : vector<1x128x64xf32> to vector<128x64xf32>
    %cst_160 = arith.constant dense<0.000000e+00> : vector<4x64xf32>
    %222 = tpu.matmul %219, %221, %cst_160 {dimension_numbers = #tpu.dot_dimension_numbers<[1], [0], [0], [1], [0, 0, 1, 1], [], []>} : vector<4x128xf32>, vector<128x64xf32>, vector<4x64xf32> -> vector<4x64xf32>
    %c0_161 = arith.constant 0 : index
    %c0_162 = arith.constant 0 : index
    %c0_163 = arith.constant 0 : index
    %223 = vector.load %arg28[%c0_161, %c0_162, %c0_163] : memref<2x1x64xf32, #tpu.memory_space<vmem>>, vector<1x1x64xf32>
    %224 = vector.shape_cast %223 : vector<1x1x64xf32> to vector<1x64xf32>
    %225 = vector.broadcast %224 : vector<1x64xf32> to vector<4x64xf32>
    %226 = arith.addf %222, %225 : vector<4x64xf32>
    %cst_164 = arith.constant 5.000000e-01 : f32
    %227 = vector.broadcast %cst_164 : f32 to vector<4x64xf32>
    %228 = arith.mulf %227, %226 : vector<4x64xf32>
    %229 = arith.addf %182, %228 : vector<4x64xf32>
    %c0_165 = arith.constant 0 : index
    %c0_166 = arith.constant 0 : index
    %c0_167 = arith.constant 0 : index
    %230 = vector.load %arg40[%c0_165, %c0_166, %c0_167] : memref<2x1x64xf32, #tpu.memory_space<vmem>>, vector<1x1x64xf32>
    %231 = vector.shape_cast %230 : vector<1x1x64xf32> to vector<1x64xf32>
    %c0_168 = arith.constant 0 : index
    %c0_169 = arith.constant 0 : index
    %c0_170 = arith.constant 0 : index
    %232 = vector.load %arg39[%c0_168, %c0_169, %c0_170] : memref<2x1x64xf32, #tpu.memory_space<vmem>>, vector<1x1x64xf32>
    %233 = vector.shape_cast %232 : vector<1x1x64xf32> to vector<1x64xf32>
    %cst_171 = arith.constant dense<0.000000e+00> : vector<4xf32>
    %234 = vector.multi_reduction <add>, %229, %cst_171 [1] : vector<4x64xf32> to vector<4xf32>
    %235 = vector.shape_cast %234 : vector<4xf32> to vector<4x1xf32>
    %cst_172 = arith.constant 6.400000e+01 : f32
    %236 = vector.broadcast %cst_172 : f32 to vector<4x1xf32>
    %237 = arith.divf %235, %236 : vector<4x1xf32>
    %238 = vector.broadcast %237 : vector<4x1xf32> to vector<4x64xf32>
    %239 = arith.subf %229, %238 : vector<4x64xf32>
    %240 = arith.mulf %239, %239 : vector<4x64xf32>
    %cst_173 = arith.constant dense<0.000000e+00> : vector<4xf32>
    %241 = vector.multi_reduction <add>, %240, %cst_173 [1] : vector<4x64xf32> to vector<4xf32>
    %242 = vector.shape_cast %241 : vector<4xf32> to vector<4x1xf32>
    %cst_174 = arith.constant 6.400000e+01 : f32
    %243 = vector.broadcast %cst_174 : f32 to vector<4x1xf32>
    %244 = arith.divf %242, %243 : vector<4x1xf32>
    %cst_175 = arith.constant 9.99999974E-6 : f32
    %245 = vector.broadcast %cst_175 : f32 to vector<4x1xf32>
    %246 = arith.addf %244, %245 : vector<4x1xf32>
    %247 = math.rsqrt %246 : vector<4x1xf32>
    %248 = vector.broadcast %247 : vector<4x1xf32> to vector<4x64xf32>
    %249 = arith.mulf %239, %248 : vector<4x64xf32>
    %250 = vector.broadcast %231 : vector<1x64xf32> to vector<4x64xf32>
    %251 = arith.mulf %249, %250 : vector<4x64xf32>
    %252 = vector.broadcast %233 : vector<1x64xf32> to vector<4x64xf32>
    %253 = arith.addf %251, %252 : vector<4x64xf32>
    %c0_176 = arith.constant 0 : index
    %c0_177 = arith.constant 0 : index
    %c0_178 = arith.constant 0 : index
    %254 = vector.load %arg50[%c0_176, %c0_177, %c0_178] : memref<2x64x64xf32, #tpu.memory_space<vmem>>, vector<1x64x64xf32>
    %255 = vector.shape_cast %254 : vector<1x64x64xf32> to vector<64x64xf32>
    %cst_179 = arith.constant dense<0.000000e+00> : vector<4x64xf32>
    %256 = tpu.matmul %253, %255, %cst_179 {dimension_numbers = #tpu.dot_dimension_numbers<[1], [0], [0], [1], [0, 0, 1, 1], [], []>} : vector<4x64xf32>, vector<64x64xf32>, vector<4x64xf32> -> vector<4x64xf32>
    %c0_180 = arith.constant 0 : index
    %c0_181 = arith.constant 0 : index
    %c0_182 = arith.constant 0 : index
    %257 = vector.load %arg19[%c0_180, %c0_181, %c0_182] : memref<2x1x64xf32, #tpu.memory_space<vmem>>, vector<1x1x64xf32>
    %258 = vector.shape_cast %257 : vector<1x1x64xf32> to vector<1x64xf32>
    %259 = vector.broadcast %258 : vector<1x64xf32> to vector<4x64xf32>
    %260 = arith.addf %256, %259 : vector<4x64xf32>
    %c0_183 = arith.constant 0 : index
    %c0_184 = arith.constant 0 : index
    %c0_185 = arith.constant 0 : index
    %261 = vector.load %arg47[%c0_183, %c0_184, %c0_185] : memref<2x64x64xf32, #tpu.memory_space<vmem>>, vector<1x64x64xf32>
    %262 = vector.shape_cast %261 : vector<1x64x64xf32> to vector<64x64xf32>
    %cst_186 = arith.constant dense<0.000000e+00> : vector<4x64xf32>
    %263 = tpu.matmul %253, %262, %cst_186 {dimension_numbers = #tpu.dot_dimension_numbers<[1], [0], [0], [1], [0, 0, 1, 1], [], []>} : vector<4x64xf32>, vector<64x64xf32>, vector<4x64xf32> -> vector<4x64xf32>
    %c0_187 = arith.constant 0 : index
    %c0_188 = arith.constant 0 : index
    %c0_189 = arith.constant 0 : index
    %264 = vector.load %arg15[%c0_187, %c0_188, %c0_189] : memref<2x1x64xf32, #tpu.memory_space<vmem>>, vector<1x1x64xf32>
    %265 = vector.shape_cast %264 : vector<1x1x64xf32> to vector<1x64xf32>
    %266 = vector.broadcast %265 : vector<1x64xf32> to vector<4x64xf32>
    %267 = arith.addf %263, %266 : vector<4x64xf32>
    %c0_190 = arith.constant 0 : index
    %c0_191 = arith.constant 0 : index
    %c0_192 = arith.constant 0 : index
    %268 = vector.load %arg51[%c0_190, %c0_191, %c0_192] : memref<2x64x64xf32, #tpu.memory_space<vmem>>, vector<1x64x64xf32>
    %269 = vector.shape_cast %268 : vector<1x64x64xf32> to vector<64x64xf32>
    %cst_193 = arith.constant dense<0.000000e+00> : vector<4x64xf32>
    %270 = tpu.matmul %253, %269, %cst_193 {dimension_numbers = #tpu.dot_dimension_numbers<[1], [0], [0], [1], [0, 0, 1, 1], [], []>} : vector<4x64xf32>, vector<64x64xf32>, vector<4x64xf32> -> vector<4x64xf32>
    %c0_194 = arith.constant 0 : index
    %c0_195 = arith.constant 0 : index
    %c0_196 = arith.constant 0 : index
    %271 = vector.load %arg20[%c0_194, %c0_195, %c0_196] : memref<2x1x64xf32, #tpu.memory_space<vmem>>, vector<1x1x64xf32>
    %272 = vector.shape_cast %271 : vector<1x1x64xf32> to vector<1x64xf32>
    %273 = vector.broadcast %272 : vector<1x64xf32> to vector<4x64xf32>
    %274 = arith.addf %270, %273 : vector<4x64xf32>
    %c0_197 = arith.constant 0 : index
    %c0_198 = arith.constant 0 : index
    %c0_199 = arith.constant 0 : index
    %275 = vector.load %arg49[%c0_197, %c0_198, %c0_199] : memref<2x64x64xf32, #tpu.memory_space<vmem>>, vector<1x64x64xf32>
    %276 = vector.shape_cast %275 : vector<1x64x64xf32> to vector<64x64xf32>
    %cst_200 = arith.constant dense<0.000000e+00> : vector<20x64xf32>
    %277 = tpu.matmul %3, %276, %cst_200 {dimension_numbers = #tpu.dot_dimension_numbers<[1], [0], [0], [1], [0, 0, 1, 1], [], []>} : vector<20x64xf32>, vector<64x64xf32>, vector<20x64xf32> -> vector<20x64xf32>
    %c0_201 = arith.constant 0 : index
    %c0_202 = arith.constant 0 : index
    %c0_203 = arith.constant 0 : index
    %c0_204 = arith.constant 0 : index
    %278 = vector.load %arg0[%c0_201, %c0_202, %c0_203, %c0_204] : memref<2x4x16x32xf32, #tpu.memory_space<vmem>>, vector<1x4x16x32xf32>
    %279 = vector.shape_cast %278 : vector<1x4x16x32xf32> to vector<4x16x32xf32>
    %c0_205 = arith.constant 0 : index
    %c0_206 = arith.constant 0 : index
    %c0_207 = arith.constant 0 : index
    %280 = vector.load %arg41[%c0_205, %c0_206, %c0_207] : memref<2x4x16xf32, #tpu.memory_space<vmem>>, vector<1x4x16xf32>
    %281 = vector.shape_cast %280 : vector<1x4x16xf32> to vector<4x16xf32>
    %c0_208 = arith.constant 0 : index
    %c0_209 = arith.constant 0 : index
    %c0_210 = arith.constant 0 : index
    %282 = vector.load %arg42[%c0_208, %c0_209, %c0_210] : memref<2x4x16xf32, #tpu.memory_space<vmem>>, vector<1x4x16xf32>
    %283 = vector.shape_cast %282 : vector<1x4x16xf32> to vector<4x16xf32>
    %284 = vector.extract_strided_slice %260 {offsets = [0, 0], sizes = [4, 16], strides = [1, 1]} : vector<4x64xf32> to vector<4x16xf32>
    %285 = vector.extract_strided_slice %279 {offsets = [0, 0, 0], sizes = [1, 16, 16], strides = [1, 1, 1]} : vector<4x16x32xf32> to vector<1x16x16xf32>
    %286 = vector.shape_cast %285 : vector<1x16x16xf32> to vector<16x16xf32>
    %287 = vector.extract_strided_slice %267 {offsets = [0, 0], sizes = [4, 16], strides = [1, 1]} : vector<4x64xf32> to vector<4x16xf32>
    %288 = tpu.concatenate %286, %287 in 0 : vector<16x16xf32>, vector<4x16xf32> -> vector<20x16xf32>
    %289 = vector.extract_strided_slice %279 {offsets = [0, 0, 16], sizes = [1, 16, 16], strides = [1, 1, 1]} : vector<4x16x32xf32> to vector<1x16x16xf32>
    %290 = vector.shape_cast %289 : vector<1x16x16xf32> to vector<16x16xf32>
    %291 = vector.extract_strided_slice %274 {offsets = [0, 0], sizes = [4, 16], strides = [1, 1]} : vector<4x64xf32> to vector<4x16xf32>
    %292 = tpu.concatenate %290, %291 in 0 : vector<16x16xf32>, vector<4x16xf32> -> vector<20x16xf32>
    %293 = vector.extract_strided_slice %281 {offsets = [0, 0], sizes = [1, 16], strides = [1, 1]} : vector<4x16xf32> to vector<1x16xf32>
    %294 = vector.broadcast %293 : vector<1x16xf32> to vector<4x16xf32>
    %295 = arith.addf %284, %294 : vector<4x16xf32>
    %cst_211 = arith.constant dense<0.000000e+00> : vector<4x20xf32>
    %296 = tpu.matmul %295, %288, %cst_211 {dimension_numbers = #tpu.dot_dimension_numbers<[1], [1], [0], [0], [0, 0, 1, 0], [], []>} : vector<4x16xf32>, vector<20x16xf32>, vector<4x20xf32> -> vector<4x20xf32>
    %297 = vector.extract_strided_slice %283 {offsets = [0, 0], sizes = [1, 16], strides = [1, 1]} : vector<4x16xf32> to vector<1x16xf32>
    %298 = vector.broadcast %297 : vector<1x16xf32> to vector<4x16xf32>
    %299 = arith.addf %284, %298 : vector<4x16xf32>
    %300 = vector.extract_strided_slice %277 {offsets = [0, 0], sizes = [20, 16], strides = [1, 1]} : vector<20x64xf32> to vector<20x16xf32>
    %cst_212 = arith.constant dense<0.000000e+00> : vector<4x20xf32>
    %301 = tpu.matmul %299, %300, %cst_212 {dimension_numbers = #tpu.dot_dimension_numbers<[1], [1], [0], [0], [0, 0, 1, 0], [], []>} : vector<4x16xf32>, vector<20x16xf32>, vector<4x20xf32> -> vector<4x20xf32>
    %302 = arith.addf %296, %301 : vector<4x20xf32>
    %cst_213 = arith.constant 2.500000e-01 : f32
    %303 = vector.broadcast %cst_213 : f32 to vector<4x20xf32>
    %304 = arith.mulf %302, %303 : vector<4x20xf32>
    %cst_214 = arith.constant -1.000000e+30 : f32
    %305 = vector.shape_cast %2 : vector<1x20xi1> to vector<1x20xi1>
    %306 = vector.broadcast %305 : vector<1x20xi1> to vector<4x20xi1>
    %307 = vector.broadcast %cst_214 : f32 to vector<4x20xf32>
    %308 = arith.select %306, %304, %307 : vector<4x20xi1>, vector<4x20xf32>
    %cst_215 = arith.constant dense<0xFF800000> : vector<4xf32>
    %309 = vector.multi_reduction <maximumf>, %308, %cst_215 [1] : vector<4x20xf32> to vector<4xf32>
    %310 = vector.shape_cast %309 : vector<4xf32> to vector<4x1xf32>
    %311 = vector.broadcast %310 : vector<4x1xf32> to vector<4x20xf32>
    %312 = arith.subf %308, %311 : vector<4x20xf32>
    %313 = math.exp %312 : vector<4x20xf32>
    %cst_216 = arith.constant 0.000000e+00 : f32
    %314 = vector.shape_cast %2 : vector<1x20xi1> to vector<1x20xi1>
    %315 = vector.broadcast %314 : vector<1x20xi1> to vector<4x20xi1>
    %316 = vector.broadcast %cst_216 : f32 to vector<4x20xf32>
    %317 = arith.select %315, %313, %316 : vector<4x20xi1>, vector<4x20xf32>
    %cst_217 = arith.constant dense<0.000000e+00> : vector<4xf32>
    %318 = vector.multi_reduction <add>, %317, %cst_217 [1] : vector<4x20xf32> to vector<4xf32>
    %319 = vector.shape_cast %318 : vector<4xf32> to vector<4x1xf32>
    %320 = tpu.reciprocal %319 {approx = true} : vector<4x1xf32> -> vector<4x1xf32>
    %321 = vector.broadcast %320 : vector<4x1xf32> to vector<4x20xf32>
    %322 = arith.mulf %317, %321 : vector<4x20xf32>
    %cst_218 = arith.constant dense<0.000000e+00> : vector<4x16xf32>
    %323 = tpu.matmul %322, %292, %cst_218 {dimension_numbers = #tpu.dot_dimension_numbers<[1], [0], [0], [1], [0, 0, 1, 1], [], []>} : vector<4x20xf32>, vector<20x16xf32>, vector<4x16xf32> -> vector<4x16xf32>
    %324 = tpu.concatenate %288, %292 in 1 : vector<20x16xf32>, vector<20x16xf32> -> vector<20x32xf32>
    %325 = vector.extract_strided_slice %324 {offsets = [4, 0], sizes = [16, 32], strides = [1, 1]} : vector<20x32xf32> to vector<16x32xf32>
    %326 = vector.extract_strided_slice %260 {offsets = [0, 16], sizes = [4, 16], strides = [1, 1]} : vector<4x64xf32> to vector<4x16xf32>
    %327 = vector.extract_strided_slice %279 {offsets = [1, 0, 0], sizes = [1, 16, 16], strides = [1, 1, 1]} : vector<4x16x32xf32> to vector<1x16x16xf32>
    %328 = vector.shape_cast %327 : vector<1x16x16xf32> to vector<16x16xf32>
    %329 = vector.extract_strided_slice %267 {offsets = [0, 16], sizes = [4, 16], strides = [1, 1]} : vector<4x64xf32> to vector<4x16xf32>
    %330 = tpu.concatenate %328, %329 in 0 : vector<16x16xf32>, vector<4x16xf32> -> vector<20x16xf32>
    %331 = vector.extract_strided_slice %279 {offsets = [1, 0, 16], sizes = [1, 16, 16], strides = [1, 1, 1]} : vector<4x16x32xf32> to vector<1x16x16xf32>
    %332 = vector.shape_cast %331 : vector<1x16x16xf32> to vector<16x16xf32>
    %333 = vector.extract_strided_slice %274 {offsets = [0, 16], sizes = [4, 16], strides = [1, 1]} : vector<4x64xf32> to vector<4x16xf32>
    %334 = tpu.concatenate %332, %333 in 0 : vector<16x16xf32>, vector<4x16xf32> -> vector<20x16xf32>
    %335 = vector.extract_strided_slice %281 {offsets = [1, 0], sizes = [1, 16], strides = [1, 1]} : vector<4x16xf32> to vector<1x16xf32>
    %336 = vector.broadcast %335 : vector<1x16xf32> to vector<4x16xf32>
    %337 = arith.addf %326, %336 : vector<4x16xf32>
    %cst_219 = arith.constant dense<0.000000e+00> : vector<4x20xf32>
    %338 = tpu.matmul %337, %330, %cst_219 {dimension_numbers = #tpu.dot_dimension_numbers<[1], [1], [0], [0], [0, 0, 1, 0], [], []>} : vector<4x16xf32>, vector<20x16xf32>, vector<4x20xf32> -> vector<4x20xf32>
    %339 = vector.extract_strided_slice %283 {offsets = [1, 0], sizes = [1, 16], strides = [1, 1]} : vector<4x16xf32> to vector<1x16xf32>
    %340 = vector.broadcast %339 : vector<1x16xf32> to vector<4x16xf32>
    %341 = arith.addf %326, %340 : vector<4x16xf32>
    %342 = vector.extract_strided_slice %277 {offsets = [0, 16], sizes = [20, 16], strides = [1, 1]} : vector<20x64xf32> to vector<20x16xf32>
    %cst_220 = arith.constant dense<0.000000e+00> : vector<4x20xf32>
    %343 = tpu.matmul %341, %342, %cst_220 {dimension_numbers = #tpu.dot_dimension_numbers<[1], [1], [0], [0], [0, 0, 1, 0], [], []>} : vector<4x16xf32>, vector<20x16xf32>, vector<4x20xf32> -> vector<4x20xf32>
    %344 = arith.addf %338, %343 : vector<4x20xf32>
    %cst_221 = arith.constant 2.500000e-01 : f32
    %345 = vector.broadcast %cst_221 : f32 to vector<4x20xf32>
    %346 = arith.mulf %344, %345 : vector<4x20xf32>
    %cst_222 = arith.constant -1.000000e+30 : f32
    %347 = vector.shape_cast %2 : vector<1x20xi1> to vector<1x20xi1>
    %348 = vector.broadcast %347 : vector<1x20xi1> to vector<4x20xi1>
    %349 = vector.broadcast %cst_222 : f32 to vector<4x20xf32>
    %350 = arith.select %348, %346, %349 : vector<4x20xi1>, vector<4x20xf32>
    %cst_223 = arith.constant dense<0xFF800000> : vector<4xf32>
    %351 = vector.multi_reduction <maximumf>, %350, %cst_223 [1] : vector<4x20xf32> to vector<4xf32>
    %352 = vector.shape_cast %351 : vector<4xf32> to vector<4x1xf32>
    %353 = vector.broadcast %352 : vector<4x1xf32> to vector<4x20xf32>
    %354 = arith.subf %350, %353 : vector<4x20xf32>
    %355 = math.exp %354 : vector<4x20xf32>
    %cst_224 = arith.constant 0.000000e+00 : f32
    %356 = vector.shape_cast %2 : vector<1x20xi1> to vector<1x20xi1>
    %357 = vector.broadcast %356 : vector<1x20xi1> to vector<4x20xi1>
    %358 = vector.broadcast %cst_224 : f32 to vector<4x20xf32>
    %359 = arith.select %357, %355, %358 : vector<4x20xi1>, vector<4x20xf32>
    %cst_225 = arith.constant dense<0.000000e+00> : vector<4xf32>
    %360 = vector.multi_reduction <add>, %359, %cst_225 [1] : vector<4x20xf32> to vector<4xf32>
    %361 = vector.shape_cast %360 : vector<4xf32> to vector<4x1xf32>
    %362 = tpu.reciprocal %361 {approx = true} : vector<4x1xf32> -> vector<4x1xf32>
    %363 = vector.broadcast %362 : vector<4x1xf32> to vector<4x20xf32>
    %364 = arith.mulf %359, %363 : vector<4x20xf32>
    %cst_226 = arith.constant dense<0.000000e+00> : vector<4x16xf32>
    %365 = tpu.matmul %364, %334, %cst_226 {dimension_numbers = #tpu.dot_dimension_numbers<[1], [0], [0], [1], [0, 0, 1, 1], [], []>} : vector<4x20xf32>, vector<20x16xf32>, vector<4x16xf32> -> vector<4x16xf32>
    %366 = tpu.concatenate %330, %334 in 1 : vector<20x16xf32>, vector<20x16xf32> -> vector<20x32xf32>
    %367 = vector.extract_strided_slice %366 {offsets = [4, 0], sizes = [16, 32], strides = [1, 1]} : vector<20x32xf32> to vector<16x32xf32>
    %368 = vector.extract_strided_slice %260 {offsets = [0, 32], sizes = [4, 16], strides = [1, 1]} : vector<4x64xf32> to vector<4x16xf32>
    %369 = vector.extract_strided_slice %279 {offsets = [2, 0, 0], sizes = [1, 16, 16], strides = [1, 1, 1]} : vector<4x16x32xf32> to vector<1x16x16xf32>
    %370 = vector.shape_cast %369 : vector<1x16x16xf32> to vector<16x16xf32>
    %371 = vector.extract_strided_slice %267 {offsets = [0, 32], sizes = [4, 16], strides = [1, 1]} : vector<4x64xf32> to vector<4x16xf32>
    %372 = tpu.concatenate %370, %371 in 0 : vector<16x16xf32>, vector<4x16xf32> -> vector<20x16xf32>
    %373 = vector.extract_strided_slice %279 {offsets = [2, 0, 16], sizes = [1, 16, 16], strides = [1, 1, 1]} : vector<4x16x32xf32> to vector<1x16x16xf32>
    %374 = vector.shape_cast %373 : vector<1x16x16xf32> to vector<16x16xf32>
    %375 = vector.extract_strided_slice %274 {offsets = [0, 32], sizes = [4, 16], strides = [1, 1]} : vector<4x64xf32> to vector<4x16xf32>
    %376 = tpu.concatenate %374, %375 in 0 : vector<16x16xf32>, vector<4x16xf32> -> vector<20x16xf32>
    %377 = vector.extract_strided_slice %281 {offsets = [2, 0], sizes = [1, 16], strides = [1, 1]} : vector<4x16xf32> to vector<1x16xf32>
    %378 = vector.broadcast %377 : vector<1x16xf32> to vector<4x16xf32>
    %379 = arith.addf %368, %378 : vector<4x16xf32>
    %cst_227 = arith.constant dense<0.000000e+00> : vector<4x20xf32>
    %380 = tpu.matmul %379, %372, %cst_227 {dimension_numbers = #tpu.dot_dimension_numbers<[1], [1], [0], [0], [0, 0, 1, 0], [], []>} : vector<4x16xf32>, vector<20x16xf32>, vector<4x20xf32> -> vector<4x20xf32>
    %381 = vector.extract_strided_slice %283 {offsets = [2, 0], sizes = [1, 16], strides = [1, 1]} : vector<4x16xf32> to vector<1x16xf32>
    %382 = vector.broadcast %381 : vector<1x16xf32> to vector<4x16xf32>
    %383 = arith.addf %368, %382 : vector<4x16xf32>
    %384 = vector.extract_strided_slice %277 {offsets = [0, 32], sizes = [20, 16], strides = [1, 1]} : vector<20x64xf32> to vector<20x16xf32>
    %cst_228 = arith.constant dense<0.000000e+00> : vector<4x20xf32>
    %385 = tpu.matmul %383, %384, %cst_228 {dimension_numbers = #tpu.dot_dimension_numbers<[1], [1], [0], [0], [0, 0, 1, 0], [], []>} : vector<4x16xf32>, vector<20x16xf32>, vector<4x20xf32> -> vector<4x20xf32>
    %386 = arith.addf %380, %385 : vector<4x20xf32>
    %cst_229 = arith.constant 2.500000e-01 : f32
    %387 = vector.broadcast %cst_229 : f32 to vector<4x20xf32>
    %388 = arith.mulf %386, %387 : vector<4x20xf32>
    %cst_230 = arith.constant -1.000000e+30 : f32
    %389 = vector.shape_cast %2 : vector<1x20xi1> to vector<1x20xi1>
    %390 = vector.broadcast %389 : vector<1x20xi1> to vector<4x20xi1>
    %391 = vector.broadcast %cst_230 : f32 to vector<4x20xf32>
    %392 = arith.select %390, %388, %391 : vector<4x20xi1>, vector<4x20xf32>
    %cst_231 = arith.constant dense<0xFF800000> : vector<4xf32>
    %393 = vector.multi_reduction <maximumf>, %392, %cst_231 [1] : vector<4x20xf32> to vector<4xf32>
    %394 = vector.shape_cast %393 : vector<4xf32> to vector<4x1xf32>
    %395 = vector.broadcast %394 : vector<4x1xf32> to vector<4x20xf32>
    %396 = arith.subf %392, %395 : vector<4x20xf32>
    %397 = math.exp %396 : vector<4x20xf32>
    %cst_232 = arith.constant 0.000000e+00 : f32
    %398 = vector.shape_cast %2 : vector<1x20xi1> to vector<1x20xi1>
    %399 = vector.broadcast %398 : vector<1x20xi1> to vector<4x20xi1>
    %400 = vector.broadcast %cst_232 : f32 to vector<4x20xf32>
    %401 = arith.select %399, %397, %400 : vector<4x20xi1>, vector<4x20xf32>
    %cst_233 = arith.constant dense<0.000000e+00> : vector<4xf32>
    %402 = vector.multi_reduction <add>, %401, %cst_233 [1] : vector<4x20xf32> to vector<4xf32>
    %403 = vector.shape_cast %402 : vector<4xf32> to vector<4x1xf32>
    %404 = tpu.reciprocal %403 {approx = true} : vector<4x1xf32> -> vector<4x1xf32>
    %405 = vector.broadcast %404 : vector<4x1xf32> to vector<4x20xf32>
    %406 = arith.mulf %401, %405 : vector<4x20xf32>
    %cst_234 = arith.constant dense<0.000000e+00> : vector<4x16xf32>
    %407 = tpu.matmul %406, %376, %cst_234 {dimension_numbers = #tpu.dot_dimension_numbers<[1], [0], [0], [1], [0, 0, 1, 1], [], []>} : vector<4x20xf32>, vector<20x16xf32>, vector<4x16xf32> -> vector<4x16xf32>
    %408 = tpu.concatenate %372, %376 in 1 : vector<20x16xf32>, vector<20x16xf32> -> vector<20x32xf32>
    %409 = vector.extract_strided_slice %408 {offsets = [4, 0], sizes = [16, 32], strides = [1, 1]} : vector<20x32xf32> to vector<16x32xf32>
    %410 = vector.extract_strided_slice %260 {offsets = [0, 48], sizes = [4, 16], strides = [1, 1]} : vector<4x64xf32> to vector<4x16xf32>
    %411 = vector.extract_strided_slice %279 {offsets = [3, 0, 0], sizes = [1, 16, 16], strides = [1, 1, 1]} : vector<4x16x32xf32> to vector<1x16x16xf32>
    %412 = vector.shape_cast %411 : vector<1x16x16xf32> to vector<16x16xf32>
    %413 = vector.extract_strided_slice %267 {offsets = [0, 48], sizes = [4, 16], strides = [1, 1]} : vector<4x64xf32> to vector<4x16xf32>
    %414 = tpu.concatenate %412, %413 in 0 : vector<16x16xf32>, vector<4x16xf32> -> vector<20x16xf32>
    %415 = vector.extract_strided_slice %279 {offsets = [3, 0, 16], sizes = [1, 16, 16], strides = [1, 1, 1]} : vector<4x16x32xf32> to vector<1x16x16xf32>
    %416 = vector.shape_cast %415 : vector<1x16x16xf32> to vector<16x16xf32>
    %417 = vector.extract_strided_slice %274 {offsets = [0, 48], sizes = [4, 16], strides = [1, 1]} : vector<4x64xf32> to vector<4x16xf32>
    %418 = tpu.concatenate %416, %417 in 0 : vector<16x16xf32>, vector<4x16xf32> -> vector<20x16xf32>
    %419 = vector.extract_strided_slice %281 {offsets = [3, 0], sizes = [1, 16], strides = [1, 1]} : vector<4x16xf32> to vector<1x16xf32>
    %420 = vector.broadcast %419 : vector<1x16xf32> to vector<4x16xf32>
    %421 = arith.addf %410, %420 : vector<4x16xf32>
    %cst_235 = arith.constant dense<0.000000e+00> : vector<4x20xf32>
    %422 = tpu.matmul %421, %414, %cst_235 {dimension_numbers = #tpu.dot_dimension_numbers<[1], [1], [0], [0], [0, 0, 1, 0], [], []>} : vector<4x16xf32>, vector<20x16xf32>, vector<4x20xf32> -> vector<4x20xf32>
    %423 = vector.extract_strided_slice %283 {offsets = [3, 0], sizes = [1, 16], strides = [1, 1]} : vector<4x16xf32> to vector<1x16xf32>
    %424 = vector.broadcast %423 : vector<1x16xf32> to vector<4x16xf32>
    %425 = arith.addf %410, %424 : vector<4x16xf32>
    %426 = vector.extract_strided_slice %277 {offsets = [0, 48], sizes = [20, 16], strides = [1, 1]} : vector<20x64xf32> to vector<20x16xf32>
    %cst_236 = arith.constant dense<0.000000e+00> : vector<4x20xf32>
    %427 = tpu.matmul %425, %426, %cst_236 {dimension_numbers = #tpu.dot_dimension_numbers<[1], [1], [0], [0], [0, 0, 1, 0], [], []>} : vector<4x16xf32>, vector<20x16xf32>, vector<4x20xf32> -> vector<4x20xf32>
    %428 = arith.addf %422, %427 : vector<4x20xf32>
    %cst_237 = arith.constant 2.500000e-01 : f32
    %429 = vector.broadcast %cst_237 : f32 to vector<4x20xf32>
    %430 = arith.mulf %428, %429 : vector<4x20xf32>
    %cst_238 = arith.constant -1.000000e+30 : f32
    %431 = vector.shape_cast %2 : vector<1x20xi1> to vector<1x20xi1>
    %432 = vector.broadcast %431 : vector<1x20xi1> to vector<4x20xi1>
    %433 = vector.broadcast %cst_238 : f32 to vector<4x20xf32>
    %434 = arith.select %432, %430, %433 : vector<4x20xi1>, vector<4x20xf32>
    %cst_239 = arith.constant dense<0xFF800000> : vector<4xf32>
    %435 = vector.multi_reduction <maximumf>, %434, %cst_239 [1] : vector<4x20xf32> to vector<4xf32>
    %436 = vector.shape_cast %435 : vector<4xf32> to vector<4x1xf32>
    %437 = vector.broadcast %436 : vector<4x1xf32> to vector<4x20xf32>
    %438 = arith.subf %434, %437 : vector<4x20xf32>
    %439 = math.exp %438 : vector<4x20xf32>
    %cst_240 = arith.constant 0.000000e+00 : f32
    %440 = vector.shape_cast %2 : vector<1x20xi1> to vector<1x20xi1>
    %441 = vector.broadcast %440 : vector<1x20xi1> to vector<4x20xi1>
    %442 = vector.broadcast %cst_240 : f32 to vector<4x20xf32>
    %443 = arith.select %441, %439, %442 : vector<4x20xi1>, vector<4x20xf32>
    %cst_241 = arith.constant dense<0.000000e+00> : vector<4xf32>
    %444 = vector.multi_reduction <add>, %443, %cst_241 [1] : vector<4x20xf32> to vector<4xf32>
    %445 = vector.shape_cast %444 : vector<4xf32> to vector<4x1xf32>
    %446 = tpu.reciprocal %445 {approx = true} : vector<4x1xf32> -> vector<4x1xf32>
    %447 = vector.broadcast %446 : vector<4x1xf32> to vector<4x20xf32>
    %448 = arith.mulf %443, %447 : vector<4x20xf32>
    %cst_242 = arith.constant dense<0.000000e+00> : vector<4x16xf32>
    %449 = tpu.matmul %448, %418, %cst_242 {dimension_numbers = #tpu.dot_dimension_numbers<[1], [0], [0], [1], [0, 0, 1, 1], [], []>} : vector<4x20xf32>, vector<20x16xf32>, vector<4x16xf32> -> vector<4x16xf32>
    %450 = tpu.concatenate %414, %418 in 1 : vector<20x16xf32>, vector<20x16xf32> -> vector<20x32xf32>
    %451 = vector.extract_strided_slice %450 {offsets = [4, 0], sizes = [16, 32], strides = [1, 1]} : vector<20x32xf32> to vector<16x32xf32>
    %452 = vector.shape_cast %325 : vector<16x32xf32> to vector<1x16x32xf32>
    %453 = vector.shape_cast %367 : vector<16x32xf32> to vector<1x16x32xf32>
    %454 = vector.shape_cast %409 : vector<16x32xf32> to vector<1x16x32xf32>
    %455 = vector.shape_cast %451 : vector<16x32xf32> to vector<1x16x32xf32>
    %456 = tpu.concatenate %452, %453, %454, %455 in 0 : vector<1x16x32xf32>, vector<1x16x32xf32>, vector<1x16x32xf32>, vector<1x16x32xf32> -> vector<4x16x32xf32>
    %c0_243 = arith.constant 0 : index
    %c0_244 = arith.constant 0 : index
    %c0_245 = arith.constant 0 : index
    %c0_246 = arith.constant 0 : index
    %457 = vector.load %arg53[%c0_243, %c0_244, %c0_245, %c0_246] : memref<2x4x16x32xf32, #tpu.memory_space<vmem>>, vector<1x4x16x32xf32>
    %458 = vector.shape_cast %457 : vector<1x4x16x32xf32> to vector<4x16x32xf32>
    %459 = vector.shape_cast %456 : vector<4x16x32xf32> to vector<1x4x16x32xf32>
    tpu.vector_store %arg53[%c0_243, %c0_244, %c0_245, %c0_246], %459 {strides = array<i32>} : memref<2x4x16x32xf32, #tpu.memory_space<vmem>>, vector<1x4x16x32xf32>,
    %460 = tpu.concatenate %323, %365, %407, %449 in 1 : vector<4x16xf32>, vector<4x16xf32>, vector<4x16xf32>, vector<4x16xf32> -> vector<4x64xf32>
    %c0_247 = arith.constant 0 : index
    %c0_248 = arith.constant 0 : index
    %c0_249 = arith.constant 0 : index
    %461 = vector.load %arg48[%c0_247, %c0_248, %c0_249] : memref<2x64x64xf32, #tpu.memory_space<vmem>>, vector<1x64x64xf32>
    %462 = vector.shape_cast %461 : vector<1x64x64xf32> to vector<64x64xf32>
    %cst_250 = arith.constant dense<0.000000e+00> : vector<4x64xf32>
    %463 = tpu.matmul %460, %462, %cst_250 {dimension_numbers = #tpu.dot_dimension_numbers<[1], [0], [0], [1], [0, 0, 1, 1], [], []>} : vector<4x64xf32>, vector<64x64xf32>, vector<4x64xf32> -> vector<4x64xf32>
    %464 = arith.addf %229, %463 : vector<4x64xf32>
    %c0_251 = arith.constant 0 : index
    %c0_252 = arith.constant 0 : index
    %c0_253 = arith.constant 0 : index
    %465 = vector.load %arg18[%c0_251, %c0_252, %c0_253] : memref<2x1x64xf32, #tpu.memory_space<vmem>>, vector<1x1x64xf32>
    %466 = vector.shape_cast %465 : vector<1x1x64xf32> to vector<1x64xf32>
    %467 = vector.broadcast %466 : vector<1x64xf32> to vector<4x64xf32>
    %468 = arith.addf %464, %467 : vector<4x64xf32>
    %c0_254 = arith.constant 0 : index
    %c0_255 = arith.constant 0 : index
    %c0_256 = arith.constant 0 : index
    %469 = vector.load %arg32[%c0_254, %c0_255, %c0_256] : memref<2x1x64xf32, #tpu.memory_space<vmem>>, vector<1x1x64xf32>
    %470 = vector.shape_cast %469 : vector<1x1x64xf32> to vector<1x64xf32>
    %c0_257 = arith.constant 0 : index
    %c0_258 = arith.constant 0 : index
    %c0_259 = arith.constant 0 : index
    %471 = vector.load %arg31[%c0_257, %c0_258, %c0_259] : memref<2x1x64xf32, #tpu.memory_space<vmem>>, vector<1x1x64xf32>
    %472 = vector.shape_cast %471 : vector<1x1x64xf32> to vector<1x64xf32>
    %cst_260 = arith.constant dense<0.000000e+00> : vector<4xf32>
    %473 = vector.multi_reduction <add>, %468, %cst_260 [1] : vector<4x64xf32> to vector<4xf32>
    %474 = vector.shape_cast %473 : vector<4xf32> to vector<4x1xf32>
    %cst_261 = arith.constant 6.400000e+01 : f32
    %475 = vector.broadcast %cst_261 : f32 to vector<4x1xf32>
    %476 = arith.divf %474, %475 : vector<4x1xf32>
    %477 = vector.broadcast %476 : vector<4x1xf32> to vector<4x64xf32>
    %478 = arith.subf %468, %477 : vector<4x64xf32>
    %479 = arith.mulf %478, %478 : vector<4x64xf32>
    %cst_262 = arith.constant dense<0.000000e+00> : vector<4xf32>
    %480 = vector.multi_reduction <add>, %479, %cst_262 [1] : vector<4x64xf32> to vector<4xf32>
    %481 = vector.shape_cast %480 : vector<4xf32> to vector<4x1xf32>
    %cst_263 = arith.constant 6.400000e+01 : f32
    %482 = vector.broadcast %cst_263 : f32 to vector<4x1xf32>
    %483 = arith.divf %481, %482 : vector<4x1xf32>
    %cst_264 = arith.constant 9.99999974E-6 : f32
    %484 = vector.broadcast %cst_264 : f32 to vector<4x1xf32>
    %485 = arith.addf %483, %484 : vector<4x1xf32>
    %486 = math.rsqrt %485 : vector<4x1xf32>
    %487 = vector.broadcast %486 : vector<4x1xf32> to vector<4x64xf32>
    %488 = arith.mulf %478, %487 : vector<4x64xf32>
    %489 = vector.broadcast %470 : vector<1x64xf32> to vector<4x64xf32>
    %490 = arith.mulf %488, %489 : vector<4x64xf32>
    %491 = vector.broadcast %472 : vector<1x64xf32> to vector<4x64xf32>
    %492 = arith.addf %490, %491 : vector<4x64xf32>
    %c0_265 = arith.constant 0 : index
    %c0_266 = arith.constant 0 : index
    %c0_267 = arith.constant 0 : index
    %493 = vector.load %arg1[%c0_265, %c0_266, %c0_267] : memref<2x6x64xf32, #tpu.memory_space<vmem>>, vector<1x6x64xf32>
    %494 = vector.shape_cast %493 : vector<1x6x64xf32> to vector<6x64xf32>
    %495 = tpu.concatenate %494, %492 in 0 : vector<6x64xf32>, vector<4x64xf32> -> vector<10x64xf32>
    %496 = vector.extract_strided_slice %495 {offsets = [4, 0], sizes = [6, 64], strides = [1, 1]} : vector<10x64xf32> to vector<6x64xf32>
    %c0_268 = arith.constant 0 : index
    %c0_269 = arith.constant 0 : index
    %c0_270 = arith.constant 0 : index
    %497 = vector.load %arg54[%c0_268, %c0_269, %c0_270] : memref<2x6x64xf32, #tpu.memory_space<vmem>>, vector<1x6x64xf32>
    %498 = vector.shape_cast %497 : vector<1x6x64xf32> to vector<6x64xf32>
    %499 = vector.shape_cast %496 : vector<6x64xf32> to vector<1x6x64xf32>
    tpu.vector_store %arg54[%c0_268, %c0_269, %c0_270], %499 {strides = array<i32>} : memref<2x6x64xf32, #tpu.memory_space<vmem>>, vector<1x6x64xf32>,
    %c0_271 = arith.constant 0 : index
    %c0_272 = arith.constant 0 : index
    %c0_273 = arith.constant 0 : index
    %500 = vector.load %arg44[%c0_271, %c0_272, %c0_273] : memref<2x64x128xf32, #tpu.memory_space<vmem>>, vector<1x64x128xf32>
    %501 = vector.shape_cast %500 : vector<1x64x128xf32> to vector<64x128xf32>
    %cst_274 = arith.constant dense<0.000000e+00> : vector<10x128xf32>
    %502 = tpu.matmul %495, %501, %cst_274 {dimension_numbers = #tpu.dot_dimension_numbers<[1], [0], [0], [1], [0, 0, 1, 1], [], []>} : vector<10x64xf32>, vector<64x128xf32>, vector<10x128xf32> -> vector<10x128xf32>
    %c0_275 = arith.constant 0 : index
    %c0_276 = arith.constant 0 : index
    %c0_277 = arith.constant 0 : index
    %503 = vector.load %arg43[%c0_275, %c0_276, %c0_277] : memref<2x1x128xf32, #tpu.memory_space<vmem>>, vector<1x1x128xf32>
    %504 = vector.shape_cast %503 : vector<1x1x128xf32> to vector<1x128xf32>
    %505 = vector.broadcast %504 : vector<1x128xf32> to vector<10x128xf32>
    %506 = arith.addf %502, %505 : vector<10x128xf32>
    %507 = vector.extract_strided_slice %506 {offsets = [0, 0], sizes = [10, 64], strides = [1, 1]} : vector<10x128xf32> to vector<10x64xf32>
    %508 = vector.extract_strided_slice %506 {offsets = [0, 64], sizes = [10, 64], strides = [1, 1]} : vector<10x128xf32> to vector<10x64xf32>
    %509 = arith.negf %508 : vector<10x64xf32>
    %510 = math.exp %509 : vector<10x64xf32>
    %cst_278 = arith.constant 1.000000e+00 : f32
    %511 = vector.broadcast %cst_278 : f32 to vector<10x64xf32>
    %512 = arith.addf %511, %510 : vector<10x64xf32>
    %513 = arith.divf %511, %512 : vector<10x64xf32>
    %514 = arith.mulf %507, %513 : vector<10x64xf32>
    %c0_279 = arith.constant 0 : index
    %c0_280 = arith.constant 0 : index
    %c0_281 = arith.constant 0 : index
    %515 = vector.load %arg22[%c0_279, %c0_280, %c0_281] : memref<2x7x64xf32, #tpu.memory_space<vmem>>, vector<1x7x64xf32>
    %516 = vector.shape_cast %515 : vector<1x7x64xf32> to vector<7x64xf32>
    %cst_282 = arith.constant 0.000000e+00 : f32
    %517 = vector.broadcast %cst_282 : f32 to vector<4x64xf32>
    %518 = vector.extract_strided_slice %514 {offsets = [0, 0], sizes = [4, 64], strides = [1, 1]} : vector<10x64xf32> to vector<4x64xf32>
    %519 = vector.extract_strided_slice %516 {offsets = [0, 0], sizes = [1, 64], strides = [1, 1]} : vector<7x64xf32> to vector<1x64xf32>
    %520 = vector.broadcast %519 : vector<1x64xf32> to vector<4x64xf32>
    %521 = arith.mulf %518, %520 : vector<4x64xf32>
    %522 = arith.addf %517, %521 : vector<4x64xf32>
    %523 = vector.extract_strided_slice %514 {offsets = [1, 0], sizes = [4, 64], strides = [1, 1]} : vector<10x64xf32> to vector<4x64xf32>
    %524 = vector.extract_strided_slice %516 {offsets = [1, 0], sizes = [1, 64], strides = [1, 1]} : vector<7x64xf32> to vector<1x64xf32>
    %525 = vector.broadcast %524 : vector<1x64xf32> to vector<4x64xf32>
    %526 = arith.mulf %523, %525 : vector<4x64xf32>
    %527 = arith.addf %522, %526 : vector<4x64xf32>
    %528 = vector.extract_strided_slice %514 {offsets = [2, 0], sizes = [4, 64], strides = [1, 1]} : vector<10x64xf32> to vector<4x64xf32>
    %529 = vector.extract_strided_slice %516 {offsets = [2, 0], sizes = [1, 64], strides = [1, 1]} : vector<7x64xf32> to vector<1x64xf32>
    %530 = vector.broadcast %529 : vector<1x64xf32> to vector<4x64xf32>
    %531 = arith.mulf %528, %530 : vector<4x64xf32>
    %532 = arith.addf %527, %531 : vector<4x64xf32>
    %533 = vector.extract_strided_slice %514 {offsets = [3, 0], sizes = [4, 64], strides = [1, 1]} : vector<10x64xf32> to vector<4x64xf32>
    %534 = vector.extract_strided_slice %516 {offsets = [3, 0], sizes = [1, 64], strides = [1, 1]} : vector<7x64xf32> to vector<1x64xf32>
    %535 = vector.broadcast %534 : vector<1x64xf32> to vector<4x64xf32>
    %536 = arith.mulf %533, %535 : vector<4x64xf32>
    %537 = arith.addf %532, %536 : vector<4x64xf32>
    %538 = vector.extract_strided_slice %514 {offsets = [4, 0], sizes = [4, 64], strides = [1, 1]} : vector<10x64xf32> to vector<4x64xf32>
    %539 = vector.extract_strided_slice %516 {offsets = [4, 0], sizes = [1, 64], strides = [1, 1]} : vector<7x64xf32> to vector<1x64xf32>
    %540 = vector.broadcast %539 : vector<1x64xf32> to vector<4x64xf32>
    %541 = arith.mulf %538, %540 : vector<4x64xf32>
    %542 = arith.addf %537, %541 : vector<4x64xf32>
    %543 = vector.extract_strided_slice %514 {offsets = [5, 0], sizes = [4, 64], strides = [1, 1]} : vector<10x64xf32> to vector<4x64xf32>
    %544 = vector.extract_strided_slice %516 {offsets = [5, 0], sizes = [1, 64], strides = [1, 1]} : vector<7x64xf32> to vector<1x64xf32>
    %545 = vector.broadcast %544 : vector<1x64xf32> to vector<4x64xf32>
    %546 = arith.mulf %543, %545 : vector<4x64xf32>
    %547 = arith.addf %542, %546 : vector<4x64xf32>
    %548 = vector.extract_strided_slice %514 {offsets = [6, 0], sizes = [4, 64], strides = [1, 1]} : vector<10x64xf32> to vector<4x64xf32>
    %549 = vector.extract_strided_slice %516 {offsets = [6, 0], sizes = [1, 64], strides = [1, 1]} : vector<7x64xf32> to vector<1x64xf32>
    %550 = vector.broadcast %549 : vector<1x64xf32> to vector<4x64xf32>
    %551 = arith.mulf %548, %550 : vector<4x64xf32>
    %552 = arith.addf %547, %551 : vector<4x64xf32>
    %c0_283 = arith.constant 0 : index
    %c0_284 = arith.constant 0 : index
    %c0_285 = arith.constant 0 : index
    %553 = vector.load %arg21[%c0_283, %c0_284, %c0_285] : memref<2x1x64xf32, #tpu.memory_space<vmem>>, vector<1x1x64xf32>
    %554 = vector.shape_cast %553 : vector<1x1x64xf32> to vector<1x64xf32>
    %555 = vector.broadcast %554 : vector<1x64xf32> to vector<4x64xf32>
    %556 = arith.addf %552, %555 : vector<4x64xf32>
    %c0_286 = arith.constant 0 : index
    %c0_287 = arith.constant 0 : index
    %c0_288 = arith.constant 0 : index
    %557 = vector.load %arg16[%c0_286, %c0_287, %c0_288] : memref<2x1x64xf32, #tpu.memory_space<vmem>>, vector<1x1x64xf32>
    %558 = vector.shape_cast %557 : vector<1x1x64xf32> to vector<1x64xf32>
    %559 = vector.broadcast %558 : vector<1x64xf32> to vector<4x64xf32>
    %560 = arith.mulf %556, %559 : vector<4x64xf32>
    %c0_289 = arith.constant 0 : index
    %c0_290 = arith.constant 0 : index
    %c0_291 = arith.constant 0 : index
    %561 = vector.load %arg17[%c0_289, %c0_290, %c0_291] : memref<2x1x64xf32, #tpu.memory_space<vmem>>, vector<1x1x64xf32>
    %562 = vector.shape_cast %561 : vector<1x1x64xf32> to vector<1x64xf32>
    %563 = vector.broadcast %562 : vector<1x64xf32> to vector<4x64xf32>
    %564 = arith.addf %560, %563 : vector<4x64xf32>
    %565 = arith.negf %564 : vector<4x64xf32>
    %566 = math.exp %565 : vector<4x64xf32>
    %cst_292 = arith.constant 1.000000e+00 : f32
    %567 = vector.broadcast %cst_292 : f32 to vector<4x64xf32>
    %568 = arith.addf %567, %566 : vector<4x64xf32>
    %569 = arith.divf %567, %568 : vector<4x64xf32>
    %570 = arith.mulf %564, %569 : vector<4x64xf32>
    %c0_293 = arith.constant 0 : index
    %c0_294 = arith.constant 0 : index
    %c0_295 = arith.constant 0 : index
    %571 = vector.load %arg46[%c0_293, %c0_294, %c0_295] : memref<2x64x64xf32, #tpu.memory_space<vmem>>, vector<1x64x64xf32>
    %572 = vector.shape_cast %571 : vector<1x64x64xf32> to vector<64x64xf32>
    %cst_296 = arith.constant dense<0.000000e+00> : vector<4x64xf32>
    %573 = tpu.matmul %570, %572, %cst_296 {dimension_numbers = #tpu.dot_dimension_numbers<[1], [0], [0], [1], [0, 0, 1, 1], [], []>} : vector<4x64xf32>, vector<64x64xf32>, vector<4x64xf32> -> vector<4x64xf32>
    %c0_297 = arith.constant 0 : index
    %c0_298 = arith.constant 0 : index
    %c0_299 = arith.constant 0 : index
    %574 = vector.load %arg45[%c0_297, %c0_298, %c0_299] : memref<2x1x64xf32, #tpu.memory_space<vmem>>, vector<1x1x64xf32>
    %575 = vector.shape_cast %574 : vector<1x1x64xf32> to vector<1x64xf32>
    %576 = vector.broadcast %575 : vector<1x64xf32> to vector<4x64xf32>
    %577 = arith.addf %573, %576 : vector<4x64xf32>
    %578 = arith.addf %468, %577 : vector<4x64xf32>
    %c0_300 = arith.constant 0 : index
    %c0_301 = arith.constant 0 : index
    %c0_302 = arith.constant 0 : index
    %579 = vector.load %arg34[%c0_300, %c0_301, %c0_302] : memref<2x1x64xf32, #tpu.memory_space<vmem>>, vector<1x1x64xf32>
    %580 = vector.shape_cast %579 : vector<1x1x64xf32> to vector<1x64xf32>
    %c0_303 = arith.constant 0 : index
    %c0_304 = arith.constant 0 : index
    %c0_305 = arith.constant 0 : index
    %581 = vector.load %arg33[%c0_303, %c0_304, %c0_305] : memref<2x1x64xf32, #tpu.memory_space<vmem>>, vector<1x1x64xf32>
    %582 = vector.shape_cast %581 : vector<1x1x64xf32> to vector<1x64xf32>
    %cst_306 = arith.constant dense<0.000000e+00> : vector<4xf32>
    %583 = vector.multi_reduction <add>, %578, %cst_306 [1] : vector<4x64xf32> to vector<4xf32>
    %584 = vector.shape_cast %583 : vector<4xf32> to vector<4x1xf32>
    %cst_307 = arith.constant 6.400000e+01 : f32
    %585 = vector.broadcast %cst_307 : f32 to vector<4x1xf32>
    %586 = arith.divf %584, %585 : vector<4x1xf32>
    %587 = vector.broadcast %586 : vector<4x1xf32> to vector<4x64xf32>
    %588 = arith.subf %578, %587 : vector<4x64xf32>
    %589 = arith.mulf %588, %588 : vector<4x64xf32>
    %cst_308 = arith.constant dense<0.000000e+00> : vector<4xf32>
    %590 = vector.multi_reduction <add>, %589, %cst_308 [1] : vector<4x64xf32> to vector<4xf32>
    %591 = vector.shape_cast %590 : vector<4xf32> to vector<4x1xf32>
    %cst_309 = arith.constant 6.400000e+01 : f32
    %592 = vector.broadcast %cst_309 : f32 to vector<4x1xf32>
    %593 = arith.divf %591, %592 : vector<4x1xf32>
    %cst_310 = arith.constant 9.99999974E-6 : f32
    %594 = vector.broadcast %cst_310 : f32 to vector<4x1xf32>
    %595 = arith.addf %593, %594 : vector<4x1xf32>
    %596 = math.rsqrt %595 : vector<4x1xf32>
    %597 = vector.broadcast %596 : vector<4x1xf32> to vector<4x64xf32>
    %598 = arith.mulf %588, %597 : vector<4x64xf32>
    %599 = vector.broadcast %580 : vector<1x64xf32> to vector<4x64xf32>
    %600 = arith.mulf %598, %599 : vector<4x64xf32>
    %601 = vector.broadcast %582 : vector<1x64xf32> to vector<4x64xf32>
    %602 = arith.addf %600, %601 : vector<4x64xf32>
    %c0_311 = arith.constant 0 : index
    %c0_312 = arith.constant 0 : index
    %c0_313 = arith.constant 0 : index
    %603 = vector.load %arg25[%c0_311, %c0_312, %c0_313] : memref<2x64x128xf32, #tpu.memory_space<vmem>>, vector<1x64x128xf32>
    %604 = vector.shape_cast %603 : vector<1x64x128xf32> to vector<64x128xf32>
    %cst_314 = arith.constant dense<0.000000e+00> : vector<4x128xf32>
    %605 = tpu.matmul %602, %604, %cst_314 {dimension_numbers = #tpu.dot_dimension_numbers<[1], [0], [0], [1], [0, 0, 1, 1], [], []>} : vector<4x64xf32>, vector<64x128xf32>, vector<4x128xf32> -> vector<4x128xf32>
    %c0_315 = arith.constant 0 : index
    %c0_316 = arith.constant 0 : index
    %c0_317 = arith.constant 0 : index
    %606 = vector.load %arg23[%c0_315, %c0_316, %c0_317] : memref<2x1x128xf32, #tpu.memory_space<vmem>>, vector<1x1x128xf32>
    %607 = vector.shape_cast %606 : vector<1x1x128xf32> to vector<1x128xf32>
    %608 = vector.broadcast %607 : vector<1x128xf32> to vector<4x128xf32>
    %609 = arith.addf %605, %608 : vector<4x128xf32>
    %610 = arith.negf %609 : vector<4x128xf32>
    %611 = math.exp %610 : vector<4x128xf32>
    %cst_318 = arith.constant 1.000000e+00 : f32
    %612 = vector.broadcast %cst_318 : f32 to vector<4x128xf32>
    %613 = arith.addf %612, %611 : vector<4x128xf32>
    %614 = arith.divf %612, %613 : vector<4x128xf32>
    %615 = arith.mulf %609, %614 : vector<4x128xf32>
    %c0_319 = arith.constant 0 : index
    %c0_320 = arith.constant 0 : index
    %c0_321 = arith.constant 0 : index
    %616 = vector.load %arg26[%c0_319, %c0_320, %c0_321] : memref<2x128x64xf32, #tpu.memory_space<vmem>>, vector<1x128x64xf32>
    %617 = vector.shape_cast %616 : vector<1x128x64xf32> to vector<128x64xf32>
    %cst_322 = arith.constant dense<0.000000e+00> : vector<4x64xf32>
    %618 = tpu.matmul %615, %617, %cst_322 {dimension_numbers = #tpu.dot_dimension_numbers<[1], [0], [0], [1], [0, 0, 1, 1], [], []>} : vector<4x128xf32>, vector<128x64xf32>, vector<4x64xf32> -> vector<4x64xf32>
    %c0_323 = arith.constant 0 : index
    %c0_324 = arith.constant 0 : index
    %c0_325 = arith.constant 0 : index
    %619 = vector.load %arg24[%c0_323, %c0_324, %c0_325] : memref<2x1x64xf32, #tpu.memory_space<vmem>>, vector<1x1x64xf32>
    %620 = vector.shape_cast %619 : vector<1x1x64xf32> to vector<1x64xf32>
    %621 = vector.broadcast %620 : vector<1x64xf32> to vector<4x64xf32>
    %622 = arith.addf %618, %621 : vector<4x64xf32>
    %cst_326 = arith.constant 5.000000e-01 : f32
    %623 = vector.broadcast %cst_326 : f32 to vector<4x64xf32>
    %624 = arith.mulf %623, %622 : vector<4x64xf32>
    %625 = arith.addf %578, %624 : vector<4x64xf32>
    %c0_327 = arith.constant 0 : index
    %c0_328 = arith.constant 0 : index
    %c0_329 = arith.constant 0 : index
    %626 = vector.load %arg38[%c0_327, %c0_328, %c0_329] : memref<2x1x64xf32, #tpu.memory_space<vmem>>, vector<1x1x64xf32>
    %627 = vector.shape_cast %626 : vector<1x1x64xf32> to vector<1x64xf32>
    %c0_330 = arith.constant 0 : index
    %c0_331 = arith.constant 0 : index
    %c0_332 = arith.constant 0 : index
    %628 = vector.load %arg37[%c0_330, %c0_331, %c0_332] : memref<2x1x64xf32, #tpu.memory_space<vmem>>, vector<1x1x64xf32>
    %629 = vector.shape_cast %628 : vector<1x1x64xf32> to vector<1x64xf32>
    %cst_333 = arith.constant dense<0.000000e+00> : vector<4xf32>
    %630 = vector.multi_reduction <add>, %625, %cst_333 [1] : vector<4x64xf32> to vector<4xf32>
    %631 = vector.shape_cast %630 : vector<4xf32> to vector<4x1xf32>
    %cst_334 = arith.constant 6.400000e+01 : f32
    %632 = vector.broadcast %cst_334 : f32 to vector<4x1xf32>
    %633 = arith.divf %631, %632 : vector<4x1xf32>
    %634 = vector.broadcast %633 : vector<4x1xf32> to vector<4x64xf32>
    %635 = arith.subf %625, %634 : vector<4x64xf32>
    %636 = arith.mulf %635, %635 : vector<4x64xf32>
    %cst_335 = arith.constant dense<0.000000e+00> : vector<4xf32>
    %637 = vector.multi_reduction <add>, %636, %cst_335 [1] : vector<4x64xf32> to vector<4xf32>
    %638 = vector.shape_cast %637 : vector<4xf32> to vector<4x1xf32>
    %cst_336 = arith.constant 6.400000e+01 : f32
    %639 = vector.broadcast %cst_336 : f32 to vector<4x1xf32>
    %640 = arith.divf %638, %639 : vector<4x1xf32>
    %cst_337 = arith.constant 9.99999974E-6 : f32
    %641 = vector.broadcast %cst_337 : f32 to vector<4x1xf32>
    %642 = arith.addf %640, %641 : vector<4x1xf32>
    %643 = math.rsqrt %642 : vector<4x1xf32>
    %644 = vector.broadcast %643 : vector<4x1xf32> to vector<4x64xf32>
    %645 = arith.mulf %635, %644 : vector<4x64xf32>
    %646 = vector.broadcast %627 : vector<1x64xf32> to vector<4x64xf32>
    %647 = arith.mulf %645, %646 : vector<4x64xf32>
    %648 = vector.broadcast %629 : vector<1x64xf32> to vector<4x64xf32>
    %649 = arith.addf %647, %648 : vector<4x64xf32>
    %c1_338 = arith.constant 1 : index
    %c0_339 = arith.constant 0 : index
    %c0_340 = arith.constant 0 : index
    %650 = vector.load %arg36[%c1_338, %c0_339, %c0_340] : memref<2x1x64xf32, #tpu.memory_space<vmem>>, vector<1x1x64xf32>
    %651 = vector.shape_cast %650 : vector<1x1x64xf32> to vector<1x64xf32>
    %c1_341 = arith.constant 1 : index
    %c0_342 = arith.constant 0 : index
    %c0_343 = arith.constant 0 : index
    %652 = vector.load %arg35[%c1_341, %c0_342, %c0_343] : memref<2x1x64xf32, #tpu.memory_space<vmem>>, vector<1x1x64xf32>
    %653 = vector.shape_cast %652 : vector<1x1x64xf32> to vector<1x64xf32>
    %cst_344 = arith.constant dense<0.000000e+00> : vector<4xf32>
    %654 = vector.multi_reduction <add>, %649, %cst_344 [1] : vector<4x64xf32> to vector<4xf32>
    %655 = vector.shape_cast %654 : vector<4xf32> to vector<4x1xf32>
    %cst_345 = arith.constant 6.400000e+01 : f32
    %656 = vector.broadcast %cst_345 : f32 to vector<4x1xf32>
    %657 = arith.divf %655, %656 : vector<4x1xf32>
    %658 = vector.broadcast %657 : vector<4x1xf32> to vector<4x64xf32>
    %659 = arith.subf %649, %658 : vector<4x64xf32>
    %660 = arith.mulf %659, %659 : vector<4x64xf32>
    %cst_346 = arith.constant dense<0.000000e+00> : vector<4xf32>
    %661 = vector.multi_reduction <add>, %660, %cst_346 [1] : vector<4x64xf32> to vector<4xf32>
    %662 = vector.shape_cast %661 : vector<4xf32> to vector<4x1xf32>
    %cst_347 = arith.constant 6.400000e+01 : f32
    %663 = vector.broadcast %cst_347 : f32 to vector<4x1xf32>
    %664 = arith.divf %662, %663 : vector<4x1xf32>
    %cst_348 = arith.constant 9.99999974E-6 : f32
    %665 = vector.broadcast %cst_348 : f32 to vector<4x1xf32>
    %666 = arith.addf %664, %665 : vector<4x1xf32>
    %667 = math.rsqrt %666 : vector<4x1xf32>
    %668 = vector.broadcast %667 : vector<4x1xf32> to vector<4x64xf32>
    %669 = arith.mulf %659, %668 : vector<4x64xf32>
    %670 = vector.broadcast %651 : vector<1x64xf32> to vector<4x64xf32>
    %671 = arith.mulf %669, %670 : vector<4x64xf32>
    %672 = vector.broadcast %653 : vector<1x64xf32> to vector<4x64xf32>
    %673 = arith.addf %671, %672 : vector<4x64xf32>
    %c1_349 = arith.constant 1 : index
    %c0_350 = arith.constant 0 : index
    %c0_351 = arith.constant 0 : index
    %674 = vector.load %arg29[%c1_349, %c0_350, %c0_351] : memref<2x64x128xf32, #tpu.memory_space<vmem>>, vector<1x64x128xf32>
    %675 = vector.shape_cast %674 : vector<1x64x128xf32> to vector<64x128xf32>
    %cst_352 = arith.constant dense<0.000000e+00> : vector<4x128xf32>
    %676 = tpu.matmul %673, %675, %cst_352 {dimension_numbers = #tpu.dot_dimension_numbers<[1], [0], [0], [1], [0, 0, 1, 1], [], []>} : vector<4x64xf32>, vector<64x128xf32>, vector<4x128xf32> -> vector<4x128xf32>
    %c1_353 = arith.constant 1 : index
    %c0_354 = arith.constant 0 : index
    %c0_355 = arith.constant 0 : index
    %677 = vector.load %arg27[%c1_353, %c0_354, %c0_355] : memref<2x1x128xf32, #tpu.memory_space<vmem>>, vector<1x1x128xf32>
    %678 = vector.shape_cast %677 : vector<1x1x128xf32> to vector<1x128xf32>
    %679 = vector.broadcast %678 : vector<1x128xf32> to vector<4x128xf32>
    %680 = arith.addf %676, %679 : vector<4x128xf32>
    %681 = arith.negf %680 : vector<4x128xf32>
    %682 = math.exp %681 : vector<4x128xf32>
    %cst_356 = arith.constant 1.000000e+00 : f32
    %683 = vector.broadcast %cst_356 : f32 to vector<4x128xf32>
    %684 = arith.addf %683, %682 : vector<4x128xf32>
    %685 = arith.divf %683, %684 : vector<4x128xf32>
    %686 = arith.mulf %680, %685 : vector<4x128xf32>
    %c1_357 = arith.constant 1 : index
    %c0_358 = arith.constant 0 : index
    %c0_359 = arith.constant 0 : index
    %687 = vector.load %arg30[%c1_357, %c0_358, %c0_359] : memref<2x128x64xf32, #tpu.memory_space<vmem>>, vector<1x128x64xf32>
    %688 = vector.shape_cast %687 : vector<1x128x64xf32> to vector<128x64xf32>
    %cst_360 = arith.constant dense<0.000000e+00> : vector<4x64xf32>
    %689 = tpu.matmul %686, %688, %cst_360 {dimension_numbers = #tpu.dot_dimension_numbers<[1], [0], [0], [1], [0, 0, 1, 1], [], []>} : vector<4x128xf32>, vector<128x64xf32>, vector<4x64xf32> -> vector<4x64xf32>
    %c1_361 = arith.constant 1 : index
    %c0_362 = arith.constant 0 : index
    %c0_363 = arith.constant 0 : index
    %690 = vector.load %arg28[%c1_361, %c0_362, %c0_363] : memref<2x1x64xf32, #tpu.memory_space<vmem>>, vector<1x1x64xf32>
    %691 = vector.shape_cast %690 : vector<1x1x64xf32> to vector<1x64xf32>
    %692 = vector.broadcast %691 : vector<1x64xf32> to vector<4x64xf32>
    %693 = arith.addf %689, %692 : vector<4x64xf32>
    %cst_364 = arith.constant 5.000000e-01 : f32
    %694 = vector.broadcast %cst_364 : f32 to vector<4x64xf32>
    %695 = arith.mulf %694, %693 : vector<4x64xf32>
    %696 = arith.addf %649, %695 : vector<4x64xf32>
    %c1_365 = arith.constant 1 : index
    %c0_366 = arith.constant 0 : index
    %c0_367 = arith.constant 0 : index
    %697 = vector.load %arg40[%c1_365, %c0_366, %c0_367] : memref<2x1x64xf32, #tpu.memory_space<vmem>>, vector<1x1x64xf32>
    %698 = vector.shape_cast %697 : vector<1x1x64xf32> to vector<1x64xf32>
    %c1_368 = arith.constant 1 : index
    %c0_369 = arith.constant 0 : index
    %c0_370 = arith.constant 0 : index
    %699 = vector.load %arg39[%c1_368, %c0_369, %c0_370] : memref<2x1x64xf32, #tpu.memory_space<vmem>>, vector<1x1x64xf32>
    %700 = vector.shape_cast %699 : vector<1x1x64xf32> to vector<1x64xf32>
    %cst_371 = arith.constant dense<0.000000e+00> : vector<4xf32>
    %701 = vector.multi_reduction <add>, %696, %cst_371 [1] : vector<4x64xf32> to vector<4xf32>
    %702 = vector.shape_cast %701 : vector<4xf32> to vector<4x1xf32>
    %cst_372 = arith.constant 6.400000e+01 : f32
    %703 = vector.broadcast %cst_372 : f32 to vector<4x1xf32>
    %704 = arith.divf %702, %703 : vector<4x1xf32>
    %705 = vector.broadcast %704 : vector<4x1xf32> to vector<4x64xf32>
    %706 = arith.subf %696, %705 : vector<4x64xf32>
    %707 = arith.mulf %706, %706 : vector<4x64xf32>
    %cst_373 = arith.constant dense<0.000000e+00> : vector<4xf32>
    %708 = vector.multi_reduction <add>, %707, %cst_373 [1] : vector<4x64xf32> to vector<4xf32>
    %709 = vector.shape_cast %708 : vector<4xf32> to vector<4x1xf32>
    %cst_374 = arith.constant 6.400000e+01 : f32
    %710 = vector.broadcast %cst_374 : f32 to vector<4x1xf32>
    %711 = arith.divf %709, %710 : vector<4x1xf32>
    %cst_375 = arith.constant 9.99999974E-6 : f32
    %712 = vector.broadcast %cst_375 : f32 to vector<4x1xf32>
    %713 = arith.addf %711, %712 : vector<4x1xf32>
    %714 = math.rsqrt %713 : vector<4x1xf32>
    %715 = vector.broadcast %714 : vector<4x1xf32> to vector<4x64xf32>
    %716 = arith.mulf %706, %715 : vector<4x64xf32>
    %717 = vector.broadcast %698 : vector<1x64xf32> to vector<4x64xf32>
    %718 = arith.mulf %716, %717 : vector<4x64xf32>
    %719 = vector.broadcast %700 : vector<1x64xf32> to vector<4x64xf32>
    %720 = arith.addf %718, %719 : vector<4x64xf32>
    %c1_376 = arith.constant 1 : index
    %c0_377 = arith.constant 0 : index
    %c0_378 = arith.constant 0 : index
    %721 = vector.load %arg50[%c1_376, %c0_377, %c0_378] : memref<2x64x64xf32, #tpu.memory_space<vmem>>, vector<1x64x64xf32>
    %722 = vector.shape_cast %721 : vector<1x64x64xf32> to vector<64x64xf32>
    %cst_379 = arith.constant dense<0.000000e+00> : vector<4x64xf32>
    %723 = tpu.matmul %720, %722, %cst_379 {dimension_numbers = #tpu.dot_dimension_numbers<[1], [0], [0], [1], [0, 0, 1, 1], [], []>} : vector<4x64xf32>, vector<64x64xf32>, vector<4x64xf32> -> vector<4x64xf32>
    %c1_380 = arith.constant 1 : index
    %c0_381 = arith.constant 0 : index
    %c0_382 = arith.constant 0 : index
    %724 = vector.load %arg19[%c1_380, %c0_381, %c0_382] : memref<2x1x64xf32, #tpu.memory_space<vmem>>, vector<1x1x64xf32>
    %725 = vector.shape_cast %724 : vector<1x1x64xf32> to vector<1x64xf32>
    %726 = vector.broadcast %725 : vector<1x64xf32> to vector<4x64xf32>
    %727 = arith.addf %723, %726 : vector<4x64xf32>
    %c1_383 = arith.constant 1 : index
    %c0_384 = arith.constant 0 : index
    %c0_385 = arith.constant 0 : index
    %728 = vector.load %arg47[%c1_383, %c0_384, %c0_385] : memref<2x64x64xf32, #tpu.memory_space<vmem>>, vector<1x64x64xf32>
    %729 = vector.shape_cast %728 : vector<1x64x64xf32> to vector<64x64xf32>
    %cst_386 = arith.constant dense<0.000000e+00> : vector<4x64xf32>
    %730 = tpu.matmul %720, %729, %cst_386 {dimension_numbers = #tpu.dot_dimension_numbers<[1], [0], [0], [1], [0, 0, 1, 1], [], []>} : vector<4x64xf32>, vector<64x64xf32>, vector<4x64xf32> -> vector<4x64xf32>
    %c1_387 = arith.constant 1 : index
    %c0_388 = arith.constant 0 : index
    %c0_389 = arith.constant 0 : index
    %731 = vector.load %arg15[%c1_387, %c0_388, %c0_389] : memref<2x1x64xf32, #tpu.memory_space<vmem>>, vector<1x1x64xf32>
    %732 = vector.shape_cast %731 : vector<1x1x64xf32> to vector<1x64xf32>
    %733 = vector.broadcast %732 : vector<1x64xf32> to vector<4x64xf32>
    %734 = arith.addf %730, %733 : vector<4x64xf32>
    %c1_390 = arith.constant 1 : index
    %c0_391 = arith.constant 0 : index
    %c0_392 = arith.constant 0 : index
    %735 = vector.load %arg51[%c1_390, %c0_391, %c0_392] : memref<2x64x64xf32, #tpu.memory_space<vmem>>, vector<1x64x64xf32>
    %736 = vector.shape_cast %735 : vector<1x64x64xf32> to vector<64x64xf32>
    %cst_393 = arith.constant dense<0.000000e+00> : vector<4x64xf32>
    %737 = tpu.matmul %720, %736, %cst_393 {dimension_numbers = #tpu.dot_dimension_numbers<[1], [0], [0], [1], [0, 0, 1, 1], [], []>} : vector<4x64xf32>, vector<64x64xf32>, vector<4x64xf32> -> vector<4x64xf32>
    %c1_394 = arith.constant 1 : index
    %c0_395 = arith.constant 0 : index
    %c0_396 = arith.constant 0 : index
    %738 = vector.load %arg20[%c1_394, %c0_395, %c0_396] : memref<2x1x64xf32, #tpu.memory_space<vmem>>, vector<1x1x64xf32>
    %739 = vector.shape_cast %738 : vector<1x1x64xf32> to vector<1x64xf32>
    %740 = vector.broadcast %739 : vector<1x64xf32> to vector<4x64xf32>
    %741 = arith.addf %737, %740 : vector<4x64xf32>
    %c1_397 = arith.constant 1 : index
    %c0_398 = arith.constant 0 : index
    %c0_399 = arith.constant 0 : index
    %742 = vector.load %arg49[%c1_397, %c0_398, %c0_399] : memref<2x64x64xf32, #tpu.memory_space<vmem>>, vector<1x64x64xf32>
    %743 = vector.shape_cast %742 : vector<1x64x64xf32> to vector<64x64xf32>
    %cst_400 = arith.constant dense<0.000000e+00> : vector<20x64xf32>
    %744 = tpu.matmul %3, %743, %cst_400 {dimension_numbers = #tpu.dot_dimension_numbers<[1], [0], [0], [1], [0, 0, 1, 1], [], []>} : vector<20x64xf32>, vector<64x64xf32>, vector<20x64xf32> -> vector<20x64xf32>
    %c1_401 = arith.constant 1 : index
    %c0_402 = arith.constant 0 : index
    %c0_403 = arith.constant 0 : index
    %c0_404 = arith.constant 0 : index
    %745 = vector.load %arg0[%c1_401, %c0_402, %c0_403, %c0_404] : memref<2x4x16x32xf32, #tpu.memory_space<vmem>>, vector<1x4x16x32xf32>
    %746 = vector.shape_cast %745 : vector<1x4x16x32xf32> to vector<4x16x32xf32>
    %c1_405 = arith.constant 1 : index
    %c0_406 = arith.constant 0 : index
    %c0_407 = arith.constant 0 : index
    %747 = vector.load %arg41[%c1_405, %c0_406, %c0_407] : memref<2x4x16xf32, #tpu.memory_space<vmem>>, vector<1x4x16xf32>
    %748 = vector.shape_cast %747 : vector<1x4x16xf32> to vector<4x16xf32>
    %c1_408 = arith.constant 1 : index
    %c0_409 = arith.constant 0 : index
    %c0_410 = arith.constant 0 : index
    %749 = vector.load %arg42[%c1_408, %c0_409, %c0_410] : memref<2x4x16xf32, #tpu.memory_space<vmem>>, vector<1x4x16xf32>
    %750 = vector.shape_cast %749 : vector<1x4x16xf32> to vector<4x16xf32>
    %751 = vector.extract_strided_slice %727 {offsets = [0, 0], sizes = [4, 16], strides = [1, 1]} : vector<4x64xf32> to vector<4x16xf32>
    %752 = vector.extract_strided_slice %746 {offsets = [0, 0, 0], sizes = [1, 16, 16], strides = [1, 1, 1]} : vector<4x16x32xf32> to vector<1x16x16xf32>
    %753 = vector.shape_cast %752 : vector<1x16x16xf32> to vector<16x16xf32>
    %754 = vector.extract_strided_slice %734 {offsets = [0, 0], sizes = [4, 16], strides = [1, 1]} : vector<4x64xf32> to vector<4x16xf32>
    %755 = tpu.concatenate %753, %754 in 0 : vector<16x16xf32>, vector<4x16xf32> -> vector<20x16xf32>
    %756 = vector.extract_strided_slice %746 {offsets = [0, 0, 16], sizes = [1, 16, 16], strides = [1, 1, 1]} : vector<4x16x32xf32> to vector<1x16x16xf32>
    %757 = vector.shape_cast %756 : vector<1x16x16xf32> to vector<16x16xf32>
    %758 = vector.extract_strided_slice %741 {offsets = [0, 0], sizes = [4, 16], strides = [1, 1]} : vector<4x64xf32> to vector<4x16xf32>
    %759 = tpu.concatenate %757, %758 in 0 : vector<16x16xf32>, vector<4x16xf32> -> vector<20x16xf32>
    %760 = vector.extract_strided_slice %748 {offsets = [0, 0], sizes = [1, 16], strides = [1, 1]} : vector<4x16xf32> to vector<1x16xf32>
    %761 = vector.broadcast %760 : vector<1x16xf32> to vector<4x16xf32>
    %762 = arith.addf %751, %761 : vector<4x16xf32>
    %cst_411 = arith.constant dense<0.000000e+00> : vector<4x20xf32>
    %763 = tpu.matmul %762, %755, %cst_411 {dimension_numbers = #tpu.dot_dimension_numbers<[1], [1], [0], [0], [0, 0, 1, 0], [], []>} : vector<4x16xf32>, vector<20x16xf32>, vector<4x20xf32> -> vector<4x20xf32>
    %764 = vector.extract_strided_slice %750 {offsets = [0, 0], sizes = [1, 16], strides = [1, 1]} : vector<4x16xf32> to vector<1x16xf32>
    %765 = vector.broadcast %764 : vector<1x16xf32> to vector<4x16xf32>
    %766 = arith.addf %751, %765 : vector<4x16xf32>
    %767 = vector.extract_strided_slice %744 {offsets = [0, 0], sizes = [20, 16], strides = [1, 1]} : vector<20x64xf32> to vector<20x16xf32>
    %cst_412 = arith.constant dense<0.000000e+00> : vector<4x20xf32>
    %768 = tpu.matmul %766, %767, %cst_412 {dimension_numbers = #tpu.dot_dimension_numbers<[1], [1], [0], [0], [0, 0, 1, 0], [], []>} : vector<4x16xf32>, vector<20x16xf32>, vector<4x20xf32> -> vector<4x20xf32>
    %769 = arith.addf %763, %768 : vector<4x20xf32>
    %cst_413 = arith.constant 2.500000e-01 : f32
    %770 = vector.broadcast %cst_413 : f32 to vector<4x20xf32>
    %771 = arith.mulf %769, %770 : vector<4x20xf32>
    %cst_414 = arith.constant -1.000000e+30 : f32
    %772 = vector.shape_cast %2 : vector<1x20xi1> to vector<1x20xi1>
    %773 = vector.broadcast %772 : vector<1x20xi1> to vector<4x20xi1>
    %774 = vector.broadcast %cst_414 : f32 to vector<4x20xf32>
    %775 = arith.select %773, %771, %774 : vector<4x20xi1>, vector<4x20xf32>
    %cst_415 = arith.constant dense<0xFF800000> : vector<4xf32>
    %776 = vector.multi_reduction <maximumf>, %775, %cst_415 [1] : vector<4x20xf32> to vector<4xf32>
    %777 = vector.shape_cast %776 : vector<4xf32> to vector<4x1xf32>
    %778 = vector.broadcast %777 : vector<4x1xf32> to vector<4x20xf32>
    %779 = arith.subf %775, %778 : vector<4x20xf32>
    %780 = math.exp %779 : vector<4x20xf32>
    %cst_416 = arith.constant 0.000000e+00 : f32
    %781 = vector.shape_cast %2 : vector<1x20xi1> to vector<1x20xi1>
    %782 = vector.broadcast %781 : vector<1x20xi1> to vector<4x20xi1>
    %783 = vector.broadcast %cst_416 : f32 to vector<4x20xf32>
    %784 = arith.select %782, %780, %783 : vector<4x20xi1>, vector<4x20xf32>
    %cst_417 = arith.constant dense<0.000000e+00> : vector<4xf32>
    %785 = vector.multi_reduction <add>, %784, %cst_417 [1] : vector<4x20xf32> to vector<4xf32>
    %786 = vector.shape_cast %785 : vector<4xf32> to vector<4x1xf32>
    %787 = tpu.reciprocal %786 {approx = true} : vector<4x1xf32> -> vector<4x1xf32>
    %788 = vector.broadcast %787 : vector<4x1xf32> to vector<4x20xf32>
    %789 = arith.mulf %784, %788 : vector<4x20xf32>
    %cst_418 = arith.constant dense<0.000000e+00> : vector<4x16xf32>
    %790 = tpu.matmul %789, %759, %cst_418 {dimension_numbers = #tpu.dot_dimension_numbers<[1], [0], [0], [1], [0, 0, 1, 1], [], []>} : vector<4x20xf32>, vector<20x16xf32>, vector<4x16xf32> -> vector<4x16xf32>
    %791 = tpu.concatenate %755, %759 in 1 : vector<20x16xf32>, vector<20x16xf32> -> vector<20x32xf32>
    %792 = vector.extract_strided_slice %791 {offsets = [4, 0], sizes = [16, 32], strides = [1, 1]} : vector<20x32xf32> to vector<16x32xf32>
    %793 = vector.extract_strided_slice %727 {offsets = [0, 16], sizes = [4, 16], strides = [1, 1]} : vector<4x64xf32> to vector<4x16xf32>
    %794 = vector.extract_strided_slice %746 {offsets = [1, 0, 0], sizes = [1, 16, 16], strides = [1, 1, 1]} : vector<4x16x32xf32> to vector<1x16x16xf32>
    %795 = vector.shape_cast %794 : vector<1x16x16xf32> to vector<16x16xf32>
    %796 = vector.extract_strided_slice %734 {offsets = [0, 16], sizes = [4, 16], strides = [1, 1]} : vector<4x64xf32> to vector<4x16xf32>
    %797 = tpu.concatenate %795, %796 in 0 : vector<16x16xf32>, vector<4x16xf32> -> vector<20x16xf32>
    %798 = vector.extract_strided_slice %746 {offsets = [1, 0, 16], sizes = [1, 16, 16], strides = [1, 1, 1]} : vector<4x16x32xf32> to vector<1x16x16xf32>
    %799 = vector.shape_cast %798 : vector<1x16x16xf32> to vector<16x16xf32>
    %800 = vector.extract_strided_slice %741 {offsets = [0, 16], sizes = [4, 16], strides = [1, 1]} : vector<4x64xf32> to vector<4x16xf32>
    %801 = tpu.concatenate %799, %800 in 0 : vector<16x16xf32>, vector<4x16xf32> -> vector<20x16xf32>
    %802 = vector.extract_strided_slice %748 {offsets = [1, 0], sizes = [1, 16], strides = [1, 1]} : vector<4x16xf32> to vector<1x16xf32>
    %803 = vector.broadcast %802 : vector<1x16xf32> to vector<4x16xf32>
    %804 = arith.addf %793, %803 : vector<4x16xf32>
    %cst_419 = arith.constant dense<0.000000e+00> : vector<4x20xf32>
    %805 = tpu.matmul %804, %797, %cst_419 {dimension_numbers = #tpu.dot_dimension_numbers<[1], [1], [0], [0], [0, 0, 1, 0], [], []>} : vector<4x16xf32>, vector<20x16xf32>, vector<4x20xf32> -> vector<4x20xf32>
    %806 = vector.extract_strided_slice %750 {offsets = [1, 0], sizes = [1, 16], strides = [1, 1]} : vector<4x16xf32> to vector<1x16xf32>
    %807 = vector.broadcast %806 : vector<1x16xf32> to vector<4x16xf32>
    %808 = arith.addf %793, %807 : vector<4x16xf32>
    %809 = vector.extract_strided_slice %744 {offsets = [0, 16], sizes = [20, 16], strides = [1, 1]} : vector<20x64xf32> to vector<20x16xf32>
    %cst_420 = arith.constant dense<0.000000e+00> : vector<4x20xf32>
    %810 = tpu.matmul %808, %809, %cst_420 {dimension_numbers = #tpu.dot_dimension_numbers<[1], [1], [0], [0], [0, 0, 1, 0], [], []>} : vector<4x16xf32>, vector<20x16xf32>, vector<4x20xf32> -> vector<4x20xf32>
    %811 = arith.addf %805, %810 : vector<4x20xf32>
    %cst_421 = arith.constant 2.500000e-01 : f32
    %812 = vector.broadcast %cst_421 : f32 to vector<4x20xf32>
    %813 = arith.mulf %811, %812 : vector<4x20xf32>
    %cst_422 = arith.constant -1.000000e+30 : f32
    %814 = vector.shape_cast %2 : vector<1x20xi1> to vector<1x20xi1>
    %815 = vector.broadcast %814 : vector<1x20xi1> to vector<4x20xi1>
    %816 = vector.broadcast %cst_422 : f32 to vector<4x20xf32>
    %817 = arith.select %815, %813, %816 : vector<4x20xi1>, vector<4x20xf32>
    %cst_423 = arith.constant dense<0xFF800000> : vector<4xf32>
    %818 = vector.multi_reduction <maximumf>, %817, %cst_423 [1] : vector<4x20xf32> to vector<4xf32>
    %819 = vector.shape_cast %818 : vector<4xf32> to vector<4x1xf32>
    %820 = vector.broadcast %819 : vector<4x1xf32> to vector<4x20xf32>
    %821 = arith.subf %817, %820 : vector<4x20xf32>
    %822 = math.exp %821 : vector<4x20xf32>
    %cst_424 = arith.constant 0.000000e+00 : f32
    %823 = vector.shape_cast %2 : vector<1x20xi1> to vector<1x20xi1>
    %824 = vector.broadcast %823 : vector<1x20xi1> to vector<4x20xi1>
    %825 = vector.broadcast %cst_424 : f32 to vector<4x20xf32>
    %826 = arith.select %824, %822, %825 : vector<4x20xi1>, vector<4x20xf32>
    %cst_425 = arith.constant dense<0.000000e+00> : vector<4xf32>
    %827 = vector.multi_reduction <add>, %826, %cst_425 [1] : vector<4x20xf32> to vector<4xf32>
    %828 = vector.shape_cast %827 : vector<4xf32> to vector<4x1xf32>
    %829 = tpu.reciprocal %828 {approx = true} : vector<4x1xf32> -> vector<4x1xf32>
    %830 = vector.broadcast %829 : vector<4x1xf32> to vector<4x20xf32>
    %831 = arith.mulf %826, %830 : vector<4x20xf32>
    %cst_426 = arith.constant dense<0.000000e+00> : vector<4x16xf32>
    %832 = tpu.matmul %831, %801, %cst_426 {dimension_numbers = #tpu.dot_dimension_numbers<[1], [0], [0], [1], [0, 0, 1, 1], [], []>} : vector<4x20xf32>, vector<20x16xf32>, vector<4x16xf32> -> vector<4x16xf32>
    %833 = tpu.concatenate %797, %801 in 1 : vector<20x16xf32>, vector<20x16xf32> -> vector<20x32xf32>
    %834 = vector.extract_strided_slice %833 {offsets = [4, 0], sizes = [16, 32], strides = [1, 1]} : vector<20x32xf32> to vector<16x32xf32>
    %835 = vector.extract_strided_slice %727 {offsets = [0, 32], sizes = [4, 16], strides = [1, 1]} : vector<4x64xf32> to vector<4x16xf32>
    %836 = vector.extract_strided_slice %746 {offsets = [2, 0, 0], sizes = [1, 16, 16], strides = [1, 1, 1]} : vector<4x16x32xf32> to vector<1x16x16xf32>
    %837 = vector.shape_cast %836 : vector<1x16x16xf32> to vector<16x16xf32>
    %838 = vector.extract_strided_slice %734 {offsets = [0, 32], sizes = [4, 16], strides = [1, 1]} : vector<4x64xf32> to vector<4x16xf32>
    %839 = tpu.concatenate %837, %838 in 0 : vector<16x16xf32>, vector<4x16xf32> -> vector<20x16xf32>
    %840 = vector.extract_strided_slice %746 {offsets = [2, 0, 16], sizes = [1, 16, 16], strides = [1, 1, 1]} : vector<4x16x32xf32> to vector<1x16x16xf32>
    %841 = vector.shape_cast %840 : vector<1x16x16xf32> to vector<16x16xf32>
    %842 = vector.extract_strided_slice %741 {offsets = [0, 32], sizes = [4, 16], strides = [1, 1]} : vector<4x64xf32> to vector<4x16xf32>
    %843 = tpu.concatenate %841, %842 in 0 : vector<16x16xf32>, vector<4x16xf32> -> vector<20x16xf32>
    %844 = vector.extract_strided_slice %748 {offsets = [2, 0], sizes = [1, 16], strides = [1, 1]} : vector<4x16xf32> to vector<1x16xf32>
    %845 = vector.broadcast %844 : vector<1x16xf32> to vector<4x16xf32>
    %846 = arith.addf %835, %845 : vector<4x16xf32>
    %cst_427 = arith.constant dense<0.000000e+00> : vector<4x20xf32>
    %847 = tpu.matmul %846, %839, %cst_427 {dimension_numbers = #tpu.dot_dimension_numbers<[1], [1], [0], [0], [0, 0, 1, 0], [], []>} : vector<4x16xf32>, vector<20x16xf32>, vector<4x20xf32> -> vector<4x20xf32>
    %848 = vector.extract_strided_slice %750 {offsets = [2, 0], sizes = [1, 16], strides = [1, 1]} : vector<4x16xf32> to vector<1x16xf32>
    %849 = vector.broadcast %848 : vector<1x16xf32> to vector<4x16xf32>
    %850 = arith.addf %835, %849 : vector<4x16xf32>
    %851 = vector.extract_strided_slice %744 {offsets = [0, 32], sizes = [20, 16], strides = [1, 1]} : vector<20x64xf32> to vector<20x16xf32>
    %cst_428 = arith.constant dense<0.000000e+00> : vector<4x20xf32>
    %852 = tpu.matmul %850, %851, %cst_428 {dimension_numbers = #tpu.dot_dimension_numbers<[1], [1], [0], [0], [0, 0, 1, 0], [], []>} : vector<4x16xf32>, vector<20x16xf32>, vector<4x20xf32> -> vector<4x20xf32>
    %853 = arith.addf %847, %852 : vector<4x20xf32>
    %cst_429 = arith.constant 2.500000e-01 : f32
    %854 = vector.broadcast %cst_429 : f32 to vector<4x20xf32>
    %855 = arith.mulf %853, %854 : vector<4x20xf32>
    %cst_430 = arith.constant -1.000000e+30 : f32
    %856 = vector.shape_cast %2 : vector<1x20xi1> to vector<1x20xi1>
    %857 = vector.broadcast %856 : vector<1x20xi1> to vector<4x20xi1>
    %858 = vector.broadcast %cst_430 : f32 to vector<4x20xf32>
    %859 = arith.select %857, %855, %858 : vector<4x20xi1>, vector<4x20xf32>
    %cst_431 = arith.constant dense<0xFF800000> : vector<4xf32>
    %860 = vector.multi_reduction <maximumf>, %859, %cst_431 [1] : vector<4x20xf32> to vector<4xf32>
    %861 = vector.shape_cast %860 : vector<4xf32> to vector<4x1xf32>
    %862 = vector.broadcast %861 : vector<4x1xf32> to vector<4x20xf32>
    %863 = arith.subf %859, %862 : vector<4x20xf32>
    %864 = math.exp %863 : vector<4x20xf32>
    %cst_432 = arith.constant 0.000000e+00 : f32
    %865 = vector.shape_cast %2 : vector<1x20xi1> to vector<1x20xi1>
    %866 = vector.broadcast %865 : vector<1x20xi1> to vector<4x20xi1>
    %867 = vector.broadcast %cst_432 : f32 to vector<4x20xf32>
    %868 = arith.select %866, %864, %867 : vector<4x20xi1>, vector<4x20xf32>
    %cst_433 = arith.constant dense<0.000000e+00> : vector<4xf32>
    %869 = vector.multi_reduction <add>, %868, %cst_433 [1] : vector<4x20xf32> to vector<4xf32>
    %870 = vector.shape_cast %869 : vector<4xf32> to vector<4x1xf32>
    %871 = tpu.reciprocal %870 {approx = true} : vector<4x1xf32> -> vector<4x1xf32>
    %872 = vector.broadcast %871 : vector<4x1xf32> to vector<4x20xf32>
    %873 = arith.mulf %868, %872 : vector<4x20xf32>
    %cst_434 = arith.constant dense<0.000000e+00> : vector<4x16xf32>
    %874 = tpu.matmul %873, %843, %cst_434 {dimension_numbers = #tpu.dot_dimension_numbers<[1], [0], [0], [1], [0, 0, 1, 1], [], []>} : vector<4x20xf32>, vector<20x16xf32>, vector<4x16xf32> -> vector<4x16xf32>
    %875 = tpu.concatenate %839, %843 in 1 : vector<20x16xf32>, vector<20x16xf32> -> vector<20x32xf32>
    %876 = vector.extract_strided_slice %875 {offsets = [4, 0], sizes = [16, 32], strides = [1, 1]} : vector<20x32xf32> to vector<16x32xf32>
    %877 = vector.extract_strided_slice %727 {offsets = [0, 48], sizes = [4, 16], strides = [1, 1]} : vector<4x64xf32> to vector<4x16xf32>
    %878 = vector.extract_strided_slice %746 {offsets = [3, 0, 0], sizes = [1, 16, 16], strides = [1, 1, 1]} : vector<4x16x32xf32> to vector<1x16x16xf32>
    %879 = vector.shape_cast %878 : vector<1x16x16xf32> to vector<16x16xf32>
    %880 = vector.extract_strided_slice %734 {offsets = [0, 48], sizes = [4, 16], strides = [1, 1]} : vector<4x64xf32> to vector<4x16xf32>
    %881 = tpu.concatenate %879, %880 in 0 : vector<16x16xf32>, vector<4x16xf32> -> vector<20x16xf32>
    %882 = vector.extract_strided_slice %746 {offsets = [3, 0, 16], sizes = [1, 16, 16], strides = [1, 1, 1]} : vector<4x16x32xf32> to vector<1x16x16xf32>
    %883 = vector.shape_cast %882 : vector<1x16x16xf32> to vector<16x16xf32>
    %884 = vector.extract_strided_slice %741 {offsets = [0, 48], sizes = [4, 16], strides = [1, 1]} : vector<4x64xf32> to vector<4x16xf32>
    %885 = tpu.concatenate %883, %884 in 0 : vector<16x16xf32>, vector<4x16xf32> -> vector<20x16xf32>
    %886 = vector.extract_strided_slice %748 {offsets = [3, 0], sizes = [1, 16], strides = [1, 1]} : vector<4x16xf32> to vector<1x16xf32>
    %887 = vector.broadcast %886 : vector<1x16xf32> to vector<4x16xf32>
    %888 = arith.addf %877, %887 : vector<4x16xf32>
    %cst_435 = arith.constant dense<0.000000e+00> : vector<4x20xf32>
    %889 = tpu.matmul %888, %881, %cst_435 {dimension_numbers = #tpu.dot_dimension_numbers<[1], [1], [0], [0], [0, 0, 1, 0], [], []>} : vector<4x16xf32>, vector<20x16xf32>, vector<4x20xf32> -> vector<4x20xf32>
    %890 = vector.extract_strided_slice %750 {offsets = [3, 0], sizes = [1, 16], strides = [1, 1]} : vector<4x16xf32> to vector<1x16xf32>
    %891 = vector.broadcast %890 : vector<1x16xf32> to vector<4x16xf32>
    %892 = arith.addf %877, %891 : vector<4x16xf32>
    %893 = vector.extract_strided_slice %744 {offsets = [0, 48], sizes = [20, 16], strides = [1, 1]} : vector<20x64xf32> to vector<20x16xf32>
    %cst_436 = arith.constant dense<0.000000e+00> : vector<4x20xf32>
    %894 = tpu.matmul %892, %893, %cst_436 {dimension_numbers = #tpu.dot_dimension_numbers<[1], [1], [0], [0], [0, 0, 1, 0], [], []>} : vector<4x16xf32>, vector<20x16xf32>, vector<4x20xf32> -> vector<4x20xf32>
    %895 = arith.addf %889, %894 : vector<4x20xf32>
    %cst_437 = arith.constant 2.500000e-01 : f32
    %896 = vector.broadcast %cst_437 : f32 to vector<4x20xf32>
    %897 = arith.mulf %895, %896 : vector<4x20xf32>
    %cst_438 = arith.constant -1.000000e+30 : f32
    %898 = vector.shape_cast %2 : vector<1x20xi1> to vector<1x20xi1>
    %899 = vector.broadcast %898 : vector<1x20xi1> to vector<4x20xi1>
    %900 = vector.broadcast %cst_438 : f32 to vector<4x20xf32>
    %901 = arith.select %899, %897, %900 : vector<4x20xi1>, vector<4x20xf32>
    %cst_439 = arith.constant dense<0xFF800000> : vector<4xf32>
    %902 = vector.multi_reduction <maximumf>, %901, %cst_439 [1] : vector<4x20xf32> to vector<4xf32>
    %903 = vector.shape_cast %902 : vector<4xf32> to vector<4x1xf32>
    %904 = vector.broadcast %903 : vector<4x1xf32> to vector<4x20xf32>
    %905 = arith.subf %901, %904 : vector<4x20xf32>
    %906 = math.exp %905 : vector<4x20xf32>
    %cst_440 = arith.constant 0.000000e+00 : f32
    %907 = vector.shape_cast %2 : vector<1x20xi1> to vector<1x20xi1>
    %908 = vector.broadcast %907 : vector<1x20xi1> to vector<4x20xi1>
    %909 = vector.broadcast %cst_440 : f32 to vector<4x20xf32>
    %910 = arith.select %908, %906, %909 : vector<4x20xi1>, vector<4x20xf32>
    %cst_441 = arith.constant dense<0.000000e+00> : vector<4xf32>
    %911 = vector.multi_reduction <add>, %910, %cst_441 [1] : vector<4x20xf32> to vector<4xf32>
    %912 = vector.shape_cast %911 : vector<4xf32> to vector<4x1xf32>
    %913 = tpu.reciprocal %912 {approx = true} : vector<4x1xf32> -> vector<4x1xf32>
    %914 = vector.broadcast %913 : vector<4x1xf32> to vector<4x20xf32>
    %915 = arith.mulf %910, %914 : vector<4x20xf32>
    %cst_442 = arith.constant dense<0.000000e+00> : vector<4x16xf32>
    %916 = tpu.matmul %915, %885, %cst_442 {dimension_numbers = #tpu.dot_dimension_numbers<[1], [0], [0], [1], [0, 0, 1, 1], [], []>} : vector<4x20xf32>, vector<20x16xf32>, vector<4x16xf32> -> vector<4x16xf32>
    %917 = tpu.concatenate %881, %885 in 1 : vector<20x16xf32>, vector<20x16xf32> -> vector<20x32xf32>
    %918 = vector.extract_strided_slice %917 {offsets = [4, 0], sizes = [16, 32], strides = [1, 1]} : vector<20x32xf32> to vector<16x32xf32>
    %919 = vector.shape_cast %792 : vector<16x32xf32> to vector<1x16x32xf32>
    %920 = vector.shape_cast %834 : vector<16x32xf32> to vector<1x16x32xf32>
    %921 = vector.shape_cast %876 : vector<16x32xf32> to vector<1x16x32xf32>
    %922 = vector.shape_cast %918 : vector<16x32xf32> to vector<1x16x32xf32>
    %923 = tpu.concatenate %919, %920, %921, %922 in 0 : vector<1x16x32xf32>, vector<1x16x32xf32>, vector<1x16x32xf32>, vector<1x16x32xf32> -> vector<4x16x32xf32>
    %c1_443 = arith.constant 1 : index
    %c0_444 = arith.constant 0 : index
    %c0_445 = arith.constant 0 : index
    %c0_446 = arith.constant 0 : index
    %924 = vector.load %arg53[%c1_443, %c0_444, %c0_445, %c0_446] : memref<2x4x16x32xf32, #tpu.memory_space<vmem>>, vector<1x4x16x32xf32>
    %925 = vector.shape_cast %924 : vector<1x4x16x32xf32> to vector<4x16x32xf32>
    %926 = vector.shape_cast %923 : vector<4x16x32xf32> to vector<1x4x16x32xf32>
    tpu.vector_store %arg53[%c1_443, %c0_444, %c0_445, %c0_446], %926 {strides = array<i32>} : memref<2x4x16x32xf32, #tpu.memory_space<vmem>>, vector<1x4x16x32xf32>,
    %927 = tpu.concatenate %790, %832, %874, %916 in 1 : vector<4x16xf32>, vector<4x16xf32>, vector<4x16xf32>, vector<4x16xf32> -> vector<4x64xf32>
    %c1_447 = arith.constant 1 : index
    %c0_448 = arith.constant 0 : index
    %c0_449 = arith.constant 0 : index
    %928 = vector.load %arg48[%c1_447, %c0_448, %c0_449] : memref<2x64x64xf32, #tpu.memory_space<vmem>>, vector<1x64x64xf32>
    %929 = vector.shape_cast %928 : vector<1x64x64xf32> to vector<64x64xf32>
    %cst_450 = arith.constant dense<0.000000e+00> : vector<4x64xf32>
    %930 = tpu.matmul %927, %929, %cst_450 {dimension_numbers = #tpu.dot_dimension_numbers<[1], [0], [0], [1], [0, 0, 1, 1], [], []>} : vector<4x64xf32>, vector<64x64xf32>, vector<4x64xf32> -> vector<4x64xf32>
    %931 = arith.addf %696, %930 : vector<4x64xf32>
    %c1_451 = arith.constant 1 : index
    %c0_452 = arith.constant 0 : index
    %c0_453 = arith.constant 0 : index
    %932 = vector.load %arg18[%c1_451, %c0_452, %c0_453] : memref<2x1x64xf32, #tpu.memory_space<vmem>>, vector<1x1x64xf32>
    %933 = vector.shape_cast %932 : vector<1x1x64xf32> to vector<1x64xf32>
    %934 = vector.broadcast %933 : vector<1x64xf32> to vector<4x64xf32>
    %935 = arith.addf %931, %934 : vector<4x64xf32>
    %c1_454 = arith.constant 1 : index
    %c0_455 = arith.constant 0 : index
    %c0_456 = arith.constant 0 : index
    %936 = vector.load %arg32[%c1_454, %c0_455, %c0_456] : memref<2x1x64xf32, #tpu.memory_space<vmem>>, vector<1x1x64xf32>
    %937 = vector.shape_cast %936 : vector<1x1x64xf32> to vector<1x64xf32>
    %c1_457 = arith.constant 1 : index
    %c0_458 = arith.constant 0 : index
    %c0_459 = arith.constant 0 : index
    %938 = vector.load %arg31[%c1_457, %c0_458, %c0_459] : memref<2x1x64xf32, #tpu.memory_space<vmem>>, vector<1x1x64xf32>
    %939 = vector.shape_cast %938 : vector<1x1x64xf32> to vector<1x64xf32>
    %cst_460 = arith.constant dense<0.000000e+00> : vector<4xf32>
    %940 = vector.multi_reduction <add>, %935, %cst_460 [1] : vector<4x64xf32> to vector<4xf32>
    %941 = vector.shape_cast %940 : vector<4xf32> to vector<4x1xf32>
    %cst_461 = arith.constant 6.400000e+01 : f32
    %942 = vector.broadcast %cst_461 : f32 to vector<4x1xf32>
    %943 = arith.divf %941, %942 : vector<4x1xf32>
    %944 = vector.broadcast %943 : vector<4x1xf32> to vector<4x64xf32>
    %945 = arith.subf %935, %944 : vector<4x64xf32>
    %946 = arith.mulf %945, %945 : vector<4x64xf32>
    %cst_462 = arith.constant dense<0.000000e+00> : vector<4xf32>
    %947 = vector.multi_reduction <add>, %946, %cst_462 [1] : vector<4x64xf32> to vector<4xf32>
    %948 = vector.shape_cast %947 : vector<4xf32> to vector<4x1xf32>
    %cst_463 = arith.constant 6.400000e+01 : f32
    %949 = vector.broadcast %cst_463 : f32 to vector<4x1xf32>
    %950 = arith.divf %948, %949 : vector<4x1xf32>
    %cst_464 = arith.constant 9.99999974E-6 : f32
    %951 = vector.broadcast %cst_464 : f32 to vector<4x1xf32>
    %952 = arith.addf %950, %951 : vector<4x1xf32>
    %953 = math.rsqrt %952 : vector<4x1xf32>
    %954 = vector.broadcast %953 : vector<4x1xf32> to vector<4x64xf32>
    %955 = arith.mulf %945, %954 : vector<4x64xf32>
    %956 = vector.broadcast %937 : vector<1x64xf32> to vector<4x64xf32>
    %957 = arith.mulf %955, %956 : vector<4x64xf32>
    %958 = vector.broadcast %939 : vector<1x64xf32> to vector<4x64xf32>
    %959 = arith.addf %957, %958 : vector<4x64xf32>
    %c1_465 = arith.constant 1 : index
    %c0_466 = arith.constant 0 : index
    %c0_467 = arith.constant 0 : index
    %960 = vector.load %arg1[%c1_465, %c0_466, %c0_467] : memref<2x6x64xf32, #tpu.memory_space<vmem>>, vector<1x6x64xf32>
    %961 = vector.shape_cast %960 : vector<1x6x64xf32> to vector<6x64xf32>
    %962 = tpu.concatenate %961, %959 in 0 : vector<6x64xf32>, vector<4x64xf32> -> vector<10x64xf32>
    %963 = vector.extract_strided_slice %962 {offsets = [4, 0], sizes = [6, 64], strides = [1, 1]} : vector<10x64xf32> to vector<6x64xf32>
    %c1_468 = arith.constant 1 : index
    %c0_469 = arith.constant 0 : index
    %c0_470 = arith.constant 0 : index
    %964 = vector.load %arg54[%c1_468, %c0_469, %c0_470] : memref<2x6x64xf32, #tpu.memory_space<vmem>>, vector<1x6x64xf32>
    %965 = vector.shape_cast %964 : vector<1x6x64xf32> to vector<6x64xf32>
    %966 = vector.shape_cast %963 : vector<6x64xf32> to vector<1x6x64xf32>
    tpu.vector_store %arg54[%c1_468, %c0_469, %c0_470], %966 {strides = array<i32>} : memref<2x6x64xf32, #tpu.memory_space<vmem>>, vector<1x6x64xf32>,
    %c1_471 = arith.constant 1 : index
    %c0_472 = arith.constant 0 : index
    %c0_473 = arith.constant 0 : index
    %967 = vector.load %arg44[%c1_471, %c0_472, %c0_473] : memref<2x64x128xf32, #tpu.memory_space<vmem>>, vector<1x64x128xf32>
    %968 = vector.shape_cast %967 : vector<1x64x128xf32> to vector<64x128xf32>
    %cst_474 = arith.constant dense<0.000000e+00> : vector<10x128xf32>
    %969 = tpu.matmul %962, %968, %cst_474 {dimension_numbers = #tpu.dot_dimension_numbers<[1], [0], [0], [1], [0, 0, 1, 1], [], []>} : vector<10x64xf32>, vector<64x128xf32>, vector<10x128xf32> -> vector<10x128xf32>
    %c1_475 = arith.constant 1 : index
    %c0_476 = arith.constant 0 : index
    %c0_477 = arith.constant 0 : index
    %970 = vector.load %arg43[%c1_475, %c0_476, %c0_477] : memref<2x1x128xf32, #tpu.memory_space<vmem>>, vector<1x1x128xf32>
    %971 = vector.shape_cast %970 : vector<1x1x128xf32> to vector<1x128xf32>
    %972 = vector.broadcast %971 : vector<1x128xf32> to vector<10x128xf32>
    %973 = arith.addf %969, %972 : vector<10x128xf32>
    %974 = vector.extract_strided_slice %973 {offsets = [0, 0], sizes = [10, 64], strides = [1, 1]} : vector<10x128xf32> to vector<10x64xf32>
    %975 = vector.extract_strided_slice %973 {offsets = [0, 64], sizes = [10, 64], strides = [1, 1]} : vector<10x128xf32> to vector<10x64xf32>
    %976 = arith.negf %975 : vector<10x64xf32>
    %977 = math.exp %976 : vector<10x64xf32>
    %cst_478 = arith.constant 1.000000e+00 : f32
    %978 = vector.broadcast %cst_478 : f32 to vector<10x64xf32>
    %979 = arith.addf %978, %977 : vector<10x64xf32>
    %980 = arith.divf %978, %979 : vector<10x64xf32>
    %981 = arith.mulf %974, %980 : vector<10x64xf32>
    %c1_479 = arith.constant 1 : index
    %c0_480 = arith.constant 0 : index
    %c0_481 = arith.constant 0 : index
    %982 = vector.load %arg22[%c1_479, %c0_480, %c0_481] : memref<2x7x64xf32, #tpu.memory_space<vmem>>, vector<1x7x64xf32>
    %983 = vector.shape_cast %982 : vector<1x7x64xf32> to vector<7x64xf32>
    %cst_482 = arith.constant 0.000000e+00 : f32
    %984 = vector.broadcast %cst_482 : f32 to vector<4x64xf32>
    %985 = vector.extract_strided_slice %981 {offsets = [0, 0], sizes = [4, 64], strides = [1, 1]} : vector<10x64xf32> to vector<4x64xf32>
    %986 = vector.extract_strided_slice %983 {offsets = [0, 0], sizes = [1, 64], strides = [1, 1]} : vector<7x64xf32> to vector<1x64xf32>
    %987 = vector.broadcast %986 : vector<1x64xf32> to vector<4x64xf32>
    %988 = arith.mulf %985, %987 : vector<4x64xf32>
    %989 = arith.addf %984, %988 : vector<4x64xf32>
    %990 = vector.extract_strided_slice %981 {offsets = [1, 0], sizes = [4, 64], strides = [1, 1]} : vector<10x64xf32> to vector<4x64xf32>
    %991 = vector.extract_strided_slice %983 {offsets = [1, 0], sizes = [1, 64], strides = [1, 1]} : vector<7x64xf32> to vector<1x64xf32>
    %992 = vector.broadcast %991 : vector<1x64xf32> to vector<4x64xf32>
    %993 = arith.mulf %990, %992 : vector<4x64xf32>
    %994 = arith.addf %989, %993 : vector<4x64xf32>
    %995 = vector.extract_strided_slice %981 {offsets = [2, 0], sizes = [4, 64], strides = [1, 1]} : vector<10x64xf32> to vector<4x64xf32>
    %996 = vector.extract_strided_slice %983 {offsets = [2, 0], sizes = [1, 64], strides = [1, 1]} : vector<7x64xf32> to vector<1x64xf32>
    %997 = vector.broadcast %996 : vector<1x64xf32> to vector<4x64xf32>
    %998 = arith.mulf %995, %997 : vector<4x64xf32>
    %999 = arith.addf %994, %998 : vector<4x64xf32>
    %1000 = vector.extract_strided_slice %981 {offsets = [3, 0], sizes = [4, 64], strides = [1, 1]} : vector<10x64xf32> to vector<4x64xf32>
    %1001 = vector.extract_strided_slice %983 {offsets = [3, 0], sizes = [1, 64], strides = [1, 1]} : vector<7x64xf32> to vector<1x64xf32>
    %1002 = vector.broadcast %1001 : vector<1x64xf32> to vector<4x64xf32>
    %1003 = arith.mulf %1000, %1002 : vector<4x64xf32>
    %1004 = arith.addf %999, %1003 : vector<4x64xf32>
    %1005 = vector.extract_strided_slice %981 {offsets = [4, 0], sizes = [4, 64], strides = [1, 1]} : vector<10x64xf32> to vector<4x64xf32>
    %1006 = vector.extract_strided_slice %983 {offsets = [4, 0], sizes = [1, 64], strides = [1, 1]} : vector<7x64xf32> to vector<1x64xf32>
    %1007 = vector.broadcast %1006 : vector<1x64xf32> to vector<4x64xf32>
    %1008 = arith.mulf %1005, %1007 : vector<4x64xf32>
    %1009 = arith.addf %1004, %1008 : vector<4x64xf32>
    %1010 = vector.extract_strided_slice %981 {offsets = [5, 0], sizes = [4, 64], strides = [1, 1]} : vector<10x64xf32> to vector<4x64xf32>
    %1011 = vector.extract_strided_slice %983 {offsets = [5, 0], sizes = [1, 64], strides = [1, 1]} : vector<7x64xf32> to vector<1x64xf32>
    %1012 = vector.broadcast %1011 : vector<1x64xf32> to vector<4x64xf32>
    %1013 = arith.mulf %1010, %1012 : vector<4x64xf32>
    %1014 = arith.addf %1009, %1013 : vector<4x64xf32>
    %1015 = vector.extract_strided_slice %981 {offsets = [6, 0], sizes = [4, 64], strides = [1, 1]} : vector<10x64xf32> to vector<4x64xf32>
    %1016 = vector.extract_strided_slice %983 {offsets = [6, 0], sizes = [1, 64], strides = [1, 1]} : vector<7x64xf32> to vector<1x64xf32>
    %1017 = vector.broadcast %1016 : vector<1x64xf32> to vector<4x64xf32>
    %1018 = arith.mulf %1015, %1017 : vector<4x64xf32>
    %1019 = arith.addf %1014, %1018 : vector<4x64xf32>
    %c1_483 = arith.constant 1 : index
    %c0_484 = arith.constant 0 : index
    %c0_485 = arith.constant 0 : index
    %1020 = vector.load %arg21[%c1_483, %c0_484, %c0_485] : memref<2x1x64xf32, #tpu.memory_space<vmem>>, vector<1x1x64xf32>
    %1021 = vector.shape_cast %1020 : vector<1x1x64xf32> to vector<1x64xf32>
    %1022 = vector.broadcast %1021 : vector<1x64xf32> to vector<4x64xf32>
    %1023 = arith.addf %1019, %1022 : vector<4x64xf32>
    %c1_486 = arith.constant 1 : index
    %c0_487 = arith.constant 0 : index
    %c0_488 = arith.constant 0 : index
    %1024 = vector.load %arg16[%c1_486, %c0_487, %c0_488] : memref<2x1x64xf32, #tpu.memory_space<vmem>>, vector<1x1x64xf32>
    %1025 = vector.shape_cast %1024 : vector<1x1x64xf32> to vector<1x64xf32>
    %1026 = vector.broadcast %1025 : vector<1x64xf32> to vector<4x64xf32>
    %1027 = arith.mulf %1023, %1026 : vector<4x64xf32>
    %c1_489 = arith.constant 1 : index
    %c0_490 = arith.constant 0 : index
    %c0_491 = arith.constant 0 : index
    %1028 = vector.load %arg17[%c1_489, %c0_490, %c0_491] : memref<2x1x64xf32, #tpu.memory_space<vmem>>, vector<1x1x64xf32>
    %1029 = vector.shape_cast %1028 : vector<1x1x64xf32> to vector<1x64xf32>
    %1030 = vector.broadcast %1029 : vector<1x64xf32> to vector<4x64xf32>
    %1031 = arith.addf %1027, %1030 : vector<4x64xf32>
    %1032 = arith.negf %1031 : vector<4x64xf32>
    %1033 = math.exp %1032 : vector<4x64xf32>
    %cst_492 = arith.constant 1.000000e+00 : f32
    %1034 = vector.broadcast %cst_492 : f32 to vector<4x64xf32>
    %1035 = arith.addf %1034, %1033 : vector<4x64xf32>
    %1036 = arith.divf %1034, %1035 : vector<4x64xf32>
    %1037 = arith.mulf %1031, %1036 : vector<4x64xf32>
    %c1_493 = arith.constant 1 : index
    %c0_494 = arith.constant 0 : index
    %c0_495 = arith.constant 0 : index
    %1038 = vector.load %arg46[%c1_493, %c0_494, %c0_495] : memref<2x64x64xf32, #tpu.memory_space<vmem>>, vector<1x64x64xf32>
    %1039 = vector.shape_cast %1038 : vector<1x64x64xf32> to vector<64x64xf32>
    %cst_496 = arith.constant dense<0.000000e+00> : vector<4x64xf32>
    %1040 = tpu.matmul %1037, %1039, %cst_496 {dimension_numbers = #tpu.dot_dimension_numbers<[1], [0], [0], [1], [0, 0, 1, 1], [], []>} : vector<4x64xf32>, vector<64x64xf32>, vector<4x64xf32> -> vector<4x64xf32>
    %c1_497 = arith.constant 1 : index
    %c0_498 = arith.constant 0 : index
    %c0_499 = arith.constant 0 : index
    %1041 = vector.load %arg45[%c1_497, %c0_498, %c0_499] : memref<2x1x64xf32, #tpu.memory_space<vmem>>, vector<1x1x64xf32>
    %1042 = vector.shape_cast %1041 : vector<1x1x64xf32> to vector<1x64xf32>
    %1043 = vector.broadcast %1042 : vector<1x64xf32> to vector<4x64xf32>
    %1044 = arith.addf %1040, %1043 : vector<4x64xf32>
    %1045 = arith.addf %935, %1044 : vector<4x64xf32>
    %c1_500 = arith.constant 1 : index
    %c0_501 = arith.constant 0 : index
    %c0_502 = arith.constant 0 : index
    %1046 = vector.load %arg34[%c1_500, %c0_501, %c0_502] : memref<2x1x64xf32, #tpu.memory_space<vmem>>, vector<1x1x64xf32>
    %1047 = vector.shape_cast %1046 : vector<1x1x64xf32> to vector<1x64xf32>
    %c1_503 = arith.constant 1 : index
    %c0_504 = arith.constant 0 : index
    %c0_505 = arith.constant 0 : index
    %1048 = vector.load %arg33[%c1_503, %c0_504, %c0_505] : memref<2x1x64xf32, #tpu.memory_space<vmem>>, vector<1x1x64xf32>
    %1049 = vector.shape_cast %1048 : vector<1x1x64xf32> to vector<1x64xf32>
    %cst_506 = arith.constant dense<0.000000e+00> : vector<4xf32>
    %1050 = vector.multi_reduction <add>, %1045, %cst_506 [1] : vector<4x64xf32> to vector<4xf32>
    %1051 = vector.shape_cast %1050 : vector<4xf32> to vector<4x1xf32>
    %cst_507 = arith.constant 6.400000e+01 : f32
    %1052 = vector.broadcast %cst_507 : f32 to vector<4x1xf32>
    %1053 = arith.divf %1051, %1052 : vector<4x1xf32>
    %1054 = vector.broadcast %1053 : vector<4x1xf32> to vector<4x64xf32>
    %1055 = arith.subf %1045, %1054 : vector<4x64xf32>
    %1056 = arith.mulf %1055, %1055 : vector<4x64xf32>
    %cst_508 = arith.constant dense<0.000000e+00> : vector<4xf32>
    %1057 = vector.multi_reduction <add>, %1056, %cst_508 [1] : vector<4x64xf32> to vector<4xf32>
    %1058 = vector.shape_cast %1057 : vector<4xf32> to vector<4x1xf32>
    %cst_509 = arith.constant 6.400000e+01 : f32
    %1059 = vector.broadcast %cst_509 : f32 to vector<4x1xf32>
    %1060 = arith.divf %1058, %1059 : vector<4x1xf32>
    %cst_510 = arith.constant 9.99999974E-6 : f32
    %1061 = vector.broadcast %cst_510 : f32 to vector<4x1xf32>
    %1062 = arith.addf %1060, %1061 : vector<4x1xf32>
    %1063 = math.rsqrt %1062 : vector<4x1xf32>
    %1064 = vector.broadcast %1063 : vector<4x1xf32> to vector<4x64xf32>
    %1065 = arith.mulf %1055, %1064 : vector<4x64xf32>
    %1066 = vector.broadcast %1047 : vector<1x64xf32> to vector<4x64xf32>
    %1067 = arith.mulf %1065, %1066 : vector<4x64xf32>
    %1068 = vector.broadcast %1049 : vector<1x64xf32> to vector<4x64xf32>
    %1069 = arith.addf %1067, %1068 : vector<4x64xf32>
    %c1_511 = arith.constant 1 : index
    %c0_512 = arith.constant 0 : index
    %c0_513 = arith.constant 0 : index
    %1070 = vector.load %arg25[%c1_511, %c0_512, %c0_513] : memref<2x64x128xf32, #tpu.memory_space<vmem>>, vector<1x64x128xf32>
    %1071 = vector.shape_cast %1070 : vector<1x64x128xf32> to vector<64x128xf32>
    %cst_514 = arith.constant dense<0.000000e+00> : vector<4x128xf32>
    %1072 = tpu.matmul %1069, %1071, %cst_514 {dimension_numbers = #tpu.dot_dimension_numbers<[1], [0], [0], [1], [0, 0, 1, 1], [], []>} : vector<4x64xf32>, vector<64x128xf32>, vector<4x128xf32> -> vector<4x128xf32>
    %c1_515 = arith.constant 1 : index
    %c0_516 = arith.constant 0 : index
    %c0_517 = arith.constant 0 : index
    %1073 = vector.load %arg23[%c1_515, %c0_516, %c0_517] : memref<2x1x128xf32, #tpu.memory_space<vmem>>, vector<1x1x128xf32>
    %1074 = vector.shape_cast %1073 : vector<1x1x128xf32> to vector<1x128xf32>
    %1075 = vector.broadcast %1074 : vector<1x128xf32> to vector<4x128xf32>
    %1076 = arith.addf %1072, %1075 : vector<4x128xf32>
    %1077 = arith.negf %1076 : vector<4x128xf32>
    %1078 = math.exp %1077 : vector<4x128xf32>
    %cst_518 = arith.constant 1.000000e+00 : f32
    %1079 = vector.broadcast %cst_518 : f32 to vector<4x128xf32>
    %1080 = arith.addf %1079, %1078 : vector<4x128xf32>
    %1081 = arith.divf %1079, %1080 : vector<4x128xf32>
    %1082 = arith.mulf %1076, %1081 : vector<4x128xf32>
    %c1_519 = arith.constant 1 : index
    %c0_520 = arith.constant 0 : index
    %c0_521 = arith.constant 0 : index
    %1083 = vector.load %arg26[%c1_519, %c0_520, %c0_521] : memref<2x128x64xf32, #tpu.memory_space<vmem>>, vector<1x128x64xf32>
    %1084 = vector.shape_cast %1083 : vector<1x128x64xf32> to vector<128x64xf32>
    %cst_522 = arith.constant dense<0.000000e+00> : vector<4x64xf32>
    %1085 = tpu.matmul %1082, %1084, %cst_522 {dimension_numbers = #tpu.dot_dimension_numbers<[1], [0], [0], [1], [0, 0, 1, 1], [], []>} : vector<4x128xf32>, vector<128x64xf32>, vector<4x64xf32> -> vector<4x64xf32>
    %c1_523 = arith.constant 1 : index
    %c0_524 = arith.constant 0 : index
    %c0_525 = arith.constant 0 : index
    %1086 = vector.load %arg24[%c1_523, %c0_524, %c0_525] : memref<2x1x64xf32, #tpu.memory_space<vmem>>, vector<1x1x64xf32>
    %1087 = vector.shape_cast %1086 : vector<1x1x64xf32> to vector<1x64xf32>
    %1088 = vector.broadcast %1087 : vector<1x64xf32> to vector<4x64xf32>
    %1089 = arith.addf %1085, %1088 : vector<4x64xf32>
    %cst_526 = arith.constant 5.000000e-01 : f32
    %1090 = vector.broadcast %cst_526 : f32 to vector<4x64xf32>
    %1091 = arith.mulf %1090, %1089 : vector<4x64xf32>
    %1092 = arith.addf %1045, %1091 : vector<4x64xf32>
    %c1_527 = arith.constant 1 : index
    %c0_528 = arith.constant 0 : index
    %c0_529 = arith.constant 0 : index
    %1093 = vector.load %arg38[%c1_527, %c0_528, %c0_529] : memref<2x1x64xf32, #tpu.memory_space<vmem>>, vector<1x1x64xf32>
    %1094 = vector.shape_cast %1093 : vector<1x1x64xf32> to vector<1x64xf32>
    %c1_530 = arith.constant 1 : index
    %c0_531 = arith.constant 0 : index
    %c0_532 = arith.constant 0 : index
    %1095 = vector.load %arg37[%c1_530, %c0_531, %c0_532] : memref<2x1x64xf32, #tpu.memory_space<vmem>>, vector<1x1x64xf32>
    %1096 = vector.shape_cast %1095 : vector<1x1x64xf32> to vector<1x64xf32>
    %cst_533 = arith.constant dense<0.000000e+00> : vector<4xf32>
    %1097 = vector.multi_reduction <add>, %1092, %cst_533 [1] : vector<4x64xf32> to vector<4xf32>
    %1098 = vector.shape_cast %1097 : vector<4xf32> to vector<4x1xf32>
    %cst_534 = arith.constant 6.400000e+01 : f32
    %1099 = vector.broadcast %cst_534 : f32 to vector<4x1xf32>
    %1100 = arith.divf %1098, %1099 : vector<4x1xf32>
    %1101 = vector.broadcast %1100 : vector<4x1xf32> to vector<4x64xf32>
    %1102 = arith.subf %1092, %1101 : vector<4x64xf32>
    %1103 = arith.mulf %1102, %1102 : vector<4x64xf32>
    %cst_535 = arith.constant dense<0.000000e+00> : vector<4xf32>
    %1104 = vector.multi_reduction <add>, %1103, %cst_535 [1] : vector<4x64xf32> to vector<4xf32>
    %1105 = vector.shape_cast %1104 : vector<4xf32> to vector<4x1xf32>
    %cst_536 = arith.constant 6.400000e+01 : f32
    %1106 = vector.broadcast %cst_536 : f32 to vector<4x1xf32>
    %1107 = arith.divf %1105, %1106 : vector<4x1xf32>
    %cst_537 = arith.constant 9.99999974E-6 : f32
    %1108 = vector.broadcast %cst_537 : f32 to vector<4x1xf32>
    %1109 = arith.addf %1107, %1108 : vector<4x1xf32>
    %1110 = math.rsqrt %1109 : vector<4x1xf32>
    %1111 = vector.broadcast %1110 : vector<4x1xf32> to vector<4x64xf32>
    %1112 = arith.mulf %1102, %1111 : vector<4x64xf32>
    %1113 = vector.broadcast %1094 : vector<1x64xf32> to vector<4x64xf32>
    %1114 = arith.mulf %1112, %1113 : vector<4x64xf32>
    %1115 = vector.broadcast %1096 : vector<1x64xf32> to vector<4x64xf32>
    %1116 = arith.addf %1114, %1115 : vector<4x64xf32>
    %c0_538 = arith.constant 0 : index
    %c0_539 = arith.constant 0 : index
    %1117 = vector.load %arg6[%c0_538, %c0_539] : memref<1x64xf32, #tpu.memory_space<vmem>>, vector<1x64xf32>
    %c0_540 = arith.constant 0 : index
    %c0_541 = arith.constant 0 : index
    %1118 = vector.load %arg5[%c0_540, %c0_541] : memref<1x64xf32, #tpu.memory_space<vmem>>, vector<1x64xf32>
    %cst_542 = arith.constant dense<0.000000e+00> : vector<4xf32>
    %1119 = vector.multi_reduction <add>, %1116, %cst_542 [1] : vector<4x64xf32> to vector<4xf32>
    %1120 = vector.shape_cast %1119 : vector<4xf32> to vector<4x1xf32>
    %cst_543 = arith.constant 6.400000e+01 : f32
    %1121 = vector.broadcast %cst_543 : f32 to vector<4x1xf32>
    %1122 = arith.divf %1120, %1121 : vector<4x1xf32>
    %1123 = vector.broadcast %1122 : vector<4x1xf32> to vector<4x64xf32>
    %1124 = arith.subf %1116, %1123 : vector<4x64xf32>
    %1125 = arith.mulf %1124, %1124 : vector<4x64xf32>
    %cst_544 = arith.constant dense<0.000000e+00> : vector<4xf32>
    %1126 = vector.multi_reduction <add>, %1125, %cst_544 [1] : vector<4x64xf32> to vector<4xf32>
    %1127 = vector.shape_cast %1126 : vector<4xf32> to vector<4x1xf32>
    %cst_545 = arith.constant 6.400000e+01 : f32
    %1128 = vector.broadcast %cst_545 : f32 to vector<4x1xf32>
    %1129 = arith.divf %1127, %1128 : vector<4x1xf32>
    %cst_546 = arith.constant 9.99999974E-6 : f32
    %1130 = vector.broadcast %cst_546 : f32 to vector<4x1xf32>
    %1131 = arith.addf %1129, %1130 : vector<4x1xf32>
    %1132 = math.rsqrt %1131 : vector<4x1xf32>
    %1133 = vector.broadcast %1132 : vector<4x1xf32> to vector<4x64xf32>
    %1134 = arith.mulf %1124, %1133 : vector<4x64xf32>
    %1135 = vector.broadcast %1117 : vector<1x64xf32> to vector<4x64xf32>
    %1136 = arith.mulf %1134, %1135 : vector<4x64xf32>
    %1137 = vector.broadcast %1118 : vector<1x64xf32> to vector<4x64xf32>
    %1138 = arith.addf %1136, %1137 : vector<4x64xf32>
    %c0_547 = arith.constant 0 : index
    %c0_548 = arith.constant 0 : index
    %1139 = vector.load %arg10[%c0_547, %c0_548] : memref<64x128xf32, #tpu.memory_space<vmem>>, vector<64x128xf32>
    %cst_549 = arith.constant dense<0.000000e+00> : vector<4x128xf32>
    %1140 = tpu.matmul %1138, %1139, %cst_549 {dimension_numbers = #tpu.dot_dimension_numbers<[1], [0], [0], [1], [0, 0, 1, 1], [], []>} : vector<4x64xf32>, vector<64x128xf32>, vector<4x128xf32> -> vector<4x128xf32>
    %c0_550 = arith.constant 0 : index
    %c0_551 = arith.constant 0 : index
    %1141 = vector.load %arg9[%c0_550, %c0_551] : memref<1x128xf32, #tpu.memory_space<vmem>>, vector<1x128xf32>
    %1142 = vector.broadcast %1141 : vector<1x128xf32> to vector<4x128xf32>
    %1143 = arith.addf %1140, %1142 : vector<4x128xf32>
    %cst_552 = arith.constant dense<0xFF800000> : vector<4xf32>
    %1144 = vector.multi_reduction <maximumf>, %1143, %cst_552 [1] : vector<4x128xf32> to vector<4xf32>
    %1145 = vector.shape_cast %1144 : vector<4xf32> to vector<4x1xf32>
    %1146 = vector.broadcast %1145 : vector<4x1xf32> to vector<4x128xf32>
    %1147 = arith.subf %1143, %1146 : vector<4x128xf32>
    %1148 = math.exp %1147 : vector<4x128xf32>
    %cst_553 = arith.constant dense<0.000000e+00> : vector<4xf32>
    %1149 = vector.multi_reduction <add>, %1148, %cst_553 [1] : vector<4x128xf32> to vector<4xf32>
    %1150 = vector.shape_cast %1149 : vector<4xf32> to vector<4x1xf32>
    %1151 = math.log %1150 : vector<4x1xf32>
    %1152 = vector.broadcast %1145 : vector<4x1xf32> to vector<4x128xf32>
    %1153 = arith.subf %1143, %1152 : vector<4x128xf32>
    %1154 = vector.broadcast %1151 : vector<4x1xf32> to vector<4x128xf32>
    %1155 = arith.subf %1153, %1154 : vector<4x128xf32>
    %c0_554 = arith.constant 0 : index
    %c0_555 = arith.constant 0 : index
    %1156 = vector.load %arg52[%c0_554, %c0_555] : memref<4x128xf32, #tpu.memory_space<vmem>>, vector<4x128xf32>
    tpu.vector_store %arg52[%c0_554, %c0_555], %1155 {strides = array<i32>} : memref<4x128xf32, #tpu.memory_space<vmem>>, vector<4x128xf32>,
    return
  }
}

</mosaic_0001>

<llo_original>
// kernel: forward.1
$region0: #{forward.1}
  #allocation0 [shape = 'u32[]', space=smem, size = 0x4, offset = 0x4, fixed_abs, tag = 'smem constant byte address 0x4 - core index']
  #allocation1 [shape = 'u32[144,128]{1,0:T(1,128)}', space=vmem, size = 0x12000, scoped, tag = 'internal scratch']
  %s0 = inlined_call_operand.smem [shape: u32[55], index: -1, kind: input, shape index: {}]
  %s1 = sld [smem:[%s0]]
  %s2 = scalar_lea.smem %s0, 1
  %s3 = sld [smem:[%s2]]
  %s4 = scalar_lea.smem %s0, 2
  %s5 = sld [smem:[%s4]]
  %s6 = scalar_lea.smem %s0, 3
  %s7 = sld [smem:[%s6]]
  %s8 = scalar_lea.smem %s0, 4
  %s9 = sld [smem:[%s8]]
  %s10 = scalar_lea.smem %s0, 5
  %s11 = sld [smem:[%s10]]
  %s12 = scalar_lea.smem %s0, 6
  %s13 = sld [smem:[%s12]]
  %s14 = scalar_lea.smem %s0, 7
  %s15 = sld [smem:[%s14]]
  %s16 = scalar_lea.smem %s0, 8
  %s17 = sld [smem:[%s16]]
  %s18 = scalar_lea.smem %s0, 9
  %s19 = sld [smem:[%s18]]
  %s20 = scalar_lea.smem %s0, 10
  %s21 = sld [smem:[%s20]]
  %s22 = scalar_lea.smem %s0, 11
  %s23 = sld [smem:[%s22]]
  %s24 = scalar_lea.smem %s0, 12
  %s25 = sld [smem:[%s24]]
  %s26 = scalar_lea.smem %s0, 13
  %s27 = sld [smem:[%s26]]
  %s28 = scalar_lea.smem %s0, 14
  %s29 = sld [smem:[%s28]]
  %s30 = scalar_lea.smem %s0, 15
  %s31 = sld [smem:[%s30]]
  %s32 = scalar_lea.smem %s0, 16
  %s33 = sld [smem:[%s32]]
  %s34 = scalar_lea.smem %s0, 17
  %s35 = sld [smem:[%s34]]
  %s36 = scalar_lea.smem %s0, 18
  %s37 = sld [smem:[%s36]]
  %s38 = scalar_lea.smem %s0, 19
  %s39 = sld [smem:[%s38]]
  %s40 = scalar_lea.smem %s0, 20
  %s41 = sld [smem:[%s40]]
  %s42 = scalar_lea.smem %s0, 21
  %s43 = sld [smem:[%s42]]
  %s44 = scalar_lea.smem %s0, 22
  %s45 = sld [smem:[%s44]]
  %s46 = scalar_lea.smem %s0, 23
  %s47 = sld [smem:[%s46]]
  %s48 = scalar_lea.smem %s0, 24
  %s49 = sld [smem:[%s48]]
  %s50 = scalar_lea.smem %s0, 25
  %s51 = sld [smem:[%s50]]
  %s52 = scalar_lea.smem %s0, 26
  %s53 = sld [smem:[%s52]]
  %s54 = scalar_lea.smem %s0, 27
  %s55 = sld [smem:[%s54]]
  %s56 = scalar_lea.smem %s0, 28
  %s57 = sld [smem:[%s56]]
  %s58 = scalar_lea.smem %s0, 29
  %s59 = sld [smem:[%s58]]
  %s60 = scalar_lea.smem %s0, 30
  %s61 = sld [smem:[%s60]]
  %s62 = scalar_lea.smem %s0, 31
  %s63 = sld [smem:[%s62]]
  %s64 = scalar_lea.smem %s0, 32
  %s65 = sld [smem:[%s64]]
  %s66 = scalar_lea.smem %s0, 33
  %s67 = sld [smem:[%s66]]
  %s68 = scalar_lea.smem %s0, 34
  %s69 = sld [smem:[%s68]]
  %s70 = scalar_lea.smem %s0, 35
  %s71 = sld [smem:[%s70]]
  %s72 = scalar_lea.smem %s0, 36
  %s73 = sld [smem:[%s72]]
  %s74 = scalar_lea.smem %s0, 37
  %s75 = sld [smem:[%s74]]
  %s76 = scalar_lea.smem %s0, 38
  %s77 = sld [smem:[%s76]]
  %s78 = scalar_lea.smem %s0, 39
  %s79 = sld [smem:[%s78]]
  %s80 = scalar_lea.smem %s0, 40
  %s81 = sld [smem:[%s80]]
  %s82 = scalar_lea.smem %s0, 41
  %s83 = sld [smem:[%s82]]
  %s84 = scalar_lea.smem %s0, 42
  %s85 = sld [smem:[%s84]]
  %s86 = scalar_lea.smem %s0, 43
  %s87 = sld [smem:[%s86]]
  %s88 = scalar_lea.smem %s0, 44
  %s89 = sld [smem:[%s88]]
  %s90 = scalar_lea.smem %s0, 45
  %s91 = sld [smem:[%s90]]
  %s92 = scalar_lea.smem %s0, 46
  %s93 = sld [smem:[%s92]]
  %s94 = scalar_lea.smem %s0, 47
  %s95 = sld [smem:[%s94]]
  %s96 = scalar_lea.smem %s0, 48
  %s97 = sld [smem:[%s96]]
  %s98 = scalar_lea.smem %s0, 49
  %s99 = sld [smem:[%s98]]
  %s100 = scalar_lea.smem %s0, 50
  %s101 = sld [smem:[%s100]]
  %s102 = scalar_lea.smem %s0, 51
  %s103 = sld [smem:[%s102]]
  %s104 = scalar_lea.smem %s0, 52
  %s105 = sld [smem:[%s104]]
  %s106 = scalar_lea.smem %s0, 53
  %s107 = sld [smem:[%s106]]
  %s108 = scalar_lea.smem %s0, 54
  %s109 = sld [smem:[%s108]]
  %110 = xla_tuple %s105, %s107, %s109
  %s111 = sld [smem:[#allocation0]]
  $region346: #{forward.1} parent=0
    _
  %s113 = ssub.s32 1, %s111
  %s114 = scalar_select 0, %s113, %s111
  $region1: #{forward.1} parent=0
    #allocation2 [shape = 'u8[512]{0}', space=vmem, size = 0x400, scoped, tag = 'input window, operand 6, single buffered']
    #allocation3 [shape = 's32[1]{0}', space=sflag, size = 0x4, scoped, tag = 'scoped memory for forward.1']
    #allocation4 [shape = 's32[1]{0}', space=sflag, size = 0x4, scoped, tag = 'scoped memory for forward.1']
    #allocation5 [shape = 'u8[512]{0}', space=vmem, size = 0x400, scoped, tag = 'input window, operand 7, single buffered']
    #allocation6 [shape = 's32[1]{0}', space=sflag, size = 0x4, scoped, tag = 'scoped memory for forward.1']
    #allocation7 [shape = 'u8[512]{0}', space=vmem, size = 0x400, scoped, tag = 'input window, operand 8, single buffered']
    #allocation8 [shape = 'u8[512]{0}', space=vmem, size = 0x400, scoped, tag = 'input window, operand 9, single buffered']
    #allocation9 [shape = 's32[1]{0}', space=sflag, size = 0x4, scoped, tag = 'scoped memory for forward.1']
    #allocation10 [shape = 'u8[512]{0}', space=vmem, size = 0x400, scoped, tag = 'input window, operand 11, single buffered']
    #allocation11 [shape = 'u8[1024]{0}', space=vmem, size = 0x400, scoped, tag = 'input window, operand 15, single buffered']
    #allocation12 [shape = 's32[1]{0}', space=sflag, size = 0x4, scoped, tag = 'scoped memory for forward.1']
    #allocation13 [shape = 'u8[1024]{0}', space=vmem, size = 0x400, scoped, tag = 'input window, operand 16, single buffered']
    #allocation14 [shape = 'u8[1024]{0}', space=vmem, size = 0x400, scoped, tag = 'input window, operand 17, single buffered']
    #allocation15 [shape = 's32[1]{0}', space=sflag, size = 0x4, scoped, tag = 'scoped memory for forward.1']
    #allocation16 [shape = 'u8[1024]{0}', space=vmem, size = 0x400, scoped, tag = 'input window, operand 18, single buffered']
    #allocation17 [shape = 'u8[1024]{0}', space=vmem, size = 0x400, scoped, tag = 'input window, operand 19, single buffered']
    #allocation18 [shape = 's32[1]{0}', space=sflag, size = 0x4, scoped, tag = 'scoped memory for forward.1']
    #allocation19 [shape = 'u8[1024]{0}', space=vmem, size = 0x400, scoped, tag = 'input window, operand 20, single buffered']
    #allocation20 [shape = 'u8[1024]{0}', space=vmem, size = 0x400, scoped, tag = 'input window, operand 21, single buffered']
    #allocation21 [shape = 's32[1]{0}', space=sflag, size = 0x4, scoped, tag = 'scoped memory for forward.1']
    #allocation22 [shape = 'u8[1024]{0}', space=vmem, size = 0x400, scoped, tag = 'input window, operand 23, single buffered']
    #allocation23 [shape = 'u8[1024]{0}', space=vmem, size = 0x400, scoped, tag = 'input window, operand 24, single buffered']
    #allocation24 [shape = 's32[1]{0}', space=sflag, size = 0x4, scoped, tag = 'scoped memory for forward.1']
    #allocation25 [shape = 'u8[1024]{0}', space=vmem, size = 0x400, scoped, tag = 'input window, operand 27, single buffered']
    #allocation26 [shape = 'u8[1024]{0}', space=vmem, size = 0x400, scoped, tag = 'input window, operand 28, single buffered']
    #allocation27 [shape = 's32[1]{0}', space=sflag, size = 0x4, scoped, tag = 'scoped memory for forward.1']
    #allocation28 [shape = 'u8[1024]{0}', space=vmem, size = 0x400, scoped, tag = 'input window, operand 31, single buffered']
    #allocation29 [shape = 'u8[1024]{0}', space=vmem, size = 0x400, scoped, tag = 'input window, operand 32, single buffered']
    #allocation30 [shape = 's32[1]{0}', space=sflag, size = 0x4, scoped, tag = 'scoped memory for forward.1']
    #allocation31 [shape = 'u8[1024]{0}', space=vmem, size = 0x400, scoped, tag = 'input window, operand 33, single buffered']
    #allocation32 [shape = 'u8[1024]{0}', space=vmem, size = 0x400, scoped, tag = 'input window, operand 34, single buffered']
    #allocation33 [shape = 's32[1]{0}', space=sflag, size = 0x4, scoped, tag = 'scoped memory for forward.1']
    #allocation34 [shape = 'u8[1024]{0}', space=vmem, size = 0x400, scoped, tag = 'input window, operand 35, single buffered']
    #allocation35 [shape = 'u8[1024]{0}', space=vmem, size = 0x400, scoped, tag = 'input window, operand 36, single buffered']
    #allocation36 [shape = 's32[1]{0}', space=sflag, size = 0x4, scoped, tag = 'scoped memory for forward.1']
    #allocation37 [shape = 'u8[1024]{0}', space=vmem, size = 0x400, scoped, tag = 'input window, operand 37, single buffered']
    #allocation38 [shape = 'u8[1024]{0}', space=vmem, size = 0x400, scoped, tag = 'input window, operand 38, single buffered']
    #allocation39 [shape = 's32[1]{0}', space=sflag, size = 0x4, scoped, tag = 'scoped memory for forward.1']
    #allocation40 [shape = 'u8[1024]{0}', space=vmem, size = 0x400, scoped, tag = 'input window, operand 39, single buffered']
    #allocation41 [shape = 'u8[1024]{0}', space=vmem, size = 0x400, scoped, tag = 'input window, operand 40, single buffered']
    #allocation42 [shape = 's32[1]{0}', space=sflag, size = 0x4, scoped, tag = 'scoped memory for forward.1']
    #allocation43 [shape = 'u8[4096]{0}', space=vmem, size = 0x1000, scoped, tag = 'input window, operand 41, single buffered']
    #allocation44 [shape = 'u8[4096]{0}', space=vmem, size = 0x1000, scoped, tag = 'input window, operand 42, single buffered']
    #allocation45 [shape = 's32[1]{0}', space=sflag, size = 0x4, scoped, tag = 'scoped memory for forward.1']
    #allocation46 [shape = 'u8[65536]{0}', space=vmem, size = 0x10000, scoped, tag = 'output window, operand 1, single buffered']
    %115 = vsyncpa [#allocation3], 0
    %116 = vsyncpa [#allocation6], 0
    %117 = vsyncpa [#allocation9], 0
    %118 = vsyncpa [#allocation12], 0
    %119 = vsyncpa [#allocation15], 0
    %120 = vsyncpa [#allocation18], 0
    %121 = vsyncpa [#allocation21], 0
    %122 = vsyncpa [#allocation24], 0
    %123 = vsyncpa [#allocation27], 0
    %124 = vsyncpa [#allocation30], 0
    %125 = vsyncpa [#allocation33], 0
    %126 = vsyncpa [#allocation36], 0
    %127 = vsyncpa [#allocation39], 0
    %128 = vsyncpa [#allocation42], 0
    %129 = vsyncpa [#allocation45], 0
    %130 = vsyncpa [#allocation4], 0
    // Predicated region
    $region2: #{forward.1} parent=1 // pred_check
      _
    $region3: #{forward.1} parent=1 // pred_check_branch
      %132 = sbr.rel (0) target = $region5
    $region4: #{forward.1} parent=1 // pred_region
      _
    $region5: #{forward.1} parent=1 // pred_fallthru
      _
    // Predicated region
    $region6: #{forward.1} parent=1 // pred_check
      _
    $region7: #{forward.1} parent=1 // pred_check_branch
      %134 = sbr.rel (0) target = $region9
    $region8: #{forward.1} parent=1 // pred_region
      _
    $region9: #{forward.1} parent=1 // pred_fallthru
      _
    // Predicated region
    $region10: #{forward.1} parent=1 // pred_check
      _
    $region11: #{forward.1} parent=1 // pred_check_branch
      %136 = sbr.rel (0) target = $region13
    $region12: #{forward.1} parent=1 // pred_region
      _
    $region13: #{forward.1} parent=1 // pred_fallthru
      _
    // Predicated region
    $region14: #{forward.1} parent=1 // pred_check
      _
    $region15: #{forward.1} parent=1 // pred_check_branch
      %138 = sbr.rel (0) target = $region17
    $region16: #{forward.1} parent=1 // pred_region
      _
    $region17: #{forward.1} parent=1 // pred_fallthru
      _
    // Predicated region
    $region18: #{forward.1} parent=1 // pred_check
      _
    $region19: #{forward.1} parent=1 // pred_check_branch
      %140 = sbr.rel (0) target = $region21
    $region20: #{forward.1} parent=1 // pred_region
      _
    $region21: #{forward.1} parent=1 // pred_fallthru
      _
    // Predicated region
    $region22: #{forward.1} parent=1 // pred_check
      _
    $region23: #{forward.1} parent=1 // pred_check_branch
      %142 = sbr.rel (0) target = $region25
    $region24: #{forward.1} parent=1 // pred_region
      _
    $region25: #{forward.1} parent=1 // pred_fallthru
      _
    // Predicated region
    $region26: #{forward.1} parent=1 // pred_check
      _
    $region27: #{forward.1} parent=1 // pred_check_branch
      %144 = sbr.rel (0) target = $region29
    $region28: #{forward.1} parent=1 // pred_region
      %s146 = ssub.s32 16, 16
      %147 = vsyncadd [#allocation3], %s146
      %s149 = sshll.u32 [#allocation2], 4
      %s150 = int_to_ptr.vmem [resolvable:$true] %s149
      %152 = dma.hbm_to_vmem [thread:$0]  %s13, 16, %s150, [#allocation3]
    $region29: #{forward.1} parent=1 // pred_fallthru
      _
    // Predicated region
    $region30: #{forward.1} parent=1 // pred_check
      _
    $region31: #{forward.1} parent=1 // pred_check_branch
      %154 = sbr.rel (0) target = $region33
    $region32: #{forward.1} parent=1 // pred_region
      %s156 = ssub.s32 16, 16
      %157 = vsyncadd [#allocation6], %s156
      %s159 = sshll.u32 [#allocation5], 4
      %s160 = int_to_ptr.vmem [resolvable:$true] %s159
      %162 = dma.hbm_to_vmem [thread:$0]  %s15, 16, %s160, [#allocation6]
    $region33: #{forward.1} parent=1 // pred_fallthru
      _
    // Predicated region
    $region34: #{forward.1} parent=1 // pred_check
      _
    $region35: #{forward.1} parent=1 // pred_check_branch
      %164 = sbr.rel (0) target = $region37
    $region36: #{forward.1} parent=1 // pred_region
      %s166 = ssub.s32 16, 16
      %167 = vsyncadd [#allocation6], %s166
      %s169 = sshll.u32 [#allocation7], 4
      %s170 = int_to_ptr.vmem [resolvable:$true] %s169
      %172 = dma.hbm_to_vmem [thread:$0]  %s17, 16, %s170, [#allocation6]
    $region37: #{forward.1} parent=1 // pred_fallthru
      _
    // Predicated region
    $region38: #{forward.1} parent=1 // pred_check
      _
    $region39: #{forward.1} parent=1 // pred_check_branch
      %174 = sbr.rel (0) target = $region41
    $region40: #{forward.1} parent=1 // pred_region
      %s176 = ssub.s32 16, 16
      %177 = vsyncadd [#allocation9], %s176
      %s179 = sshll.u32 [#allocation8], 4
      %s180 = int_to_ptr.vmem [resolvable:$true] %s179
      %182 = dma.hbm_to_vmem [thread:$0]  %s19, 16, %s180, [#allocation9]
    $region41: #{forward.1} parent=1 // pred_fallthru
      _
    // Predicated region
    $region42: #{forward.1} parent=1 // pred_check
      _
    $region43: #{forward.1} parent=1 // pred_check_branch
      %184 = sbr.rel (0) target = $region45
    $region44: #{forward.1} parent=1 // pred_region
      _
    $region45: #{forward.1} parent=1 // pred_fallthru
      _
    // Predicated region
    $region46: #{forward.1} parent=1 // pred_check
      _
    $region47: #{forward.1} parent=1 // pred_check_branch
      %186 = sbr.rel (0) target = $region49
    $region48: #{forward.1} parent=1 // pred_region
      %s188 = ssub.s32 16, 16
      %189 = vsyncadd [#allocation9], %s188
      %s191 = sshll.u32 [#allocation10], 4
      %s192 = int_to_ptr.vmem [resolvable:$true] %s191
      %194 = dma.hbm_to_vmem [thread:$0]  %s23, 16, %s192, [#allocation9]
    $region49: #{forward.1} parent=1 // pred_fallthru
      _
    // Predicated region
    $region50: #{forward.1} parent=1 // pred_check
      _
    $region51: #{forward.1} parent=1 // pred_check_branch
      %196 = sbr.rel (0) target = $region53
    $region52: #{forward.1} parent=1 // pred_region
      _
    $region53: #{forward.1} parent=1 // pred_fallthru
      _
    // Predicated region
    $region54: #{forward.1} parent=1 // pred_check
      _
    $region55: #{forward.1} parent=1 // pred_check_branch
      %198 = sbr.rel (0) target = $region57
    $region56: #{forward.1} parent=1 // pred_region
      _
    $region57: #{forward.1} parent=1 // pred_fallthru
      _
    // Predicated region
    $region58: #{forward.1} parent=1 // pred_check
      _
    $region59: #{forward.1} parent=1 // pred_check_branch
      %200 = sbr.rel (0) target = $region61
    $region60: #{forward.1} parent=1 // pred_region
      _
    $region61: #{forward.1} parent=1 // pred_fallthru
      _
    // Predicated region
    $region62: #{forward.1} parent=1 // pred_check
      _
    $region63: #{forward.1} parent=1 // pred_check_branch
      %202 = sbr.rel (0) target = $region65
    $region64: #{forward.1} parent=1 // pred_region
      %s204 = ssub.s32 32, 32
      %205 = vsyncadd [#allocation12], %s204
      %s206 = sshll.u32 [#allocation11], 4
      %s207 = int_to_ptr.vmem [resolvable:$true] %s206
      %212 = dma.hbm_to_vmem [thread:$0]  %s31, 32, %s207, [#allocation12], 16, 16, 1
    $region65: #{forward.1} parent=1 // pred_fallthru
      _
    // Predicated region
    $region66: #{forward.1} parent=1 // pred_check
      _
    $region67: #{forward.1} parent=1 // pred_check_branch
      %214 = sbr.rel (0) target = $region69
    $region68: #{forward.1} parent=1 // pred_region
      %s216 = ssub.s32 32, 32
      %217 = vsyncadd [#allocation12], %s216
      %s218 = sshll.u32 [#allocation13], 4
      %s219 = int_to_ptr.vmem [resolvable:$true] %s218
      %224 = dma.hbm_to_vmem [thread:$0]  %s33, 32, %s219, [#allocation12], 16, 16, 1
    $region69: #{forward.1} parent=1 // pred_fallthru
      _
    // Predicated region
    $region70: #{forward.1} parent=1 // pred_check
      _
    $region71: #{forward.1} parent=1 // pred_check_branch
      %226 = sbr.rel (0) target = $region73
    $region72: #{forward.1} parent=1 // pred_region
      %s228 = ssub.s32 32, 32
      %229 = vsyncadd [#allocation15], %s228
      %s230 = sshll.u32 [#allocation14], 4
      %s231 = int_to_ptr.vmem [resolvable:$true] %s230
      %236 = dma.hbm_to_vmem [thread:$0]  %s35, 32, %s231, [#allocation15], 16, 16, 1
    $region73: #{forward.1} parent=1 // pred_fallthru
      _
    // Predicated region
    $region74: #{forward.1} parent=1 // pred_check
      _
    $region75: #{forward.1} parent=1 // pred_check_branch
      %238 = sbr.rel (0) target = $region77
    $region76: #{forward.1} parent=1 // pred_region
      %s240 = ssub.s32 32, 32
      %241 = vsyncadd [#allocation15], %s240
      %s242 = sshll.u32 [#allocation16], 4
      %s243 = int_to_ptr.vmem [resolvable:$true] %s242
      %248 = dma.hbm_to_vmem [thread:$0]  %s37, 32, %s243, [#allocation15], 16, 16, 1
    $region77: #{forward.1} parent=1 // pred_fallthru
      _
    // Predicated region
    $region78: #{forward.1} parent=1 // pred_check
      _
    $region79: #{forward.1} parent=1 // pred_check_branch
      %250 = sbr.rel (0) target = $region81
    $region80: #{forward.1} parent=1 // pred_region
      %s252 = ssub.s32 32, 32
      %253 = vsyncadd [#allocation18], %s252
      %s254 = sshll.u32 [#allocation17], 4
      %s255 = int_to_ptr.vmem [resolvable:$true] %s254
      %260 = dma.hbm_to_vmem [thread:$0]  %s39, 32, %s255, [#allocation18], 16, 16, 1
    $region81: #{forward.1} parent=1 // pred_fallthru
      _
    // Predicated region
    $region82: #{forward.1} parent=1 // pred_check
      _
    $region83: #{forward.1} parent=1 // pred_check_branch
      %262 = sbr.rel (0) target = $region85
    $region84: #{forward.1} parent=1 // pred_region
      %s264 = ssub.s32 32, 32
      %265 = vsyncadd [#allocation18], %s264
      %s266 = sshll.u32 [#allocation19], 4
      %s267 = int_to_ptr.vmem [resolvable:$true] %s266
      %272 = dma.hbm_to_vmem [thread:$0]  %s41, 32, %s267, [#allocation18], 16, 16, 1
    $region85: #{forward.1} parent=1 // pred_fallthru
      _
    // Predicated region
    $region86: #{forward.1} parent=1 // pred_check
      _
    $region87: #{forward.1} parent=1 // pred_check_branch
      %274 = sbr.rel (0) target = $region89
    $region88: #{forward.1} parent=1 // pred_region
      %s276 = ssub.s32 32, 32
      %277 = vsyncadd [#allocation21], %s276
      %s278 = sshll.u32 [#allocation20], 4
      %s279 = int_to_ptr.vmem [resolvable:$true] %s278
      %284 = dma.hbm_to_vmem [thread:$0]  %s43, 32, %s279, [#allocation21], 16, 16, 1
    $region89: #{forward.1} parent=1 // pred_fallthru
      _
    // Predicated region
    $region90: #{forward.1} parent=1 // pred_check
      _
    $region91: #{forward.1} parent=1 // pred_check_branch
      %286 = sbr.rel (0) target = $region93
    $region92: #{forward.1} parent=1 // pred_region
      _
    $region93: #{forward.1} parent=1 // pred_fallthru
      _
    // Predicated region
    $region94: #{forward.1} parent=1 // pred_check
      _
    $region95: #{forward.1} parent=1 // pred_check_branch
      %288 = sbr.rel (0) target = $region97
    $region96: #{forward.1} parent=1 // pred_region
      %s290 = ssub.s32 32, 32
      %291 = vsyncadd [#allocation21], %s290
      %s292 = sshll.u32 [#allocation22], 4
      %s293 = int_to_ptr.vmem [resolvable:$true] %s292
      %298 = dma.hbm_to_vmem [thread:$0]  %s47, 32, %s293, [#allocation21], 16, 16, 1
    $region97: #{forward.1} parent=1 // pred_fallthru
      _
    // Predicated region
    $region98: #{forward.1} parent=1 // pred_check
      _
    $region99: #{forward.1} parent=1 // pred_check_branch
      %300 = sbr.rel (0) target = $region101
    $region100: #{forward.1} parent=1 // pred_region
      %s302 = ssub.s32 32, 32
      %303 = vsyncadd [#allocation24], %s302
      %s304 = sshll.u32 [#allocation23], 4
      %s305 = int_to_ptr.vmem [resolvable:$true] %s304
      %310 = dma.hbm_to_vmem [thread:$0]  %s49, 32, %s305, [#allocation24], 16, 16, 1
    $region101: #{forward.1} parent=1 // pred_fallthru
      _
    // Predicated region
    $region102: #{forward.1} parent=1 // pred_check
      _
    $region103: #{forward.1} parent=1 // pred_check_branch
      %312 = sbr.rel (0) target = $region105
    $region104: #{forward.1} parent=1 // pred_region
      _
    $region105: #{forward.1} parent=1 // pred_fallthru
      _
    // Predicated region
    $region106: #{forward.1} parent=1 // pred_check
      _
    $region107: #{forward.1} parent=1 // pred_check_branch
      %314 = sbr.rel (0) target = $region109
    $region108: #{forward.1} parent=1 // pred_region
      _
    $region109: #{forward.1} parent=1 // pred_fallthru
      _
    // Predicated region
    $region110: #{forward.1} parent=1 // pred_check
      _
    $region111: #{forward.1} parent=1 // pred_check_branch
      %316 = sbr.rel (0) target = $region113
    $region112: #{forward.1} parent=1 // pred_region
      %s318 = ssub.s32 32, 32
      %319 = vsyncadd [#allocation24], %s318
      %s320 = sshll.u32 [#allocation25], 4
      %s321 = int_to_ptr.vmem [resolvable:$true] %s320
      %326 = dma.hbm_to_vmem [thread:$0]  %s55, 32, %s321, [#allocation24], 16, 16, 1
    $region113: #{forward.1} parent=1 // pred_fallthru
      _
    // Predicated region
    $region114: #{forward.1} parent=1 // pred_check
      _
    $region115: #{forward.1} parent=1 // pred_check_branch
      %328 = sbr.rel (0) target = $region117
    $region116: #{forward.1} parent=1 // pred_region
      %s330 = ssub.s32 32, 32
      %331 = vsyncadd [#allocation27], %s330
      %s332 = sshll.u32 [#allocation26], 4
      %s333 = int_to_ptr.vmem [resolvable:$true] %s332
      %338 = dma.hbm_to_vmem [thread:$0]  %s57, 32, %s333, [#allocation27], 16, 16, 1
    $region117: #{forward.1} parent=1 // pred_fallthru
      _
    // Predicated region
    $region118: #{forward.1} parent=1 // pred_check
      _
    $region119: #{forward.1} parent=1 // pred_check_branch
      %340 = sbr.rel (0) target = $region121
    $region120: #{forward.1} parent=1 // pred_region
      _
    $region121: #{forward.1} parent=1 // pred_fallthru
      _
    // Predicated region
    $region122: #{forward.1} parent=1 // pred_check
      _
    $region123: #{forward.1} parent=1 // pred_check_branch
      %342 = sbr.rel (0) target = $region125
    $region124: #{forward.1} parent=1 // pred_region
      _
    $region125: #{forward.1} parent=1 // pred_fallthru
      _
    // Predicated region
    $region126: #{forward.1} parent=1 // pred_check
      _
    $region127: #{forward.1} parent=1 // pred_check_branch
      %344 = sbr.rel (0) target = $region129
    $region128: #{forward.1} parent=1 // pred_region
      %s346 = ssub.s32 32, 32
      %347 = vsyncadd [#allocation27], %s346
      %s348 = sshll.u32 [#allocation28], 4
      %s349 = int_to_ptr.vmem [resolvable:$true] %s348
      %354 = dma.hbm_to_vmem [thread:$0]  %s63, 32, %s349, [#allocation27], 16, 16, 1
    $region129: #{forward.1} parent=1 // pred_fallthru
      _
    // Predicated region
    $region130: #{forward.1} parent=1 // pred_check
      _
    $region131: #{forward.1} parent=1 // pred_check_branch
      %356 = sbr.rel (0) target = $region133
    $region132: #{forward.1} parent=1 // pred_region
      %s358 = ssub.s32 32, 32
      %359 = vsyncadd [#allocation30], %s358
      %s360 = sshll.u32 [#allocation29], 4
      %s361 = int_to_ptr.vmem [resolvable:$true] %s360
      %366 = dma.hbm_to_vmem [thread:$0]  %s65, 32, %s361, [#allocation30], 16, 16, 1
    $region133: #{forward.1} parent=1 // pred_fallthru
      _
    // Predicated region
    $region134: #{forward.1} parent=1 // pred_check
      _
    $region135: #{forward.1} parent=1 // pred_check_branch
      %368 = sbr.rel (0) target = $region137
    $region136: #{forward.1} parent=1 // pred_region
      %s370 = ssub.s32 32, 32
      %371 = vsyncadd [#allocation30], %s370
      %s372 = sshll.u32 [#allocation31], 4
      %s373 = int_to_ptr.vmem [resolvable:$true] %s372
      %378 = dma.hbm_to_vmem [thread:$0]  %s67, 32, %s373, [#allocation30], 16, 16, 1
    $region137: #{forward.1} parent=1 // pred_fallthru
      _
    // Predicated region
    $region138: #{forward.1} parent=1 // pred_check
      _
    $region139: #{forward.1} parent=1 // pred_check_branch
      %380 = sbr.rel (0) target = $region141
    $region140: #{forward.1} parent=1 // pred_region
      %s382 = ssub.s32 32, 32
      %383 = vsyncadd [#allocation33], %s382
      %s384 = sshll.u32 [#allocation32], 4
      %s385 = int_to_ptr.vmem [resolvable:$true] %s384
      %390 = dma.hbm_to_vmem [thread:$0]  %s69, 32, %s385, [#allocation33], 16, 16, 1
    $region141: #{forward.1} parent=1 // pred_fallthru
      _
    // Predicated region
    $region142: #{forward.1} parent=1 // pred_check
      _
    $region143: #{forward.1} parent=1 // pred_check_branch
      %392 = sbr.rel (0) target = $region145
    $region144: #{forward.1} parent=1 // pred_region
      %s394 = ssub.s32 32, 32
      %395 = vsyncadd [#allocation33], %s394
      %s396 = sshll.u32 [#allocation34], 4
      %s397 = int_to_ptr.vmem [resolvable:$true] %s396
      %402 = dma.hbm_to_vmem [thread:$0]  %s71, 32, %s397, [#allocation33], 16, 16, 1
    $region145: #{forward.1} parent=1 // pred_fallthru
      _
    // Predicated region
    $region146: #{forward.1} parent=1 // pred_check
      _
    $region147: #{forward.1} parent=1 // pred_check_branch
      %404 = sbr.rel (0) target = $region149
    $region148: #{forward.1} parent=1 // pred_region
      %s406 = ssub.s32 32, 32
      %407 = vsyncadd [#allocation36], %s406
      %s408 = sshll.u32 [#allocation35], 4
      %s409 = int_to_ptr.vmem [resolvable:$true] %s408
      %414 = dma.hbm_to_vmem [thread:$0]  %s73, 32, %s409, [#allocation36], 16, 16, 1
    $region149: #{forward.1} parent=1 // pred_fallthru
      _
    // Predicated region
    $region150: #{forward.1} parent=1 // pred_check
      _
    $region151: #{forward.1} parent=1 // pred_check_branch
      %416 = sbr.rel (0) target = $region153
    $region152: #{forward.1} parent=1 // pred_region
      %s418 = ssub.s32 32, 32
      %419 = vsyncadd [#allocation36], %s418
      %s420 = sshll.u32 [#allocation37], 4
      %s421 = int_to_ptr.vmem [resolvable:$true] %s420
      %426 = dma.hbm_to_vmem [thread:$0]  %s75, 32, %s421, [#allocation36], 16, 16, 1
    $region153: #{forward.1} parent=1 // pred_fallthru
      _
    // Predicated region
    $region154: #{forward.1} parent=1 // pred_check
      _
    $region155: #{forward.1} parent=1 // pred_check_branch
      %428 = sbr.rel (0) target = $region157
    $region156: #{forward.1} parent=1 // pred_region
      %s430 = ssub.s32 32, 32
      %431 = vsyncadd [#allocation39], %s430
      %s432 = sshll.u32 [#allocation38], 4
      %s433 = int_to_ptr.vmem [resolvable:$true] %s432
      %438 = dma.hbm_to_vmem [thread:$0]  %s77, 32, %s433, [#allocation39], 16, 16, 1
    $region157: #{forward.1} parent=1 // pred_fallthru
      _
    // Predicated region
    $region158: #{forward.1} parent=1 // pred_check
      _
    $region159: #{forward.1} parent=1 // pred_check_branch
      %440 = sbr.rel (0) target = $region161
    $region160: #{forward.1} parent=1 // pred_region
      %s442 = ssub.s32 32, 32
      %443 = vsyncadd [#allocation39], %s442
      %s444 = sshll.u32 [#allocation40], 4
      %s445 = int_to_ptr.vmem [resolvable:$true] %s444
      %450 = dma.hbm_to_vmem [thread:$0]  %s79, 32, %s445, [#allocation39], 16, 16, 1
    $region161: #{forward.1} parent=1 // pred_fallthru
      _
    // Predicated region
    $region162: #{forward.1} parent=1 // pred_check
      _
    $region163: #{forward.1} parent=1 // pred_check_branch
      %452 = sbr.rel (0) target = $region165
    $region164: #{forward.1} parent=1 // pred_region
      %s454 = ssub.s32 32, 32
      %455 = vsyncadd [#allocation42], %s454
      %s456 = sshll.u32 [#allocation41], 4
      %s457 = int_to_ptr.vmem [resolvable:$true] %s456
      %462 = dma.hbm_to_vmem [thread:$0]  %s81, 32, %s457, [#allocation42], 16, 16, 1
    $region165: #{forward.1} parent=1 // pred_fallthru
      _
    // Predicated region
    $region166: #{forward.1} parent=1 // pred_check
      _
    $region167: #{forward.1} parent=1 // pred_check_branch
      %464 = sbr.rel (0) target = $region169
    $region168: #{forward.1} parent=1 // pred_region
      %s466 = ssub.s32 128, 128
      %467 = vsyncadd [#allocation42], %s466
      %s468 = sshll.u32 [#allocation43], 4
      %s469 = int_to_ptr.vmem [resolvable:$true] %s468
      %474 = dma.hbm_to_vmem [thread:$0]  %s83, 128, %s469, [#allocation42], 64, 64, 4
    $region169: #{forward.1} parent=1 // pred_fallthru
      _
    // Predicated region
    $region170: #{forward.1} parent=1 // pred_check
      _
    $region171: #{forward.1} parent=1 // pred_check_branch
      %476 = sbr.rel (0) target = $region173
    $region172: #{forward.1} parent=1 // pred_region
      %s478 = ssub.s32 128, 128
      %479 = vsyncadd [#allocation45], %s478
      %s480 = sshll.u32 [#allocation44], 4
      %s481 = int_to_ptr.vmem [resolvable:$true] %s480
      %486 = dma.hbm_to_vmem [thread:$0]  %s85, 128, %s481, [#allocation45], 64, 64, 4
    $region173: #{forward.1} parent=1 // pred_fallthru
      _
    // Predicated region
    $region174: #{forward.1} parent=1 // pred_check
      _
    $region175: #{forward.1} parent=1 // pred_check_branch
      %488 = sbr.rel (0) target = $region177
    $region176: #{forward.1} parent=1 // pred_region
      _
    $region177: #{forward.1} parent=1 // pred_fallthru
      _
    // Predicated region
    $region178: #{forward.1} parent=1 // pred_check
      _
    $region179: #{forward.1} parent=1 // pred_check_branch
      %490 = sbr.rel (0) target = $region181
    $region180: #{forward.1} parent=1 // pred_region
      _
    $region181: #{forward.1} parent=1 // pred_fallthru
      _
    // Predicated region
    $region182: #{forward.1} parent=1 // pred_check
      _
    $region183: #{forward.1} parent=1 // pred_check_branch
      %492 = sbr.rel (0) target = $region185
    $region184: #{forward.1} parent=1 // pred_region
      _
    $region185: #{forward.1} parent=1 // pred_fallthru
      _
    // Predicated region
    $region186: #{forward.1} parent=1 // pred_check
      _
    $region187: #{forward.1} parent=1 // pred_check_branch
      %494 = sbr.rel (0) target = $region189
    $region188: #{forward.1} parent=1 // pred_region
      _
    $region189: #{forward.1} parent=1 // pred_fallthru
      _
    // Predicated region
    $region190: #{forward.1} parent=1 // pred_check
      _
    $region191: #{forward.1} parent=1 // pred_check_branch
      %496 = sbr.rel (0) target = $region193
    $region192: #{forward.1} parent=1 // pred_region
      _
    $region193: #{forward.1} parent=1 // pred_fallthru
      _
    // Predicated region
    $region194: #{forward.1} parent=1 // pred_check
      _
    $region195: #{forward.1} parent=1 // pred_check_branch
      %498 = sbr.rel (0) target = $region197
    $region196: #{forward.1} parent=1 // pred_region
      _
    $region197: #{forward.1} parent=1 // pred_fallthru
      _
    // Predicated region
    $region198: #{forward.1} parent=1 // pred_check
      _
    $region199: #{forward.1} parent=1 // pred_check_branch
      %500 = sbr.rel (0) target = $region201
    $region200: #{forward.1} parent=1 // pred_region
      _
    $region201: #{forward.1} parent=1 // pred_fallthru
      _
    // Predicated region
    $region202: #{forward.1} parent=1 // pred_check
      _
    $region203: #{forward.1} parent=1 // pred_check_branch
      %502 = sbr.rel (0) target = $region205
    $region204: #{forward.1} parent=1 // pred_region
      _
    $region205: #{forward.1} parent=1 // pred_fallthru
      _
    // Predicated region
    $region206: #{forward.1} parent=1 // pred_check
      _
    $region207: #{forward.1} parent=1 // pred_check_branch
      %504 = sbr.rel (0) target = $region209
    $region208: #{forward.1} parent=1 // pred_region
      _
    $region209: #{forward.1} parent=1 // pred_fallthru
      _
    // Predicated region
    $region210: #{forward.1} parent=1 // pred_check
      _
    $region211: #{forward.1} parent=1 // pred_check_branch
      %506 = sbr.rel (0) target = $region213
    $region212: #{forward.1} parent=1 // pred_region
      %507 = dma.done [#allocation3], 16
    $region213: #{forward.1} parent=1 // pred_fallthru
      _
    // Predicated region
    $region214: #{forward.1} parent=1 // pred_check
      _
    $region215: #{forward.1} parent=1 // pred_check_branch
      %509 = sbr.rel (0) target = $region217
    $region216: #{forward.1} parent=1 // pred_region
      %510 = dma.done [#allocation6], 16
    $region217: #{forward.1} parent=1 // pred_fallthru
      _
    // Predicated region
    $region218: #{forward.1} parent=1 // pred_check
      _
    $region219: #{forward.1} parent=1 // pred_check_branch
      %512 = sbr.rel (0) target = $region221
    $region220: #{forward.1} parent=1 // pred_region
      %513 = dma.done [#allocation6], 16
    $region221: #{forward.1} parent=1 // pred_fallthru
      _
    // Predicated region
    $region222: #{forward.1} parent=1 // pred_check
      _
    $region223: #{forward.1} parent=1 // pred_check_branch
      %515 = sbr.rel (0) target = $region225
    $region224: #{forward.1} parent=1 // pred_region
      %516 = dma.done [#allocation9], 16
    $region225: #{forward.1} parent=1 // pred_fallthru
      _
    // Predicated region
    $region226: #{forward.1} parent=1 // pred_check
      _
    $region227: #{forward.1} parent=1 // pred_check_branch
      %518 = sbr.rel (0) target = $region229
    $region228: #{forward.1} parent=1 // pred_region
      %519 = dma.done [#allocation9], 16
    $region229: #{forward.1} parent=1 // pred_fallthru
      _
    // Predicated region
    $region230: #{forward.1} parent=1 // pred_check
      _
    $region231: #{forward.1} parent=1 // pred_check_branch
      %521 = sbr.rel (0) target = $region233
    $region232: #{forward.1} parent=1 // pred_region
      %522 = dma.done [#allocation12], 32
    $region233: #{forward.1} parent=1 // pred_fallthru
      _
    // Predicated region
    $region234: #{forward.1} parent=1 // pred_check
      _
    $region235: #{forward.1} parent=1 // pred_check_branch
      %524 = sbr.rel (0) target = $region237
    $region236: #{forward.1} parent=1 // pred_region
      %525 = dma.done [#allocation12], 32
    $region237: #{forward.1} parent=1 // pred_fallthru
      _
    // Predicated region
    $region238: #{forward.1} parent=1 // pred_check
      _
    $region239: #{forward.1} parent=1 // pred_check_branch
      %527 = sbr.rel (0) target = $region241
    $region240: #{forward.1} parent=1 // pred_region
      %528 = dma.done [#allocation15], 32
    $region241: #{forward.1} parent=1 // pred_fallthru
      _
    // Predicated region
    $region242: #{forward.1} parent=1 // pred_check
      _
    $region243: #{forward.1} parent=1 // pred_check_branch
      %530 = sbr.rel (0) target = $region245
    $region244: #{forward.1} parent=1 // pred_region
      %531 = dma.done [#allocation15], 32
    $region245: #{forward.1} parent=1 // pred_fallthru
      _
    // Predicated region
    $region246: #{forward.1} parent=1 // pred_check
      _
    $region247: #{forward.1} parent=1 // pred_check_branch
      %533 = sbr.rel (0) target = $region249
    $region248: #{forward.1} parent=1 // pred_region
      %534 = dma.done [#allocation18], 32
    $region249: #{forward.1} parent=1 // pred_fallthru
      _
    // Predicated region
    $region250: #{forward.1} parent=1 // pred_check
      _
    $region251: #{forward.1} parent=1 // pred_check_branch
      %536 = sbr.rel (0) target = $region253
    $region252: #{forward.1} parent=1 // pred_region
      %537 = dma.done [#allocation18], 32
    $region253: #{forward.1} parent=1 // pred_fallthru
      _
    // Predicated region
    $region254: #{forward.1} parent=1 // pred_check
      _
    $region255: #{forward.1} parent=1 // pred_check_branch
      %539 = sbr.rel (0) target = $region257
    $region256: #{forward.1} parent=1 // pred_region
      %540 = dma.done [#allocation21], 32
    $region257: #{forward.1} parent=1 // pred_fallthru
      _
    // Predicated region
    $region258: #{forward.1} parent=1 // pred_check
      _
    $region259: #{forward.1} parent=1 // pred_check_branch
      %542 = sbr.rel (0) target = $region261
    $region260: #{forward.1} parent=1 // pred_region
      %543 = dma.done [#allocation21], 32
    $region261: #{forward.1} parent=1 // pred_fallthru
      _
    // Predicated region
    $region262: #{forward.1} parent=1 // pred_check
      _
    $region263: #{forward.1} parent=1 // pred_check_branch
      %545 = sbr.rel (0) target = $region265
    $region264: #{forward.1} parent=1 // pred_region
      %546 = dma.done [#allocation24], 32
    $region265: #{forward.1} parent=1 // pred_fallthru
      _
    // Predicated region
    $region266: #{forward.1} parent=1 // pred_check
      _
    $region267: #{forward.1} parent=1 // pred_check_branch
      %548 = sbr.rel (0) target = $region269
    $region268: #{forward.1} parent=1 // pred_region
      %549 = dma.done [#allocation24], 32
    $region269: #{forward.1} parent=1 // pred_fallthru
      _
    // Predicated region
    $region270: #{forward.1} parent=1 // pred_check
      _
    $region271: #{forward.1} parent=1 // pred_check_branch
      %551 = sbr.rel (0) target = $region273
    $region272: #{forward.1} parent=1 // pred_region
      %552 = dma.done [#allocation27], 32
    $region273: #{forward.1} parent=1 // pred_fallthru
      _
    // Predicated region
    $region274: #{forward.1} parent=1 // pred_check
      _
    $region275: #{forward.1} parent=1 // pred_check_branch
      %554 = sbr.rel (0) target = $region277
    $region276: #{forward.1} parent=1 // pred_region
      %555 = dma.done [#allocation27], 32
    $region277: #{forward.1} parent=1 // pred_fallthru
      _
    // Predicated region
    $region278: #{forward.1} parent=1 // pred_check
      _
    $region279: #{forward.1} parent=1 // pred_check_branch
      %557 = sbr.rel (0) target = $region281
    $region280: #{forward.1} parent=1 // pred_region
      %558 = dma.done [#allocation30], 32
    $region281: #{forward.1} parent=1 // pred_fallthru
      _
    // Predicated region
    $region282: #{forward.1} parent=1 // pred_check
      _
    $region283: #{forward.1} parent=1 // pred_check_branch
      %560 = sbr.rel (0) target = $region285
    $region284: #{forward.1} parent=1 // pred_region
      %561 = dma.done [#allocation30], 32
    $region285: #{forward.1} parent=1 // pred_fallthru
      _
    // Predicated region
    $region286: #{forward.1} parent=1 // pred_check
      _
    $region287: #{forward.1} parent=1 // pred_check_branch
      %563 = sbr.rel (0) target = $region289
    $region288: #{forward.1} parent=1 // pred_region
      %564 = dma.done [#allocation33], 32
    $region289: #{forward.1} parent=1 // pred_fallthru
      _
    // Predicated region
    $region290: #{forward.1} parent=1 // pred_check
      _
    $region291: #{forward.1} parent=1 // pred_check_branch
      %566 = sbr.rel (0) target = $region293
    $region292: #{forward.1} parent=1 // pred_region
      %567 = dma.done [#allocation33], 32
    $region293: #{forward.1} parent=1 // pred_fallthru
      _
    // Predicated region
    $region294: #{forward.1} parent=1 // pred_check
      _
    $region295: #{forward.1} parent=1 // pred_check_branch
      %569 = sbr.rel (0) target = $region297
    $region296: #{forward.1} parent=1 // pred_region
      %570 = dma.done [#allocation36], 32
    $region297: #{forward.1} parent=1 // pred_fallthru
      _
    // Predicated region
    $region298: #{forward.1} parent=1 // pred_check
      _
    $region299: #{forward.1} parent=1 // pred_check_branch
      %572 = sbr.rel (0) target = $region301
    $region300: #{forward.1} parent=1 // pred_region
      %573 = dma.done [#allocation36], 32
    $region301: #{forward.1} parent=1 // pred_fallthru
      _
    // Predicated region
    $region302: #{forward.1} parent=1 // pred_check
      _
    $region303: #{forward.1} parent=1 // pred_check_branch
      %575 = sbr.rel (0) target = $region305
    $region304: #{forward.1} parent=1 // pred_region
      %576 = dma.done [#allocation39], 32
    $region305: #{forward.1} parent=1 // pred_fallthru
      _
    // Predicated region
    $region306: #{forward.1} parent=1 // pred_check
      _
    $region307: #{forward.1} parent=1 // pred_check_branch
      %578 = sbr.rel (0) target = $region309
    $region308: #{forward.1} parent=1 // pred_region
      %579 = dma.done [#allocation39], 32
    $region309: #{forward.1} parent=1 // pred_fallthru
      _
    // Predicated region
    $region310: #{forward.1} parent=1 // pred_check
      _
    $region311: #{forward.1} parent=1 // pred_check_branch
      %581 = sbr.rel (0) target = $region313
    $region312: #{forward.1} parent=1 // pred_region
      %582 = dma.done [#allocation42], 32
    $region313: #{forward.1} parent=1 // pred_fallthru
      _
    // Predicated region
    $region314: #{forward.1} parent=1 // pred_check
      _
    $region315: #{forward.1} parent=1 // pred_check_branch
      %584 = sbr.rel (0) target = $region317
    $region316: #{forward.1} parent=1 // pred_region
      %585 = dma.done [#allocation42], 128
    $region317: #{forward.1} parent=1 // pred_fallthru
      _
    // Predicated region
    $region318: #{forward.1} parent=1 // pred_check
      _
    $region319: #{forward.1} parent=1 // pred_check_branch
      %587 = sbr.rel (0) target = $region321
    $region320: #{forward.1} parent=1 // pred_region
      %588 = dma.done [#allocation45], 128
    $region321: #{forward.1} parent=1 // pred_fallthru
      _
    %v589 = vld [vmem:[%s5] sm:$0x1]
    %vm590 = vcmp.gt.s32.totalorder %v589, 0
    %v591 = vld [vmem:[%s9] sm:$0xff]
    %v592 = vld [vmem:[%s9 + $0x8] sm:$0xff]
    %v593 = vld [vmem:[%s9 + $0x10] sm:$0xf]
    %v594 = vld [vmem:[%s7] sm:$0xff]
    %v595 = vld [vmem:[%s7 + $0x8] sm:$0xff]
    %v596 = vld [vmem:[%s7 + $0x10] sm:$0xff]
    %v597 = vld [vmem:[%s7 + $0x18] sm:$0xff]
    %v598 = vld [vmem:[%s7 + $0x20] sm:$0xff]
    %v599 = vld [vmem:[%s7 + $0x28] sm:$0xff]
    %v600 = vld [vmem:[%s7 + $0x30] sm:$0xff]
    %v601 = vld [vmem:[%s7 + $0x38] sm:$0x7f]
    %v602 = vld [vmem:[%s27] sm:$0xff]
    %v603 = vld [vmem:[%s27 + $0x8] sm:$0x1]
    %v604 = vld [vmem:[#allocation5] sm:$0x1]
    %v606 = vlaneseq
    %v607 = vshrl.u32 %v606, 7
    %v608 = vsub.s32 0, %v607
    %v609 = vrot.slane %v604, %v608
    %vm611 = vcmask 72704
    %v613 = vsel %vm611, %v594, 0
    %v616 = vsel %vm611, %v595, 0
    %v619 = vsel %vm611, %v596, 0
    %v622 = vsel %vm611, %v597, 0
    %v625 = vsel %vm611, %v598, 0
    %v628 = vsel %vm611, %v599, 0
    %v631 = vsel %vm611, %v600, 0
    %v634 = vsel %vm611, %v601, 0
    %vm636 = vcmask 1040384
    %v638 = vsel %vm636, %v603, 0
    %640 = vmatprep.subr.mxu0 0.0
    %641 = vmatpush1.msra.mxu0 %v602
    %642 = vmatprep.subr.mxu0 0.0
    %643 = vmatpush1.msra.mxu0 %v638
    %644 = vmatprep.subr.mxu0 0.0
    %645 = vmatpush1.msra.mxu0 0.0
    %646 = vmatprep.subr.mxu0 0.0
    %647 = vmatpush1.msra.mxu0 0.0
    %648 = vmatprep.subr.mxu0 0.0
    %649 = vmatpush1.msra.mxu0 0.0
    %650 = vmatprep.subr.mxu0 0.0
    %651 = vmatpush1.msra.mxu0 0.0
    %652 = vmatprep.subr.mxu0 0.0
    %653 = vmatpush1.msra.mxu0 0.0
    %654 = vmatprep.subr.mxu0 0.0
    %655 = vmatpush1.msra.mxu0 0.0
    %656 = vmatprep.subr.mxu0 0.0
    %657 = vmatpush1.msra.mxu0 0.0
    %658 = vmatprep.subr.mxu0 0.0
    %659 = vmatpush1.msra.mxu0 0.0
    %660 = vmatprep.subr.mxu0 0.0
    %661 = vmatpush1.msra.mxu0 0.0
    %662 = vmatprep.subr.mxu0 0.0
    %663 = vmatpush1.msra.mxu0 0.0
    %664 = vmatprep.subr.mxu0 0.0
    %665 = vmatpush1.msra.mxu0 0.0
    %666 = vmatprep.subr.mxu0 0.0
    %667 = vmatpush1.msra.mxu0 0.0
    %668 = vmatprep.subr.mxu0 0.0
    %669 = vmatpush1.msra.mxu0 0.0
    %670 = vmatprep.subr.mxu0 0.0
    %671 = vmatpush1.msra.mxu0 0.0
    %672 = vmatprep.subr.mxu0 0.0
    %673 = vmatpush1.msra.mxu0 0.0
    %674 = vmatprep.subr.mxu0 0.0
    %675 = vmatpush1.msra.mxu0 0.0
    %676 = vmatprep.subr.mxu0 0.0
    %677 = vmatpush1.msra.mxu0 0.0
    %678 = vmatprep.subr.mxu0 0.0
    %679 = vmatpush1.msra.mxu0 0.0
    %680 = vmatprep.subr.mxu0 0.0
    %681 = vmatpush1.msra.mxu0 0.0
    %682 = vmatprep.subr.mxu0 0.0
    %683 = vmatpush1.msra.mxu0 0.0
    %684 = vmatprep.subr.mxu0 0.0
    %685 = vmatpush1.msra.mxu0 0.0
    %686 = vmatprep.subr.mxu0 0.0
    %687 = vmatpush1.msra.mxu0 0.0
    %688 = vmatprep.subr.mxu0 0.0
    %689 = vmatpush1.msra.mxu0 0.0
    %690 = vmatprep.subr.mxu0 0.0
    %691 = vmatpush1.msra.mxu0 0.0
    %692 = vmatprep.subr.mxu0 0.0
    %693 = vmatpush1.msra.mxu0 0.0
    %694 = vmatprep.subr.mxu0 0.0
    %695 = vmatpush1.msra.mxu0 0.0
    %696 = vmatprep.subr.mxu0 0.0
    %697 = vmatpush1.msra.mxu0 0.0
    %698 = vmatprep.subr.mxu0 0.0
    %699 = vmatpush1.msra.mxu0 0.0
    %700 = vmatprep.subr.mxu0 0.0
    %701 = vmatpush1.msra.mxu0 0.0
    %702 = vmatprep.subr.mxu0 0.0
    %703 = vmatpush1.msra.mxu0 0.0
    %704 = vmatprep.mubr.f32.mxu0 0.0
    %705 = vmatmul.mubr.f32.gmra.mrb[0].mxu0 %v613
    %v706 = vpop.f32.mrb[0].mxu0
    %v707 = vadd.f32 %v609, %v706
    %v708 = vpop.f32.mrb[0].mxu0
    %709 = vmatprep.mubr.f32.mxu0 0.0
    %710 = vmatmul.mubr.f32.gmra.mrb[0].mxu0 %v616
    %v711 = vpop.f32.mrb[0].mxu0
    %v712 = vadd.f32 %v609, %v711
    %v713 = vpop.f32.mrb[0].mxu0
    %714 = vmatprep.mubr.f32.mxu0 0.0
    %715 = vmatmul.mubr.f32.gmra.mrb[0].mxu0 %v619
    %v716 = vpop.f32.mrb[0].mxu0
    %v717 = vadd.f32 %v609, %v716
    %v718 = vpop.f32.mrb[0].mxu0
    %719 = vmatprep.mubr.f32.mxu0 0.0
    %720 = vmatmul.mubr.f32.gmra.mrb[0].mxu0 %v622
    %v721 = vpop.f32.mrb[0].mxu0
    %v722 = vadd.f32 %v609, %v721
    %v723 = vpop.f32.mrb[0].mxu0
    %724 = vmatprep.mubr.f32.mxu0 0.0
    %725 = vmatmul.mubr.f32.gmra.mrb[0].mxu0 %v625
    %v726 = vpop.f32.mrb[0].mxu0
    %v727 = vadd.f32 %v609, %v726
    %v728 = vpop.f32.mrb[0].mxu0
    %729 = vmatprep.mubr.f32.mxu0 0.0
    %730 = vmatmul.mubr.f32.gmra.mrb[0].mxu0 %v628
    %v731 = vpop.f32.mrb[0].mxu0
    %v732 = vadd.f32 %v609, %v731
    %v733 = vpop.f32.mrb[0].mxu0
    %734 = vmatprep.mubr.f32.mxu0 0.0
    %735 = vmatmul.mubr.f32.gmra.mrb[0].mxu0 %v631
    %v736 = vpop.f32.mrb[0].mxu0
    %v737 = vadd.f32 %v609, %v736
    %v738 = vpop.f32.mrb[0].mxu0
    %739 = vmatprep.mubr.f32.mxu0 0.0
    %740 = vmatmul.mubr.f32.gmra.mrb[0].mxu0 %v634
    %v741 = vpop.f32.mrb[0].mxu0
    %v742 = vadd.f32 %v609, %v741
    %v743 = vpop.f32.mrb[0].mxu0
    %744 = vdwg.mxu0
    %v745 = vmax.f32 %v707, 0.0
    %v746 = vmax.f32 %v712, 0.0
    %v747 = vmax.f32 %v717, 0.0
    %v748 = vmax.f32 %v722, 0.0
    %v749 = vmax.f32 %v727, 0.0
    %v750 = vmax.f32 %v732, 0.0
    %v751 = vmax.f32 %v737, 0.0
    %v752 = vmax.f32 %v742, 0.0
    %v753 = vld [vmem:[%s29] sm:$0xff]
    %v754 = vld [vmem:[%s29 + $0x8] sm:$0xff]
    %v755 = vld [vmem:[%s29 + $0x10] sm:$0xff]
    %v756 = vld [vmem:[%s29 + $0x18] sm:$0xff]
    %v757 = vld [vmem:[%s29 + $0x20] sm:$0xff]
    %v758 = vld [vmem:[%s29 + $0x28] sm:$0xff]
    %v759 = vld [vmem:[%s29 + $0x30] sm:$0xff]
    %v760 = vld [vmem:[%s29 + $0x38] sm:$0xff]
    %s761 = scalar_lea.vmem %s29, 64
    %v762 = vld [vmem:[%s761] sm:$0xff]
    %v763 = vld [vmem:[%s761 + $0x8] sm:$0xff]
    %v764 = vld [vmem:[%s761 + $0x10] sm:$0xff]
    %v765 = vld [vmem:[%s761 + $0x18] sm:$0xff]
    %v766 = vld [vmem:[%s761 + $0x20] sm:$0xff]
    %v767 = vld [vmem:[%s761 + $0x28] sm:$0xff]
    %v768 = vld [vmem:[%s761 + $0x30] sm:$0xff]
    %v769 = vld [vmem:[%s761 + $0x38] sm:$0xff]
    %vm772 = vcmask 1042432
    %v773 = vrot.slane %v745, 5
    %v774 = vrot.slane %v746, 5
    %v775 = vsel %vm772, %v773, %v774
    %vm776 = vcmask 523264
    %v777 = vsel %vm776, %v775, 0
    %779 = vmatprep.subr.mxu0 0.0
    %780 = vmatpush1.msra.mxu0 %v762
    %781 = vmatprep.subr.mxu0 0.0
    %782 = vmatpush1.msra.mxu0 %v763
    %783 = vmatprep.subr.mxu0 0.0
    %784 = vmatpush1.msra.mxu0 %v764
    %785 = vmatprep.subr.mxu0 0.0
    %786 = vmatpush1.msra.mxu0 %v765
    %787 = vmatprep.subr.mxu0 0.0
    %788 = vmatpush1.msra.mxu0 %v766
    %789 = vmatprep.subr.mxu0 0.0
    %790 = vmatpush1.msra.mxu0 %v767
    %791 = vmatprep.subr.mxu0 0.0
    %792 = vmatpush1.msra.mxu0 %v768
    %793 = vmatprep.subr.mxu0 0.0
    %794 = vmatpush1.msra.mxu0 %v769
    %795 = vmatprep.subr.mxu0 0.0
    %796 = vmatpush1.msra.mxu0 0.0
    %797 = vmatprep.subr.mxu0 0.0
    %798 = vmatpush1.msra.mxu0 0.0
    %799 = vmatprep.subr.mxu0 0.0
    %800 = vmatpush1.msra.mxu0 0.0
    %801 = vmatprep.subr.mxu0 0.0
    %802 = vmatpush1.msra.mxu0 0.0
    %803 = vmatprep.subr.mxu0 0.0
    %804 = vmatpush1.msra.mxu0 0.0
    %805 = vmatprep.subr.mxu0 0.0
    %806 = vmatpush1.msra.mxu0 0.0
    %807 = vmatprep.subr.mxu0 0.0
    %808 = vmatpush1.msra.mxu0 0.0
    %809 = vmatprep.subr.mxu0 0.0
    %810 = vmatpush1.msra.mxu0 0.0
    %811 = vmatprep.subr.mxu0 0.0
    %812 = vmatpush1.msra.mxu0 0.0
    %813 = vmatprep.subr.mxu0 0.0
    %814 = vmatpush1.msra.mxu0 0.0
    %815 = vmatprep.subr.mxu0 0.0
    %816 = vmatpush1.msra.mxu0 0.0
    %817 = vmatprep.subr.mxu0 0.0
    %818 = vmatpush1.msra.mxu0 0.0
    %819 = vmatprep.subr.mxu0 0.0
    %820 = vmatpush1.msra.mxu0 0.0
    %821 = vmatprep.subr.mxu0 0.0
    %822 = vmatpush1.msra.mxu0 0.0
    %823 = vmatprep.subr.mxu0 0.0
    %824 = vmatpush1.msra.mxu0 0.0
    %825 = vmatprep.subr.mxu0 0.0
    %826 = vmatpush1.msra.mxu0 0.0
    %827 = vmatprep.subr.mxu0 0.0
    %828 = vmatpush1.msra.mxu0 0.0
    %829 = vmatprep.subr.mxu0 0.0
    %830 = vmatpush1.msra.mxu0 0.0
    %831 = vmatprep.subr.mxu0 0.0
    %832 = vmatpush1.msra.mxu0 0.0
    %833 = vmatprep.subr.mxu0 0.0
    %834 = vmatpush1.msra.mxu0 0.0
    %835 = vmatprep.subr.mxu0 0.0
    %836 = vmatpush1.msra.mxu0 0.0
    %837 = vmatprep.subr.mxu0 0.0
    %838 = vmatpush1.msra.mxu0 0.0
    %839 = vmatprep.subr.mxu0 0.0
    %840 = vmatpush1.msra.mxu0 0.0
    %841 = vmatprep.subr.mxu0 0.0
    %842 = vmatpush1.msra.mxu0 0.0
    %843 = vmatprep.mubr.f32.mxu0 0.0
    %844 = vmatmul.mubr.f32.gmra.mrb[0].mxu0 %v777
    %v845 = vpop.f32.mrb[0].mxu0
    %v846 = vadd.f32 0.0, %v845
    %v847 = vpop.f32.mrb[0].mxu0
    %848 = vdwg.mxu0
    %v849 = vsel %vm776, %v745, 0
    %851 = vmatprep.subr.mxu0 0.0
    %852 = vmatpush1.msra.mxu0 %v753
    %853 = vmatprep.subr.mxu0 0.0
    %854 = vmatpush1.msra.mxu0 %v754
    %855 = vmatprep.subr.mxu0 0.0
    %856 = vmatpush1.msra.mxu0 %v755
    %857 = vmatprep.subr.mxu0 0.0
    %858 = vmatpush1.msra.mxu0 %v756
    %859 = vmatprep.subr.mxu0 0.0
    %860 = vmatpush1.msra.mxu0 %v757
    %861 = vmatprep.subr.mxu0 0.0
    %862 = vmatpush1.msra.mxu0 %v758
    %863 = vmatprep.subr.mxu0 0.0
    %864 = vmatpush1.msra.mxu0 %v759
    %865 = vmatprep.subr.mxu0 0.0
    %866 = vmatpush1.msra.mxu0 %v760
    %867 = vmatprep.subr.mxu0 0.0
    %868 = vmatpush1.msra.mxu0 0.0
    %869 = vmatprep.subr.mxu0 0.0
    %870 = vmatpush1.msra.mxu0 0.0
    %871 = vmatprep.subr.mxu0 0.0
    %872 = vmatpush1.msra.mxu0 0.0
    %873 = vmatprep.subr.mxu0 0.0
    %874 = vmatpush1.msra.mxu0 0.0
    %875 = vmatprep.subr.mxu0 0.0
    %876 = vmatpush1.msra.mxu0 0.0
    %877 = vmatprep.subr.mxu0 0.0
    %878 = vmatpush1.msra.mxu0 0.0
    %879 = vmatprep.subr.mxu0 0.0
    %880 = vmatpush1.msra.mxu0 0.0
    %881 = vmatprep.subr.mxu0 0.0
    %882 = vmatpush1.msra.mxu0 0.0
    %883 = vmatprep.subr.mxu0 0.0
    %884 = vmatpush1.msra.mxu0 0.0
    %885 = vmatprep.subr.mxu0 0.0
    %886 = vmatpush1.msra.mxu0 0.0
    %887 = vmatprep.subr.mxu0 0.0
    %888 = vmatpush1.msra.mxu0 0.0
    %889 = vmatprep.subr.mxu0 0.0
    %890 = vmatpush1.msra.mxu0 0.0
    %891 = vmatprep.subr.mxu0 0.0
    %892 = vmatpush1.msra.mxu0 0.0
    %893 = vmatprep.subr.mxu0 0.0
    %894 = vmatpush1.msra.mxu0 0.0
    %895 = vmatprep.subr.mxu0 0.0
    %896 = vmatpush1.msra.mxu0 0.0
    %897 = vmatprep.subr.mxu0 0.0
    %898 = vmatpush1.msra.mxu0 0.0
    %899 = vmatprep.subr.mxu0 0.0
    %900 = vmatpush1.msra.mxu0 0.0
    %901 = vmatprep.subr.mxu0 0.0
    %902 = vmatpush1.msra.mxu0 0.0
    %903 = vmatprep.subr.mxu0 0.0
    %904 = vmatpush1.msra.mxu0 0.0
    %905 = vmatprep.subr.mxu0 0.0
    %906 = vmatpush1.msra.mxu0 0.0
    %907 = vmatprep.subr.mxu0 0.0
    %908 = vmatpush1.msra.mxu0 0.0
    %909 = vmatprep.subr.mxu0 0.0
    %910 = vmatpush1.msra.mxu0 0.0
    %911 = vmatprep.subr.mxu0 0.0
    %912 = vmatpush1.msra.mxu0 0.0
    %913 = vmatprep.subr.mxu0 0.0
    %914 = vmatpush1.msra.mxu0 0.0
    %915 = vmatprep.mubr.f32.mxu0 0.0
    %916 = vmatmul.mubr.f32.gmra.mrb[0].mxu0 %v849
    %v917 = vpop.f32.mrb[0].mxu0
    %v918 = vadd.f32 %v846, %v917
    %v919 = vpop.f32.mrb[0].mxu0
    %920 = vdwg.mxu0
    %s921 = scalar_lea.vmem %s29, 128
    %v922 = vld [vmem:[%s921] sm:$0xff]
    %v923 = vld [vmem:[%s921 + $0x8] sm:$0xff]
    %v924 = vld [vmem:[%s921 + $0x10] sm:$0xff]
    %v925 = vld [vmem:[%s921 + $0x18] sm:$0xff]
    %v926 = vld [vmem:[%s921 + $0x20] sm:$0xff]
    %v927 = vld [vmem:[%s921 + $0x28] sm:$0xff]
    %v928 = vld [vmem:[%s921 + $0x30] sm:$0xff]
    %v929 = vld [vmem:[%s921 + $0x38] sm:$0xff]
    %v930 = vrot.slane %v746, 2
    %v931 = vsel %vm776, %v930, 0
    %933 = vmatprep.subr.mxu0 0.0
    %934 = vmatpush1.msra.mxu0 %v922
    %935 = vmatprep.subr.mxu0 0.0
    %936 = vmatpush1.msra.mxu0 %v923
    %937 = vmatprep.subr.mxu0 0.0
    %938 = vmatpush1.msra.mxu0 %v924
    %939 = vmatprep.subr.mxu0 0.0
    %940 = vmatpush1.msra.mxu0 %v925
    %941 = vmatprep.subr.mxu0 0.0
    %942 = vmatpush1.msra.mxu0 %v926
    %943 = vmatprep.subr.mxu0 0.0
    %944 = vmatpush1.msra.mxu0 %v927
    %945 = vmatprep.subr.mxu0 0.0
    %946 = vmatpush1.msra.mxu0 %v928
    %947 = vmatprep.subr.mxu0 0.0
    %948 = vmatpush1.msra.mxu0 %v929
    %949 = vmatprep.subr.mxu0 0.0
    %950 = vmatpush1.msra.mxu0 0.0
    %951 = vmatprep.subr.mxu0 0.0
    %952 = vmatpush1.msra.mxu0 0.0
    %953 = vmatprep.subr.mxu0 0.0
    %954 = vmatpush1.msra.mxu0 0.0
    %955 = vmatprep.subr.mxu0 0.0
    %956 = vmatpush1.msra.mxu0 0.0
    %957 = vmatprep.subr.mxu0 0.0
    %958 = vmatpush1.msra.mxu0 0.0
    %959 = vmatprep.subr.mxu0 0.0
    %960 = vmatpush1.msra.mxu0 0.0
    %961 = vmatprep.subr.mxu0 0.0
    %962 = vmatpush1.msra.mxu0 0.0
    %963 = vmatprep.subr.mxu0 0.0
    %964 = vmatpush1.msra.mxu0 0.0
    %965 = vmatprep.subr.mxu0 0.0
    %966 = vmatpush1.msra.mxu0 0.0
    %967 = vmatprep.subr.mxu0 0.0
    %968 = vmatpush1.msra.mxu0 0.0
    %969 = vmatprep.subr.mxu0 0.0
    %970 = vmatpush1.msra.mxu0 0.0
    %971 = vmatprep.subr.mxu0 0.0
    %972 = vmatpush1.msra.mxu0 0.0
    %973 = vmatprep.subr.mxu0 0.0
    %974 = vmatpush1.msra.mxu0 0.0
    %975 = vmatprep.subr.mxu0 0.0
    %976 = vmatpush1.msra.mxu0 0.0
    %977 = vmatprep.subr.mxu0 0.0
    %978 = vmatpush1.msra.mxu0 0.0
    %979 = vmatprep.subr.mxu0 0.0
    %980 = vmatpush1.msra.mxu0 0.0
    %981 = vmatprep.subr.mxu0 0.0
    %982 = vmatpush1.msra.mxu0 0.0
    %983 = vmatprep.subr.mxu0 0.0
    %984 = vmatpush1.msra.mxu0 0.0
    %985 = vmatprep.subr.mxu0 0.0
    %986 = vmatpush1.msra.mxu0 0.0
    %987 = vmatprep.subr.mxu0 0.0
    %988 = vmatpush1.msra.mxu0 0.0
    %989 = vmatprep.subr.mxu0 0.0
    %990 = vmatpush1.msra.mxu0 0.0
    %991 = vmatprep.subr.mxu0 0.0
    %992 = vmatpush1.msra.mxu0 0.0
    %993 = vmatprep.subr.mxu0 0.0
    %994 = vmatpush1.msra.mxu0 0.0
    %995 = vmatprep.subr.mxu0 0.0
    %996 = vmatpush1.msra.mxu0 0.0
    %997 = vmatprep.mubr.f32.mxu0 0.0
    %998 = vmatmul.mubr.f32.gmra.mrb[0].mxu0 %v931
    %v999 = vpop.f32.mrb[0].mxu0
    %v1000 = vadd.f32 0.0, %v999
    %v1001 = vpop.f32.mrb[0].mxu0
    %1002 = vdwg.mxu0
    %v1003 = vadd.f32 %v918, %v1000
    %s1004 = scalar_lea.vmem %s29, 192
    %v1005 = vld [vmem:[%s1004] sm:$0xff]
    %v1006 = vld [vmem:[%s1004 + $0x8] sm:$0xff]
    %v1007 = vld [vmem:[%s1004 + $0x10] sm:$0xff]
    %v1008 = vld [vmem:[%s1004 + $0x18] sm:$0xff]
    %v1009 = vld [vmem:[%s1004 + $0x20] sm:$0xff]
    %v1010 = vld [vmem:[%s1004 + $0x28] sm:$0xff]
    %v1011 = vld [vmem:[%s1004 + $0x30] sm:$0xff]
    %v1012 = vld [vmem:[%s1004 + $0x38] sm:$0xff]
    %v1014 = vrot.slane %v749, 3
    %v1015 = vsel %vm776, %v1014, 0
    %1017 = vmatprep.subr.mxu0 0.0
    %1018 = vmatpush1.msra.mxu0 %v1005
    %1019 = vmatprep.subr.mxu0 0.0
    %1020 = vmatpush1.msra.mxu0 %v1006
    %1021 = vmatprep.subr.mxu0 0.0
    %1022 = vmatpush1.msra.mxu0 %v1007
    %1023 = vmatprep.subr.mxu0 0.0
    %1024 = vmatpush1.msra.mxu0 %v1008
    %1025 = vmatprep.subr.mxu0 0.0
    %1026 = vmatpush1.msra.mxu0 %v1009
    %1027 = vmatprep.subr.mxu0 0.0
    %1028 = vmatpush1.msra.mxu0 %v1010
    %1029 = vmatprep.subr.mxu0 0.0
    %1030 = vmatpush1.msra.mxu0 %v1011
    %1031 = vmatprep.subr.mxu0 0.0
    %1032 = vmatpush1.msra.mxu0 %v1012
    %1033 = vmatprep.subr.mxu0 0.0
    %1034 = vmatpush1.msra.mxu0 0.0
    %1035 = vmatprep.subr.mxu0 0.0
    %1036 = vmatpush1.msra.mxu0 0.0
    %1037 = vmatprep.subr.mxu0 0.0
    %1038 = vmatpush1.msra.mxu0 0.0
    %1039 = vmatprep.subr.mxu0 0.0
    %1040 = vmatpush1.msra.mxu0 0.0
    %1041 = vmatprep.subr.mxu0 0.0
    %1042 = vmatpush1.msra.mxu0 0.0
    %1043 = vmatprep.subr.mxu0 0.0
    %1044 = vmatpush1.msra.mxu0 0.0
    %1045 = vmatprep.subr.mxu0 0.0
    %1046 = vmatpush1.msra.mxu0 0.0
    %1047 = vmatprep.subr.mxu0 0.0
    %1048 = vmatpush1.msra.mxu0 0.0
    %1049 = vmatprep.subr.mxu0 0.0
    %1050 = vmatpush1.msra.mxu0 0.0
    %1051 = vmatprep.subr.mxu0 0.0
    %1052 = vmatpush1.msra.mxu0 0.0
    %1053 = vmatprep.subr.mxu0 0.0
    %1054 = vmatpush1.msra.mxu0 0.0
    %1055 = vmatprep.subr.mxu0 0.0
    %1056 = vmatpush1.msra.mxu0 0.0
    %1057 = vmatprep.subr.mxu0 0.0
    %1058 = vmatpush1.msra.mxu0 0.0
    %1059 = vmatprep.subr.mxu0 0.0
    %1060 = vmatpush1.msra.mxu0 0.0
    %1061 = vmatprep.subr.mxu0 0.0
    %1062 = vmatpush1.msra.mxu0 0.0
    %1063 = vmatprep.subr.mxu0 0.0
    %1064 = vmatpush1.msra.mxu0 0.0
    %1065 = vmatprep.subr.mxu0 0.0
    %1066 = vmatpush1.msra.mxu0 0.0
    %1067 = vmatprep.subr.mxu0 0.0
    %1068 = vmatpush1.msra.mxu0 0.0
    %1069 = vmatprep.subr.mxu0 0.0
    %1070 = vmatpush1.msra.mxu0 0.0
    %1071 = vmatprep.subr.mxu0 0.0
    %1072 = vmatpush1.msra.mxu0 0.0
    %1073 = vmatprep.subr.mxu0 0.0
    %1074 = vmatpush1.msra.mxu0 0.0
    %1075 = vmatprep.subr.mxu0 0.0
    %1076 = vmatpush1.msra.mxu0 0.0
    %1077 = vmatprep.subr.mxu0 0.0
    %1078 = vmatpush1.msra.mxu0 0.0
    %1079 = vmatprep.subr.mxu0 0.0
    %1080 = vmatpush1.msra.mxu0 0.0
    %1081 = vmatprep.mubr.f32.mxu0 0.0
    %1082 = vmatmul.mubr.f32.gmra.mrb[0].mxu0 %v1015
    %v1083 = vpop.f32.mrb[0].mxu0
    %v1084 = vadd.f32 0.0, %v1083
    %v1085 = vpop.f32.mrb[0].mxu0
    %1086 = vdwg.mxu0
    %v1087 = vadd.f32 %v1003, %v1084
    %s1088 = scalar_lea.vmem %s29, 256
    %v1089 = vld [vmem:[%s1088] sm:$0xff]
    %v1090 = vld [vmem:[%s1088 + $0x8] sm:$0xff]
    %v1091 = vld [vmem:[%s1088 + $0x10] sm:$0xff]
    %v1092 = vld [vmem:[%s1088 + $0x18] sm:$0xff]
    %v1093 = vld [vmem:[%s1088 + $0x20] sm:$0xff]
    %v1094 = vld [vmem:[%s1088 + $0x28] sm:$0xff]
    %v1095 = vld [vmem:[%s1088 + $0x30] sm:$0xff]
    %v1096 = vld [vmem:[%s1088 + $0x38] sm:$0xff]
    %v1098 = vrot.slane %v749, 7
    %v1099 = vrot.slane %v750, 7
    %v1100 = vsel %vm636, %v1098, %v1099
    %v1101 = vsel %vm776, %v1100, 0
    %1103 = vmatprep.subr.mxu0 0.0
    %1104 = vmatpush1.msra.mxu0 %v1089
    %1105 = vmatprep.subr.mxu0 0.0
    %1106 = vmatpush1.msra.mxu0 %v1090
    %1107 = vmatprep.subr.mxu0 0.0
    %1108 = vmatpush1.msra.mxu0 %v1091
    %1109 = vmatprep.subr.mxu0 0.0
    %1110 = vmatpush1.msra.mxu0 %v1092
    %1111 = vmatprep.subr.mxu0 0.0
    %1112 = vmatpush1.msra.mxu0 %v1093
    %1113 = vmatprep.subr.mxu0 0.0
    %1114 = vmatpush1.msra.mxu0 %v1094
    %1115 = vmatprep.subr.mxu0 0.0
    %1116 = vmatpush1.msra.mxu0 %v1095
    %1117 = vmatprep.subr.mxu0 0.0
    %1118 = vmatpush1.msra.mxu0 %v1096
    %1119 = vmatprep.subr.mxu0 0.0
    %1120 = vmatpush1.msra.mxu0 0.0
    %1121 = vmatprep.subr.mxu0 0.0
    %1122 = vmatpush1.msra.mxu0 0.0
    %1123 = vmatprep.subr.mxu0 0.0
    %1124 = vmatpush1.msra.mxu0 0.0
    %1125 = vmatprep.subr.mxu0 0.0
    %1126 = vmatpush1.msra.mxu0 0.0
    %1127 = vmatprep.subr.mxu0 0.0
    %1128 = vmatpush1.msra.mxu0 0.0
    %1129 = vmatprep.subr.mxu0 0.0
    %1130 = vmatpush1.msra.mxu0 0.0
    %1131 = vmatprep.subr.mxu0 0.0
    %1132 = vmatpush1.msra.mxu0 0.0
    %1133 = vmatprep.subr.mxu0 0.0
    %1134 = vmatpush1.msra.mxu0 0.0
    %1135 = vmatprep.subr.mxu0 0.0
    %1136 = vmatpush1.msra.mxu0 0.0
    %1137 = vmatprep.subr.mxu0 0.0
    %1138 = vmatpush1.msra.mxu0 0.0
    %1139 = vmatprep.subr.mxu0 0.0
    %1140 = vmatpush1.msra.mxu0 0.0
    %1141 = vmatprep.subr.mxu0 0.0
    %1142 = vmatpush1.msra.mxu0 0.0
    %1143 = vmatprep.subr.mxu0 0.0
    %1144 = vmatpush1.msra.mxu0 0.0
    %1145 = vmatprep.subr.mxu0 0.0
    %1146 = vmatpush1.msra.mxu0 0.0
    %1147 = vmatprep.subr.mxu0 0.0
    %1148 = vmatpush1.msra.mxu0 0.0
    %1149 = vmatprep.subr.mxu0 0.0
    %1150 = vmatpush1.msra.mxu0 0.0
    %1151 = vmatprep.subr.mxu0 0.0
    %1152 = vmatpush1.msra.mxu0 0.0
    %1153 = vmatprep.subr.mxu0 0.0
    %1154 = vmatpush1.msra.mxu0 0.0
    %1155 = vmatprep.subr.mxu0 0.0
    %1156 = vmatpush1.msra.mxu0 0.0
    %1157 = vmatprep.subr.mxu0 0.0
    %1158 = vmatpush1.msra.mxu0 0.0
    %1159 = vmatprep.subr.mxu0 0.0
    %1160 = vmatpush1.msra.mxu0 0.0
    %1161 = vmatprep.subr.mxu0 0.0
    %1162 = vmatpush1.msra.mxu0 0.0
    %1163 = vmatprep.subr.mxu0 0.0
    %1164 = vmatpush1.msra.mxu0 0.0
    %1165 = vmatprep.subr.mxu0 0.0
    %1166 = vmatpush1.msra.mxu0 0.0
    %1167 = vmatprep.mubr.f32.mxu0 0.0
    %1168 = vmatmul.mubr.f32.gmra.mrb[0].mxu0 %v1101
    %v1169 = vpop.f32.mrb[0].mxu0
    %v1170 = vadd.f32 0.0, %v1169
    %v1171 = vpop.f32.mrb[0].mxu0
    %1172 = vdwg.mxu0
    %v1173 = vadd.f32 %v1087, %v1170
    %s1174 = scalar_lea.vmem %s29, 320
    %v1175 = vld [vmem:[%s1174] sm:$0xff]
    %v1176 = vld [vmem:[%s1174 + $0x8] sm:$0xff]
    %v1177 = vld [vmem:[%s1174 + $0x10] sm:$0xff]
    %v1178 = vld [vmem:[%s1174 + $0x18] sm:$0xff]
    %v1179 = vld [vmem:[%s1174 + $0x20] sm:$0xff]
    %v1180 = vld [vmem:[%s1174 + $0x28] sm:$0xff]
    %v1181 = vld [vmem:[%s1174 + $0x30] sm:$0xff]
    %v1182 = vld [vmem:[%s1174 + $0x38] sm:$0xff]
    %v1183 = vrot.slane %v750, 3
    %v1184 = vsel %vm776, %v1183, 0
    %1186 = vmatprep.subr.mxu0 0.0
    %1187 = vmatpush1.msra.mxu0 %v1175
    %1188 = vmatprep.subr.mxu0 0.0
    %1189 = vmatpush1.msra.mxu0 %v1176
    %1190 = vmatprep.subr.mxu0 0.0
    %1191 = vmatpush1.msra.mxu0 %v1177
    %1192 = vmatprep.subr.mxu0 0.0
    %1193 = vmatpush1.msra.mxu0 %v1178
    %1194 = vmatprep.subr.mxu0 0.0
    %1195 = vmatpush1.msra.mxu0 %v1179
    %1196 = vmatprep.subr.mxu0 0.0
    %1197 = vmatpush1.msra.mxu0 %v1180
    %1198 = vmatprep.subr.mxu0 0.0
    %1199 = vmatpush1.msra.mxu0 %v1181
    %1200 = vmatprep.subr.mxu0 0.0
    %1201 = vmatpush1.msra.mxu0 %v1182
    %1202 = vmatprep.subr.mxu0 0.0
    %1203 = vmatpush1.msra.mxu0 0.0
    %1204 = vmatprep.subr.mxu0 0.0
    %1205 = vmatpush1.msra.mxu0 0.0
    %1206 = vmatprep.subr.mxu0 0.0
    %1207 = vmatpush1.msra.mxu0 0.0
    %1208 = vmatprep.subr.mxu0 0.0
    %1209 = vmatpush1.msra.mxu0 0.0
    %1210 = vmatprep.subr.mxu0 0.0
    %1211 = vmatpush1.msra.mxu0 0.0
    %1212 = vmatprep.subr.mxu0 0.0
    %1213 = vmatpush1.msra.mxu0 0.0
    %1214 = vmatprep.subr.mxu0 0.0
    %1215 = vmatpush1.msra.mxu0 0.0
    %1216 = vmatprep.subr.mxu0 0.0
    %1217 = vmatpush1.msra.mxu0 0.0
    %1218 = vmatprep.subr.mxu0 0.0
    %1219 = vmatpush1.msra.mxu0 0.0
    %1220 = vmatprep.subr.mxu0 0.0
    %1221 = vmatpush1.msra.mxu0 0.0
    %1222 = vmatprep.subr.mxu0 0.0
    %1223 = vmatpush1.msra.mxu0 0.0
    %1224 = vmatprep.subr.mxu0 0.0
    %1225 = vmatpush1.msra.mxu0 0.0
    %1226 = vmatprep.subr.mxu0 0.0
    %1227 = vmatpush1.msra.mxu0 0.0
    %1228 = vmatprep.subr.mxu0 0.0
    %1229 = vmatpush1.msra.mxu0 0.0
    %1230 = vmatprep.subr.mxu0 0.0
    %1231 = vmatpush1.msra.mxu0 0.0
    %1232 = vmatprep.subr.mxu0 0.0
    %1233 = vmatpush1.msra.mxu0 0.0
    %1234 = vmatprep.subr.mxu0 0.0
    %1235 = vmatpush1.msra.mxu0 0.0
    %1236 = vmatprep.subr.mxu0 0.0
    %1237 = vmatpush1.msra.mxu0 0.0
    %1238 = vmatprep.subr.mxu0 0.0
    %1239 = vmatpush1.msra.mxu0 0.0
    %1240 = vmatprep.subr.mxu0 0.0
    %1241 = vmatpush1.msra.mxu0 0.0
    %1242 = vmatprep.subr.mxu0 0.0
    %1243 = vmatpush1.msra.mxu0 0.0
    %1244 = vmatprep.subr.mxu0 0.0
    %1245 = vmatpush1.msra.mxu0 0.0
    %1246 = vmatprep.subr.mxu0 0.0
    %1247 = vmatpush1.msra.mxu0 0.0
    %1248 = vmatprep.subr.mxu0 0.0
    %1249 = vmatpush1.msra.mxu0 0.0
    %1250 = vmatprep.mubr.f32.mxu0 0.0
    %1251 = vmatmul.mubr.f32.gmra.mrb[0].mxu0 %v1184
    %v1252 = vpop.f32.mrb[0].mxu0
    %v1253 = vadd.f32 0.0, %v1252
    %v1254 = vpop.f32.mrb[0].mxu0
    %1255 = vdwg.mxu0
    %v1256 = vadd.f32 %v1173, %v1253
    %s1257 = scalar_lea.vmem %s29, 384
    %v1258 = vld [vmem:[%s1257] sm:$0xff]
    %v1259 = vld [vmem:[%s1257 + $0x8] sm:$0xff]
    %v1260 = vld [vmem:[%s1257 + $0x10] sm:$0xff]
    %v1261 = vld [vmem:[%s1257 + $0x18] sm:$0xff]
    %v1262 = vld [vmem:[%s1257 + $0x20] sm:$0xff]
    %v1263 = vld [vmem:[%s1257 + $0x28] sm:$0xff]
    %v1264 = vld [vmem:[%s1257 + $0x30] sm:$0xff]
    %v1265 = vld [vmem:[%s1257 + $0x38] sm:$0xff]
    %v1266 = vrot.slane %v745, 1
    %v1267 = vsel %vm776, %v1266, 0
    %1269 = vmatprep.subr.mxu0 0.0
    %1270 = vmatpush1.msra.mxu0 %v1258
    %1271 = vmatprep.subr.mxu0 0.0
    %1272 = vmatpush1.msra.mxu0 %v1259
    %1273 = vmatprep.subr.mxu0 0.0
    %1274 = vmatpush1.msra.mxu0 %v1260
    %1275 = vmatprep.subr.mxu0 0.0
    %1276 = vmatpush1.msra.mxu0 %v1261
    %1277 = vmatprep.subr.mxu0 0.0
    %1278 = vmatpush1.msra.mxu0 %v1262
    %1279 = vmatprep.subr.mxu0 0.0
    %1280 = vmatpush1.msra.mxu0 %v1263
    %1281 = vmatprep.subr.mxu0 0.0
    %1282 = vmatpush1.msra.mxu0 %v1264
    %1283 = vmatprep.subr.mxu0 0.0
    %1284 = vmatpush1.msra.mxu0 %v1265
    %1285 = vmatprep.subr.mxu0 0.0
    %1286 = vmatpush1.msra.mxu0 0.0
    %1287 = vmatprep.subr.mxu0 0.0
    %1288 = vmatpush1.msra.mxu0 0.0
    %1289 = vmatprep.subr.mxu0 0.0
    %1290 = vmatpush1.msra.mxu0 0.0
    %1291 = vmatprep.subr.mxu0 0.0
    %1292 = vmatpush1.msra.mxu0 0.0
    %1293 = vmatprep.subr.mxu0 0.0
    %1294 = vmatpush1.msra.mxu0 0.0
    %1295 = vmatprep.subr.mxu0 0.0
    %1296 = vmatpush1.msra.mxu0 0.0
    %1297 = vmatprep.subr.mxu0 0.0
    %1298 = vmatpush1.msra.mxu0 0.0
    %1299 = vmatprep.subr.mxu0 0.0
    %1300 = vmatpush1.msra.mxu0 0.0
    %1301 = vmatprep.subr.mxu0 0.0
    %1302 = vmatpush1.msra.mxu0 0.0
    %1303 = vmatprep.subr.mxu0 0.0
    %1304 = vmatpush1.msra.mxu0 0.0
    %1305 = vmatprep.subr.mxu0 0.0
    %1306 = vmatpush1.msra.mxu0 0.0
    %1307 = vmatprep.subr.mxu0 0.0
    %1308 = vmatpush1.msra.mxu0 0.0
    %1309 = vmatprep.subr.mxu0 0.0
    %1310 = vmatpush1.msra.mxu0 0.0
    %1311 = vmatprep.subr.mxu0 0.0
    %1312 = vmatpush1.msra.mxu0 0.0
    %1313 = vmatprep.subr.mxu0 0.0
    %1314 = vmatpush1.msra.mxu0 0.0
    %1315 = vmatprep.subr.mxu0 0.0
    %1316 = vmatpush1.msra.mxu0 0.0
    %1317 = vmatprep.subr.mxu0 0.0
    %1318 = vmatpush1.msra.mxu0 0.0
    %1319 = vmatprep.subr.mxu0 0.0
    %1320 = vmatpush1.msra.mxu0 0.0
    %1321 = vmatprep.subr.mxu0 0.0
    %1322 = vmatpush1.msra.mxu0 0.0
    %1323 = vmatprep.subr.mxu0 0.0
    %1324 = vmatpush1.msra.mxu0 0.0
    %1325 = vmatprep.subr.mxu0 0.0
    %1326 = vmatpush1.msra.mxu0 0.0
    %1327 = vmatprep.subr.mxu0 0.0
    %1328 = vmatpush1.msra.mxu0 0.0
    %1329 = vmatprep.subr.mxu0 0.0
    %1330 = vmatpush1.msra.mxu0 0.0
    %1331 = vmatprep.subr.mxu0 0.0
    %1332 = vmatpush1.msra.mxu0 0.0
    %1333 = vmatprep.mubr.f32.mxu0 0.0
    %1334 = vmatmul.mubr.f32.gmra.mrb[0].mxu0 %v1267
    %v1335 = vpop.f32.mrb[0].mxu0
    %v1336 = vadd.f32 0.0, %v1335
    %v1337 = vpop.f32.mrb[0].mxu0
    %1338 = vdwg.mxu0
    %v1339 = vadd.f32 %v1256, %v1336
    %s1340 = scalar_lea.vmem %s29, 448
    %v1341 = vld [vmem:[%s1340] sm:$0xff]
    %v1342 = vld [vmem:[%s1340 + $0x8] sm:$0xff]
    %v1343 = vld [vmem:[%s1340 + $0x10] sm:$0xff]
    %v1344 = vld [vmem:[%s1340 + $0x18] sm:$0xff]
    %v1345 = vld [vmem:[%s1340 + $0x20] sm:$0xff]
    %v1346 = vld [vmem:[%s1340 + $0x28] sm:$0xff]
    %v1347 = vld [vmem:[%s1340 + $0x30] sm:$0xff]
    %v1348 = vld [vmem:[%s1340 + $0x38] sm:$0xff]
    %vm1349 = vcmask 1041408
    %v1350 = vrot.slane %v745, 6
    %v1351 = vrot.slane %v746, 6
    %v1352 = vsel %vm1349, %v1350, %v1351
    %v1353 = vsel %vm776, %v1352, 0
    %1355 = vmatprep.subr.mxu0 0.0
    %1356 = vmatpush1.msra.mxu0 %v1341
    %1357 = vmatprep.subr.mxu0 0.0
    %1358 = vmatpush1.msra.mxu0 %v1342
    %1359 = vmatprep.subr.mxu0 0.0
    %1360 = vmatpush1.msra.mxu0 %v1343
    %1361 = vmatprep.subr.mxu0 0.0
    %1362 = vmatpush1.msra.mxu0 %v1344
    %1363 = vmatprep.subr.mxu0 0.0
    %1364 = vmatpush1.msra.mxu0 %v1345
    %1365 = vmatprep.subr.mxu0 0.0
    %1366 = vmatpush1.msra.mxu0 %v1346
    %1367 = vmatprep.subr.mxu0 0.0
    %1368 = vmatpush1.msra.mxu0 %v1347
    %1369 = vmatprep.subr.mxu0 0.0
    %1370 = vmatpush1.msra.mxu0 %v1348
    %1371 = vmatprep.subr.mxu0 0.0
    %1372 = vmatpush1.msra.mxu0 0.0
    %1373 = vmatprep.subr.mxu0 0.0
    %1374 = vmatpush1.msra.mxu0 0.0
    %1375 = vmatprep.subr.mxu0 0.0
    %1376 = vmatpush1.msra.mxu0 0.0
    %1377 = vmatprep.subr.mxu0 0.0
    %1378 = vmatpush1.msra.mxu0 0.0
    %1379 = vmatprep.subr.mxu0 0.0
    %1380 = vmatpush1.msra.mxu0 0.0
    %1381 = vmatprep.subr.mxu0 0.0
    %1382 = vmatpush1.msra.mxu0 0.0
    %1383 = vmatprep.subr.mxu0 0.0
    %1384 = vmatpush1.msra.mxu0 0.0
    %1385 = vmatprep.subr.mxu0 0.0
    %1386 = vmatpush1.msra.mxu0 0.0
    %1387 = vmatprep.subr.mxu0 0.0
    %1388 = vmatpush1.msra.mxu0 0.0
    %1389 = vmatprep.subr.mxu0 0.0
    %1390 = vmatpush1.msra.mxu0 0.0
    %1391 = vmatprep.subr.mxu0 0.0
    %1392 = vmatpush1.msra.mxu0 0.0
    %1393 = vmatprep.subr.mxu0 0.0
    %1394 = vmatpush1.msra.mxu0 0.0
    %1395 = vmatprep.subr.mxu0 0.0
    %1396 = vmatpush1.msra.mxu0 0.0
    %1397 = vmatprep.subr.mxu0 0.0
    %1398 = vmatpush1.msra.mxu0 0.0
    %1399 = vmatprep.subr.mxu0 0.0
    %1400 = vmatpush1.msra.mxu0 0.0
    %1401 = vmatprep.subr.mxu0 0.0
    %1402 = vmatpush1.msra.mxu0 0.0
    %1403 = vmatprep.subr.mxu0 0.0
    %1404 = vmatpush1.msra.mxu0 0.0
    %1405 = vmatprep.subr.mxu0 0.0
    %1406 = vmatpush1.msra.mxu0 0.0
    %1407 = vmatprep.subr.mxu0 0.0
    %1408 = vmatpush1.msra.mxu0 0.0
    %1409 = vmatprep.subr.mxu0 0.0
    %1410 = vmatpush1.msra.mxu0 0.0
    %1411 = vmatprep.subr.mxu0 0.0
    %1412 = vmatpush1.msra.mxu0 0.0
    %1413 = vmatprep.subr.mxu0 0.0
    %1414 = vmatpush1.msra.mxu0 0.0
    %1415 = vmatprep.subr.mxu0 0.0
    %1416 = vmatpush1.msra.mxu0 0.0
    %1417 = vmatprep.subr.mxu0 0.0
    %1418 = vmatpush1.msra.mxu0 0.0
    %1419 = vmatprep.mubr.f32.mxu0 0.0
    %1420 = vmatmul.mubr.f32.gmra.mrb[0].mxu0 %v1353
    %v1421 = vpop.f32.mrb[0].mxu0
    %v1422 = vadd.f32 0.0, %v1421
    %v1423 = vpop.f32.mrb[0].mxu0
    %1424 = vdwg.mxu0
    %v1425 = vadd.f32 %v1339, %v1422
    %s1426 = scalar_lea.vmem %s29, 512
    %v1427 = vld [vmem:[%s1426] sm:$0xff]
    %v1428 = vld [vmem:[%s1426 + $0x8] sm:$0xff]
    %v1429 = vld [vmem:[%s1426 + $0x10] sm:$0xff]
    %v1430 = vld [vmem:[%s1426 + $0x18] sm:$0xff]
    %v1431 = vld [vmem:[%s1426 + $0x20] sm:$0xff]
    %v1432 = vld [vmem:[%s1426 + $0x28] sm:$0xff]
    %v1433 = vld [vmem:[%s1426 + $0x30] sm:$0xff]
    %v1434 = vld [vmem:[%s1426 + $0x38] sm:$0xff]
    %v1435 = vrot.slane %v746, 3
    %v1436 = vsel %vm776, %v1435, 0
    %1438 = vmatprep.subr.mxu0 0.0
    %1439 = vmatpush1.msra.mxu0 %v1427
    %1440 = vmatprep.subr.mxu0 0.0
    %1441 = vmatpush1.msra.mxu0 %v1428
    %1442 = vmatprep.subr.mxu0 0.0
    %1443 = vmatpush1.msra.mxu0 %v1429
    %1444 = vmatprep.subr.mxu0 0.0
    %1445 = vmatpush1.msra.mxu0 %v1430
    %1446 = vmatprep.subr.mxu0 0.0
    %1447 = vmatpush1.msra.mxu0 %v1431
    %1448 = vmatprep.subr.mxu0 0.0
    %1449 = vmatpush1.msra.mxu0 %v1432
    %1450 = vmatprep.subr.mxu0 0.0
    %1451 = vmatpush1.msra.mxu0 %v1433
    %1452 = vmatprep.subr.mxu0 0.0
    %1453 = vmatpush1.msra.mxu0 %v1434
    %1454 = vmatprep.subr.mxu0 0.0
    %1455 = vmatpush1.msra.mxu0 0.0
    %1456 = vmatprep.subr.mxu0 0.0
    %1457 = vmatpush1.msra.mxu0 0.0
    %1458 = vmatprep.subr.mxu0 0.0
    %1459 = vmatpush1.msra.mxu0 0.0
    %1460 = vmatprep.subr.mxu0 0.0
    %1461 = vmatpush1.msra.mxu0 0.0
    %1462 = vmatprep.subr.mxu0 0.0
    %1463 = vmatpush1.msra.mxu0 0.0
    %1464 = vmatprep.subr.mxu0 0.0
    %1465 = vmatpush1.msra.mxu0 0.0
    %1466 = vmatprep.subr.mxu0 0.0
    %1467 = vmatpush1.msra.mxu0 0.0
    %1468 = vmatprep.subr.mxu0 0.0
    %1469 = vmatpush1.msra.mxu0 0.0
    %1470 = vmatprep.subr.mxu0 0.0
    %1471 = vmatpush1.msra.mxu0 0.0
    %1472 = vmatprep.subr.mxu0 0.0
    %1473 = vmatpush1.msra.mxu0 0.0
    %1474 = vmatprep.subr.mxu0 0.0
    %1475 = vmatpush1.msra.mxu0 0.0
    %1476 = vmatprep.subr.mxu0 0.0
    %1477 = vmatpush1.msra.mxu0 0.0
    %1478 = vmatprep.subr.mxu0 0.0
    %1479 = vmatpush1.msra.mxu0 0.0
    %1480 = vmatprep.subr.mxu0 0.0
    %1481 = vmatpush1.msra.mxu0 0.0
    %1482 = vmatprep.subr.mxu0 0.0
    %1483 = vmatpush1.msra.mxu0 0.0
    %1484 = vmatprep.subr.mxu0 0.0
    %1485 = vmatpush1.msra.mxu0 0.0
    %1486 = vmatprep.subr.mxu0 0.0
    %1487 = vmatpush1.msra.mxu0 0.0
    %1488 = vmatprep.subr.mxu0 0.0
    %1489 = vmatpush1.msra.mxu0 0.0
    %1490 = vmatprep.subr.mxu0 0.0
    %1491 = vmatpush1.msra.mxu0 0.0
    %1492 = vmatprep.subr.mxu0 0.0
    %1493 = vmatpush1.msra.mxu0 0.0
    %1494 = vmatprep.subr.mxu0 0.0
    %1495 = vmatpush1.msra.mxu0 0.0
    %1496 = vmatprep.subr.mxu0 0.0
    %1497 = vmatpush1.msra.mxu0 0.0
    %1498 = vmatprep.subr.mxu0 0.0
    %1499 = vmatpush1.msra.mxu0 0.0
    %1500 = vmatprep.subr.mxu0 0.0
    %1501 = vmatpush1.msra.mxu0 0.0
    %1502 = vmatprep.mubr.f32.mxu0 0.0
    %1503 = vmatmul.mubr.f32.gmra.mrb[0].mxu0 %v1436
    %v1504 = vpop.f32.mrb[0].mxu0
    %v1505 = vadd.f32 0.0, %v1504
    %v1506 = vpop.f32.mrb[0].mxu0
    %1507 = vdwg.mxu0
    %v1508 = vadd.f32 %v1425, %v1505
    %v1509 = vld [vmem:[#allocation7] sm:$0x1]
    %v1511 = vlaneseq
    %v1512 = vshrl.u32 %v1511, 7
    %v1513 = vsub.s32 0, %v1512
    %v1514 = vrot.slane %v1509, %v1513
    %v1516 = vadd.f32 %v1508, %v1514
    %v1517 = vmax.f32 %v1516, 0.0
    %v1518 = vld [vmem:[%s25] sm:$0xff]
    %v1519 = vld [vmem:[%s25 + $0x8] sm:$0xff]
    %v1520 = vld [vmem:[%s25 + $0x10] sm:$0xff]
    %v1521 = vld [vmem:[%s25 + $0x18] sm:$0xff]
    %v1522 = vld [vmem:[%s25 + $0x20] sm:$0xff]
    %v1523 = vld [vmem:[%s25 + $0x28] sm:$0xff]
    %v1524 = vld [vmem:[%s25 + $0x30] sm:$0xff]
    %v1525 = vld [vmem:[%s25 + $0x38] sm:$0xff]
    %v1527 = vrot.slane %v746, 7
    %v1528 = vrot.slane %v747, 7
    %v1529 = vsel %vm636, %v1527, %v1528
    %v1530 = vsel %vm776, %v1529, 0
    %1532 = vmatprep.subr.mxu0 0.0
    %1533 = vmatpush1.msra.mxu0 %v762
    %1534 = vmatprep.subr.mxu0 0.0
    %1535 = vmatpush1.msra.mxu0 %v763
    %1536 = vmatprep.subr.mxu0 0.0
    %1537 = vmatpush1.msra.mxu0 %v764
    %1538 = vmatprep.subr.mxu0 0.0
    %1539 = vmatpush1.msra.mxu0 %v765
    %1540 = vmatprep.subr.mxu0 0.0
    %1541 = vmatpush1.msra.mxu0 %v766
    %1542 = vmatprep.subr.mxu0 0.0
    %1543 = vmatpush1.msra.mxu0 %v767
    %1544 = vmatprep.subr.mxu0 0.0
    %1545 = vmatpush1.msra.mxu0 %v768
    %1546 = vmatprep.subr.mxu0 0.0
    %1547 = vmatpush1.msra.mxu0 %v769
    %1548 = vmatprep.subr.mxu0 0.0
    %1549 = vmatpush1.msra.mxu0 0.0
    %1550 = vmatprep.subr.mxu0 0.0
    %1551 = vmatpush1.msra.mxu0 0.0
    %1552 = vmatprep.subr.mxu0 0.0
    %1553 = vmatpush1.msra.mxu0 0.0
    %1554 = vmatprep.subr.mxu0 0.0
    %1555 = vmatpush1.msra.mxu0 0.0
    %1556 = vmatprep.subr.mxu0 0.0
    %1557 = vmatpush1.msra.mxu0 0.0
    %1558 = vmatprep.subr.mxu0 0.0
    %1559 = vmatpush1.msra.mxu0 0.0
    %1560 = vmatprep.subr.mxu0 0.0
    %1561 = vmatpush1.msra.mxu0 0.0
    %1562 = vmatprep.subr.mxu0 0.0
    %1563 = vmatpush1.msra.mxu0 0.0
    %1564 = vmatprep.subr.mxu0 0.0
    %1565 = vmatpush1.msra.mxu0 0.0
    %1566 = vmatprep.subr.mxu0 0.0
    %1567 = vmatpush1.msra.mxu0 0.0
    %1568 = vmatprep.subr.mxu0 0.0
    %1569 = vmatpush1.msra.mxu0 0.0
    %1570 = vmatprep.subr.mxu0 0.0
    %1571 = vmatpush1.msra.mxu0 0.0
    %1572 = vmatprep.subr.mxu0 0.0
    %1573 = vmatpush1.msra.mxu0 0.0
    %1574 = vmatprep.subr.mxu0 0.0
    %1575 = vmatpush1.msra.mxu0 0.0
    %1576 = vmatprep.subr.mxu0 0.0
    %1577 = vmatpush1.msra.mxu0 0.0
    %1578 = vmatprep.subr.mxu0 0.0
    %1579 = vmatpush1.msra.mxu0 0.0
    %1580 = vmatprep.subr.mxu0 0.0
    %1581 = vmatpush1.msra.mxu0 0.0
    %1582 = vmatprep.subr.mxu0 0.0
    %1583 = vmatpush1.msra.mxu0 0.0
    %1584 = vmatprep.subr.mxu0 0.0
    %1585 = vmatpush1.msra.mxu0 0.0
    %1586 = vmatprep.subr.mxu0 0.0
    %1587 = vmatpush1.msra.mxu0 0.0
    %1588 = vmatprep.subr.mxu0 0.0
    %1589 = vmatpush1.msra.mxu0 0.0
    %1590 = vmatprep.subr.mxu0 0.0
    %1591 = vmatpush1.msra.mxu0 0.0
    %1592 = vmatprep.subr.mxu0 0.0
    %1593 = vmatpush1.msra.mxu0 0.0
    %1594 = vmatprep.subr.mxu0 0.0
    %1595 = vmatpush1.msra.mxu0 0.0
    %1596 = vmatprep.mubr.f32.mxu0 0.0
    %1597 = vmatmul.mubr.f32.gmra.mrb[0].mxu0 %v1530
    %v1598 = vpop.f32.mrb[0].mxu0
    %v1599 = vadd.f32 0.0, %v1598
    %v1600 = vpop.f32.mrb[0].mxu0
    %1601 = vdwg.mxu0
    %1602 = vmatprep.subr.mxu0 0.0
    %1603 = vmatpush1.msra.mxu0 %v753
    %1604 = vmatprep.subr.mxu0 0.0
    %1605 = vmatpush1.msra.mxu0 %v754
    %1606 = vmatprep.subr.mxu0 0.0
    %1607 = vmatpush1.msra.mxu0 %v755
    %1608 = vmatprep.subr.mxu0 0.0
    %1609 = vmatpush1.msra.mxu0 %v756
    %1610 = vmatprep.subr.mxu0 0.0
    %1611 = vmatpush1.msra.mxu0 %v757
    %1612 = vmatprep.subr.mxu0 0.0
    %1613 = vmatpush1.msra.mxu0 %v758
    %1614 = vmatprep.subr.mxu0 0.0
    %1615 = vmatpush1.msra.mxu0 %v759
    %1616 = vmatprep.subr.mxu0 0.0
    %1617 = vmatpush1.msra.mxu0 %v760
    %1618 = vmatprep.subr.mxu0 0.0
    %1619 = vmatpush1.msra.mxu0 0.0
    %1620 = vmatprep.subr.mxu0 0.0
    %1621 = vmatpush1.msra.mxu0 0.0
    %1622 = vmatprep.subr.mxu0 0.0
    %1623 = vmatpush1.msra.mxu0 0.0
    %1624 = vmatprep.subr.mxu0 0.0
    %1625 = vmatpush1.msra.mxu0 0.0
    %1626 = vmatprep.subr.mxu0 0.0
    %1627 = vmatpush1.msra.mxu0 0.0
    %1628 = vmatprep.subr.mxu0 0.0
    %1629 = vmatpush1.msra.mxu0 0.0
    %1630 = vmatprep.subr.mxu0 0.0
    %1631 = vmatpush1.msra.mxu0 0.0
    %1632 = vmatprep.subr.mxu0 0.0
    %1633 = vmatpush1.msra.mxu0 0.0
    %1634 = vmatprep.subr.mxu0 0.0
    %1635 = vmatpush1.msra.mxu0 0.0
    %1636 = vmatprep.subr.mxu0 0.0
    %1637 = vmatpush1.msra.mxu0 0.0
    %1638 = vmatprep.subr.mxu0 0.0
    %1639 = vmatpush1.msra.mxu0 0.0
    %1640 = vmatprep.subr.mxu0 0.0
    %1641 = vmatpush1.msra.mxu0 0.0
    %1642 = vmatprep.subr.mxu0 0.0
    %1643 = vmatpush1.msra.mxu0 0.0
    %1644 = vmatprep.subr.mxu0 0.0
    %1645 = vmatpush1.msra.mxu0 0.0
    %1646 = vmatprep.subr.mxu0 0.0
    %1647 = vmatpush1.msra.mxu0 0.0
    %1648 = vmatprep.subr.mxu0 0.0
    %1649 = vmatpush1.msra.mxu0 0.0
    %1650 = vmatprep.subr.mxu0 0.0
    %1651 = vmatpush1.msra.mxu0 0.0
    %1652 = vmatprep.subr.mxu0 0.0
    %1653 = vmatpush1.msra.mxu0 0.0
    %1654 = vmatprep.subr.mxu0 0.0
    %1655 = vmatpush1.msra.mxu0 0.0
    %1656 = vmatprep.subr.mxu0 0.0
    %1657 = vmatpush1.msra.mxu0 0.0
    %1658 = vmatprep.subr.mxu0 0.0
    %1659 = vmatpush1.msra.mxu0 0.0
    %1660 = vmatprep.subr.mxu0 0.0
    %1661 = vmatpush1.msra.mxu0 0.0
    %1662 = vmatprep.subr.mxu0 0.0
    %1663 = vmatpush1.msra.mxu0 0.0
    %1664 = vmatprep.subr.mxu0 0.0
    %1665 = vmatpush1.msra.mxu0 0.0
    %1666 = vmatprep.mubr.f32.mxu0 0.0
    %1667 = vmatmul.mubr.f32.gmra.mrb[0].mxu0 %v931
    %v1668 = vpop.f32.mrb[0].mxu0
    %v1669 = vadd.f32 %v1599, %v1668
    %v1670 = vpop.f32.mrb[0].mxu0
    %1671 = vdwg.mxu0
    %v1672 = vrot.slane %v747, 4
    %v1673 = vsel %vm776, %v1672, 0
    %1675 = vmatprep.subr.mxu0 0.0
    %1676 = vmatpush1.msra.mxu0 %v922
    %1677 = vmatprep.subr.mxu0 0.0
    %1678 = vmatpush1.msra.mxu0 %v923
    %1679 = vmatprep.subr.mxu0 0.0
    %1680 = vmatpush1.msra.mxu0 %v924
    %1681 = vmatprep.subr.mxu0 0.0
    %1682 = vmatpush1.msra.mxu0 %v925
    %1683 = vmatprep.subr.mxu0 0.0
    %1684 = vmatpush1.msra.mxu0 %v926
    %1685 = vmatprep.subr.mxu0 0.0
    %1686 = vmatpush1.msra.mxu0 %v927
    %1687 = vmatprep.subr.mxu0 0.0
    %1688 = vmatpush1.msra.mxu0 %v928
    %1689 = vmatprep.subr.mxu0 0.0
    %1690 = vmatpush1.msra.mxu0 %v929
    %1691 = vmatprep.subr.mxu0 0.0
    %1692 = vmatpush1.msra.mxu0 0.0
    %1693 = vmatprep.subr.mxu0 0.0
    %1694 = vmatpush1.msra.mxu0 0.0
    %1695 = vmatprep.subr.mxu0 0.0
    %1696 = vmatpush1.msra.mxu0 0.0
    %1697 = vmatprep.subr.mxu0 0.0
    %1698 = vmatpush1.msra.mxu0 0.0
    %1699 = vmatprep.subr.mxu0 0.0
    %1700 = vmatpush1.msra.mxu0 0.0
    %1701 = vmatprep.subr.mxu0 0.0
    %1702 = vmatpush1.msra.mxu0 0.0
    %1703 = vmatprep.subr.mxu0 0.0
    %1704 = vmatpush1.msra.mxu0 0.0
    %1705 = vmatprep.subr.mxu0 0.0
    %1706 = vmatpush1.msra.mxu0 0.0
    %1707 = vmatprep.subr.mxu0 0.0
    %1708 = vmatpush1.msra.mxu0 0.0
    %1709 = vmatprep.subr.mxu0 0.0
    %1710 = vmatpush1.msra.mxu0 0.0
    %1711 = vmatprep.subr.mxu0 0.0
    %1712 = vmatpush1.msra.mxu0 0.0
    %1713 = vmatprep.subr.mxu0 0.0
    %1714 = vmatpush1.msra.mxu0 0.0
    %1715 = vmatprep.subr.mxu0 0.0
    %1716 = vmatpush1.msra.mxu0 0.0
    %1717 = vmatprep.subr.mxu0 0.0
    %1718 = vmatpush1.msra.mxu0 0.0
    %1719 = vmatprep.subr.mxu0 0.0
    %1720 = vmatpush1.msra.mxu0 0.0
    %1721 = vmatprep.subr.mxu0 0.0
    %1722 = vmatpush1.msra.mxu0 0.0
    %1723 = vmatprep.subr.mxu0 0.0
    %1724 = vmatpush1.msra.mxu0 0.0
    %1725 = vmatprep.subr.mxu0 0.0
    %1726 = vmatpush1.msra.mxu0 0.0
    %1727 = vmatprep.subr.mxu0 0.0
    %1728 = vmatpush1.msra.mxu0 0.0
    %1729 = vmatprep.subr.mxu0 0.0
    %1730 = vmatpush1.msra.mxu0 0.0
    %1731 = vmatprep.subr.mxu0 0.0
    %1732 = vmatpush1.msra.mxu0 0.0
    %1733 = vmatprep.subr.mxu0 0.0
    %1734 = vmatpush1.msra.mxu0 0.0
    %1735 = vmatprep.subr.mxu0 0.0
    %1736 = vmatpush1.msra.mxu0 0.0
    %1737 = vmatprep.subr.mxu0 0.0
    %1738 = vmatpush1.msra.mxu0 0.0
    %1739 = vmatprep.mubr.f32.mxu0 0.0
    %1740 = vmatmul.mubr.f32.gmra.mrb[0].mxu0 %v1673
    %v1741 = vpop.f32.mrb[0].mxu0
    %v1742 = vadd.f32 0.0, %v1741
    %v1743 = vpop.f32.mrb[0].mxu0
    %1744 = vdwg.mxu0
    %v1745 = vadd.f32 %v1669, %v1742
    %1746 = vmatprep.subr.mxu0 0.0
    %1747 = vmatpush1.msra.mxu0 %v1005
    %1748 = vmatprep.subr.mxu0 0.0
    %1749 = vmatpush1.msra.mxu0 %v1006
    %1750 = vmatprep.subr.mxu0 0.0
    %1751 = vmatpush1.msra.mxu0 %v1007
    %1752 = vmatprep.subr.mxu0 0.0
    %1753 = vmatpush1.msra.mxu0 %v1008
    %1754 = vmatprep.subr.mxu0 0.0
    %1755 = vmatpush1.msra.mxu0 %v1009
    %1756 = vmatprep.subr.mxu0 0.0
    %1757 = vmatpush1.msra.mxu0 %v1010
    %1758 = vmatprep.subr.mxu0 0.0
    %1759 = vmatpush1.msra.mxu0 %v1011
    %1760 = vmatprep.subr.mxu0 0.0
    %1761 = vmatpush1.msra.mxu0 %v1012
    %1762 = vmatprep.subr.mxu0 0.0
    %1763 = vmatpush1.msra.mxu0 0.0
    %1764 = vmatprep.subr.mxu0 0.0
    %1765 = vmatpush1.msra.mxu0 0.0
    %1766 = vmatprep.subr.mxu0 0.0
    %1767 = vmatpush1.msra.mxu0 0.0
    %1768 = vmatprep.subr.mxu0 0.0
    %1769 = vmatpush1.msra.mxu0 0.0
    %1770 = vmatprep.subr.mxu0 0.0
    %1771 = vmatpush1.msra.mxu0 0.0
    %1772 = vmatprep.subr.mxu0 0.0
    %1773 = vmatpush1.msra.mxu0 0.0
    %1774 = vmatprep.subr.mxu0 0.0
    %1775 = vmatpush1.msra.mxu0 0.0
    %1776 = vmatprep.subr.mxu0 0.0
    %1777 = vmatpush1.msra.mxu0 0.0
    %1778 = vmatprep.subr.mxu0 0.0
    %1779 = vmatpush1.msra.mxu0 0.0
    %1780 = vmatprep.subr.mxu0 0.0
    %1781 = vmatpush1.msra.mxu0 0.0
    %1782 = vmatprep.subr.mxu0 0.0
    %1783 = vmatpush1.msra.mxu0 0.0
    %1784 = vmatprep.subr.mxu0 0.0
    %1785 = vmatpush1.msra.mxu0 0.0
    %1786 = vmatprep.subr.mxu0 0.0
    %1787 = vmatpush1.msra.mxu0 0.0
    %1788 = vmatprep.subr.mxu0 0.0
    %1789 = vmatpush1.msra.mxu0 0.0
    %1790 = vmatprep.subr.mxu0 0.0
    %1791 = vmatpush1.msra.mxu0 0.0
    %1792 = vmatprep.subr.mxu0 0.0
    %1793 = vmatpush1.msra.mxu0 0.0
    %1794 = vmatprep.subr.mxu0 0.0
    %1795 = vmatpush1.msra.mxu0 0.0
    %1796 = vmatprep.subr.mxu0 0.0
    %1797 = vmatpush1.msra.mxu0 0.0
    %1798 = vmatprep.subr.mxu0 0.0
    %1799 = vmatpush1.msra.mxu0 0.0
    %1800 = vmatprep.subr.mxu0 0.0
    %1801 = vmatpush1.msra.mxu0 0.0
    %1802 = vmatprep.subr.mxu0 0.0
    %1803 = vmatpush1.msra.mxu0 0.0
    %1804 = vmatprep.subr.mxu0 0.0
    %1805 = vmatpush1.msra.mxu0 0.0
    %1806 = vmatprep.subr.mxu0 0.0
    %1807 = vmatpush1.msra.mxu0 0.0
    %1808 = vmatprep.subr.mxu0 0.0
    %1809 = vmatpush1.msra.mxu0 0.0
    %1810 = vmatprep.mubr.f32.mxu0 0.0
    %1811 = vmatmul.mubr.f32.gmra.mrb[0].mxu0 %v1184
    %v1812 = vpop.f32.mrb[0].mxu0
    %v1813 = vadd.f32 0.0, %v1812
    %v1814 = vpop.f32.mrb[0].mxu0
    %1815 = vdwg.mxu0
    %v1816 = vadd.f32 %v1745, %v1813
    %v1818 = vrot.slane %v751, 7
    %v1819 = vsel %vm636, %v1099, %v1818
    %v1820 = vsel %vm776, %v1819, 0
    %1822 = vmatprep.subr.mxu0 0.0
    %1823 = vmatpush1.msra.mxu0 %v1089
    %1824 = vmatprep.subr.mxu0 0.0
    %1825 = vmatpush1.msra.mxu0 %v1090
    %1826 = vmatprep.subr.mxu0 0.0
    %1827 = vmatpush1.msra.mxu0 %v1091
    %1828 = vmatprep.subr.mxu0 0.0
    %1829 = vmatpush1.msra.mxu0 %v1092
    %1830 = vmatprep.subr.mxu0 0.0
    %1831 = vmatpush1.msra.mxu0 %v1093
    %1832 = vmatprep.subr.mxu0 0.0
    %1833 = vmatpush1.msra.mxu0 %v1094
    %1834 = vmatprep.subr.mxu0 0.0
    %1835 = vmatpush1.msra.mxu0 %v1095
    %1836 = vmatprep.subr.mxu0 0.0
    %1837 = vmatpush1.msra.mxu0 %v1096
    %1838 = vmatprep.subr.mxu0 0.0
    %1839 = vmatpush1.msra.mxu0 0.0
    %1840 = vmatprep.subr.mxu0 0.0
    %1841 = vmatpush1.msra.mxu0 0.0
    %1842 = vmatprep.subr.mxu0 0.0
    %1843 = vmatpush1.msra.mxu0 0.0
    %1844 = vmatprep.subr.mxu0 0.0
    %1845 = vmatpush1.msra.mxu0 0.0
    %1846 = vmatprep.subr.mxu0 0.0
    %1847 = vmatpush1.msra.mxu0 0.0
    %1848 = vmatprep.subr.mxu0 0.0
    %1849 = vmatpush1.msra.mxu0 0.0
    %1850 = vmatprep.subr.mxu0 0.0
    %1851 = vmatpush1.msra.mxu0 0.0
    %1852 = vmatprep.subr.mxu0 0.0
    %1853 = vmatpush1.msra.mxu0 0.0
    %1854 = vmatprep.subr.mxu0 0.0
    %1855 = vmatpush1.msra.mxu0 0.0
    %1856 = vmatprep.subr.mxu0 0.0
    %1857 = vmatpush1.msra.mxu0 0.0
    %1858 = vmatprep.subr.mxu0 0.0
    %1859 = vmatpush1.msra.mxu0 0.0
    %1860 = vmatprep.subr.mxu0 0.0
    %1861 = vmatpush1.msra.mxu0 0.0
    %1862 = vmatprep.subr.mxu0 0.0
    %1863 = vmatpush1.msra.mxu0 0.0
    %1864 = vmatprep.subr.mxu0 0.0
    %1865 = vmatpush1.msra.mxu0 0.0
    %1866 = vmatprep.subr.mxu0 0.0
    %1867 = vmatpush1.msra.mxu0 0.0
    %1868 = vmatprep.subr.mxu0 0.0
    %1869 = vmatpush1.msra.mxu0 0.0
    %1870 = vmatprep.subr.mxu0 0.0
    %1871 = vmatpush1.msra.mxu0 0.0
    %1872 = vmatprep.subr.mxu0 0.0
    %1873 = vmatpush1.msra.mxu0 0.0
    %1874 = vmatprep.subr.mxu0 0.0
    %1875 = vmatpush1.msra.mxu0 0.0
    %1876 = vmatprep.subr.mxu0 0.0
    %1877 = vmatpush1.msra.mxu0 0.0
    %1878 = vmatprep.subr.mxu0 0.0
    %1879 = vmatpush1.msra.mxu0 0.0
    %1880 = vmatprep.subr.mxu0 0.0
    %1881 = vmatpush1.msra.mxu0 0.0
    %1882 = vmatprep.subr.mxu0 0.0
    %1883 = vmatpush1.msra.mxu0 0.0
    %1884 = vmatprep.subr.mxu0 0.0
    %1885 = vmatpush1.msra.mxu0 0.0
    %1886 = vmatprep.mubr.f32.mxu0 0.0
    %1887 = vmatmul.mubr.f32.gmra.mrb[0].mxu0 %v1820
    %v1888 = vpop.f32.mrb[0].mxu0
    %v1889 = vadd.f32 0.0, %v1888
    %v1890 = vpop.f32.mrb[0].mxu0
    %1891 = vdwg.mxu0
    %v1892 = vadd.f32 %v1816, %v1889
    %v1893 = vrot.slane %v751, 3
    %v1894 = vsel %vm776, %v1893, 0
    %1896 = vmatprep.subr.mxu0 0.0
    %1897 = vmatpush1.msra.mxu0 %v1175
    %1898 = vmatprep.subr.mxu0 0.0
    %1899 = vmatpush1.msra.mxu0 %v1176
    %1900 = vmatprep.subr.mxu0 0.0
    %1901 = vmatpush1.msra.mxu0 %v1177
    %1902 = vmatprep.subr.mxu0 0.0
    %1903 = vmatpush1.msra.mxu0 %v1178
    %1904 = vmatprep.subr.mxu0 0.0
    %1905 = vmatpush1.msra.mxu0 %v1179
    %1906 = vmatprep.subr.mxu0 0.0
    %1907 = vmatpush1.msra.mxu0 %v1180
    %1908 = vmatprep.subr.mxu0 0.0
    %1909 = vmatpush1.msra.mxu0 %v1181
    %1910 = vmatprep.subr.mxu0 0.0
    %1911 = vmatpush1.msra.mxu0 %v1182
    %1912 = vmatprep.subr.mxu0 0.0
    %1913 = vmatpush1.msra.mxu0 0.0
    %1914 = vmatprep.subr.mxu0 0.0
    %1915 = vmatpush1.msra.mxu0 0.0
    %1916 = vmatprep.subr.mxu0 0.0
    %1917 = vmatpush1.msra.mxu0 0.0
    %1918 = vmatprep.subr.mxu0 0.0
    %1919 = vmatpush1.msra.mxu0 0.0
    %1920 = vmatprep.subr.mxu0 0.0
    %1921 = vmatpush1.msra.mxu0 0.0
    %1922 = vmatprep.subr.mxu0 0.0
    %1923 = vmatpush1.msra.mxu0 0.0
    %1924 = vmatprep.subr.mxu0 0.0
    %1925 = vmatpush1.msra.mxu0 0.0
    %1926 = vmatprep.subr.mxu0 0.0
    %1927 = vmatpush1.msra.mxu0 0.0
    %1928 = vmatprep.subr.mxu0 0.0
    %1929 = vmatpush1.msra.mxu0 0.0
    %1930 = vmatprep.subr.mxu0 0.0
    %1931 = vmatpush1.msra.mxu0 0.0
    %1932 = vmatprep.subr.mxu0 0.0
    %1933 = vmatpush1.msra.mxu0 0.0
    %1934 = vmatprep.subr.mxu0 0.0
    %1935 = vmatpush1.msra.mxu0 0.0
    %1936 = vmatprep.subr.mxu0 0.0
    %1937 = vmatpush1.msra.mxu0 0.0
    %1938 = vmatprep.subr.mxu0 0.0
    %1939 = vmatpush1.msra.mxu0 0.0
    %1940 = vmatprep.subr.mxu0 0.0
    %1941 = vmatpush1.msra.mxu0 0.0
    %1942 = vmatprep.subr.mxu0 0.0
    %1943 = vmatpush1.msra.mxu0 0.0
    %1944 = vmatprep.subr.mxu0 0.0
    %1945 = vmatpush1.msra.mxu0 0.0
    %1946 = vmatprep.subr.mxu0 0.0
    %1947 = vmatpush1.msra.mxu0 0.0
    %1948 = vmatprep.subr.mxu0 0.0
    %1949 = vmatpush1.msra.mxu0 0.0
    %1950 = vmatprep.subr.mxu0 0.0
    %1951 = vmatpush1.msra.mxu0 0.0
    %1952 = vmatprep.subr.mxu0 0.0
    %1953 = vmatpush1.msra.mxu0 0.0
    %1954 = vmatprep.subr.mxu0 0.0
    %1955 = vmatpush1.msra.mxu0 0.0
    %1956 = vmatprep.subr.mxu0 0.0
    %1957 = vmatpush1.msra.mxu0 0.0
    %1958 = vmatprep.subr.mxu0 0.0
    %1959 = vmatpush1.msra.mxu0 0.0
    %1960 = vmatprep.mubr.f32.mxu0 0.0
    %1961 = vmatmul.mubr.f32.gmra.mrb[0].mxu0 %v1894
    %v1962 = vpop.f32.mrb[0].mxu0
    %v1963 = vadd.f32 0.0, %v1962
    %v1964 = vpop.f32.mrb[0].mxu0
    %1965 = vdwg.mxu0
    %v1966 = vadd.f32 %v1892, %v1963
    %1967 = vmatprep.subr.mxu0 0.0
    %1968 = vmatpush1.msra.mxu0 %v1258
    %1969 = vmatprep.subr.mxu0 0.0
    %1970 = vmatpush1.msra.mxu0 %v1259
    %1971 = vmatprep.subr.mxu0 0.0
    %1972 = vmatpush1.msra.mxu0 %v1260
    %1973 = vmatprep.subr.mxu0 0.0
    %1974 = vmatpush1.msra.mxu0 %v1261
    %1975 = vmatprep.subr.mxu0 0.0
    %1976 = vmatpush1.msra.mxu0 %v1262
    %1977 = vmatprep.subr.mxu0 0.0
    %1978 = vmatpush1.msra.mxu0 %v1263
    %1979 = vmatprep.subr.mxu0 0.0
    %1980 = vmatpush1.msra.mxu0 %v1264
    %1981 = vmatprep.subr.mxu0 0.0
    %1982 = vmatpush1.msra.mxu0 %v1265
    %1983 = vmatprep.subr.mxu0 0.0
    %1984 = vmatpush1.msra.mxu0 0.0
    %1985 = vmatprep.subr.mxu0 0.0
    %1986 = vmatpush1.msra.mxu0 0.0
    %1987 = vmatprep.subr.mxu0 0.0
    %1988 = vmatpush1.msra.mxu0 0.0
    %1989 = vmatprep.subr.mxu0 0.0
    %1990 = vmatpush1.msra.mxu0 0.0
    %1991 = vmatprep.subr.mxu0 0.0
    %1992 = vmatpush1.msra.mxu0 0.0
    %1993 = vmatprep.subr.mxu0 0.0
    %1994 = vmatpush1.msra.mxu0 0.0
    %1995 = vmatprep.subr.mxu0 0.0
    %1996 = vmatpush1.msra.mxu0 0.0
    %1997 = vmatprep.subr.mxu0 0.0
    %1998 = vmatpush1.msra.mxu0 0.0
    %1999 = vmatprep.subr.mxu0 0.0
    %2000 = vmatpush1.msra.mxu0 0.0
    %2001 = vmatprep.subr.mxu0 0.0
    %2002 = vmatpush1.msra.mxu0 0.0
    %2003 = vmatprep.subr.mxu0 0.0
    %2004 = vmatpush1.msra.mxu0 0.0
    %2005 = vmatprep.subr.mxu0 0.0
    %2006 = vmatpush1.msra.mxu0 0.0
    %2007 = vmatprep.subr.mxu0 0.0
    %2008 = vmatpush1.msra.mxu0 0.0
    %2009 = vmatprep.subr.mxu0 0.0
    %2010 = vmatpush1.msra.mxu0 0.0
    %2011 = vmatprep.subr.mxu0 0.0
    %2012 = vmatpush1.msra.mxu0 0.0
    %2013 = vmatprep.subr.mxu0 0.0
    %2014 = vmatpush1.msra.mxu0 0.0
    %2015 = vmatprep.subr.mxu0 0.0
    %2016 = vmatpush1.msra.mxu0 0.0
    %2017 = vmatprep.subr.mxu0 0.0
    %2018 = vmatpush1.msra.mxu0 0.0
    %2019 = vmatprep.subr.mxu0 0.0
    %2020 = vmatpush1.msra.mxu0 0.0
    %2021 = vmatprep.subr.mxu0 0.0
    %2022 = vmatpush1.msra.mxu0 0.0
    %2023 = vmatprep.subr.mxu0 0.0
    %2024 = vmatpush1.msra.mxu0 0.0
    %2025 = vmatprep.subr.mxu0 0.0
    %2026 = vmatpush1.msra.mxu0 0.0
    %2027 = vmatprep.subr.mxu0 0.0
    %2028 = vmatpush1.msra.mxu0 0.0
    %2029 = vmatprep.subr.mxu0 0.0
    %2030 = vmatpush1.msra.mxu0 0.0
    %2031 = vmatprep.mubr.f32.mxu0 0.0
    %2032 = vmatmul.mubr.f32.gmra.mrb[0].mxu0 %v1436
    %v2033 = vpop.f32.mrb[0].mxu0
    %v2034 = vadd.f32 0.0, %v2033
    %v2035 = vpop.f32.mrb[0].mxu0
    %2036 = vdwg.mxu0
    %v2037 = vadd.f32 %v1966, %v2034
    %v2038 = vsel %vm776, %v747, 0
    %2040 = vmatprep.subr.mxu0 0.0
    %2041 = vmatpush1.msra.mxu0 %v1341
    %2042 = vmatprep.subr.mxu0 0.0
    %2043 = vmatpush1.msra.mxu0 %v1342
    %2044 = vmatprep.subr.mxu0 0.0
    %2045 = vmatpush1.msra.mxu0 %v1343
    %2046 = vmatprep.subr.mxu0 0.0
    %2047 = vmatpush1.msra.mxu0 %v1344
    %2048 = vmatprep.subr.mxu0 0.0
    %2049 = vmatpush1.msra.mxu0 %v1345
    %2050 = vmatprep.subr.mxu0 0.0
    %2051 = vmatpush1.msra.mxu0 %v1346
    %2052 = vmatprep.subr.mxu0 0.0
    %2053 = vmatpush1.msra.mxu0 %v1347
    %2054 = vmatprep.subr.mxu0 0.0
    %2055 = vmatpush1.msra.mxu0 %v1348
    %2056 = vmatprep.subr.mxu0 0.0
    %2057 = vmatpush1.msra.mxu0 0.0
    %2058 = vmatprep.subr.mxu0 0.0
    %2059 = vmatpush1.msra.mxu0 0.0
    %2060 = vmatprep.subr.mxu0 0.0
    %2061 = vmatpush1.msra.mxu0 0.0
    %2062 = vmatprep.subr.mxu0 0.0
    %2063 = vmatpush1.msra.mxu0 0.0
    %2064 = vmatprep.subr.mxu0 0.0
    %2065 = vmatpush1.msra.mxu0 0.0
    %2066 = vmatprep.subr.mxu0 0.0
    %2067 = vmatpush1.msra.mxu0 0.0
    %2068 = vmatprep.subr.mxu0 0.0
    %2069 = vmatpush1.msra.mxu0 0.0
    %2070 = vmatprep.subr.mxu0 0.0
    %2071 = vmatpush1.msra.mxu0 0.0
    %2072 = vmatprep.subr.mxu0 0.0
    %2073 = vmatpush1.msra.mxu0 0.0
    %2074 = vmatprep.subr.mxu0 0.0
    %2075 = vmatpush1.msra.mxu0 0.0
    %2076 = vmatprep.subr.mxu0 0.0
    %2077 = vmatpush1.msra.mxu0 0.0
    %2078 = vmatprep.subr.mxu0 0.0
    %2079 = vmatpush1.msra.mxu0 0.0
    %2080 = vmatprep.subr.mxu0 0.0
    %2081 = vmatpush1.msra.mxu0 0.0
    %2082 = vmatprep.subr.mxu0 0.0
    %2083 = vmatpush1.msra.mxu0 0.0
    %2084 = vmatprep.subr.mxu0 0.0
    %2085 = vmatpush1.msra.mxu0 0.0
    %2086 = vmatprep.subr.mxu0 0.0
    %2087 = vmatpush1.msra.mxu0 0.0
    %2088 = vmatprep.subr.mxu0 0.0
    %2089 = vmatpush1.msra.mxu0 0.0
    %2090 = vmatprep.subr.mxu0 0.0
    %2091 = vmatpush1.msra.mxu0 0.0
    %2092 = vmatprep.subr.mxu0 0.0
    %2093 = vmatpush1.msra.mxu0 0.0
    %2094 = vmatprep.subr.mxu0 0.0
    %2095 = vmatpush1.msra.mxu0 0.0
    %2096 = vmatprep.subr.mxu0 0.0
    %2097 = vmatpush1.msra.mxu0 0.0
    %2098 = vmatprep.subr.mxu0 0.0
    %2099 = vmatpush1.msra.mxu0 0.0
    %2100 = vmatprep.subr.mxu0 0.0
    %2101 = vmatpush1.msra.mxu0 0.0
    %2102 = vmatprep.subr.mxu0 0.0
    %2103 = vmatpush1.msra.mxu0 0.0
    %2104 = vmatprep.mubr.f32.mxu0 0.0
    %2105 = vmatmul.mubr.f32.gmra.mrb[0].mxu0 %v2038
    %v2106 = vpop.f32.mrb[0].mxu0
    %v2107 = vadd.f32 0.0, %v2106
    %v2108 = vpop.f32.mrb[0].mxu0
    %2109 = vdwg.mxu0
    %v2110 = vadd.f32 %v2037, %v2107
    %v2112 = vrot.slane %v747, 5
    %v2113 = vrot.slane %v748, 5
    %v2114 = vsel %vm772, %v2112, %v2113
    %v2115 = vsel %vm776, %v2114, 0
    %2117 = vmatprep.subr.mxu0 0.0
    %2118 = vmatpush1.msra.mxu0 %v1427
    %2119 = vmatprep.subr.mxu0 0.0
    %2120 = vmatpush1.msra.mxu0 %v1428
    %2121 = vmatprep.subr.mxu0 0.0
    %2122 = vmatpush1.msra.mxu0 %v1429
    %2123 = vmatprep.subr.mxu0 0.0
    %2124 = vmatpush1.msra.mxu0 %v1430
    %2125 = vmatprep.subr.mxu0 0.0
    %2126 = vmatpush1.msra.mxu0 %v1431
    %2127 = vmatprep.subr.mxu0 0.0
    %2128 = vmatpush1.msra.mxu0 %v1432
    %2129 = vmatprep.subr.mxu0 0.0
    %2130 = vmatpush1.msra.mxu0 %v1433
    %2131 = vmatprep.subr.mxu0 0.0
    %2132 = vmatpush1.msra.mxu0 %v1434
    %2133 = vmatprep.subr.mxu0 0.0
    %2134 = vmatpush1.msra.mxu0 0.0
    %2135 = vmatprep.subr.mxu0 0.0
    %2136 = vmatpush1.msra.mxu0 0.0
    %2137 = vmatprep.subr.mxu0 0.0
    %2138 = vmatpush1.msra.mxu0 0.0
    %2139 = vmatprep.subr.mxu0 0.0
    %2140 = vmatpush1.msra.mxu0 0.0
    %2141 = vmatprep.subr.mxu0 0.0
    %2142 = vmatpush1.msra.mxu0 0.0
    %2143 = vmatprep.subr.mxu0 0.0
    %2144 = vmatpush1.msra.mxu0 0.0
    %2145 = vmatprep.subr.mxu0 0.0
    %2146 = vmatpush1.msra.mxu0 0.0
    %2147 = vmatprep.subr.mxu0 0.0
    %2148 = vmatpush1.msra.mxu0 0.0
    %2149 = vmatprep.subr.mxu0 0.0
    %2150 = vmatpush1.msra.mxu0 0.0
    %2151 = vmatprep.subr.mxu0 0.0
    %2152 = vmatpush1.msra.mxu0 0.0
    %2153 = vmatprep.subr.mxu0 0.0
    %2154 = vmatpush1.msra.mxu0 0.0
    %2155 = vmatprep.subr.mxu0 0.0
    %2156 = vmatpush1.msra.mxu0 0.0
    %2157 = vmatprep.subr.mxu0 0.0
    %2158 = vmatpush1.msra.mxu0 0.0
    %2159 = vmatprep.subr.mxu0 0.0
    %2160 = vmatpush1.msra.mxu0 0.0
    %2161 = vmatprep.subr.mxu0 0.0
    %2162 = vmatpush1.msra.mxu0 0.0
    %2163 = vmatprep.subr.mxu0 0.0
    %2164 = vmatpush1.msra.mxu0 0.0
    %2165 = vmatprep.subr.mxu0 0.0
    %2166 = vmatpush1.msra.mxu0 0.0
    %2167 = vmatprep.subr.mxu0 0.0
    %2168 = vmatpush1.msra.mxu0 0.0
    %2169 = vmatprep.subr.mxu0 0.0
    %2170 = vmatpush1.msra.mxu0 0.0
    %2171 = vmatprep.subr.mxu0 0.0
    %2172 = vmatpush1.msra.mxu0 0.0
    %2173 = vmatprep.subr.mxu0 0.0
    %2174 = vmatpush1.msra.mxu0 0.0
    %2175 = vmatprep.subr.mxu0 0.0
    %2176 = vmatpush1.msra.mxu0 0.0
    %2177 = vmatprep.subr.mxu0 0.0
    %2178 = vmatpush1.msra.mxu0 0.0
    %2179 = vmatprep.subr.mxu0 0.0
    %2180 = vmatpush1.msra.mxu0 0.0
    %2181 = vmatprep.mubr.f32.mxu0 0.0
    %2182 = vmatmul.mubr.f32.gmra.mrb[0].mxu0 %v2115
    %v2183 = vpop.f32.mrb[0].mxu0
    %v2184 = vadd.f32 0.0, %v2183
    %v2185 = vpop.f32.mrb[0].mxu0
    %2186 = vdwg.mxu0
    %v2187 = vadd.f32 %v2110, %v2184
    %v2188 = vadd.f32 %v2187, %v1514
    %v2189 = vmax.f32 %v2188, 0.0
    %s2190 = scalar_lea.vmem %s25, 64
    %v2191 = vld [vmem:[%s2190] sm:$0xff]
    %v2192 = vld [vmem:[%s2190 + $0x8] sm:$0xff]
    %v2193 = vld [vmem:[%s2190 + $0x10] sm:$0xff]
    %v2194 = vld [vmem:[%s2190 + $0x18] sm:$0xff]
    %v2195 = vld [vmem:[%s2190 + $0x20] sm:$0xff]
    %v2196 = vld [vmem:[%s2190 + $0x28] sm:$0xff]
    %v2197 = vld [vmem:[%s2190 + $0x30] sm:$0xff]
    %v2198 = vld [vmem:[%s2190 + $0x38] sm:$0xff]
    %v2200 = vsel %vm776, %v2189, 0
    %2202 = vmatprep.subr.mxu0 0.0
    %2203 = vmatpush1.msra.mxu0 %v2191
    %2204 = vmatprep.subr.mxu0 0.0
    %2205 = vmatpush1.msra.mxu0 %v2192
    %2206 = vmatprep.subr.mxu0 0.0
    %2207 = vmatpush1.msra.mxu0 %v2193
    %2208 = vmatprep.subr.mxu0 0.0
    %2209 = vmatpush1.msra.mxu0 %v2194
    %2210 = vmatprep.subr.mxu0 0.0
    %2211 = vmatpush1.msra.mxu0 %v2195
    %2212 = vmatprep.subr.mxu0 0.0
    %2213 = vmatpush1.msra.mxu0 %v2196
    %2214 = vmatprep.subr.mxu0 0.0
    %2215 = vmatpush1.msra.mxu0 %v2197
    %2216 = vmatprep.subr.mxu0 0.0
    %2217 = vmatpush1.msra.mxu0 %v2198
    %2218 = vmatprep.subr.mxu0 0.0
    %2219 = vmatpush1.msra.mxu0 0.0
    %2220 = vmatprep.subr.mxu0 0.0
    %2221 = vmatpush1.msra.mxu0 0.0
    %2222 = vmatprep.subr.mxu0 0.0
    %2223 = vmatpush1.msra.mxu0 0.0
    %2224 = vmatprep.subr.mxu0 0.0
    %2225 = vmatpush1.msra.mxu0 0.0
    %2226 = vmatprep.subr.mxu0 0.0
    %2227 = vmatpush1.msra.mxu0 0.0
    %2228 = vmatprep.subr.mxu0 0.0
    %2229 = vmatpush1.msra.mxu0 0.0
    %2230 = vmatprep.subr.mxu0 0.0
    %2231 = vmatpush1.msra.mxu0 0.0
    %2232 = vmatprep.subr.mxu0 0.0
    %2233 = vmatpush1.msra.mxu0 0.0
    %2234 = vmatprep.subr.mxu0 0.0
    %2235 = vmatpush1.msra.mxu0 0.0
    %2236 = vmatprep.subr.mxu0 0.0
    %2237 = vmatpush1.msra.mxu0 0.0
    %2238 = vmatprep.subr.mxu0 0.0
    %2239 = vmatpush1.msra.mxu0 0.0
    %2240 = vmatprep.subr.mxu0 0.0
    %2241 = vmatpush1.msra.mxu0 0.0
    %2242 = vmatprep.subr.mxu0 0.0
    %2243 = vmatpush1.msra.mxu0 0.0
    %2244 = vmatprep.subr.mxu0 0.0
    %2245 = vmatpush1.msra.mxu0 0.0
    %2246 = vmatprep.subr.mxu0 0.0
    %2247 = vmatpush1.msra.mxu0 0.0
    %2248 = vmatprep.subr.mxu0 0.0
    %2249 = vmatpush1.msra.mxu0 0.0
    %2250 = vmatprep.subr.mxu0 0.0
    %2251 = vmatpush1.msra.mxu0 0.0
    %2252 = vmatprep.subr.mxu0 0.0
    %2253 = vmatpush1.msra.mxu0 0.0
    %2254 = vmatprep.subr.mxu0 0.0
    %2255 = vmatpush1.msra.mxu0 0.0
    %2256 = vmatprep.subr.mxu0 0.0
    %2257 = vmatpush1.msra.mxu0 0.0
    %2258 = vmatprep.subr.mxu0 0.0
    %2259 = vmatpush1.msra.mxu0 0.0
    %2260 = vmatprep.subr.mxu0 0.0
    %2261 = vmatpush1.msra.mxu0 0.0
    %2262 = vmatprep.subr.mxu0 0.0
    %2263 = vmatpush1.msra.mxu0 0.0
    %2264 = vmatprep.subr.mxu0 0.0
    %2265 = vmatpush1.msra.mxu0 0.0
    %2266 = vmatprep.mubr.f32.mxu0 0.0
    %2267 = vmatmul.mubr.f32.gmra.mrb[0].mxu0 %v2200
    %v2268 = vpop.f32.mrb[0].mxu0
    %v2269 = vadd.f32 0.0, %v2268
    %v2270 = vpop.f32.mrb[0].mxu0
    %2271 = vdwg.mxu0
    %v2273 = vsel %vm776, %v1517, 0
    %2275 = vmatprep.subr.mxu0 0.0
    %2276 = vmatpush1.msra.mxu0 %v1518
    %2277 = vmatprep.subr.mxu0 0.0
    %2278 = vmatpush1.msra.mxu0 %v1519
    %2279 = vmatprep.subr.mxu0 0.0
    %2280 = vmatpush1.msra.mxu0 %v1520
    %2281 = vmatprep.subr.mxu0 0.0
    %2282 = vmatpush1.msra.mxu0 %v1521
    %2283 = vmatprep.subr.mxu0 0.0
    %2284 = vmatpush1.msra.mxu0 %v1522
    %2285 = vmatprep.subr.mxu0 0.0
    %2286 = vmatpush1.msra.mxu0 %v1523
    %2287 = vmatprep.subr.mxu0 0.0
    %2288 = vmatpush1.msra.mxu0 %v1524
    %2289 = vmatprep.subr.mxu0 0.0
    %2290 = vmatpush1.msra.mxu0 %v1525
    %2291 = vmatprep.subr.mxu0 0.0
    %2292 = vmatpush1.msra.mxu0 0.0
    %2293 = vmatprep.subr.mxu0 0.0
    %2294 = vmatpush1.msra.mxu0 0.0
    %2295 = vmatprep.subr.mxu0 0.0
    %2296 = vmatpush1.msra.mxu0 0.0
    %2297 = vmatprep.subr.mxu0 0.0
    %2298 = vmatpush1.msra.mxu0 0.0
    %2299 = vmatprep.subr.mxu0 0.0
    %2300 = vmatpush1.msra.mxu0 0.0
    %2301 = vmatprep.subr.mxu0 0.0
    %2302 = vmatpush1.msra.mxu0 0.0
    %2303 = vmatprep.subr.mxu0 0.0
    %2304 = vmatpush1.msra.mxu0 0.0
    %2305 = vmatprep.subr.mxu0 0.0
    %2306 = vmatpush1.msra.mxu0 0.0
    %2307 = vmatprep.subr.mxu0 0.0
    %2308 = vmatpush1.msra.mxu0 0.0
    %2309 = vmatprep.subr.mxu0 0.0
    %2310 = vmatpush1.msra.mxu0 0.0
    %2311 = vmatprep.subr.mxu0 0.0
    %2312 = vmatpush1.msra.mxu0 0.0
    %2313 = vmatprep.subr.mxu0 0.0
    %2314 = vmatpush1.msra.mxu0 0.0
    %2315 = vmatprep.subr.mxu0 0.0
    %2316 = vmatpush1.msra.mxu0 0.0
    %2317 = vmatprep.subr.mxu0 0.0
    %2318 = vmatpush1.msra.mxu0 0.0
    %2319 = vmatprep.subr.mxu0 0.0
    %2320 = vmatpush1.msra.mxu0 0.0
    %2321 = vmatprep.subr.mxu0 0.0
    %2322 = vmatpush1.msra.mxu0 0.0
    %2323 = vmatprep.subr.mxu0 0.0
    %2324 = vmatpush1.msra.mxu0 0.0
    %2325 = vmatprep.subr.mxu0 0.0
    %2326 = vmatpush1.msra.mxu0 0.0
    %2327 = vmatprep.subr.mxu0 0.0
    %2328 = vmatpush1.msra.mxu0 0.0
    %2329 = vmatprep.subr.mxu0 0.0
    %2330 = vmatpush1.msra.mxu0 0.0
    %2331 = vmatprep.subr.mxu0 0.0
    %2332 = vmatpush1.msra.mxu0 0.0
    %2333 = vmatprep.subr.mxu0 0.0
    %2334 = vmatpush1.msra.mxu0 0.0
    %2335 = vmatprep.subr.mxu0 0.0
    %2336 = vmatpush1.msra.mxu0 0.0
    %2337 = vmatprep.subr.mxu0 0.0
    %2338 = vmatpush1.msra.mxu0 0.0
    %2339 = vmatprep.mubr.f32.mxu0 0.0
    %2340 = vmatmul.mubr.f32.gmra.mrb[0].mxu0 %v2273
    %v2341 = vpop.f32.mrb[0].mxu0
    %v2342 = vadd.f32 %v2269, %v2341
    %v2343 = vpop.f32.mrb[0].mxu0
    %2344 = vdwg.mxu0
    %v2345 = vrot.slane %v748, 1
    %v2346 = vsel %vm776, %v2345, 0
    %2348 = vmatprep.subr.mxu0 0.0
    %2349 = vmatpush1.msra.mxu0 %v762
    %2350 = vmatprep.subr.mxu0 0.0
    %2351 = vmatpush1.msra.mxu0 %v763
    %2352 = vmatprep.subr.mxu0 0.0
    %2353 = vmatpush1.msra.mxu0 %v764
    %2354 = vmatprep.subr.mxu0 0.0
    %2355 = vmatpush1.msra.mxu0 %v765
    %2356 = vmatprep.subr.mxu0 0.0
    %2357 = vmatpush1.msra.mxu0 %v766
    %2358 = vmatprep.subr.mxu0 0.0
    %2359 = vmatpush1.msra.mxu0 %v767
    %2360 = vmatprep.subr.mxu0 0.0
    %2361 = vmatpush1.msra.mxu0 %v768
    %2362 = vmatprep.subr.mxu0 0.0
    %2363 = vmatpush1.msra.mxu0 %v769
    %2364 = vmatprep.subr.mxu0 0.0
    %2365 = vmatpush1.msra.mxu0 0.0
    %2366 = vmatprep.subr.mxu0 0.0
    %2367 = vmatpush1.msra.mxu0 0.0
    %2368 = vmatprep.subr.mxu0 0.0
    %2369 = vmatpush1.msra.mxu0 0.0
    %2370 = vmatprep.subr.mxu0 0.0
    %2371 = vmatpush1.msra.mxu0 0.0
    %2372 = vmatprep.subr.mxu0 0.0
    %2373 = vmatpush1.msra.mxu0 0.0
    %2374 = vmatprep.subr.mxu0 0.0
    %2375 = vmatpush1.msra.mxu0 0.0
    %2376 = vmatprep.subr.mxu0 0.0
    %2377 = vmatpush1.msra.mxu0 0.0
    %2378 = vmatprep.subr.mxu0 0.0
    %2379 = vmatpush1.msra.mxu0 0.0
    %2380 = vmatprep.subr.mxu0 0.0
    %2381 = vmatpush1.msra.mxu0 0.0
    %2382 = vmatprep.subr.mxu0 0.0
    %2383 = vmatpush1.msra.mxu0 0.0
    %2384 = vmatprep.subr.mxu0 0.0
    %2385 = vmatpush1.msra.mxu0 0.0
    %2386 = vmatprep.subr.mxu0 0.0
    %2387 = vmatpush1.msra.mxu0 0.0
    %2388 = vmatprep.subr.mxu0 0.0
    %2389 = vmatpush1.msra.mxu0 0.0
    %2390 = vmatprep.subr.mxu0 0.0
    %2391 = vmatpush1.msra.mxu0 0.0
    %2392 = vmatprep.subr.mxu0 0.0
    %2393 = vmatpush1.msra.mxu0 0.0
    %2394 = vmatprep.subr.mxu0 0.0
    %2395 = vmatpush1.msra.mxu0 0.0
    %2396 = vmatprep.subr.mxu0 0.0
    %2397 = vmatpush1.msra.mxu0 0.0
    %2398 = vmatprep.subr.mxu0 0.0
    %2399 = vmatpush1.msra.mxu0 0.0
    %2400 = vmatprep.subr.mxu0 0.0
    %2401 = vmatpush1.msra.mxu0 0.0
    %2402 = vmatprep.subr.mxu0 0.0
    %2403 = vmatpush1.msra.mxu0 0.0
    %2404 = vmatprep.subr.mxu0 0.0
    %2405 = vmatpush1.msra.mxu0 0.0
    %2406 = vmatprep.subr.mxu0 0.0
    %2407 = vmatpush1.msra.mxu0 0.0
    %2408 = vmatprep.subr.mxu0 0.0
    %2409 = vmatpush1.msra.mxu0 0.0
    %2410 = vmatprep.subr.mxu0 0.0
    %2411 = vmatpush1.msra.mxu0 0.0
    %2412 = vmatprep.mubr.f32.mxu0 0.0
    %2413 = vmatmul.mubr.f32.gmra.mrb[0].mxu0 %v2346
    %v2414 = vpop.f32.mrb[0].mxu0
    %v2415 = vadd.f32 0.0, %v2414
    %v2416 = vpop.f32.mrb[0].mxu0
    %2417 = vdwg.mxu0
    %2418 = vmatprep.subr.mxu0 0.0
    %2419 = vmatpush1.msra.mxu0 %v753
    %2420 = vmatprep.subr.mxu0 0.0
    %2421 = vmatpush1.msra.mxu0 %v754
    %2422 = vmatprep.subr.mxu0 0.0
    %2423 = vmatpush1.msra.mxu0 %v755
    %2424 = vmatprep.subr.mxu0 0.0
    %2425 = vmatpush1.msra.mxu0 %v756
    %2426 = vmatprep.subr.mxu0 0.0
    %2427 = vmatpush1.msra.mxu0 %v757
    %2428 = vmatprep.subr.mxu0 0.0
    %2429 = vmatpush1.msra.mxu0 %v758
    %2430 = vmatprep.subr.mxu0 0.0
    %2431 = vmatpush1.msra.mxu0 %v759
    %2432 = vmatprep.subr.mxu0 0.0
    %2433 = vmatpush1.msra.mxu0 %v760
    %2434 = vmatprep.subr.mxu0 0.0
    %2435 = vmatpush1.msra.mxu0 0.0
    %2436 = vmatprep.subr.mxu0 0.0
    %2437 = vmatpush1.msra.mxu0 0.0
    %2438 = vmatprep.subr.mxu0 0.0
    %2439 = vmatpush1.msra.mxu0 0.0
    %2440 = vmatprep.subr.mxu0 0.0
    %2441 = vmatpush1.msra.mxu0 0.0
    %2442 = vmatprep.subr.mxu0 0.0
    %2443 = vmatpush1.msra.mxu0 0.0
    %2444 = vmatprep.subr.mxu0 0.0
    %2445 = vmatpush1.msra.mxu0 0.0
    %2446 = vmatprep.subr.mxu0 0.0
    %2447 = vmatpush1.msra.mxu0 0.0
    %2448 = vmatprep.subr.mxu0 0.0
    %2449 = vmatpush1.msra.mxu0 0.0
    %2450 = vmatprep.subr.mxu0 0.0
    %2451 = vmatpush1.msra.mxu0 0.0
    %2452 = vmatprep.subr.mxu0 0.0
    %2453 = vmatpush1.msra.mxu0 0.0
    %2454 = vmatprep.subr.mxu0 0.0
    %2455 = vmatpush1.msra.mxu0 0.0
    %2456 = vmatprep.subr.mxu0 0.0
    %2457 = vmatpush1.msra.mxu0 0.0
    %2458 = vmatprep.subr.mxu0 0.0
    %2459 = vmatpush1.msra.mxu0 0.0
    %2460 = vmatprep.subr.mxu0 0.0
    %2461 = vmatpush1.msra.mxu0 0.0
    %2462 = vmatprep.subr.mxu0 0.0
    %2463 = vmatpush1.msra.mxu0 0.0
    %2464 = vmatprep.subr.mxu0 0.0
    %2465 = vmatpush1.msra.mxu0 0.0
    %2466 = vmatprep.subr.mxu0 0.0
    %2467 = vmatpush1.msra.mxu0 0.0
    %2468 = vmatprep.subr.mxu0 0.0
    %2469 = vmatpush1.msra.mxu0 0.0
    %2470 = vmatprep.subr.mxu0 0.0
    %2471 = vmatpush1.msra.mxu0 0.0
    %2472 = vmatprep.subr.mxu0 0.0
    %2473 = vmatpush1.msra.mxu0 0.0
    %2474 = vmatprep.subr.mxu0 0.0
    %2475 = vmatpush1.msra.mxu0 0.0
    %2476 = vmatprep.subr.mxu0 0.0
    %2477 = vmatpush1.msra.mxu0 0.0
    %2478 = vmatprep.subr.mxu0 0.0
    %2479 = vmatpush1.msra.mxu0 0.0
    %2480 = vmatprep.subr.mxu0 0.0
    %2481 = vmatpush1.msra.mxu0 0.0
    %2482 = vmatprep.mubr.f32.mxu0 0.0
    %2483 = vmatmul.mubr.f32.gmra.mrb[0].mxu0 %v1673
    %v2484 = vpop.f32.mrb[0].mxu0
    %v2485 = vadd.f32 %v2415, %v2484
    %v2486 = vpop.f32.mrb[0].mxu0
    %2487 = vdwg.mxu0
    %v2488 = vrot.slane %v748, 6
    %v2489 = vrot.slane %v749, 6
    %v2490 = vsel %vm1349, %v2488, %v2489
    %v2491 = vsel %vm776, %v2490, 0
    %2493 = vmatprep.subr.mxu0 0.0
    %2494 = vmatpush1.msra.mxu0 %v922
    %2495 = vmatprep.subr.mxu0 0.0
    %2496 = vmatpush1.msra.mxu0 %v923
    %2497 = vmatprep.subr.mxu0 0.0
    %2498 = vmatpush1.msra.mxu0 %v924
    %2499 = vmatprep.subr.mxu0 0.0
    %2500 = vmatpush1.msra.mxu0 %v925
    %2501 = vmatprep.subr.mxu0 0.0
    %2502 = vmatpush1.msra.mxu0 %v926
    %2503 = vmatprep.subr.mxu0 0.0
    %2504 = vmatpush1.msra.mxu0 %v927
    %2505 = vmatprep.subr.mxu0 0.0
    %2506 = vmatpush1.msra.mxu0 %v928
    %2507 = vmatprep.subr.mxu0 0.0
    %2508 = vmatpush1.msra.mxu0 %v929
    %2509 = vmatprep.subr.mxu0 0.0
    %2510 = vmatpush1.msra.mxu0 0.0
    %2511 = vmatprep.subr.mxu0 0.0
    %2512 = vmatpush1.msra.mxu0 0.0
    %2513 = vmatprep.subr.mxu0 0.0
    %2514 = vmatpush1.msra.mxu0 0.0
    %2515 = vmatprep.subr.mxu0 0.0
    %2516 = vmatpush1.msra.mxu0 0.0
    %2517 = vmatprep.subr.mxu0 0.0
    %2518 = vmatpush1.msra.mxu0 0.0
    %2519 = vmatprep.subr.mxu0 0.0
    %2520 = vmatpush1.msra.mxu0 0.0
    %2521 = vmatprep.subr.mxu0 0.0
    %2522 = vmatpush1.msra.mxu0 0.0
    %2523 = vmatprep.subr.mxu0 0.0
    %2524 = vmatpush1.msra.mxu0 0.0
    %2525 = vmatprep.subr.mxu0 0.0
    %2526 = vmatpush1.msra.mxu0 0.0
    %2527 = vmatprep.subr.mxu0 0.0
    %2528 = vmatpush1.msra.mxu0 0.0
    %2529 = vmatprep.subr.mxu0 0.0
    %2530 = vmatpush1.msra.mxu0 0.0
    %2531 = vmatprep.subr.mxu0 0.0
    %2532 = vmatpush1.msra.mxu0 0.0
    %2533 = vmatprep.subr.mxu0 0.0
    %2534 = vmatpush1.msra.mxu0 0.0
    %2535 = vmatprep.subr.mxu0 0.0
    %2536 = vmatpush1.msra.mxu0 0.0
    %2537 = vmatprep.subr.mxu0 0.0
    %2538 = vmatpush1.msra.mxu0 0.0
    %2539 = vmatprep.subr.mxu0 0.0
    %2540 = vmatpush1.msra.mxu0 0.0
    %2541 = vmatprep.subr.mxu0 0.0
    %2542 = vmatpush1.msra.mxu0 0.0
    %2543 = vmatprep.subr.mxu0 0.0
    %2544 = vmatpush1.msra.mxu0 0.0
    %2545 = vmatprep.subr.mxu0 0.0
    %2546 = vmatpush1.msra.mxu0 0.0
    %2547 = vmatprep.subr.mxu0 0.0
    %2548 = vmatpush1.msra.mxu0 0.0
    %2549 = vmatprep.subr.mxu0 0.0
    %2550 = vmatpush1.msra.mxu0 0.0
    %2551 = vmatprep.subr.mxu0 0.0
    %2552 = vmatpush1.msra.mxu0 0.0
    %2553 = vmatprep.subr.mxu0 0.0
    %2554 = vmatpush1.msra.mxu0 0.0
    %2555 = vmatprep.subr.mxu0 0.0
    %2556 = vmatpush1.msra.mxu0 0.0
    %2557 = vmatprep.mubr.f32.mxu0 0.0
    %2558 = vmatmul.mubr.f32.gmra.mrb[0].mxu0 %v2491
    %v2559 = vpop.f32.mrb[0].mxu0
    %v2560 = vadd.f32 0.0, %v2559
    %v2561 = vpop.f32.mrb[0].mxu0
    %2562 = vdwg.mxu0
    %v2563 = vadd.f32 %v2485, %v2560
    %2564 = vmatprep.subr.mxu0 0.0
    %2565 = vmatpush1.msra.mxu0 %v1005
    %2566 = vmatprep.subr.mxu0 0.0
    %2567 = vmatpush1.msra.mxu0 %v1006
    %2568 = vmatprep.subr.mxu0 0.0
    %2569 = vmatpush1.msra.mxu0 %v1007
    %2570 = vmatprep.subr.mxu0 0.0
    %2571 = vmatpush1.msra.mxu0 %v1008
    %2572 = vmatprep.subr.mxu0 0.0
    %2573 = vmatpush1.msra.mxu0 %v1009
    %2574 = vmatprep.subr.mxu0 0.0
    %2575 = vmatpush1.msra.mxu0 %v1010
    %2576 = vmatprep.subr.mxu0 0.0
    %2577 = vmatpush1.msra.mxu0 %v1011
    %2578 = vmatprep.subr.mxu0 0.0
    %2579 = vmatpush1.msra.mxu0 %v1012
    %2580 = vmatprep.subr.mxu0 0.0
    %2581 = vmatpush1.msra.mxu0 0.0
    %2582 = vmatprep.subr.mxu0 0.0
    %2583 = vmatpush1.msra.mxu0 0.0
    %2584 = vmatprep.subr.mxu0 0.0
    %2585 = vmatpush1.msra.mxu0 0.0
    %2586 = vmatprep.subr.mxu0 0.0
    %2587 = vmatpush1.msra.mxu0 0.0
    %2588 = vmatprep.subr.mxu0 0.0
    %2589 = vmatpush1.msra.mxu0 0.0
    %2590 = vmatprep.subr.mxu0 0.0
    %2591 = vmatpush1.msra.mxu0 0.0
    %2592 = vmatprep.subr.mxu0 0.0
    %2593 = vmatpush1.msra.mxu0 0.0
    %2594 = vmatprep.subr.mxu0 0.0
    %2595 = vmatpush1.msra.mxu0 0.0
    %2596 = vmatprep.subr.mxu0 0.0
    %2597 = vmatpush1.msra.mxu0 0.0
    %2598 = vmatprep.subr.mxu0 0.0
    %2599 = vmatpush1.msra.mxu0 0.0
    %2600 = vmatprep.subr.mxu0 0.0
    %2601 = vmatpush1.msra.mxu0 0.0
    %2602 = vmatprep.subr.mxu0 0.0
    %2603 = vmatpush1.msra.mxu0 0.0
    %2604 = vmatprep.subr.mxu0 0.0
    %2605 = vmatpush1.msra.mxu0 0.0
    %2606 = vmatprep.subr.mxu0 0.0
    %2607 = vmatpush1.msra.mxu0 0.0
    %2608 = vmatprep.subr.mxu0 0.0
    %2609 = vmatpush1.msra.mxu0 0.0
    %2610 = vmatprep.subr.mxu0 0.0
    %2611 = vmatpush1.msra.mxu0 0.0
    %2612 = vmatprep.subr.mxu0 0.0
    %2613 = vmatpush1.msra.mxu0 0.0
    %2614 = vmatprep.subr.mxu0 0.0
    %2615 = vmatpush1.msra.mxu0 0.0
    %2616 = vmatprep.subr.mxu0 0.0
    %2617 = vmatpush1.msra.mxu0 0.0
    %2618 = vmatprep.subr.mxu0 0.0
    %2619 = vmatpush1.msra.mxu0 0.0
    %2620 = vmatprep.subr.mxu0 0.0
    %2621 = vmatpush1.msra.mxu0 0.0
    %2622 = vmatprep.subr.mxu0 0.0
    %2623 = vmatpush1.msra.mxu0 0.0
    %2624 = vmatprep.subr.mxu0 0.0
    %2625 = vmatpush1.msra.mxu0 0.0
    %2626 = vmatprep.subr.mxu0 0.0
    %2627 = vmatpush1.msra.mxu0 0.0
    %2628 = vmatprep.mubr.f32.mxu0 0.0
    %2629 = vmatmul.mubr.f32.gmra.mrb[0].mxu0 %v1894
    %v2630 = vpop.f32.mrb[0].mxu0
    %v2631 = vadd.f32 0.0, %v2630
    %v2632 = vpop.f32.mrb[0].mxu0
    %2633 = vdwg.mxu0
    %v2634 = vadd.f32 %v2563, %v2631
    %v2636 = vrot.slane %v752, 7
    %v2637 = vsel %vm636, %v1818, %v2636
    %v2638 = vsel %vm776, %v2637, 0
    %2640 = vmatprep.subr.mxu0 0.0
    %2641 = vmatpush1.msra.mxu0 %v1089
    %2642 = vmatprep.subr.mxu0 0.0
    %2643 = vmatpush1.msra.mxu0 %v1090
    %2644 = vmatprep.subr.mxu0 0.0
    %2645 = vmatpush1.msra.mxu0 %v1091
    %2646 = vmatprep.subr.mxu0 0.0
    %2647 = vmatpush1.msra.mxu0 %v1092
    %2648 = vmatprep.subr.mxu0 0.0
    %2649 = vmatpush1.msra.mxu0 %v1093
    %2650 = vmatprep.subr.mxu0 0.0
    %2651 = vmatpush1.msra.mxu0 %v1094
    %2652 = vmatprep.subr.mxu0 0.0
    %2653 = vmatpush1.msra.mxu0 %v1095
    %2654 = vmatprep.subr.mxu0 0.0
    %2655 = vmatpush1.msra.mxu0 %v1096
    %2656 = vmatprep.subr.mxu0 0.0
    %2657 = vmatpush1.msra.mxu0 0.0
    %2658 = vmatprep.subr.mxu0 0.0
    %2659 = vmatpush1.msra.mxu0 0.0
    %2660 = vmatprep.subr.mxu0 0.0
    %2661 = vmatpush1.msra.mxu0 0.0
    %2662 = vmatprep.subr.mxu0 0.0
    %2663 = vmatpush1.msra.mxu0 0.0
    %2664 = vmatprep.subr.mxu0 0.0
    %2665 = vmatpush1.msra.mxu0 0.0
    %2666 = vmatprep.subr.mxu0 0.0
    %2667 = vmatpush1.msra.mxu0 0.0
    %2668 = vmatprep.subr.mxu0 0.0
    %2669 = vmatpush1.msra.mxu0 0.0
    %2670 = vmatprep.subr.mxu0 0.0
    %2671 = vmatpush1.msra.mxu0 0.0
    %2672 = vmatprep.subr.mxu0 0.0
    %2673 = vmatpush1.msra.mxu0 0.0
    %2674 = vmatprep.subr.mxu0 0.0
    %2675 = vmatpush1.msra.mxu0 0.0
    %2676 = vmatprep.subr.mxu0 0.0
    %2677 = vmatpush1.msra.mxu0 0.0
    %2678 = vmatprep.subr.mxu0 0.0
    %2679 = vmatpush1.msra.mxu0 0.0
    %2680 = vmatprep.subr.mxu0 0.0
    %2681 = vmatpush1.msra.mxu0 0.0
    %2682 = vmatprep.subr.mxu0 0.0
    %2683 = vmatpush1.msra.mxu0 0.0
    %2684 = vmatprep.subr.mxu0 0.0
    %2685 = vmatpush1.msra.mxu0 0.0
    %2686 = vmatprep.subr.mxu0 0.0
    %2687 = vmatpush1.msra.mxu0 0.0
    %2688 = vmatprep.subr.mxu0 0.0
    %2689 = vmatpush1.msra.mxu0 0.0
    %2690 = vmatprep.subr.mxu0 0.0
    %2691 = vmatpush1.msra.mxu0 0.0
    %2692 = vmatprep.subr.mxu0 0.0
    %2693 = vmatpush1.msra.mxu0 0.0
    %2694 = vmatprep.subr.mxu0 0.0
    %2695 = vmatpush1.msra.mxu0 0.0
    %2696 = vmatprep.subr.mxu0 0.0
    %2697 = vmatpush1.msra.mxu0 0.0
    %2698 = vmatprep.subr.mxu0 0.0
    %2699 = vmatpush1.msra.mxu0 0.0
    %2700 = vmatprep.subr.mxu0 0.0
    %2701 = vmatpush1.msra.mxu0 0.0
    %2702 = vmatprep.subr.mxu0 0.0
    %2703 = vmatpush1.msra.mxu0 0.0
    %2704 = vmatprep.mubr.f32.mxu0 0.0
    %2705 = vmatmul.mubr.f32.gmra.mrb[0].mxu0 %v2638
    %v2706 = vpop.f32.mrb[0].mxu0
    %v2707 = vadd.f32 0.0, %v2706
    %v2708 = vpop.f32.mrb[0].mxu0
    %2709 = vdwg.mxu0
    %v2710 = vadd.f32 %v2634, %v2707
    %v2711 = vrot.slane %v752, 3
    %v2712 = vsel %vm776, %v2711, 0
    %2714 = vmatprep.subr.mxu0 0.0
    %2715 = vmatpush1.msra.mxu0 %v1175
    %2716 = vmatprep.subr.mxu0 0.0
    %2717 = vmatpush1.msra.mxu0 %v1176
    %2718 = vmatprep.subr.mxu0 0.0
    %2719 = vmatpush1.msra.mxu0 %v1177
    %2720 = vmatprep.subr.mxu0 0.0
    %2721 = vmatpush1.msra.mxu0 %v1178
    %2722 = vmatprep.subr.mxu0 0.0
    %2723 = vmatpush1.msra.mxu0 %v1179
    %2724 = vmatprep.subr.mxu0 0.0
    %2725 = vmatpush1.msra.mxu0 %v1180
    %2726 = vmatprep.subr.mxu0 0.0
    %2727 = vmatpush1.msra.mxu0 %v1181
    %2728 = vmatprep.subr.mxu0 0.0
    %2729 = vmatpush1.msra.mxu0 %v1182
    %2730 = vmatprep.subr.mxu0 0.0
    %2731 = vmatpush1.msra.mxu0 0.0
    %2732 = vmatprep.subr.mxu0 0.0
    %2733 = vmatpush1.msra.mxu0 0.0
    %2734 = vmatprep.subr.mxu0 0.0
    %2735 = vmatpush1.msra.mxu0 0.0
    %2736 = vmatprep.subr.mxu0 0.0
    %2737 = vmatpush1.msra.mxu0 0.0
    %2738 = vmatprep.subr.mxu0 0.0
    %2739 = vmatpush1.msra.mxu0 0.0
    %2740 = vmatprep.subr.mxu0 0.0
    %2741 = vmatpush1.msra.mxu0 0.0
    %2742 = vmatprep.subr.mxu0 0.0
    %2743 = vmatpush1.msra.mxu0 0.0
    %2744 = vmatprep.subr.mxu0 0.0
    %2745 = vmatpush1.msra.mxu0 0.0
    %2746 = vmatprep.subr.mxu0 0.0
    %2747 = vmatpush1.msra.mxu0 0.0
    %2748 = vmatprep.subr.mxu0 0.0
    %2749 = vmatpush1.msra.mxu0 0.0
    %2750 = vmatprep.subr.mxu0 0.0
    %2751 = vmatpush1.msra.mxu0 0.0
    %2752 = vmatprep.subr.mxu0 0.0
    %2753 = vmatpush1.msra.mxu0 0.0
    %2754 = vmatprep.subr.mxu0 0.0
    %2755 = vmatpush1.msra.mxu0 0.0
    %2756 = vmatprep.subr.mxu0 0.0
    %2757 = vmatpush1.msra.mxu0 0.0
    %2758 = vmatprep.subr.mxu0 0.0
    %2759 = vmatpush1.msra.mxu0 0.0
    %2760 = vmatprep.subr.mxu0 0.0
    %2761 = vmatpush1.msra.mxu0 0.0
    %2762 = vmatprep.subr.mxu0 0.0
    %2763 = vmatpush1.msra.mxu0 0.0
    %2764 = vmatprep.subr.mxu0 0.0
    %2765 = vmatpush1.msra.mxu0 0.0
    %2766 = vmatprep.subr.mxu0 0.0
    %2767 = vmatpush1.msra.mxu0 0.0
    %2768 = vmatprep.subr.mxu0 0.0
    %2769 = vmatpush1.msra.mxu0 0.0
    %2770 = vmatprep.subr.mxu0 0.0
    %2771 = vmatpush1.msra.mxu0 0.0
    %2772 = vmatprep.subr.mxu0 0.0
    %2773 = vmatpush1.msra.mxu0 0.0
    %2774 = vmatprep.subr.mxu0 0.0
    %2775 = vmatpush1.msra.mxu0 0.0
    %2776 = vmatprep.subr.mxu0 0.0
    %2777 = vmatpush1.msra.mxu0 0.0
    %2778 = vmatprep.mubr.f32.mxu0 0.0
    %2779 = vmatmul.mubr.f32.gmra.mrb[0].mxu0 %v2712
    %v2780 = vpop.f32.mrb[0].mxu0
    %v2781 = vadd.f32 0.0, %v2780
    %v2782 = vpop.f32.mrb[0].mxu0
    %2783 = vdwg.mxu0
    %v2784 = vadd.f32 %v2710, %v2781
    %2785 = vmatprep.subr.mxu0 0.0
    %2786 = vmatpush1.msra.mxu0 %v1258
    %2787 = vmatprep.subr.mxu0 0.0
    %2788 = vmatpush1.msra.mxu0 %v1259
    %2789 = vmatprep.subr.mxu0 0.0
    %2790 = vmatpush1.msra.mxu0 %v1260
    %2791 = vmatprep.subr.mxu0 0.0
    %2792 = vmatpush1.msra.mxu0 %v1261
    %2793 = vmatprep.subr.mxu0 0.0
    %2794 = vmatpush1.msra.mxu0 %v1262
    %2795 = vmatprep.subr.mxu0 0.0
    %2796 = vmatpush1.msra.mxu0 %v1263
    %2797 = vmatprep.subr.mxu0 0.0
    %2798 = vmatpush1.msra.mxu0 %v1264
    %2799 = vmatprep.subr.mxu0 0.0
    %2800 = vmatpush1.msra.mxu0 %v1265
    %2801 = vmatprep.subr.mxu0 0.0
    %2802 = vmatpush1.msra.mxu0 0.0
    %2803 = vmatprep.subr.mxu0 0.0
    %2804 = vmatpush1.msra.mxu0 0.0
    %2805 = vmatprep.subr.mxu0 0.0
    %2806 = vmatpush1.msra.mxu0 0.0
    %2807 = vmatprep.subr.mxu0 0.0
    %2808 = vmatpush1.msra.mxu0 0.0
    %2809 = vmatprep.subr.mxu0 0.0
    %2810 = vmatpush1.msra.mxu0 0.0
    %2811 = vmatprep.subr.mxu0 0.0
    %2812 = vmatpush1.msra.mxu0 0.0
    %2813 = vmatprep.subr.mxu0 0.0
    %2814 = vmatpush1.msra.mxu0 0.0
    %2815 = vmatprep.subr.mxu0 0.0
    %2816 = vmatpush1.msra.mxu0 0.0
    %2817 = vmatprep.subr.mxu0 0.0
    %2818 = vmatpush1.msra.mxu0 0.0
    %2819 = vmatprep.subr.mxu0 0.0
    %2820 = vmatpush1.msra.mxu0 0.0
    %2821 = vmatprep.subr.mxu0 0.0
    %2822 = vmatpush1.msra.mxu0 0.0
    %2823 = vmatprep.subr.mxu0 0.0
    %2824 = vmatpush1.msra.mxu0 0.0
    %2825 = vmatprep.subr.mxu0 0.0
    %2826 = vmatpush1.msra.mxu0 0.0
    %2827 = vmatprep.subr.mxu0 0.0
    %2828 = vmatpush1.msra.mxu0 0.0
    %2829 = vmatprep.subr.mxu0 0.0
    %2830 = vmatpush1.msra.mxu0 0.0
    %2831 = vmatprep.subr.mxu0 0.0
    %2832 = vmatpush1.msra.mxu0 0.0
    %2833 = vmatprep.subr.mxu0 0.0
    %2834 = vmatpush1.msra.mxu0 0.0
    %2835 = vmatprep.subr.mxu0 0.0
    %2836 = vmatpush1.msra.mxu0 0.0
    %2837 = vmatprep.subr.mxu0 0.0
    %2838 = vmatpush1.msra.mxu0 0.0
    %2839 = vmatprep.subr.mxu0 0.0
    %2840 = vmatpush1.msra.mxu0 0.0
    %2841 = vmatprep.subr.mxu0 0.0
    %2842 = vmatpush1.msra.mxu0 0.0
    %2843 = vmatprep.subr.mxu0 0.0
    %2844 = vmatpush1.msra.mxu0 0.0
    %2845 = vmatprep.subr.mxu0 0.0
    %2846 = vmatpush1.msra.mxu0 0.0
    %2847 = vmatprep.subr.mxu0 0.0
    %2848 = vmatpush1.msra.mxu0 0.0
    %2849 = vmatprep.mubr.f32.mxu0 0.0
    %2850 = vmatmul.mubr.f32.gmra.mrb[0].mxu0 %v2115
    %v2851 = vpop.f32.mrb[0].mxu0
    %v2852 = vadd.f32 0.0, %v2851
    %v2853 = vpop.f32.mrb[0].mxu0
    %2854 = vdwg.mxu0
    %v2855 = vadd.f32 %v2784, %v2852
    %v2856 = vrot.slane %v748, 2
    %v2857 = vsel %vm776, %v2856, 0
    %2859 = vmatprep.subr.mxu0 0.0
    %2860 = vmatpush1.msra.mxu0 %v1341
    %2861 = vmatprep.subr.mxu0 0.0
    %2862 = vmatpush1.msra.mxu0 %v1342
    %2863 = vmatprep.subr.mxu0 0.0
    %2864 = vmatpush1.msra.mxu0 %v1343
    %2865 = vmatprep.subr.mxu0 0.0
    %2866 = vmatpush1.msra.mxu0 %v1344
    %2867 = vmatprep.subr.mxu0 0.0
    %2868 = vmatpush1.msra.mxu0 %v1345
    %2869 = vmatprep.subr.mxu0 0.0
    %2870 = vmatpush1.msra.mxu0 %v1346
    %2871 = vmatprep.subr.mxu0 0.0
    %2872 = vmatpush1.msra.mxu0 %v1347
    %2873 = vmatprep.subr.mxu0 0.0
    %2874 = vmatpush1.msra.mxu0 %v1348
    %2875 = vmatprep.subr.mxu0 0.0
    %2876 = vmatpush1.msra.mxu0 0.0
    %2877 = vmatprep.subr.mxu0 0.0
    %2878 = vmatpush1.msra.mxu0 0.0
    %2879 = vmatprep.subr.mxu0 0.0
    %2880 = vmatpush1.msra.mxu0 0.0
    %2881 = vmatprep.subr.mxu0 0.0
    %2882 = vmatpush1.msra.mxu0 0.0
    %2883 = vmatprep.subr.mxu0 0.0
    %2884 = vmatpush1.msra.mxu0 0.0
    %2885 = vmatprep.subr.mxu0 0.0
    %2886 = vmatpush1.msra.mxu0 0.0
    %2887 = vmatprep.subr.mxu0 0.0
    %2888 = vmatpush1.msra.mxu0 0.0
    %2889 = vmatprep.subr.mxu0 0.0
    %2890 = vmatpush1.msra.mxu0 0.0
    %2891 = vmatprep.subr.mxu0 0.0
    %2892 = vmatpush1.msra.mxu0 0.0
    %2893 = vmatprep.subr.mxu0 0.0
    %2894 = vmatpush1.msra.mxu0 0.0
    %2895 = vmatprep.subr.mxu0 0.0
    %2896 = vmatpush1.msra.mxu0 0.0
    %2897 = vmatprep.subr.mxu0 0.0
    %2898 = vmatpush1.msra.mxu0 0.0
    %2899 = vmatprep.subr.mxu0 0.0
    %2900 = vmatpush1.msra.mxu0 0.0
    %2901 = vmatprep.subr.mxu0 0.0
    %2902 = vmatpush1.msra.mxu0 0.0
    %2903 = vmatprep.subr.mxu0 0.0
    %2904 = vmatpush1.msra.mxu0 0.0
    %2905 = vmatprep.subr.mxu0 0.0
    %2906 = vmatpush1.msra.mxu0 0.0
    %2907 = vmatprep.subr.mxu0 0.0
    %2908 = vmatpush1.msra.mxu0 0.0
    %2909 = vmatprep.subr.mxu0 0.0
    %2910 = vmatpush1.msra.mxu0 0.0
    %2911 = vmatprep.subr.mxu0 0.0
    %2912 = vmatpush1.msra.mxu0 0.0
    %2913 = vmatprep.subr.mxu0 0.0
    %2914 = vmatpush1.msra.mxu0 0.0
    %2915 = vmatprep.subr.mxu0 0.0
    %2916 = vmatpush1.msra.mxu0 0.0
    %2917 = vmatprep.subr.mxu0 0.0
    %2918 = vmatpush1.msra.mxu0 0.0
    %2919 = vmatprep.subr.mxu0 0.0
    %2920 = vmatpush1.msra.mxu0 0.0
    %2921 = vmatprep.subr.mxu0 0.0
    %2922 = vmatpush1.msra.mxu0 0.0
    %2923 = vmatprep.mubr.f32.mxu0 0.0
    %2924 = vmatmul.mubr.f32.gmra.mrb[0].mxu0 %v2857
    %v2925 = vpop.f32.mrb[0].mxu0
    %v2926 = vadd.f32 0.0, %v2925
    %v2927 = vpop.f32.mrb[0].mxu0
    %2928 = vdwg.mxu0
    %v2929 = vadd.f32 %v2855, %v2926
    %v2930 = vrot.slane %v748, 7
    %v2931 = vsel %vm636, %v2930, %v1098
    %v2932 = vsel %vm776, %v2931, 0
    %2934 = vmatprep.subr.mxu0 0.0
    %2935 = vmatpush1.msra.mxu0 %v1427
    %2936 = vmatprep.subr.mxu0 0.0
    %2937 = vmatpush1.msra.mxu0 %v1428
    %2938 = vmatprep.subr.mxu0 0.0
    %2939 = vmatpush1.msra.mxu0 %v1429
    %2940 = vmatprep.subr.mxu0 0.0
    %2941 = vmatpush1.msra.mxu0 %v1430
    %2942 = vmatprep.subr.mxu0 0.0
    %2943 = vmatpush1.msra.mxu0 %v1431
    %2944 = vmatprep.subr.mxu0 0.0
    %2945 = vmatpush1.msra.mxu0 %v1432
    %2946 = vmatprep.subr.mxu0 0.0
    %2947 = vmatpush1.msra.mxu0 %v1433
    %2948 = vmatprep.subr.mxu0 0.0
    %2949 = vmatpush1.msra.mxu0 %v1434
    %2950 = vmatprep.subr.mxu0 0.0
    %2951 = vmatpush1.msra.mxu0 0.0
    %2952 = vmatprep.subr.mxu0 0.0
    %2953 = vmatpush1.msra.mxu0 0.0
    %2954 = vmatprep.subr.mxu0 0.0
    %2955 = vmatpush1.msra.mxu0 0.0
    %2956 = vmatprep.subr.mxu0 0.0
    %2957 = vmatpush1.msra.mxu0 0.0
    %2958 = vmatprep.subr.mxu0 0.0
    %2959 = vmatpush1.msra.mxu0 0.0
    %2960 = vmatprep.subr.mxu0 0.0
    %2961 = vmatpush1.msra.mxu0 0.0
    %2962 = vmatprep.subr.mxu0 0.0
    %2963 = vmatpush1.msra.mxu0 0.0
    %2964 = vmatprep.subr.mxu0 0.0
    %2965 = vmatpush1.msra.mxu0 0.0
    %2966 = vmatprep.subr.mxu0 0.0
    %2967 = vmatpush1.msra.mxu0 0.0
    %2968 = vmatprep.subr.mxu0 0.0
    %2969 = vmatpush1.msra.mxu0 0.0
    %2970 = vmatprep.subr.mxu0 0.0
    %2971 = vmatpush1.msra.mxu0 0.0
    %2972 = vmatprep.subr.mxu0 0.0
    %2973 = vmatpush1.msra.mxu0 0.0
    %2974 = vmatprep.subr.mxu0 0.0
    %2975 = vmatpush1.msra.mxu0 0.0
    %2976 = vmatprep.subr.mxu0 0.0
    %2977 = vmatpush1.msra.mxu0 0.0
    %2978 = vmatprep.subr.mxu0 0.0
    %2979 = vmatpush1.msra.mxu0 0.0
    %2980 = vmatprep.subr.mxu0 0.0
    %2981 = vmatpush1.msra.mxu0 0.0
    %2982 = vmatprep.subr.mxu0 0.0
    %2983 = vmatpush1.msra.mxu0 0.0
    %2984 = vmatprep.subr.mxu0 0.0
    %2985 = vmatpush1.msra.mxu0 0.0
    %2986 = vmatprep.subr.mxu0 0.0
    %2987 = vmatpush1.msra.mxu0 0.0
    %2988 = vmatprep.subr.mxu0 0.0
    %2989 = vmatpush1.msra.mxu0 0.0
    %2990 = vmatprep.subr.mxu0 0.0
    %2991 = vmatpush1.msra.mxu0 0.0
    %2992 = vmatprep.subr.mxu0 0.0
    %2993 = vmatpush1.msra.mxu0 0.0
    %2994 = vmatprep.subr.mxu0 0.0
    %2995 = vmatpush1.msra.mxu0 0.0
    %2996 = vmatprep.subr.mxu0 0.0
    %2997 = vmatpush1.msra.mxu0 0.0
    %2998 = vmatprep.mubr.f32.mxu0 0.0
    %2999 = vmatmul.mubr.f32.gmra.mrb[0].mxu0 %v2932
    %v3000 = vpop.f32.mrb[0].mxu0
    %v3001 = vadd.f32 0.0, %v3000
    %v3002 = vpop.f32.mrb[0].mxu0
    %3003 = vdwg.mxu0
    %v3004 = vadd.f32 %v2929, %v3001
    %v3005 = vadd.f32 %v3004, %v1514
    %v3006 = vmax.f32 %v3005, 0.0
    %s3007 = scalar_lea.vmem %s25, 128
    %v3008 = vld [vmem:[%s3007] sm:$0xff]
    %v3009 = vld [vmem:[%s3007 + $0x8] sm:$0xff]
    %v3010 = vld [vmem:[%s3007 + $0x10] sm:$0xff]
    %v3011 = vld [vmem:[%s3007 + $0x18] sm:$0xff]
    %v3012 = vld [vmem:[%s3007 + $0x20] sm:$0xff]
    %v3013 = vld [vmem:[%s3007 + $0x28] sm:$0xff]
    %v3014 = vld [vmem:[%s3007 + $0x30] sm:$0xff]
    %v3015 = vld [vmem:[%s3007 + $0x38] sm:$0xff]
    %v3017 = vsel %vm776, %v3006, 0
    %3019 = vmatprep.subr.mxu0 0.0
    %3020 = vmatpush1.msra.mxu0 %v3008
    %3021 = vmatprep.subr.mxu0 0.0
    %3022 = vmatpush1.msra.mxu0 %v3009
    %3023 = vmatprep.subr.mxu0 0.0
    %3024 = vmatpush1.msra.mxu0 %v3010
    %3025 = vmatprep.subr.mxu0 0.0
    %3026 = vmatpush1.msra.mxu0 %v3011
    %3027 = vmatprep.subr.mxu0 0.0
    %3028 = vmatpush1.msra.mxu0 %v3012
    %3029 = vmatprep.subr.mxu0 0.0
    %3030 = vmatpush1.msra.mxu0 %v3013
    %3031 = vmatprep.subr.mxu0 0.0
    %3032 = vmatpush1.msra.mxu0 %v3014
    %3033 = vmatprep.subr.mxu0 0.0
    %3034 = vmatpush1.msra.mxu0 %v3015
    %3035 = vmatprep.subr.mxu0 0.0
    %3036 = vmatpush1.msra.mxu0 0.0
    %3037 = vmatprep.subr.mxu0 0.0
    %3038 = vmatpush1.msra.mxu0 0.0
    %3039 = vmatprep.subr.mxu0 0.0
    %3040 = vmatpush1.msra.mxu0 0.0
    %3041 = vmatprep.subr.mxu0 0.0
    %3042 = vmatpush1.msra.mxu0 0.0
    %3043 = vmatprep.subr.mxu0 0.0
    %3044 = vmatpush1.msra.mxu0 0.0
    %3045 = vmatprep.subr.mxu0 0.0
    %3046 = vmatpush1.msra.mxu0 0.0
    %3047 = vmatprep.subr.mxu0 0.0
    %3048 = vmatpush1.msra.mxu0 0.0
    %3049 = vmatprep.subr.mxu0 0.0
    %3050 = vmatpush1.msra.mxu0 0.0
    %3051 = vmatprep.subr.mxu0 0.0
    %3052 = vmatpush1.msra.mxu0 0.0
    %3053 = vmatprep.subr.mxu0 0.0
    %3054 = vmatpush1.msra.mxu0 0.0
    %3055 = vmatprep.subr.mxu0 0.0
    %3056 = vmatpush1.msra.mxu0 0.0
    %3057 = vmatprep.subr.mxu0 0.0
    %3058 = vmatpush1.msra.mxu0 0.0
    %3059 = vmatprep.subr.mxu0 0.0
    %3060 = vmatpush1.msra.mxu0 0.0
    %3061 = vmatprep.subr.mxu0 0.0
    %3062 = vmatpush1.msra.mxu0 0.0
    %3063 = vmatprep.subr.mxu0 0.0
    %3064 = vmatpush1.msra.mxu0 0.0
    %3065 = vmatprep.subr.mxu0 0.0
    %3066 = vmatpush1.msra.mxu0 0.0
    %3067 = vmatprep.subr.mxu0 0.0
    %3068 = vmatpush1.msra.mxu0 0.0
    %3069 = vmatprep.subr.mxu0 0.0
    %3070 = vmatpush1.msra.mxu0 0.0
    %3071 = vmatprep.subr.mxu0 0.0
    %3072 = vmatpush1.msra.mxu0 0.0
    %3073 = vmatprep.subr.mxu0 0.0
    %3074 = vmatpush1.msra.mxu0 0.0
    %3075 = vmatprep.subr.mxu0 0.0
    %3076 = vmatpush1.msra.mxu0 0.0
    %3077 = vmatprep.subr.mxu0 0.0
    %3078 = vmatpush1.msra.mxu0 0.0
    %3079 = vmatprep.subr.mxu0 0.0
    %3080 = vmatpush1.msra.mxu0 0.0
    %3081 = vmatprep.subr.mxu0 0.0
    %3082 = vmatpush1.msra.mxu0 0.0
    %3083 = vmatprep.mubr.f32.mxu0 0.0
    %3084 = vmatmul.mubr.f32.gmra.mrb[0].mxu0 %v3017
    %v3085 = vpop.f32.mrb[0].mxu0
    %v3086 = vadd.f32 0.0, %v3085
    %v3087 = vpop.f32.mrb[0].mxu0
    %3088 = vdwg.mxu0
    %v3089 = vadd.f32 %v2342, %v3086
    %v3090 = vld [vmem:[#allocation10] sm:$0x1]
    %v3092 = vlaneseq
    %v3093 = vshrl.u32 %v3092, 7
    %v3094 = vsub.s32 0, %v3093
    %v3095 = vrot.slane %v3090, %v3094
    %v3097 = vadd.f32 %v3089, %v3095
    %v3098 = vmul.f32 %v3097, 8.0
    %v3099 = vld [vmem:[#allocation35] sm:$0x1]
    %v3100 = vld [vmem:[#allocation34] sm:$0x1]
    %vm3101 = vcmask 519168
    %v3102 = vsel %vm3101, %v3098, 0.0
    %3103 = vadd.xlane.f32.xlu0 %v3102
    %v3104 = vpop.xlane.xlu0 %3103
    %v3105 = vrcp.pop 64.0
    %v3106 = vmul.f32 %v3104, %v3105
    %v3107 = vsub.f32 %v3098, %v3106
    %v3108 = vmul.f32 %v3107, %v3107
    %v3109 = vsel %vm3101, %v3108, 0.0
    %3110 = vadd.xlane.f32.xlu0 %v3109
    %v3111 = vpop.xlane.xlu0 %3110
    %v3112 = vmul.f32 %v3111, %v3105
    %v3113 = vadd.f32 %v3112, 1e-05
    %v3114 = vrsqrt.pop %v3113
    %v3115 = vmul.f32 %v3107, %v3114
    %v3117 = vlaneseq
    %v3118 = vshrl.u32 %v3117, 7
    %v3119 = vsub.s32 0, %v3118
    %v3120 = vrot.slane %v3099, %v3119
    %v3122 = vmul.f32 %v3115, %v3120
    %v3124 = vlaneseq
    %v3125 = vshrl.u32 %v3124, 7
    %v3126 = vsub.s32 0, %v3125
    %v3127 = vrot.slane %v3100, %v3126
    %v3129 = vadd.f32 %v3122, %v3127
    %v3130 = vld [vmem:[%s59] sm:$0xff]
    %v3131 = vld [vmem:[%s59 + $0x8] sm:$0xff]
    %v3132 = vld [vmem:[%s59 + $0x10] sm:$0xff]
    %v3133 = vld [vmem:[%s59 + $0x18] sm:$0xff]
    %v3134 = vld [vmem:[%s59 + $0x20] sm:$0xff]
    %v3135 = vld [vmem:[%s59 + $0x28] sm:$0xff]
    %v3136 = vld [vmem:[%s59 + $0x30] sm:$0xff]
    %v3137 = vld [vmem:[%s59 + $0x38] sm:$0xff]
    %v3138 = vld [vmem:[#allocation25] sm:$0x1]
    %v3140 = vlaneseq
    %v3141 = vshrl.u32 %v3140, 7
    %v3142 = vsub.s32 0, %v3141
    %v3143 = vrot.slane %v3138, %v3142
    %v3146 = vsel %vm776, %v3129, 0
    %3148 = vmatprep.subr.mxu0 0.0
    %3149 = vmatpush1.msra.mxu0 %v3130
    %3150 = vmatprep.subr.mxu0 0.0
    %3151 = vmatpush1.msra.mxu0 %v3131
    %3152 = vmatprep.subr.mxu0 0.0
    %3153 = vmatpush1.msra.mxu0 %v3132
    %3154 = vmatprep.subr.mxu0 0.0
    %3155 = vmatpush1.msra.mxu0 %v3133
    %3156 = vmatprep.subr.mxu0 0.0
    %3157 = vmatpush1.msra.mxu0 %v3134
    %3158 = vmatprep.subr.mxu0 0.0
    %3159 = vmatpush1.msra.mxu0 %v3135
    %3160 = vmatprep.subr.mxu0 0.0
    %3161 = vmatpush1.msra.mxu0 %v3136
    %3162 = vmatprep.subr.mxu0 0.0
    %3163 = vmatpush1.msra.mxu0 %v3137
    %3164 = vmatprep.subr.mxu0 0.0
    %3165 = vmatpush1.msra.mxu0 0.0
    %3166 = vmatprep.subr.mxu0 0.0
    %3167 = vmatpush1.msra.mxu0 0.0
    %3168 = vmatprep.subr.mxu0 0.0
    %3169 = vmatpush1.msra.mxu0 0.0
    %3170 = vmatprep.subr.mxu0 0.0
    %3171 = vmatpush1.msra.mxu0 0.0
    %3172 = vmatprep.subr.mxu0 0.0
    %3173 = vmatpush1.msra.mxu0 0.0
    %3174 = vmatprep.subr.mxu0 0.0
    %3175 = vmatpush1.msra.mxu0 0.0
    %3176 = vmatprep.subr.mxu0 0.0
    %3177 = vmatpush1.msra.mxu0 0.0
    %3178 = vmatprep.subr.mxu0 0.0
    %3179 = vmatpush1.msra.mxu0 0.0
    %3180 = vmatprep.subr.mxu0 0.0
    %3181 = vmatpush1.msra.mxu0 0.0
    %3182 = vmatprep.subr.mxu0 0.0
    %3183 = vmatpush1.msra.mxu0 0.0
    %3184 = vmatprep.subr.mxu0 0.0
    %3185 = vmatpush1.msra.mxu0 0.0
    %3186 = vmatprep.subr.mxu0 0.0
    %3187 = vmatpush1.msra.mxu0 0.0
    %3188 = vmatprep.subr.mxu0 0.0
    %3189 = vmatpush1.msra.mxu0 0.0
    %3190 = vmatprep.subr.mxu0 0.0
    %3191 = vmatpush1.msra.mxu0 0.0
    %3192 = vmatprep.subr.mxu0 0.0
    %3193 = vmatpush1.msra.mxu0 0.0
    %3194 = vmatprep.subr.mxu0 0.0
    %3195 = vmatpush1.msra.mxu0 0.0
    %3196 = vmatprep.subr.mxu0 0.0
    %3197 = vmatpush1.msra.mxu0 0.0
    %3198 = vmatprep.subr.mxu0 0.0
    %3199 = vmatpush1.msra.mxu0 0.0
    %3200 = vmatprep.subr.mxu0 0.0
    %3201 = vmatpush1.msra.mxu0 0.0
    %3202 = vmatprep.subr.mxu0 0.0
    %3203 = vmatpush1.msra.mxu0 0.0
    %3204 = vmatprep.subr.mxu0 0.0
    %3205 = vmatpush1.msra.mxu0 0.0
    %3206 = vmatprep.subr.mxu0 0.0
    %3207 = vmatpush1.msra.mxu0 0.0
    %3208 = vmatprep.subr.mxu0 0.0
    %3209 = vmatpush1.msra.mxu0 0.0
    %3210 = vmatprep.subr.mxu0 0.0
    %3211 = vmatpush1.msra.mxu0 0.0
    %3212 = vmatprep.mubr.f32.mxu0 0.0
    %3213 = vmatmul.mubr.f32.gmra.mrb[0].mxu0 %v3146
    %v3214 = vpop.f32.mrb[0].mxu0
    %v3215 = vadd.f32 %v3143, %v3214
    %v3216 = vpop.f32.mrb[0].mxu0
    %3217 = vdwg.mxu0
    %v3218 = vxor.u32 %v3215, 2147483648
    %v3219 = vmul.f32 %v3218, 1.442695
    %v3220 = vpow.pop %v3219
    %v3221 = vadd.f32 %v3220, 1.0
    %v3222 = vrcp.pop %v3221
    %v3223 = vmul.f32 1.0, %v3222
    %v3224 = vmul.f32 %v3215, %v3223
    %v3225 = vld [vmem:[%s61] sm:$0xff]
    %v3226 = vld [vmem:[%s61 + $0x8] sm:$0xff]
    %v3227 = vld [vmem:[%s61 + $0x10] sm:$0xff]
    %v3228 = vld [vmem:[%s61 + $0x18] sm:$0xff]
    %v3229 = vld [vmem:[%s61 + $0x20] sm:$0xff]
    %v3230 = vld [vmem:[%s61 + $0x28] sm:$0xff]
    %v3231 = vld [vmem:[%s61 + $0x30] sm:$0xff]
    %v3232 = vld [vmem:[%s61 + $0x38] sm:$0xff]
    %v3233 = vld [vmem:[%s61 + $0x40] sm:$0xff]
    %v3234 = vld [vmem:[%s61 + $0x48] sm:$0xff]
    %v3235 = vld [vmem:[%s61 + $0x50] sm:$0xff]
    %v3236 = vld [vmem:[%s61 + $0x58] sm:$0xff]
    %v3237 = vld [vmem:[%s61 + $0x60] sm:$0xff]
    %v3238 = vld [vmem:[%s61 + $0x68] sm:$0xff]
    %v3239 = vld [vmem:[%s61 + $0x70] sm:$0xff]
    %v3240 = vld [vmem:[%s61 + $0x78] sm:$0xff]
    %v3241 = vld [vmem:[#allocation26] sm:$0x1]
    %v3243 = vlaneseq
    %v3244 = vshrl.u32 %v3243, 7
    %v3245 = vsub.s32 0, %v3244
    %v3246 = vrot.slane %v3241, %v3245
    %3248 = vmatprep.subr.mxu0 0.0
    %3249 = vmatpush1.msra.mxu0 %v3225
    %3250 = vmatprep.subr.mxu0 0.0
    %3251 = vmatpush1.msra.mxu0 %v3226
    %3252 = vmatprep.subr.mxu0 0.0
    %3253 = vmatpush1.msra.mxu0 %v3227
    %3254 = vmatprep.subr.mxu0 0.0
    %3255 = vmatpush1.msra.mxu0 %v3228
    %3256 = vmatprep.subr.mxu0 0.0
    %3257 = vmatpush1.msra.mxu0 %v3229
    %3258 = vmatprep.subr.mxu0 0.0
    %3259 = vmatpush1.msra.mxu0 %v3230
    %3260 = vmatprep.subr.mxu0 0.0
    %3261 = vmatpush1.msra.mxu0 %v3231
    %3262 = vmatprep.subr.mxu0 0.0
    %3263 = vmatpush1.msra.mxu0 %v3232
    %3264 = vmatprep.subr.mxu0 0.0
    %3265 = vmatpush1.msra.mxu0 %v3233
    %3266 = vmatprep.subr.mxu0 0.0
    %3267 = vmatpush1.msra.mxu0 %v3234
    %3268 = vmatprep.subr.mxu0 0.0
    %3269 = vmatpush1.msra.mxu0 %v3235
    %3270 = vmatprep.subr.mxu0 0.0
    %3271 = vmatpush1.msra.mxu0 %v3236
    %3272 = vmatprep.subr.mxu0 0.0
    %3273 = vmatpush1.msra.mxu0 %v3237
    %3274 = vmatprep.subr.mxu0 0.0
    %3275 = vmatpush1.msra.mxu0 %v3238
    %3276 = vmatprep.subr.mxu0 0.0
    %3277 = vmatpush1.msra.mxu0 %v3239
    %3278 = vmatprep.subr.mxu0 0.0
    %3279 = vmatpush1.msra.mxu0 %v3240
    %3280 = vmatprep.subr.mxu0 0.0
    %3281 = vmatpush1.msra.mxu0 0.0
    %3282 = vmatprep.subr.mxu0 0.0
    %3283 = vmatpush1.msra.mxu0 0.0
    %3284 = vmatprep.subr.mxu0 0.0
    %3285 = vmatpush1.msra.mxu0 0.0
    %3286 = vmatprep.subr.mxu0 0.0
    %3287 = vmatpush1.msra.mxu0 0.0
    %3288 = vmatprep.subr.mxu0 0.0
    %3289 = vmatpush1.msra.mxu0 0.0
    %3290 = vmatprep.subr.mxu0 0.0
    %3291 = vmatpush1.msra.mxu0 0.0
    %3292 = vmatprep.subr.mxu0 0.0
    %3293 = vmatpush1.msra.mxu0 0.0
    %3294 = vmatprep.subr.mxu0 0.0
    %3295 = vmatpush1.msra.mxu0 0.0
    %3296 = vmatprep.subr.mxu0 0.0
    %3297 = vmatpush1.msra.mxu0 0.0
    %3298 = vmatprep.subr.mxu0 0.0
    %3299 = vmatpush1.msra.mxu0 0.0
    %3300 = vmatprep.subr.mxu0 0.0
    %3301 = vmatpush1.msra.mxu0 0.0
    %3302 = vmatprep.subr.mxu0 0.0
    %3303 = vmatpush1.msra.mxu0 0.0
    %3304 = vmatprep.subr.mxu0 0.0
    %3305 = vmatpush1.msra.mxu0 0.0
    %3306 = vmatprep.subr.mxu0 0.0
    %3307 = vmatpush1.msra.mxu0 0.0
    %3308 = vmatprep.subr.mxu0 0.0
    %3309 = vmatpush1.msra.mxu0 0.0
    %3310 = vmatprep.subr.mxu0 0.0
    %3311 = vmatpush1.msra.mxu0 0.0
    %3312 = vmatprep.mubr.f32.mxu0 0.0
    %3313 = vmatmul.mubr.f32.gmra.mrb[0].mxu0 %v3224
    %v3314 = vpop.f32.mrb[0].mxu0
    %v3315 = vadd.f32 %v3246, %v3314
    %v3316 = vpop.f32.mrb[0].mxu0
    %3317 = vdwg.mxu0
    %v3318 = vmul.f32 %v3315, 0.5
    %v3319 = vadd.f32 %v3098, %v3318
    %v3320 = vld [vmem:[#allocation41] sm:$0x1]
    %v3321 = vld [vmem:[#allocation40] sm:$0x1]
    %v3322 = vsel %vm3101, %v3319, 0.0
    %3323 = vadd.xlane.f32.xlu0 %v3322
    %v3324 = vpop.xlane.xlu0 %3323
    %v3325 = vmul.f32 %v3324, %v3105
    %v3326 = vsub.f32 %v3319, %v3325
    %v3327 = vmul.f32 %v3326, %v3326
    %v3328 = vsel %vm3101, %v3327, 0.0
    %3329 = vadd.xlane.f32.xlu0 %v3328
    %v3330 = vpop.xlane.xlu0 %3329
    %v3331 = vmul.f32 %v3330, %v3105
    %v3332 = vadd.f32 %v3331, 1e-05
    %v3333 = vrsqrt.pop %v3332
    %v3334 = vmul.f32 %v3326, %v3333
    %v3336 = vlaneseq
    %v3337 = vshrl.u32 %v3336, 7
    %v3338 = vsub.s32 0, %v3337
    %v3339 = vrot.slane %v3320, %v3338
    %v3341 = vmul.f32 %v3334, %v3339
    %v3343 = vlaneseq
    %v3344 = vshrl.u32 %v3343, 7
    %v3345 = vsub.s32 0, %v3344
    %v3346 = vrot.slane %v3321, %v3345
    %v3348 = vadd.f32 %v3341, %v3346
    %v3349 = vld [vmem:[%s101] sm:$0xff]
    %v3350 = vld [vmem:[%s101 + $0x8] sm:$0xff]
    %v3351 = vld [vmem:[%s101 + $0x10] sm:$0xff]
    %v3352 = vld [vmem:[%s101 + $0x18] sm:$0xff]
    %v3353 = vld [vmem:[%s101 + $0x20] sm:$0xff]
    %v3354 = vld [vmem:[%s101 + $0x28] sm:$0xff]
    %v3355 = vld [vmem:[%s101 + $0x30] sm:$0xff]
    %v3356 = vld [vmem:[%s101 + $0x38] sm:$0xff]
    %v3357 = vld [vmem:[#allocation17] sm:$0x1]
    %v3359 = vlaneseq
    %v3360 = vshrl.u32 %v3359, 7
    %v3361 = vsub.s32 0, %v3360
    %v3362 = vrot.slane %v3357, %v3361
    %v3365 = vsel %vm776, %v3348, 0
    %3367 = vmatprep.subr.mxu0 0.0
    %3368 = vmatpush1.msra.mxu0 %v3349
    %3369 = vmatprep.subr.mxu0 0.0
    %3370 = vmatpush1.msra.mxu0 %v3350
    %3371 = vmatprep.subr.mxu0 0.0
    %3372 = vmatpush1.msra.mxu0 %v3351
    %3373 = vmatprep.subr.mxu0 0.0
    %3374 = vmatpush1.msra.mxu0 %v3352
    %3375 = vmatprep.subr.mxu0 0.0
    %3376 = vmatpush1.msra.mxu0 %v3353
    %3377 = vmatprep.subr.mxu0 0.0
    %3378 = vmatpush1.msra.mxu0 %v3354
    %3379 = vmatprep.subr.mxu0 0.0
    %3380 = vmatpush1.msra.mxu0 %v3355
    %3381 = vmatprep.subr.mxu0 0.0
    %3382 = vmatpush1.msra.mxu0 %v3356
    %3383 = vmatprep.subr.mxu0 0.0
    %3384 = vmatpush1.msra.mxu0 0.0
    %3385 = vmatprep.subr.mxu0 0.0
    %3386 = vmatpush1.msra.mxu0 0.0
    %3387 = vmatprep.subr.mxu0 0.0
    %3388 = vmatpush1.msra.mxu0 0.0
    %3389 = vmatprep.subr.mxu0 0.0
    %3390 = vmatpush1.msra.mxu0 0.0
    %3391 = vmatprep.subr.mxu0 0.0
    %3392 = vmatpush1.msra.mxu0 0.0
    %3393 = vmatprep.subr.mxu0 0.0
    %3394 = vmatpush1.msra.mxu0 0.0
    %3395 = vmatprep.subr.mxu0 0.0
    %3396 = vmatpush1.msra.mxu0 0.0
    %3397 = vmatprep.subr.mxu0 0.0
    %3398 = vmatpush1.msra.mxu0 0.0
    %3399 = vmatprep.subr.mxu0 0.0
    %3400 = vmatpush1.msra.mxu0 0.0
    %3401 = vmatprep.subr.mxu0 0.0
    %3402 = vmatpush1.msra.mxu0 0.0
    %3403 = vmatprep.subr.mxu0 0.0
    %3404 = vmatpush1.msra.mxu0 0.0
    %3405 = vmatprep.subr.mxu0 0.0
    %3406 = vmatpush1.msra.mxu0 0.0
    %3407 = vmatprep.subr.mxu0 0.0
    %3408 = vmatpush1.msra.mxu0 0.0
    %3409 = vmatprep.subr.mxu0 0.0
    %3410 = vmatpush1.msra.mxu0 0.0
    %3411 = vmatprep.subr.mxu0 0.0
    %3412 = vmatpush1.msra.mxu0 0.0
    %3413 = vmatprep.subr.mxu0 0.0
    %3414 = vmatpush1.msra.mxu0 0.0
    %3415 = vmatprep.subr.mxu0 0.0
    %3416 = vmatpush1.msra.mxu0 0.0
    %3417 = vmatprep.subr.mxu0 0.0
    %3418 = vmatpush1.msra.mxu0 0.0
    %3419 = vmatprep.subr.mxu0 0.0
    %3420 = vmatpush1.msra.mxu0 0.0
    %3421 = vmatprep.subr.mxu0 0.0
    %3422 = vmatpush1.msra.mxu0 0.0
    %3423 = vmatprep.subr.mxu0 0.0
    %3424 = vmatpush1.msra.mxu0 0.0
    %3425 = vmatprep.subr.mxu0 0.0
    %3426 = vmatpush1.msra.mxu0 0.0
    %3427 = vmatprep.subr.mxu0 0.0
    %3428 = vmatpush1.msra.mxu0 0.0
    %3429 = vmatprep.subr.mxu0 0.0
    %3430 = vmatpush1.msra.mxu0 0.0
    %3431 = vmatprep.mubr.f32.mxu0 0.0
    %3432 = vmatmul.mubr.f32.gmra.mrb[0].mxu0 %v3365
    %v3433 = vpop.f32.mrb[0].mxu0
    %v3434 = vadd.f32 %v3362, %v3433
    %v3435 = vpop.f32.mrb[0].mxu0
    %3436 = vdwg.mxu0
    %v3437 = vld [vmem:[%s95] sm:$0xff]
    %v3438 = vld [vmem:[%s95 + $0x8] sm:$0xff]
    %v3439 = vld [vmem:[%s95 + $0x10] sm:$0xff]
    %v3440 = vld [vmem:[%s95 + $0x18] sm:$0xff]
    %v3441 = vld [vmem:[%s95 + $0x20] sm:$0xff]
    %v3442 = vld [vmem:[%s95 + $0x28] sm:$0xff]
    %v3443 = vld [vmem:[%s95 + $0x30] sm:$0xff]
    %v3444 = vld [vmem:[%s95 + $0x38] sm:$0xff]
    %v3445 = vld [vmem:[#allocation11] sm:$0x1]
    %v3447 = vlaneseq
    %v3448 = vshrl.u32 %v3447, 7
    %v3449 = vsub.s32 0, %v3448
    %v3450 = vrot.slane %v3445, %v3449
    %3452 = vmatprep.subr.mxu0 0.0
    %3453 = vmatpush1.msra.mxu0 %v3437
    %3454 = vmatprep.subr.mxu0 0.0
    %3455 = vmatpush1.msra.mxu0 %v3438
    %3456 = vmatprep.subr.mxu0 0.0
    %3457 = vmatpush1.msra.mxu0 %v3439
    %3458 = vmatprep.subr.mxu0 0.0
    %3459 = vmatpush1.msra.mxu0 %v3440
    %3460 = vmatprep.subr.mxu0 0.0
    %3461 = vmatpush1.msra.mxu0 %v3441
    %3462 = vmatprep.subr.mxu0 0.0
    %3463 = vmatpush1.msra.mxu0 %v3442
    %3464 = vmatprep.subr.mxu0 0.0
    %3465 = vmatpush1.msra.mxu0 %v3443
    %3466 = vmatprep.subr.mxu0 0.0
    %3467 = vmatpush1.msra.mxu0 %v3444
    %3468 = vmatprep.subr.mxu0 0.0
    %3469 = vmatpush1.msra.mxu0 0.0
    %3470 = vmatprep.subr.mxu0 0.0
    %3471 = vmatpush1.msra.mxu0 0.0
    %3472 = vmatprep.subr.mxu0 0.0
    %3473 = vmatpush1.msra.mxu0 0.0
    %3474 = vmatprep.subr.mxu0 0.0
    %3475 = vmatpush1.msra.mxu0 0.0
    %3476 = vmatprep.subr.mxu0 0.0
    %3477 = vmatpush1.msra.mxu0 0.0
    %3478 = vmatprep.subr.mxu0 0.0
    %3479 = vmatpush1.msra.mxu0 0.0
    %3480 = vmatprep.subr.mxu0 0.0
    %3481 = vmatpush1.msra.mxu0 0.0
    %3482 = vmatprep.subr.mxu0 0.0
    %3483 = vmatpush1.msra.mxu0 0.0
    %3484 = vmatprep.subr.mxu0 0.0
    %3485 = vmatpush1.msra.mxu0 0.0
    %3486 = vmatprep.subr.mxu0 0.0
    %3487 = vmatpush1.msra.mxu0 0.0
    %3488 = vmatprep.subr.mxu0 0.0
    %3489 = vmatpush1.msra.mxu0 0.0
    %3490 = vmatprep.subr.mxu0 0.0
    %3491 = vmatpush1.msra.mxu0 0.0
    %3492 = vmatprep.subr.mxu0 0.0
    %3493 = vmatpush1.msra.mxu0 0.0
    %3494 = vmatprep.subr.mxu0 0.0
    %3495 = vmatpush1.msra.mxu0 0.0
    %3496 = vmatprep.subr.mxu0 0.0
    %3497 = vmatpush1.msra.mxu0 0.0
    %3498 = vmatprep.subr.mxu0 0.0
    %3499 = vmatpush1.msra.mxu0 0.0
    %3500 = vmatprep.subr.mxu0 0.0
    %3501 = vmatpush1.msra.mxu0 0.0
    %3502 = vmatprep.subr.mxu0 0.0
    %3503 = vmatpush1.msra.mxu0 0.0
    %3504 = vmatprep.subr.mxu0 0.0
    %3505 = vmatpush1.msra.mxu0 0.0
    %3506 = vmatprep.subr.mxu0 0.0
    %3507 = vmatpush1.msra.mxu0 0.0
    %3508 = vmatprep.subr.mxu0 0.0
    %3509 = vmatpush1.msra.mxu0 0.0
    %3510 = vmatprep.subr.mxu0 0.0
    %3511 = vmatpush1.msra.mxu0 0.0
    %3512 = vmatprep.subr.mxu0 0.0
    %3513 = vmatpush1.msra.mxu0 0.0
    %3514 = vmatprep.subr.mxu0 0.0
    %3515 = vmatpush1.msra.mxu0 0.0
    %3516 = vmatprep.mubr.f32.mxu0 0.0
    %3517 = vmatmul.mubr.f32.gmra.mrb[0].mxu0 %v3365
    %v3518 = vpop.f32.mrb[0].mxu0
    %v3519 = vadd.f32 %v3450, %v3518
    %v3520 = vpop.f32.mrb[0].mxu0
    %3521 = vdwg.mxu0
    %v3522 = vld [vmem:[%s103] sm:$0xff]
    %v3523 = vld [vmem:[%s103 + $0x8] sm:$0xff]
    %v3524 = vld [vmem:[%s103 + $0x10] sm:$0xff]
    %v3525 = vld [vmem:[%s103 + $0x18] sm:$0xff]
    %v3526 = vld [vmem:[%s103 + $0x20] sm:$0xff]
    %v3527 = vld [vmem:[%s103 + $0x28] sm:$0xff]
    %v3528 = vld [vmem:[%s103 + $0x30] sm:$0xff]
    %v3529 = vld [vmem:[%s103 + $0x38] sm:$0xff]
    %v3530 = vld [vmem:[#allocation19] sm:$0x1]
    %v3532 = vlaneseq
    %v3533 = vshrl.u32 %v3532, 7
    %v3534 = vsub.s32 0, %v3533
    %v3535 = vrot.slane %v3530, %v3534
    %3537 = vmatprep.subr.mxu0 0.0
    %3538 = vmatpush1.msra.mxu0 %v3522
    %3539 = vmatprep.subr.mxu0 0.0
    %3540 = vmatpush1.msra.mxu0 %v3523
    %3541 = vmatprep.subr.mxu0 0.0
    %3542 = vmatpush1.msra.mxu0 %v3524
    %3543 = vmatprep.subr.mxu0 0.0
    %3544 = vmatpush1.msra.mxu0 %v3525
    %3545 = vmatprep.subr.mxu0 0.0
    %3546 = vmatpush1.msra.mxu0 %v3526
    %3547 = vmatprep.subr.mxu0 0.0
    %3548 = vmatpush1.msra.mxu0 %v3527
    %3549 = vmatprep.subr.mxu0 0.0
    %3550 = vmatpush1.msra.mxu0 %v3528
    %3551 = vmatprep.subr.mxu0 0.0
    %3552 = vmatpush1.msra.mxu0 %v3529
    %3553 = vmatprep.subr.mxu0 0.0
    %3554 = vmatpush1.msra.mxu0 0.0
    %3555 = vmatprep.subr.mxu0 0.0
    %3556 = vmatpush1.msra.mxu0 0.0
    %3557 = vmatprep.subr.mxu0 0.0
    %3558 = vmatpush1.msra.mxu0 0.0
    %3559 = vmatprep.subr.mxu0 0.0
    %3560 = vmatpush1.msra.mxu0 0.0
    %3561 = vmatprep.subr.mxu0 0.0
    %3562 = vmatpush1.msra.mxu0 0.0
    %3563 = vmatprep.subr.mxu0 0.0
    %3564 = vmatpush1.msra.mxu0 0.0
    %3565 = vmatprep.subr.mxu0 0.0
    %3566 = vmatpush1.msra.mxu0 0.0
    %3567 = vmatprep.subr.mxu0 0.0
    %3568 = vmatpush1.msra.mxu0 0.0
    %3569 = vmatprep.subr.mxu0 0.0
    %3570 = vmatpush1.msra.mxu0 0.0
    %3571 = vmatprep.subr.mxu0 0.0
    %3572 = vmatpush1.msra.mxu0 0.0
    %3573 = vmatprep.subr.mxu0 0.0
    %3574 = vmatpush1.msra.mxu0 0.0
    %3575 = vmatprep.subr.mxu0 0.0
    %3576 = vmatpush1.msra.mxu0 0.0
    %3577 = vmatprep.subr.mxu0 0.0
    %3578 = vmatpush1.msra.mxu0 0.0
    %3579 = vmatprep.subr.mxu0 0.0
    %3580 = vmatpush1.msra.mxu0 0.0
    %3581 = vmatprep.subr.mxu0 0.0
    %3582 = vmatpush1.msra.mxu0 0.0
    %3583 = vmatprep.subr.mxu0 0.0
    %3584 = vmatpush1.msra.mxu0 0.0
    %3585 = vmatprep.subr.mxu0 0.0
    %3586 = vmatpush1.msra.mxu0 0.0
    %3587 = vmatprep.subr.mxu0 0.0
    %3588 = vmatpush1.msra.mxu0 0.0
    %3589 = vmatprep.subr.mxu0 0.0
    %3590 = vmatpush1.msra.mxu0 0.0
    %3591 = vmatprep.subr.mxu0 0.0
    %3592 = vmatpush1.msra.mxu0 0.0
    %3593 = vmatprep.subr.mxu0 0.0
    %3594 = vmatpush1.msra.mxu0 0.0
    %3595 = vmatprep.subr.mxu0 0.0
    %3596 = vmatpush1.msra.mxu0 0.0
    %3597 = vmatprep.subr.mxu0 0.0
    %3598 = vmatpush1.msra.mxu0 0.0
    %3599 = vmatprep.subr.mxu0 0.0
    %3600 = vmatpush1.msra.mxu0 0.0
    %3601 = vmatprep.mubr.f32.mxu0 0.0
    %3602 = vmatmul.mubr.f32.gmra.mrb[0].mxu0 %v3365
    %v3603 = vpop.f32.mrb[0].mxu0
    %v3604 = vadd.f32 %v3535, %v3603
    %v3605 = vpop.f32.mrb[0].mxu0
    %3606 = vdwg.mxu0
    %v3607 = vld [vmem:[%s99] sm:$0xff]
    %v3608 = vld [vmem:[%s99 + $0x8] sm:$0xff]
    %v3609 = vld [vmem:[%s99 + $0x10] sm:$0xff]
    %v3610 = vld [vmem:[%s99 + $0x18] sm:$0xff]
    %v3611 = vld [vmem:[%s99 + $0x20] sm:$0xff]
    %v3612 = vld [vmem:[%s99 + $0x28] sm:$0xff]
    %v3613 = vld [vmem:[%s99 + $0x30] sm:$0xff]
    %v3614 = vld [vmem:[%s99 + $0x38] sm:$0xff]
    %v3616 = vsel %vm776, %v591, 0
    %v3619 = vsel %vm776, %v592, 0
    %v3622 = vsel %vm776, %v593, 0
    %3624 = vmatprep.subr.mxu0 0.0
    %3625 = vmatpush1.msra.mxu0 %v3607
    %3626 = vmatprep.subr.mxu0 0.0
    %3627 = vmatpush1.msra.mxu0 %v3608
    %3628 = vmatprep.subr.mxu0 0.0
    %3629 = vmatpush1.msra.mxu0 %v3609
    %3630 = vmatprep.subr.mxu0 0.0
    %3631 = vmatpush1.msra.mxu0 %v3610
    %3632 = vmatprep.subr.mxu0 0.0
    %3633 = vmatpush1.msra.mxu0 %v3611
    %3634 = vmatprep.subr.mxu0 0.0
    %3635 = vmatpush1.msra.mxu0 %v3612
    %3636 = vmatprep.subr.mxu0 0.0
    %3637 = vmatpush1.msra.mxu0 %v3613
    %3638 = vmatprep.subr.mxu0 0.0
    %3639 = vmatpush1.msra.mxu0 %v3614
    %3640 = vmatprep.subr.mxu0 0.0
    %3641 = vmatpush1.msra.mxu0 0.0
    %3642 = vmatprep.subr.mxu0 0.0
    %3643 = vmatpush1.msra.mxu0 0.0
    %3644 = vmatprep.subr.mxu0 0.0
    %3645 = vmatpush1.msra.mxu0 0.0
    %3646 = vmatprep.subr.mxu0 0.0
    %3647 = vmatpush1.msra.mxu0 0.0
    %3648 = vmatprep.subr.mxu0 0.0
    %3649 = vmatpush1.msra.mxu0 0.0
    %3650 = vmatprep.subr.mxu0 0.0
    %3651 = vmatpush1.msra.mxu0 0.0
    %3652 = vmatprep.subr.mxu0 0.0
    %3653 = vmatpush1.msra.mxu0 0.0
    %3654 = vmatprep.subr.mxu0 0.0
    %3655 = vmatpush1.msra.mxu0 0.0
    %3656 = vmatprep.subr.mxu0 0.0
    %3657 = vmatpush1.msra.mxu0 0.0
    %3658 = vmatprep.subr.mxu0 0.0
    %3659 = vmatpush1.msra.mxu0 0.0
    %3660 = vmatprep.subr.mxu0 0.0
    %3661 = vmatpush1.msra.mxu0 0.0
    %3662 = vmatprep.subr.mxu0 0.0
    %3663 = vmatpush1.msra.mxu0 0.0
    %3664 = vmatprep.subr.mxu0 0.0
    %3665 = vmatpush1.msra.mxu0 0.0
    %3666 = vmatprep.subr.mxu0 0.0
    %3667 = vmatpush1.msra.mxu0 0.0
    %3668 = vmatprep.subr.mxu0 0.0
    %3669 = vmatpush1.msra.mxu0 0.0
    %3670 = vmatprep.subr.mxu0 0.0
    %3671 = vmatpush1.msra.mxu0 0.0
    %3672 = vmatprep.subr.mxu0 0.0
    %3673 = vmatpush1.msra.mxu0 0.0
    %3674 = vmatprep.subr.mxu0 0.0
    %3675 = vmatpush1.msra.mxu0 0.0
    %3676 = vmatprep.subr.mxu0 0.0
    %3677 = vmatpush1.msra.mxu0 0.0
    %3678 = vmatprep.subr.mxu0 0.0
    %3679 = vmatpush1.msra.mxu0 0.0
    %3680 = vmatprep.subr.mxu0 0.0
    %3681 = vmatpush1.msra.mxu0 0.0
    %3682 = vmatprep.subr.mxu0 0.0
    %3683 = vmatpush1.msra.mxu0 0.0
    %3684 = vmatprep.subr.mxu0 0.0
    %3685 = vmatpush1.msra.mxu0 0.0
    %3686 = vmatprep.subr.mxu0 0.0
    %3687 = vmatpush1.msra.mxu0 0.0
    %3688 = vmatprep.mubr.f32.mxu0 0.0
    %3689 = vmatmul.mubr.f32.gmra.mrb[0].mxu0 %v3616
    %v3690 = vpop.f32.mrb[0].mxu0
    %v3691 = vadd.f32 0.0, %v3690
    %v3692 = vpop.f32.mrb[0].mxu0
    %3693 = vmatprep.mubr.f32.mxu0 0.0
    %3694 = vmatmul.mubr.f32.gmra.mrb[0].mxu0 %v3619
    %v3695 = vpop.f32.mrb[0].mxu0
    %v3696 = vadd.f32 0.0, %v3695
    %v3697 = vpop.f32.mrb[0].mxu0
    %3698 = vmatprep.mubr.f32.mxu0 0.0
    %3699 = vmatmul.mubr.f32.gmra.mrb[0].mxu0 %v3622
    %v3700 = vpop.f32.mrb[0].mxu0
    %v3701 = vadd.f32 0.0, %v3700
    %v3702 = vpop.f32.mrb[0].mxu0
    %3703 = vdwg.mxu0
    %v3704 = vld [vmem:[%s1] sm:$0xff]
    %v3705 = vld [vmem:[%s1 + $0x8] sm:$0xff]
    %v3706 = vld [vmem:[%s1 + $0x10] sm:$0xff]
    %v3707 = vld [vmem:[%s1 + $0x18] sm:$0xff]
    %v3708 = vld [vmem:[%s1 + $0x20] sm:$0xff]
    %v3709 = vld [vmem:[%s1 + $0x28] sm:$0xff]
    %v3710 = vld [vmem:[%s1 + $0x30] sm:$0xff]
    %v3711 = vld [vmem:[%s1 + $0x38] sm:$0xff]
    %v3712 = vld [vmem:[#allocation43] sm:$0xf]
    %v3713 = vld [vmem:[#allocation44] sm:$0xf]
    %3715 = vrot.lane.b32.xlu0 %v3604, 16
    %v3716 = vpop.permute.xlu0 %3715
    %v3718 = vlaneseq
    %v3719 = vshrl.u32 %v3718, 7
    %v3720 = vsub.s32 0, %v3719
    %v3721 = vrot.slane %v3712, %v3720
    %v3722 = vadd.f32 %v3434, %v3721
    %v3723 = vlaneseq
    %v3724 = vshrl.u32 %v3723, 7
    %v3725 = vsub.s32 0, %v3724
    %v3726 = vrot.slane %v3713, %v3725
    %v3727 = vadd.f32 %v3434, %v3726
    %vm3728 = vcmask 130048
    %v3730 = vsel %vm3728, %v3727, 0
    %v3733 = vsel %vm3728, %v3691, 0
    %v3736 = vsel %vm3728, %v3696, 0
    %v3739 = vsel %vm3728, %v3701, 0
    %3741 = vmatprep.subr.mxu0 0.0
    %3742 = vmatpush1.xpose.msra.mxu0 %v3733
    %3743 = vmatprep.subr.mxu0 0.0
    %3744 = vmatpush1.xpose.msra.mxu0 %v3736
    %3745 = vmatprep.subr.mxu0 0.0
    %3746 = vmatpush1.xpose.msra.mxu0 %v3739
    %3747 = vmatprep.subr.mxu0 0.0
    %3748 = vmatpush1.xpose.msra.mxu0 0.0
    %3749 = vmatprep.subr.mxu0 0.0
    %3750 = vmatpush1.xpose.msra.mxu0 0.0
    %3751 = vmatprep.subr.mxu0 0.0
    %3752 = vmatpush1.xpose.msra.mxu0 0.0
    %3753 = vmatprep.subr.mxu0 0.0
    %3754 = vmatpush1.xpose.msra.mxu0 0.0
    %3755 = vmatprep.subr.mxu0 0.0
    %3756 = vmatpush1.xpose.msra.mxu0 0.0
    %3757 = vmatprep.subr.mxu0 0.0
    %3758 = vmatpush1.xpose.msra.mxu0 0.0
    %3759 = vmatprep.subr.mxu0 0.0
    %3760 = vmatpush1.xpose.msra.mxu0 0.0
    %3761 = vmatprep.subr.mxu0 0.0
    %3762 = vmatpush1.xpose.msra.mxu0 0.0
    %3763 = vmatprep.subr.mxu0 0.0
    %3764 = vmatpush1.xpose.msra.mxu0 0.0
    %3765 = vmatprep.subr.mxu0 0.0
    %3766 = vmatpush1.xpose.msra.mxu0 0.0
    %3767 = vmatprep.subr.mxu0 0.0
    %3768 = vmatpush1.xpose.msra.mxu0 0.0
    %3769 = vmatprep.subr.mxu0 0.0
    %3770 = vmatpush1.xpose.msra.mxu0 0.0
    %3771 = vmatprep.subr.mxu0 0.0
    %3772 = vmatpush1.xpose.msra.mxu0 0.0
    %3773 = vmatprep.subr.mxu0 0.0
    %3774 = vmatpush1.xpose.msra.mxu0 0.0
    %3775 = vmatprep.subr.mxu0 0.0
    %3776 = vmatpush1.xpose.msra.mxu0 0.0
    %3777 = vmatprep.subr.mxu0 0.0
    %3778 = vmatpush1.xpose.msra.mxu0 0.0
    %3779 = vmatprep.subr.mxu0 0.0
    %3780 = vmatpush1.xpose.msra.mxu0 0.0
    %3781 = vmatprep.subr.mxu0 0.0
    %3782 = vmatpush1.xpose.msra.mxu0 0.0
    %3783 = vmatprep.subr.mxu0 0.0
    %3784 = vmatpush1.xpose.msra.mxu0 0.0
    %3785 = vmatprep.subr.mxu0 0.0
    %3786 = vmatpush1.xpose.msra.mxu0 0.0
    %3787 = vmatprep.subr.mxu0 0.0
    %3788 = vmatpush1.xpose.msra.mxu0 0.0
    %3789 = vmatprep.subr.mxu0 0.0
    %3790 = vmatpush1.xpose.msra.mxu0 0.0
    %3791 = vmatprep.subr.mxu0 0.0
    %3792 = vmatpush1.xpose.msra.mxu0 0.0
    %3793 = vmatprep.subr.mxu0 0.0
    %3794 = vmatpush1.xpose.msra.mxu0 0.0
    %3795 = vmatprep.subr.mxu0 0.0
    %3796 = vmatpush1.xpose.msra.mxu0 0.0
    %3797 = vmatprep.subr.mxu0 0.0
    %3798 = vmatpush1.xpose.msra.mxu0 0.0
    %3799 = vmatprep.subr.mxu0 0.0
    %3800 = vmatpush1.xpose.msra.mxu0 0.0
    %3801 = vmatprep.subr.mxu0 0.0
    %3802 = vmatpush1.xpose.msra.mxu0 0.0
    %3803 = vmatprep.subr.mxu0 0.0
    %3804 = vmatpush1.xpose.msra.mxu0 0.0
    %3805 = vmatprep.mubr.f32.mxu0 0.0
    %3806 = vmatmul.mubr.f32.gmra.mrb[0].mxu0 %v3730
    %v3807 = vpop.f32.mrb[0].mxu0
    %v3808 = vadd.f32 0.0, %v3807
    %v3809 = vpop.f32.mrb[0].mxu0
    %3810 = vdwg.mxu0
    %v3812 = vsel %vm3728, %v3722, 0
    %v3815 = vsel %vm3728, %v3704, 0
    %v3818 = vsel %vm3728, %v3705, 0
    %v3821 = vsel %vm3728, %v3519, 0
    %3823 = vmatprep.subr.mxu0 0.0
    %3824 = vmatpush1.xpose.msra.mxu0 %v3815
    %3825 = vmatprep.subr.mxu0 0.0
    %3826 = vmatpush1.xpose.msra.mxu0 %v3818
    %3827 = vmatprep.subr.mxu0 0.0
    %3828 = vmatpush1.xpose.msra.mxu0 %v3821
    %3829 = vmatprep.subr.mxu0 0.0
    %3830 = vmatpush1.xpose.msra.mxu0 0.0
    %3831 = vmatprep.subr.mxu0 0.0
    %3832 = vmatpush1.xpose.msra.mxu0 0.0
    %3833 = vmatprep.subr.mxu0 0.0
    %3834 = vmatpush1.xpose.msra.mxu0 0.0
    %3835 = vmatprep.subr.mxu0 0.0
    %3836 = vmatpush1.xpose.msra.mxu0 0.0
    %3837 = vmatprep.subr.mxu0 0.0
    %3838 = vmatpush1.xpose.msra.mxu0 0.0
    %3839 = vmatprep.subr.mxu0 0.0
    %3840 = vmatpush1.xpose.msra.mxu0 0.0
    %3841 = vmatprep.subr.mxu0 0.0
    %3842 = vmatpush1.xpose.msra.mxu0 0.0
    %3843 = vmatprep.subr.mxu0 0.0
    %3844 = vmatpush1.xpose.msra.mxu0 0.0
    %3845 = vmatprep.subr.mxu0 0.0
    %3846 = vmatpush1.xpose.msra.mxu0 0.0
    %3847 = vmatprep.subr.mxu0 0.0
    %3848 = vmatpush1.xpose.msra.mxu0 0.0
    %3849 = vmatprep.subr.mxu0 0.0
    %3850 = vmatpush1.xpose.msra.mxu0 0.0
    %3851 = vmatprep.subr.mxu0 0.0
    %3852 = vmatpush1.xpose.msra.mxu0 0.0
    %3853 = vmatprep.subr.mxu0 0.0
    %3854 = vmatpush1.xpose.msra.mxu0 0.0
    %3855 = vmatprep.subr.mxu0 0.0
    %3856 = vmatpush1.xpose.msra.mxu0 0.0
    %3857 = vmatprep.subr.mxu0 0.0
    %3858 = vmatpush1.xpose.msra.mxu0 0.0
    %3859 = vmatprep.subr.mxu0 0.0
    %3860 = vmatpush1.xpose.msra.mxu0 0.0
    %3861 = vmatprep.subr.mxu0 0.0
    %3862 = vmatpush1.xpose.msra.mxu0 0.0
    %3863 = vmatprep.subr.mxu0 0.0
    %3864 = vmatpush1.xpose.msra.mxu0 0.0
    %3865 = vmatprep.subr.mxu0 0.0
    %3866 = vmatpush1.xpose.msra.mxu0 0.0
    %3867 = vmatprep.subr.mxu0 0.0
    %3868 = vmatpush1.xpose.msra.mxu0 0.0
    %3869 = vmatprep.subr.mxu0 0.0
    %3870 = vmatpush1.xpose.msra.mxu0 0.0
    %3871 = vmatprep.subr.mxu0 0.0
    %3872 = vmatpush1.xpose.msra.mxu0 0.0
    %3873 = vmatprep.subr.mxu0 0.0
    %3874 = vmatpush1.xpose.msra.mxu0 0.0
    %3875 = vmatprep.subr.mxu0 0.0
    %3876 = vmatpush1.xpose.msra.mxu0 0.0
    %3877 = vmatprep.subr.mxu0 0.0
    %3878 = vmatpush1.xpose.msra.mxu0 0.0
    %3879 = vmatprep.subr.mxu0 0.0
    %3880 = vmatpush1.xpose.msra.mxu0 0.0
    %3881 = vmatprep.subr.mxu0 0.0
    %3882 = vmatpush1.xpose.msra.mxu0 0.0
    %3883 = vmatprep.subr.mxu0 0.0
    %3884 = vmatpush1.xpose.msra.mxu0 0.0
    %3885 = vmatprep.subr.mxu0 0.0
    %3886 = vmatpush1.xpose.msra.mxu0 0.0
    %3887 = vmatprep.mubr.f32.mxu0 0.0
    %3888 = vmatmul.mubr.f32.gmra.mrb[0].mxu0 %v3812
    %v3889 = vpop.f32.mrb[0].mxu0
    %v3890 = vadd.f32 %v3808, %v3889
    %v3891 = vpop.f32.mrb[0].mxu0
    %3892 = vdwg.mxu0
    %v3893 = vmul.f32 %v3890, 0.25
    %v3894 = vsel %vm590, 1, 0
    %v3895 = vlaneseq
    %v3896 = vshrl.u32 %v3895, 7
    %v3897 = vsub.s32 0, %v3896
    %v3898 = vrot.slane %v3894, %v3897
    %vm3899 = vcmp.eq.s32.totalorder %v3898, 1
    %v3900 = vsel %vm3899, %v3893, -1e+30
    %vm3901 = vcmask 158720
    %v3902 = vsel %vm3901, %v3900, -inf
    %3903 = vmax.xlane.f32.xlu0 %v3902
    %v3904 = vpop.xlane.xlu0 %3903
    %v3905 = vsub.f32 %v3900, %v3904
    %v3906 = vmul.f32 %v3905, 1.442695
    %v3907 = vpow.pop %v3906
    %v3908 = vsel %vm3899, %v3907, 0.0
    %v3909 = vsel %vm3901, %v3908, 0.0
    %3910 = vadd.xlane.f32.xlu0 %v3909
    %v3911 = vpop.xlane.xlu0 %3910
    %v3912 = vrcp.pop %v3911
    %v3913 = vmul.f32 %v3908, %v3912
    %3914 = vrot.lane.b32.xlu0 %v3704, 112
    %v3915 = vpop.permute.xlu0 %3914
    %3916 = vrot.lane.b32.xlu0 %v3705, 112
    %v3917 = vpop.permute.xlu0 %3916
    %3918 = vrot.lane.b32.xlu0 %v3716, 112
    %v3919 = vpop.permute.xlu0 %3918
    %vm3922 = vcmask 162816
    %v3924 = vsel %vm3922, %v3913, 0
    %vm3926 = vcmask 1043456
    %v3927 = vsel %vm3926, %v3919, 0
    %3929 = vmatprep.subr.mxu0 0.0
    %3930 = vmatpush1.msra.mxu0 %v3915
    %3931 = vmatprep.subr.mxu0 0.0
    %3932 = vmatpush1.msra.mxu0 %v3917
    %3933 = vmatprep.subr.mxu0 0.0
    %3934 = vmatpush1.msra.mxu0 %v3927
    %3935 = vmatprep.subr.mxu0 0.0
    %3936 = vmatpush1.msra.mxu0 0.0
    %3937 = vmatprep.subr.mxu0 0.0
    %3938 = vmatpush1.msra.mxu0 0.0
    %3939 = vmatprep.subr.mxu0 0.0
    %3940 = vmatpush1.msra.mxu0 0.0
    %3941 = vmatprep.subr.mxu0 0.0
    %3942 = vmatpush1.msra.mxu0 0.0
    %3943 = vmatprep.subr.mxu0 0.0
    %3944 = vmatpush1.msra.mxu0 0.0
    %3945 = vmatprep.subr.mxu0 0.0
    %3946 = vmatpush1.msra.mxu0 0.0
    %3947 = vmatprep.subr.mxu0 0.0
    %3948 = vmatpush1.msra.mxu0 0.0
    %3949 = vmatprep.subr.mxu0 0.0
    %3950 = vmatpush1.msra.mxu0 0.0
    %3951 = vmatprep.subr.mxu0 0.0
    %3952 = vmatpush1.msra.mxu0 0.0
    %3953 = vmatprep.subr.mxu0 0.0
    %3954 = vmatpush1.msra.mxu0 0.0
    %3955 = vmatprep.subr.mxu0 0.0
    %3956 = vmatpush1.msra.mxu0 0.0
    %3957 = vmatprep.subr.mxu0 0.0
    %3958 = vmatpush1.msra.mxu0 0.0
    %3959 = vmatprep.subr.mxu0 0.0
    %3960 = vmatpush1.msra.mxu0 0.0
    %3961 = vmatprep.subr.mxu0 0.0
    %3962 = vmatpush1.msra.mxu0 0.0
    %3963 = vmatprep.subr.mxu0 0.0
    %3964 = vmatpush1.msra.mxu0 0.0
    %3965 = vmatprep.subr.mxu0 0.0
    %3966 = vmatpush1.msra.mxu0 0.0
    %3967 = vmatprep.subr.mxu0 0.0
    %3968 = vmatpush1.msra.mxu0 0.0
    %3969 = vmatprep.subr.mxu0 0.0
    %3970 = vmatpush1.msra.mxu0 0.0
    %3971 = vmatprep.subr.mxu0 0.0
    %3972 = vmatpush1.msra.mxu0 0.0
    %3973 = vmatprep.subr.mxu0 0.0
    %3974 = vmatpush1.msra.mxu0 0.0
    %3975 = vmatprep.subr.mxu0 0.0
    %3976 = vmatpush1.msra.mxu0 0.0
    %3977 = vmatprep.subr.mxu0 0.0
    %3978 = vmatpush1.msra.mxu0 0.0
    %3979 = vmatprep.subr.mxu0 0.0
    %3980 = vmatpush1.msra.mxu0 0.0
    %3981 = vmatprep.subr.mxu0 0.0
    %3982 = vmatpush1.msra.mxu0 0.0
    %3983 = vmatprep.subr.mxu0 0.0
    %3984 = vmatpush1.msra.mxu0 0.0
    %3985 = vmatprep.subr.mxu0 0.0
    %3986 = vmatpush1.msra.mxu0 0.0
    %3987 = vmatprep.subr.mxu0 0.0
    %3988 = vmatpush1.msra.mxu0 0.0
    %3989 = vmatprep.subr.mxu0 0.0
    %3990 = vmatpush1.msra.mxu0 0.0
    %3991 = vmatprep.subr.mxu0 0.0
    %3992 = vmatpush1.msra.mxu0 0.0
    %3993 = vmatprep.mubr.f32.mxu0 0.0
    %3994 = vmatmul.mubr.f32.gmra.mrb[0].mxu0 %v3924
    %v3995 = vpop.f32.mrb[0].mxu0
    %v3996 = vadd.f32 0.0, %v3995
    %v3997 = vpop.f32.mrb[0].mxu0
    %3998 = vdwg.mxu0
    %v3999 = vsel %vm3728, %v3519, %v3716
    %4000 = vrot.lane.b32.xlu0 %v3519, 112
    %v4001 = vpop.permute.xlu0 %4000
    %v4003 = vlaneseq
    %v4004 = vshrl.u32 %v4003, 7
    %v4005 = vsub.s32 1, %v4004
    %v4006 = vrot.slane %v3712, %v4005
    %4008 = vrot.lane.b32.xlu0 %v4006, 16
    %v4009 = vpop.permute.xlu0 %4008
    %v4011 = vadd.f32 %v3434, %v4009
    %v4012 = vlaneseq
    %v4013 = vshrl.u32 %v4012, 7
    %v4014 = vsub.s32 1, %v4013
    %v4015 = vrot.slane %v3713, %v4014
    %4017 = vrot.lane.b32.xlu0 %v4015, 16
    %v4018 = vpop.permute.xlu0 %4017
    %v4020 = vadd.f32 %v3434, %v4018
    %4022 = vrot.lane.b32.xlu0 %v4020, 112
    %v4023 = vpop.permute.xlu0 %4022
    %4024 = vrot.lane.b32.xlu0 %v3691, 112
    %v4025 = vpop.permute.xlu0 %4024
    %4026 = vrot.lane.b32.xlu0 %v3696, 112
    %v4027 = vpop.permute.xlu0 %4026
    %4028 = vrot.lane.b32.xlu0 %v3701, 112
    %v4029 = vpop.permute.xlu0 %4028
    %v4030 = vsel %vm3728, %v4023, 0
    %v4032 = vsel %vm3728, %v4025, 0
    %v4034 = vsel %vm3728, %v4027, 0
    %v4036 = vsel %vm3728, %v4029, 0
    %4038 = vmatprep.subr.mxu0 0.0
    %4039 = vmatpush1.xpose.msra.mxu0 %v4032
    %4040 = vmatprep.subr.mxu0 0.0
    %4041 = vmatpush1.xpose.msra.mxu0 %v4034
    %4042 = vmatprep.subr.mxu0 0.0
    %4043 = vmatpush1.xpose.msra.mxu0 %v4036
    %4044 = vmatprep.subr.mxu0 0.0
    %4045 = vmatpush1.xpose.msra.mxu0 0.0
    %4046 = vmatprep.subr.mxu0 0.0
    %4047 = vmatpush1.xpose.msra.mxu0 0.0
    %4048 = vmatprep.subr.mxu0 0.0
    %4049 = vmatpush1.xpose.msra.mxu0 0.0
    %4050 = vmatprep.subr.mxu0 0.0
    %4051 = vmatpush1.xpose.msra.mxu0 0.0
    %4052 = vmatprep.subr.mxu0 0.0
    %4053 = vmatpush1.xpose.msra.mxu0 0.0
    %4054 = vmatprep.subr.mxu0 0.0
    %4055 = vmatpush1.xpose.msra.mxu0 0.0
    %4056 = vmatprep.subr.mxu0 0.0
    %4057 = vmatpush1.xpose.msra.mxu0 0.0
    %4058 = vmatprep.subr.mxu0 0.0
    %4059 = vmatpush1.xpose.msra.mxu0 0.0
    %4060 = vmatprep.subr.mxu0 0.0
    %4061 = vmatpush1.xpose.msra.mxu0 0.0
    %4062 = vmatprep.subr.mxu0 0.0
    %4063 = vmatpush1.xpose.msra.mxu0 0.0
    %4064 = vmatprep.subr.mxu0 0.0
    %4065 = vmatpush1.xpose.msra.mxu0 0.0
    %4066 = vmatprep.subr.mxu0 0.0
    %4067 = vmatpush1.xpose.msra.mxu0 0.0
    %4068 = vmatprep.subr.mxu0 0.0
    %4069 = vmatpush1.xpose.msra.mxu0 0.0
    %4070 = vmatprep.subr.mxu0 0.0
    %4071 = vmatpush1.xpose.msra.mxu0 0.0
    %4072 = vmatprep.subr.mxu0 0.0
    %4073 = vmatpush1.xpose.msra.mxu0 0.0
    %4074 = vmatprep.subr.mxu0 0.0
    %4075 = vmatpush1.xpose.msra.mxu0 0.0
    %4076 = vmatprep.subr.mxu0 0.0
    %4077 = vmatpush1.xpose.msra.mxu0 0.0
    %4078 = vmatprep.subr.mxu0 0.0
    %4079 = vmatpush1.xpose.msra.mxu0 0.0
    %4080 = vmatprep.subr.mxu0 0.0
    %4081 = vmatpush1.xpose.msra.mxu0 0.0
    %4082 = vmatprep.subr.mxu0 0.0
    %4083 = vmatpush1.xpose.msra.mxu0 0.0
    %4084 = vmatprep.subr.mxu0 0.0
    %4085 = vmatpush1.xpose.msra.mxu0 0.0
    %4086 = vmatprep.subr.mxu0 0.0
    %4087 = vmatpush1.xpose.msra.mxu0 0.0
    %4088 = vmatprep.subr.mxu0 0.0
    %4089 = vmatpush1.xpose.msra.mxu0 0.0
    %4090 = vmatprep.subr.mxu0 0.0
    %4091 = vmatpush1.xpose.msra.mxu0 0.0
    %4092 = vmatprep.subr.mxu0 0.0
    %4093 = vmatpush1.xpose.msra.mxu0 0.0
    %4094 = vmatprep.subr.mxu0 0.0
    %4095 = vmatpush1.xpose.msra.mxu0 0.0
    %4096 = vmatprep.subr.mxu0 0.0
    %4097 = vmatpush1.xpose.msra.mxu0 0.0
    %4098 = vmatprep.subr.mxu0 0.0
    %4099 = vmatpush1.xpose.msra.mxu0 0.0
    %4100 = vmatprep.subr.mxu0 0.0
    %4101 = vmatpush1.xpose.msra.mxu0 0.0
    %4102 = vmatprep.mubr.f32.mxu0 0.0
    %4103 = vmatmul.mubr.f32.gmra.mrb[0].mxu0 %v4030
    %v4104 = vpop.f32.mrb[0].mxu0
    %v4105 = vadd.f32 0.0, %v4104
    %v4106 = vpop.f32.mrb[0].mxu0
    %4107 = vdwg.mxu0
    %4109 = vrot.lane.b32.xlu0 %v4011, 112
    %v4110 = vpop.permute.xlu0 %4109
    %v4111 = vsel %vm3728, %v4110, 0
    %v4114 = vsel %vm3728, %v3706, 0
    %v4117 = vsel %vm3728, %v3707, 0
    %v4119 = vsel %vm3728, %v4001, 0
    %4121 = vmatprep.subr.mxu0 0.0
    %4122 = vmatpush1.xpose.msra.mxu0 %v4114
    %4123 = vmatprep.subr.mxu0 0.0
    %4124 = vmatpush1.xpose.msra.mxu0 %v4117
    %4125 = vmatprep.subr.mxu0 0.0
    %4126 = vmatpush1.xpose.msra.mxu0 %v4119
    %4127 = vmatprep.subr.mxu0 0.0
    %4128 = vmatpush1.xpose.msra.mxu0 0.0
    %4129 = vmatprep.subr.mxu0 0.0
    %4130 = vmatpush1.xpose.msra.mxu0 0.0
    %4131 = vmatprep.subr.mxu0 0.0
    %4132 = vmatpush1.xpose.msra.mxu0 0.0
    %4133 = vmatprep.subr.mxu0 0.0
    %4134 = vmatpush1.xpose.msra.mxu0 0.0
    %4135 = vmatprep.subr.mxu0 0.0
    %4136 = vmatpush1.xpose.msra.mxu0 0.0
    %4137 = vmatprep.subr.mxu0 0.0
    %4138 = vmatpush1.xpose.msra.mxu0 0.0
    %4139 = vmatprep.subr.mxu0 0.0
    %4140 = vmatpush1.xpose.msra.mxu0 0.0
    %4141 = vmatprep.subr.mxu0 0.0
    %4142 = vmatpush1.xpose.msra.mxu0 0.0
    %4143 = vmatprep.subr.mxu0 0.0
    %4144 = vmatpush1.xpose.msra.mxu0 0.0
    %4145 = vmatprep.subr.mxu0 0.0
    %4146 = vmatpush1.xpose.msra.mxu0 0.0
    %4147 = vmatprep.subr.mxu0 0.0
    %4148 = vmatpush1.xpose.msra.mxu0 0.0
    %4149 = vmatprep.subr.mxu0 0.0
    %4150 = vmatpush1.xpose.msra.mxu0 0.0
    %4151 = vmatprep.subr.mxu0 0.0
    %4152 = vmatpush1.xpose.msra.mxu0 0.0
    %4153 = vmatprep.subr.mxu0 0.0
    %4154 = vmatpush1.xpose.msra.mxu0 0.0
    %4155 = vmatprep.subr.mxu0 0.0
    %4156 = vmatpush1.xpose.msra.mxu0 0.0
    %4157 = vmatprep.subr.mxu0 0.0
    %4158 = vmatpush1.xpose.msra.mxu0 0.0
    %4159 = vmatprep.subr.mxu0 0.0
    %4160 = vmatpush1.xpose.msra.mxu0 0.0
    %4161 = vmatprep.subr.mxu0 0.0
    %4162 = vmatpush1.xpose.msra.mxu0 0.0
    %4163 = vmatprep.subr.mxu0 0.0
    %4164 = vmatpush1.xpose.msra.mxu0 0.0
    %4165 = vmatprep.subr.mxu0 0.0
    %4166 = vmatpush1.xpose.msra.mxu0 0.0
    %4167 = vmatprep.subr.mxu0 0.0
    %4168 = vmatpush1.xpose.msra.mxu0 0.0
    %4169 = vmatprep.subr.mxu0 0.0
    %4170 = vmatpush1.xpose.msra.mxu0 0.0
    %4171 = vmatprep.subr.mxu0 0.0
    %4172 = vmatpush1.xpose.msra.mxu0 0.0
    %4173 = vmatprep.subr.mxu0 0.0
    %4174 = vmatpush1.xpose.msra.mxu0 0.0
    %4175 = vmatprep.subr.mxu0 0.0
    %4176 = vmatpush1.xpose.msra.mxu0 0.0
    %4177 = vmatprep.subr.mxu0 0.0
    %4178 = vmatpush1.xpose.msra.mxu0 0.0
    %4179 = vmatprep.subr.mxu0 0.0
    %4180 = vmatpush1.xpose.msra.mxu0 0.0
    %4181 = vmatprep.subr.mxu0 0.0
    %4182 = vmatpush1.xpose.msra.mxu0 0.0
    %4183 = vmatprep.subr.mxu0 0.0
    %4184 = vmatpush1.xpose.msra.mxu0 0.0
    %4185 = vmatprep.mubr.f32.mxu0 0.0
    %4186 = vmatmul.mubr.f32.gmra.mrb[0].mxu0 %v4111
    %v4187 = vpop.f32.mrb[0].mxu0
    %v4188 = vadd.f32 %v4105, %v4187
    %v4189 = vpop.f32.mrb[0].mxu0
    %4190 = vdwg.mxu0
    %v4191 = vmul.f32 %v4188, 0.25
    %v4192 = vsel %vm3899, %v4191, -1e+30
    %v4193 = vsel %vm3901, %v4192, -inf
    %4194 = vmax.xlane.f32.xlu0 %v4193
    %v4195 = vpop.xlane.xlu0 %4194
    %v4196 = vsub.f32 %v4192, %v4195
    %v4197 = vmul.f32 %v4196, 1.442695
    %v4198 = vpow.pop %v4197
    %v4199 = vsel %vm3899, %v4198, 0.0
    %v4200 = vsel %vm3901, %v4199, 0.0
    %4201 = vadd.xlane.f32.xlu0 %v4200
    %v4202 = vpop.xlane.xlu0 %4201
    %v4203 = vrcp.pop %v4202
    %v4204 = vmul.f32 %v4199, %v4203
    %4205 = vrot.lane.b32.xlu0 %v3706, 112
    %v4206 = vpop.permute.xlu0 %4205
    %4207 = vrot.lane.b32.xlu0 %v3707, 112
    %v4208 = vpop.permute.xlu0 %4207
    %4209 = vrot.lane.b32.xlu0 %v3604, 112
    %v4210 = vpop.permute.xlu0 %4209
    %v4214 = vsel %vm3922, %v4204, 0
    %v4216 = vsel %vm3926, %v4210, 0
    %4218 = vmatprep.subr.mxu0 0.0
    %4219 = vmatpush1.msra.mxu0 %v4206
    %4220 = vmatprep.subr.mxu0 0.0
    %4221 = vmatpush1.msra.mxu0 %v4208
    %4222 = vmatprep.subr.mxu0 0.0
    %4223 = vmatpush1.msra.mxu0 %v4216
    %4224 = vmatprep.subr.mxu0 0.0
    %4225 = vmatpush1.msra.mxu0 0.0
    %4226 = vmatprep.subr.mxu0 0.0
    %4227 = vmatpush1.msra.mxu0 0.0
    %4228 = vmatprep.subr.mxu0 0.0
    %4229 = vmatpush1.msra.mxu0 0.0
    %4230 = vmatprep.subr.mxu0 0.0
    %4231 = vmatpush1.msra.mxu0 0.0
    %4232 = vmatprep.subr.mxu0 0.0
    %4233 = vmatpush1.msra.mxu0 0.0
    %4234 = vmatprep.subr.mxu0 0.0
    %4235 = vmatpush1.msra.mxu0 0.0
    %4236 = vmatprep.subr.mxu0 0.0
    %4237 = vmatpush1.msra.mxu0 0.0
    %4238 = vmatprep.subr.mxu0 0.0
    %4239 = vmatpush1.msra.mxu0 0.0
    %4240 = vmatprep.subr.mxu0 0.0
    %4241 = vmatpush1.msra.mxu0 0.0
    %4242 = vmatprep.subr.mxu0 0.0
    %4243 = vmatpush1.msra.mxu0 0.0
    %4244 = vmatprep.subr.mxu0 0.0
    %4245 = vmatpush1.msra.mxu0 0.0
    %4246 = vmatprep.subr.mxu0 0.0
    %4247 = vmatpush1.msra.mxu0 0.0
    %4248 = vmatprep.subr.mxu0 0.0
    %4249 = vmatpush1.msra.mxu0 0.0
    %4250 = vmatprep.subr.mxu0 0.0
    %4251 = vmatpush1.msra.mxu0 0.0
    %4252 = vmatprep.subr.mxu0 0.0
    %4253 = vmatpush1.msra.mxu0 0.0
    %4254 = vmatprep.subr.mxu0 0.0
    %4255 = vmatpush1.msra.mxu0 0.0
    %4256 = vmatprep.subr.mxu0 0.0
    %4257 = vmatpush1.msra.mxu0 0.0
    %4258 = vmatprep.subr.mxu0 0.0
    %4259 = vmatpush1.msra.mxu0 0.0
    %4260 = vmatprep.subr.mxu0 0.0
    %4261 = vmatpush1.msra.mxu0 0.0
    %4262 = vmatprep.subr.mxu0 0.0
    %4263 = vmatpush1.msra.mxu0 0.0
    %4264 = vmatprep.subr.mxu0 0.0
    %4265 = vmatpush1.msra.mxu0 0.0
    %4266 = vmatprep.subr.mxu0 0.0
    %4267 = vmatpush1.msra.mxu0 0.0
    %4268 = vmatprep.subr.mxu0 0.0
    %4269 = vmatpush1.msra.mxu0 0.0
    %4270 = vmatprep.subr.mxu0 0.0
    %4271 = vmatpush1.msra.mxu0 0.0
    %4272 = vmatprep.subr.mxu0 0.0
    %4273 = vmatpush1.msra.mxu0 0.0
    %4274 = vmatprep.subr.mxu0 0.0
    %4275 = vmatpush1.msra.mxu0 0.0
    %4276 = vmatprep.subr.mxu0 0.0
    %4277 = vmatpush1.msra.mxu0 0.0
    %4278 = vmatprep.subr.mxu0 0.0
    %4279 = vmatpush1.msra.mxu0 0.0
    %4280 = vmatprep.subr.mxu0 0.0
    %4281 = vmatpush1.msra.mxu0 0.0
    %4282 = vmatprep.mubr.f32.mxu0 0.0
    %4283 = vmatmul.mubr.f32.gmra.mrb[0].mxu0 %v4214
    %v4284 = vpop.f32.mrb[0].mxu0
    %v4285 = vadd.f32 0.0, %v4284
    %v4286 = vpop.f32.mrb[0].mxu0
    %4287 = vdwg.mxu0
    %v4288 = vsel %vm3728, %v4001, %v3604
    %4289 = vrot.lane.b32.xlu0 %v3519, 96
    %v4290 = vpop.permute.xlu0 %4289
    %v4293 = vlaneseq
    %v4294 = vshrl.u32 %v4293, 7
    %v4295 = vsub.s32 2, %v4294
    %v4296 = vrot.slane %v3712, %v4295
    %4298 = vrot.lane.b32.xlu0 %v4296, 32
    %v4299 = vpop.permute.xlu0 %4298
    %v4301 = vadd.f32 %v3434, %v4299
    %v4302 = vlaneseq
    %v4303 = vshrl.u32 %v4302, 7
    %v4304 = vsub.s32 2, %v4303
    %v4305 = vrot.slane %v3713, %v4304
    %4307 = vrot.lane.b32.xlu0 %v4305, 32
    %v4308 = vpop.permute.xlu0 %4307
    %v4310 = vadd.f32 %v3434, %v4308
    %4312 = vrot.lane.b32.xlu0 %v4310, 96
    %v4313 = vpop.permute.xlu0 %4312
    %4314 = vrot.lane.b32.xlu0 %v3691, 96
    %v4315 = vpop.permute.xlu0 %4314
    %4316 = vrot.lane.b32.xlu0 %v3696, 96
    %v4317 = vpop.permute.xlu0 %4316
    %4318 = vrot.lane.b32.xlu0 %v3701, 96
    %v4319 = vpop.permute.xlu0 %4318
    %v4320 = vsel %vm3728, %v4313, 0
    %v4322 = vsel %vm3728, %v4315, 0
    %v4324 = vsel %vm3728, %v4317, 0
    %v4326 = vsel %vm3728, %v4319, 0
    %4328 = vmatprep.subr.mxu0 0.0
    %4329 = vmatpush1.xpose.msra.mxu0 %v4322
    %4330 = vmatprep.subr.mxu0 0.0
    %4331 = vmatpush1.xpose.msra.mxu0 %v4324
    %4332 = vmatprep.subr.mxu0 0.0
    %4333 = vmatpush1.xpose.msra.mxu0 %v4326
    %4334 = vmatprep.subr.mxu0 0.0
    %4335 = vmatpush1.xpose.msra.mxu0 0.0
    %4336 = vmatprep.subr.mxu0 0.0
    %4337 = vmatpush1.xpose.msra.mxu0 0.0
    %4338 = vmatprep.subr.mxu0 0.0
    %4339 = vmatpush1.xpose.msra.mxu0 0.0
    %4340 = vmatprep.subr.mxu0 0.0
    %4341 = vmatpush1.xpose.msra.mxu0 0.0
    %4342 = vmatprep.subr.mxu0 0.0
    %4343 = vmatpush1.xpose.msra.mxu0 0.0
    %4344 = vmatprep.subr.mxu0 0.0
    %4345 = vmatpush1.xpose.msra.mxu0 0.0
    %4346 = vmatprep.subr.mxu0 0.0
    %4347 = vmatpush1.xpose.msra.mxu0 0.0
    %4348 = vmatprep.subr.mxu0 0.0
    %4349 = vmatpush1.xpose.msra.mxu0 0.0
    %4350 = vmatprep.subr.mxu0 0.0
    %4351 = vmatpush1.xpose.msra.mxu0 0.0
    %4352 = vmatprep.subr.mxu0 0.0
    %4353 = vmatpush1.xpose.msra.mxu0 0.0
    %4354 = vmatprep.subr.mxu0 0.0
    %4355 = vmatpush1.xpose.msra.mxu0 0.0
    %4356 = vmatprep.subr.mxu0 0.0
    %4357 = vmatpush1.xpose.msra.mxu0 0.0
    %4358 = vmatprep.subr.mxu0 0.0
    %4359 = vmatpush1.xpose.msra.mxu0 0.0
    %4360 = vmatprep.subr.mxu0 0.0
    %4361 = vmatpush1.xpose.msra.mxu0 0.0
    %4362 = vmatprep.subr.mxu0 0.0
    %4363 = vmatpush1.xpose.msra.mxu0 0.0
    %4364 = vmatprep.subr.mxu0 0.0
    %4365 = vmatpush1.xpose.msra.mxu0 0.0
    %4366 = vmatprep.subr.mxu0 0.0
    %4367 = vmatpush1.xpose.msra.mxu0 0.0
    %4368 = vmatprep.subr.mxu0 0.0
    %4369 = vmatpush1.xpose.msra.mxu0 0.0
    %4370 = vmatprep.subr.mxu0 0.0
    %4371 = vmatpush1.xpose.msra.mxu0 0.0
    %4372 = vmatprep.subr.mxu0 0.0
    %4373 = vmatpush1.xpose.msra.mxu0 0.0
    %4374 = vmatprep.subr.mxu0 0.0
    %4375 = vmatpush1.xpose.msra.mxu0 0.0
    %4376 = vmatprep.subr.mxu0 0.0
    %4377 = vmatpush1.xpose.msra.mxu0 0.0
    %4378 = vmatprep.subr.mxu0 0.0
    %4379 = vmatpush1.xpose.msra.mxu0 0.0
    %4380 = vmatprep.subr.mxu0 0.0
    %4381 = vmatpush1.xpose.msra.mxu0 0.0
    %4382 = vmatprep.subr.mxu0 0.0
    %4383 = vmatpush1.xpose.msra.mxu0 0.0
    %4384 = vmatprep.subr.mxu0 0.0
    %4385 = vmatpush1.xpose.msra.mxu0 0.0
    %4386 = vmatprep.subr.mxu0 0.0
    %4387 = vmatpush1.xpose.msra.mxu0 0.0
    %4388 = vmatprep.subr.mxu0 0.0
    %4389 = vmatpush1.xpose.msra.mxu0 0.0
    %4390 = vmatprep.subr.mxu0 0.0
    %4391 = vmatpush1.xpose.msra.mxu0 0.0
    %4392 = vmatprep.mubr.f32.mxu0 0.0
    %4393 = vmatmul.mubr.f32.gmra.mrb[0].mxu0 %v4320
    %v4394 = vpop.f32.mrb[0].mxu0
    %v4395 = vadd.f32 0.0, %v4394
    %v4396 = vpop.f32.mrb[0].mxu0
    %4397 = vdwg.mxu0
    %4399 = vrot.lane.b32.xlu0 %v4301, 96
    %v4400 = vpop.permute.xlu0 %4399
    %v4401 = vsel %vm3728, %v4400, 0
    %v4404 = vsel %vm3728, %v3708, 0
    %v4407 = vsel %vm3728, %v3709, 0
    %v4409 = vsel %vm3728, %v4290, 0
    %4411 = vmatprep.subr.mxu0 0.0
    %4412 = vmatpush1.xpose.msra.mxu0 %v4404
    %4413 = vmatprep.subr.mxu0 0.0
    %4414 = vmatpush1.xpose.msra.mxu0 %v4407
    %4415 = vmatprep.subr.mxu0 0.0
    %4416 = vmatpush1.xpose.msra.mxu0 %v4409
    %4417 = vmatprep.subr.mxu0 0.0
    %4418 = vmatpush1.xpose.msra.mxu0 0.0
    %4419 = vmatprep.subr.mxu0 0.0
    %4420 = vmatpush1.xpose.msra.mxu0 0.0
    %4421 = vmatprep.subr.mxu0 0.0
    %4422 = vmatpush1.xpose.msra.mxu0 0.0
    %4423 = vmatprep.subr.mxu0 0.0
    %4424 = vmatpush1.xpose.msra.mxu0 0.0
    %4425 = vmatprep.subr.mxu0 0.0
    %4426 = vmatpush1.xpose.msra.mxu0 0.0
    %4427 = vmatprep.subr.mxu0 0.0
    %4428 = vmatpush1.xpose.msra.mxu0 0.0
    %4429 = vmatprep.subr.mxu0 0.0
    %4430 = vmatpush1.xpose.msra.mxu0 0.0
    %4431 = vmatprep.subr.mxu0 0.0
    %4432 = vmatpush1.xpose.msra.mxu0 0.0
    %4433 = vmatprep.subr.mxu0 0.0
    %4434 = vmatpush1.xpose.msra.mxu0 0.0
    %4435 = vmatprep.subr.mxu0 0.0
    %4436 = vmatpush1.xpose.msra.mxu0 0.0
    %4437 = vmatprep.subr.mxu0 0.0
    %4438 = vmatpush1.xpose.msra.mxu0 0.0
    %4439 = vmatprep.subr.mxu0 0.0
    %4440 = vmatpush1.xpose.msra.mxu0 0.0
    %4441 = vmatprep.subr.mxu0 0.0
    %4442 = vmatpush1.xpose.msra.mxu0 0.0
    %4443 = vmatprep.subr.mxu0 0.0
    %4444 = vmatpush1.xpose.msra.mxu0 0.0
    %4445 = vmatprep.subr.mxu0 0.0
    %4446 = vmatpush1.xpose.msra.mxu0 0.0
    %4447 = vmatprep.subr.mxu0 0.0
    %4448 = vmatpush1.xpose.msra.mxu0 0.0
    %4449 = vmatprep.subr.mxu0 0.0
    %4450 = vmatpush1.xpose.msra.mxu0 0.0
    %4451 = vmatprep.subr.mxu0 0.0
    %4452 = vmatpush1.xpose.msra.mxu0 0.0
    %4453 = vmatprep.subr.mxu0 0.0
    %4454 = vmatpush1.xpose.msra.mxu0 0.0
    %4455 = vmatprep.subr.mxu0 0.0
    %4456 = vmatpush1.xpose.msra.mxu0 0.0
    %4457 = vmatprep.subr.mxu0 0.0
    %4458 = vmatpush1.xpose.msra.mxu0 0.0
    %4459 = vmatprep.subr.mxu0 0.0
    %4460 = vmatpush1.xpose.msra.mxu0 0.0
    %4461 = vmatprep.subr.mxu0 0.0
    %4462 = vmatpush1.xpose.msra.mxu0 0.0
    %4463 = vmatprep.subr.mxu0 0.0
    %4464 = vmatpush1.xpose.msra.mxu0 0.0
    %4465 = vmatprep.subr.mxu0 0.0
    %4466 = vmatpush1.xpose.msra.mxu0 0.0
    %4467 = vmatprep.subr.mxu0 0.0
    %4468 = vmatpush1.xpose.msra.mxu0 0.0
    %4469 = vmatprep.subr.mxu0 0.0
    %4470 = vmatpush1.xpose.msra.mxu0 0.0
    %4471 = vmatprep.subr.mxu0 0.0
    %4472 = vmatpush1.xpose.msra.mxu0 0.0
    %4473 = vmatprep.subr.mxu0 0.0
    %4474 = vmatpush1.xpose.msra.mxu0 0.0
    %4475 = vmatprep.mubr.f32.mxu0 0.0
    %4476 = vmatmul.mubr.f32.gmra.mrb[0].mxu0 %v4401
    %v4477 = vpop.f32.mrb[0].mxu0
    %v4478 = vadd.f32 %v4395, %v4477
    %v4479 = vpop.f32.mrb[0].mxu0
    %4480 = vdwg.mxu0
    %v4481 = vmul.f32 %v4478, 0.25
    %v4482 = vsel %vm3899, %v4481, -1e+30
    %v4483 = vsel %vm3901, %v4482, -inf
    %4484 = vmax.xlane.f32.xlu0 %v4483
    %v4485 = vpop.xlane.xlu0 %4484
    %v4486 = vsub.f32 %v4482, %v4485
    %v4487 = vmul.f32 %v4486, 1.442695
    %v4488 = vpow.pop %v4487
    %v4489 = vsel %vm3899, %v4488, 0.0
    %v4490 = vsel %vm3901, %v4489, 0.0
    %4491 = vadd.xlane.f32.xlu0 %v4490
    %v4492 = vpop.xlane.xlu0 %4491
    %v4493 = vrcp.pop %v4492
    %v4494 = vmul.f32 %v4489, %v4493
    %4495 = vrot.lane.b32.xlu0 %v3708, 112
    %v4496 = vpop.permute.xlu0 %4495
    %4497 = vrot.lane.b32.xlu0 %v3709, 112
    %v4498 = vpop.permute.xlu0 %4497
    %4499 = vrot.lane.b32.xlu0 %v4210, 112
    %v4500 = vpop.permute.xlu0 %4499
    %v4504 = vsel %vm3922, %v4494, 0
    %v4506 = vsel %vm3926, %v4500, 0
    %4508 = vmatprep.subr.mxu0 0.0
    %4509 = vmatpush1.msra.mxu0 %v4496
    %4510 = vmatprep.subr.mxu0 0.0
    %4511 = vmatpush1.msra.mxu0 %v4498
    %4512 = vmatprep.subr.mxu0 0.0
    %4513 = vmatpush1.msra.mxu0 %v4506
    %4514 = vmatprep.subr.mxu0 0.0
    %4515 = vmatpush1.msra.mxu0 0.0
    %4516 = vmatprep.subr.mxu0 0.0
    %4517 = vmatpush1.msra.mxu0 0.0
    %4518 = vmatprep.subr.mxu0 0.0
    %4519 = vmatpush1.msra.mxu0 0.0
    %4520 = vmatprep.subr.mxu0 0.0
    %4521 = vmatpush1.msra.mxu0 0.0
    %4522 = vmatprep.subr.mxu0 0.0
    %4523 = vmatpush1.msra.mxu0 0.0
    %4524 = vmatprep.subr.mxu0 0.0
    %4525 = vmatpush1.msra.mxu0 0.0
    %4526 = vmatprep.subr.mxu0 0.0
    %4527 = vmatpush1.msra.mxu0 0.0
    %4528 = vmatprep.subr.mxu0 0.0
    %4529 = vmatpush1.msra.mxu0 0.0
    %4530 = vmatprep.subr.mxu0 0.0
    %4531 = vmatpush1.msra.mxu0 0.0
    %4532 = vmatprep.subr.mxu0 0.0
    %4533 = vmatpush1.msra.mxu0 0.0
    %4534 = vmatprep.subr.mxu0 0.0
    %4535 = vmatpush1.msra.mxu0 0.0
    %4536 = vmatprep.subr.mxu0 0.0
    %4537 = vmatpush1.msra.mxu0 0.0
    %4538 = vmatprep.subr.mxu0 0.0
    %4539 = vmatpush1.msra.mxu0 0.0
    %4540 = vmatprep.subr.mxu0 0.0
    %4541 = vmatpush1.msra.mxu0 0.0
    %4542 = vmatprep.subr.mxu0 0.0
    %4543 = vmatpush1.msra.mxu0 0.0
    %4544 = vmatprep.subr.mxu0 0.0
    %4545 = vmatpush1.msra.mxu0 0.0
    %4546 = vmatprep.subr.mxu0 0.0
    %4547 = vmatpush1.msra.mxu0 0.0
    %4548 = vmatprep.subr.mxu0 0.0
    %4549 = vmatpush1.msra.mxu0 0.0
    %4550 = vmatprep.subr.mxu0 0.0
    %4551 = vmatpush1.msra.mxu0 0.0
    %4552 = vmatprep.subr.mxu0 0.0
    %4553 = vmatpush1.msra.mxu0 0.0
    %4554 = vmatprep.subr.mxu0 0.0
    %4555 = vmatpush1.msra.mxu0 0.0
    %4556 = vmatprep.subr.mxu0 0.0
    %4557 = vmatpush1.msra.mxu0 0.0
    %4558 = vmatprep.subr.mxu0 0.0
    %4559 = vmatpush1.msra.mxu0 0.0
    %4560 = vmatprep.subr.mxu0 0.0
    %4561 = vmatpush1.msra.mxu0 0.0
    %4562 = vmatprep.subr.mxu0 0.0
    %4563 = vmatpush1.msra.mxu0 0.0
    %4564 = vmatprep.subr.mxu0 0.0
    %4565 = vmatpush1.msra.mxu0 0.0
    %4566 = vmatprep.subr.mxu0 0.0
    %4567 = vmatpush1.msra.mxu0 0.0
    %4568 = vmatprep.subr.mxu0 0.0
    %4569 = vmatpush1.msra.mxu0 0.0
    %4570 = vmatprep.subr.mxu0 0.0
    %4571 = vmatpush1.msra.mxu0 0.0
    %4572 = vmatprep.mubr.f32.mxu0 0.0
    %4573 = vmatmul.mubr.f32.gmra.mrb[0].mxu0 %v4504
    %v4574 = vpop.f32.mrb[0].mxu0
    %v4575 = vadd.f32 0.0, %v4574
    %v4576 = vpop.f32.mrb[0].mxu0
    %4577 = vdwg.mxu0
    %v4578 = vsel %vm3728, %v4290, %v4210
    %4579 = vrot.lane.b32.xlu0 %v3519, 80
    %v4580 = vpop.permute.xlu0 %4579
    %4582 = vrot.lane.b32.xlu0 %v3604, 96
    %v4583 = vpop.permute.xlu0 %4582
    %v4585 = vlaneseq
    %v4586 = vshrl.u32 %v4585, 7
    %v4587 = vsub.s32 3, %v4586
    %v4588 = vrot.slane %v3712, %v4587
    %4590 = vrot.lane.b32.xlu0 %v4588, 48
    %v4591 = vpop.permute.xlu0 %4590
    %v4593 = vadd.f32 %v3434, %v4591
    %v4594 = vlaneseq
    %v4595 = vshrl.u32 %v4594, 7
    %v4596 = vsub.s32 3, %v4595
    %v4597 = vrot.slane %v3713, %v4596
    %4599 = vrot.lane.b32.xlu0 %v4597, 48
    %v4600 = vpop.permute.xlu0 %4599
    %v4602 = vadd.f32 %v3434, %v4600
    %4604 = vrot.lane.b32.xlu0 %v4602, 80
    %v4605 = vpop.permute.xlu0 %4604
    %4606 = vrot.lane.b32.xlu0 %v3691, 80
    %v4607 = vpop.permute.xlu0 %4606
    %4608 = vrot.lane.b32.xlu0 %v3696, 80
    %v4609 = vpop.permute.xlu0 %4608
    %4610 = vrot.lane.b32.xlu0 %v3701, 80
    %v4611 = vpop.permute.xlu0 %4610
    %v4612 = vsel %vm3728, %v4605, 0
    %v4614 = vsel %vm3728, %v4607, 0
    %v4616 = vsel %vm3728, %v4609, 0
    %v4618 = vsel %vm3728, %v4611, 0
    %4620 = vmatprep.subr.mxu0 0.0
    %4621 = vmatpush1.xpose.msra.mxu0 %v4614
    %4622 = vmatprep.subr.mxu0 0.0
    %4623 = vmatpush1.xpose.msra.mxu0 %v4616
    %4624 = vmatprep.subr.mxu0 0.0
    %4625 = vmatpush1.xpose.msra.mxu0 %v4618
    %4626 = vmatprep.subr.mxu0 0.0
    %4627 = vmatpush1.xpose.msra.mxu0 0.0
    %4628 = vmatprep.subr.mxu0 0.0
    %4629 = vmatpush1.xpose.msra.mxu0 0.0
    %4630 = vmatprep.subr.mxu0 0.0
    %4631 = vmatpush1.xpose.msra.mxu0 0.0
    %4632 = vmatprep.subr.mxu0 0.0
    %4633 = vmatpush1.xpose.msra.mxu0 0.0
    %4634 = vmatprep.subr.mxu0 0.0
    %4635 = vmatpush1.xpose.msra.mxu0 0.0
    %4636 = vmatprep.subr.mxu0 0.0
    %4637 = vmatpush1.xpose.msra.mxu0 0.0
    %4638 = vmatprep.subr.mxu0 0.0
    %4639 = vmatpush1.xpose.msra.mxu0 0.0
    %4640 = vmatprep.subr.mxu0 0.0
    %4641 = vmatpush1.xpose.msra.mxu0 0.0
    %4642 = vmatprep.subr.mxu0 0.0
    %4643 = vmatpush1.xpose.msra.mxu0 0.0
    %4644 = vmatprep.subr.mxu0 0.0
    %4645 = vmatpush1.xpose.msra.mxu0 0.0
    %4646 = vmatprep.subr.mxu0 0.0
    %4647 = vmatpush1.xpose.msra.mxu0 0.0
    %4648 = vmatprep.subr.mxu0 0.0
    %4649 = vmatpush1.xpose.msra.mxu0 0.0
    %4650 = vmatprep.subr.mxu0 0.0
    %4651 = vmatpush1.xpose.msra.mxu0 0.0
    %4652 = vmatprep.subr.mxu0 0.0
    %4653 = vmatpush1.xpose.msra.mxu0 0.0
    %4654 = vmatprep.subr.mxu0 0.0
    %4655 = vmatpush1.xpose.msra.mxu0 0.0
    %4656 = vmatprep.subr.mxu0 0.0
    %4657 = vmatpush1.xpose.msra.mxu0 0.0
    %4658 = vmatprep.subr.mxu0 0.0
    %4659 = vmatpush1.xpose.msra.mxu0 0.0
    %4660 = vmatprep.subr.mxu0 0.0
    %4661 = vmatpush1.xpose.msra.mxu0 0.0
    %4662 = vmatprep.subr.mxu0 0.0
    %4663 = vmatpush1.xpose.msra.mxu0 0.0
    %4664 = vmatprep.subr.mxu0 0.0
    %4665 = vmatpush1.xpose.msra.mxu0 0.0
    %4666 = vmatprep.subr.mxu0 0.0
    %4667 = vmatpush1.xpose.msra.mxu0 0.0
    %4668 = vmatprep.subr.mxu0 0.0
    %4669 = vmatpush1.xpose.msra.mxu0 0.0
    %4670 = vmatprep.subr.mxu0 0.0
    %4671 = vmatpush1.xpose.msra.mxu0 0.0
    %4672 = vmatprep.subr.mxu0 0.0
    %4673 = vmatpush1.xpose.msra.mxu0 0.0
    %4674 = vmatprep.subr.mxu0 0.0
    %4675 = vmatpush1.xpose.msra.mxu0 0.0
    %4676 = vmatprep.subr.mxu0 0.0
    %4677 = vmatpush1.xpose.msra.mxu0 0.0
    %4678 = vmatprep.subr.mxu0 0.0
    %4679 = vmatpush1.xpose.msra.mxu0 0.0
    %4680 = vmatprep.subr.mxu0 0.0
    %4681 = vmatpush1.xpose.msra.mxu0 0.0
    %4682 = vmatprep.subr.mxu0 0.0
    %4683 = vmatpush1.xpose.msra.mxu0 0.0
    %4684 = vmatprep.mubr.f32.mxu0 0.0
    %4685 = vmatmul.mubr.f32.gmra.mrb[0].mxu0 %v4612
    %v4686 = vpop.f32.mrb[0].mxu0
    %v4687 = vadd.f32 0.0, %v4686
    %v4688 = vpop.f32.mrb[0].mxu0
    %4689 = vdwg.mxu0
    %4691 = vrot.lane.b32.xlu0 %v4593, 80
    %v4692 = vpop.permute.xlu0 %4691
    %v4693 = vsel %vm3728, %v4692, 0
    %v4696 = vsel %vm3728, %v3710, 0
    %v4699 = vsel %vm3728, %v3711, 0
    %v4701 = vsel %vm3728, %v4580, 0
    %4703 = vmatprep.subr.mxu0 0.0
    %4704 = vmatpush1.xpose.msra.mxu0 %v4696
    %4705 = vmatprep.subr.mxu0 0.0
    %4706 = vmatpush1.xpose.msra.mxu0 %v4699
    %4707 = vmatprep.subr.mxu0 0.0
    %4708 = vmatpush1.xpose.msra.mxu0 %v4701
    %4709 = vmatprep.subr.mxu0 0.0
    %4710 = vmatpush1.xpose.msra.mxu0 0.0
    %4711 = vmatprep.subr.mxu0 0.0
    %4712 = vmatpush1.xpose.msra.mxu0 0.0
    %4713 = vmatprep.subr.mxu0 0.0
    %4714 = vmatpush1.xpose.msra.mxu0 0.0
    %4715 = vmatprep.subr.mxu0 0.0
    %4716 = vmatpush1.xpose.msra.mxu0 0.0
    %4717 = vmatprep.subr.mxu0 0.0
    %4718 = vmatpush1.xpose.msra.mxu0 0.0
    %4719 = vmatprep.subr.mxu0 0.0
    %4720 = vmatpush1.xpose.msra.mxu0 0.0
    %4721 = vmatprep.subr.mxu0 0.0
    %4722 = vmatpush1.xpose.msra.mxu0 0.0
    %4723 = vmatprep.subr.mxu0 0.0
    %4724 = vmatpush1.xpose.msra.mxu0 0.0
    %4725 = vmatprep.subr.mxu0 0.0
    %4726 = vmatpush1.xpose.msra.mxu0 0.0
    %4727 = vmatprep.subr.mxu0 0.0
    %4728 = vmatpush1.xpose.msra.mxu0 0.0
    %4729 = vmatprep.subr.mxu0 0.0
    %4730 = vmatpush1.xpose.msra.mxu0 0.0
    %4731 = vmatprep.subr.mxu0 0.0
    %4732 = vmatpush1.xpose.msra.mxu0 0.0
    %4733 = vmatprep.subr.mxu0 0.0
    %4734 = vmatpush1.xpose.msra.mxu0 0.0
    %4735 = vmatprep.subr.mxu0 0.0
    %4736 = vmatpush1.xpose.msra.mxu0 0.0
    %4737 = vmatprep.subr.mxu0 0.0
    %4738 = vmatpush1.xpose.msra.mxu0 0.0
    %4739 = vmatprep.subr.mxu0 0.0
    %4740 = vmatpush1.xpose.msra.mxu0 0.0
    %4741 = vmatprep.subr.mxu0 0.0
    %4742 = vmatpush1.xpose.msra.mxu0 0.0
    %4743 = vmatprep.subr.mxu0 0.0
    %4744 = vmatpush1.xpose.msra.mxu0 0.0
    %4745 = vmatprep.subr.mxu0 0.0
    %4746 = vmatpush1.xpose.msra.mxu0 0.0
    %4747 = vmatprep.subr.mxu0 0.0
    %4748 = vmatpush1.xpose.msra.mxu0 0.0
    %4749 = vmatprep.subr.mxu0 0.0
    %4750 = vmatpush1.xpose.msra.mxu0 0.0
    %4751 = vmatprep.subr.mxu0 0.0
    %4752 = vmatpush1.xpose.msra.mxu0 0.0
    %4753 = vmatprep.subr.mxu0 0.0
    %4754 = vmatpush1.xpose.msra.mxu0 0.0
    %4755 = vmatprep.subr.mxu0 0.0
    %4756 = vmatpush1.xpose.msra.mxu0 0.0
    %4757 = vmatprep.subr.mxu0 0.0
    %4758 = vmatpush1.xpose.msra.mxu0 0.0
    %4759 = vmatprep.subr.mxu0 0.0
    %4760 = vmatpush1.xpose.msra.mxu0 0.0
    %4761 = vmatprep.subr.mxu0 0.0
    %4762 = vmatpush1.xpose.msra.mxu0 0.0
    %4763 = vmatprep.subr.mxu0 0.0
    %4764 = vmatpush1.xpose.msra.mxu0 0.0
    %4765 = vmatprep.subr.mxu0 0.0
    %4766 = vmatpush1.xpose.msra.mxu0 0.0
    %4767 = vmatprep.mubr.f32.mxu0 0.0
    %4768 = vmatmul.mubr.f32.gmra.mrb[0].mxu0 %v4693
    %v4769 = vpop.f32.mrb[0].mxu0
    %v4770 = vadd.f32 %v4687, %v4769
    %v4771 = vpop.f32.mrb[0].mxu0
    %4772 = vdwg.mxu0
    %v4773 = vmul.f32 %v4770, 0.25
    %v4774 = vsel %vm3899, %v4773, -1e+30
    %v4775 = vsel %vm3901, %v4774, -inf
    %4776 = vmax.xlane.f32.xlu0 %v4775
    %v4777 = vpop.xlane.xlu0 %4776
    %v4778 = vsub.f32 %v4774, %v4777
    %v4779 = vmul.f32 %v4778, 1.442695
    %v4780 = vpow.pop %v4779
    %v4781 = vsel %vm3899, %v4780, 0.0
    %v4782 = vsel %vm3901, %v4781, 0.0
    %4783 = vadd.xlane.f32.xlu0 %v4782
    %v4784 = vpop.xlane.xlu0 %4783
    %v4785 = vrcp.pop %v4784
    %v4786 = vmul.f32 %v4781, %v4785
    %4787 = vrot.lane.b32.xlu0 %v3710, 112
    %v4788 = vpop.permute.xlu0 %4787
    %4789 = vrot.lane.b32.xlu0 %v3711, 112
    %v4790 = vpop.permute.xlu0 %4789
    %4791 = vrot.lane.b32.xlu0 %v4583, 112
    %v4792 = vpop.permute.xlu0 %4791
    %v4796 = vsel %vm3922, %v4786, 0
    %v4798 = vsel %vm3926, %v4792, 0
    %4800 = vmatprep.subr.mxu0 0.0
    %4801 = vmatpush1.msra.mxu0 %v4788
    %4802 = vmatprep.subr.mxu0 0.0
    %4803 = vmatpush1.msra.mxu0 %v4790
    %4804 = vmatprep.subr.mxu0 0.0
    %4805 = vmatpush1.msra.mxu0 %v4798
    %4806 = vmatprep.subr.mxu0 0.0
    %4807 = vmatpush1.msra.mxu0 0.0
    %4808 = vmatprep.subr.mxu0 0.0
    %4809 = vmatpush1.msra.mxu0 0.0
    %4810 = vmatprep.subr.mxu0 0.0
    %4811 = vmatpush1.msra.mxu0 0.0
    %4812 = vmatprep.subr.mxu0 0.0
    %4813 = vmatpush1.msra.mxu0 0.0
    %4814 = vmatprep.subr.mxu0 0.0
    %4815 = vmatpush1.msra.mxu0 0.0
    %4816 = vmatprep.subr.mxu0 0.0
    %4817 = vmatpush1.msra.mxu0 0.0
    %4818 = vmatprep.subr.mxu0 0.0
    %4819 = vmatpush1.msra.mxu0 0.0
    %4820 = vmatprep.subr.mxu0 0.0
    %4821 = vmatpush1.msra.mxu0 0.0
    %4822 = vmatprep.subr.mxu0 0.0
    %4823 = vmatpush1.msra.mxu0 0.0
    %4824 = vmatprep.subr.mxu0 0.0
    %4825 = vmatpush1.msra.mxu0 0.0
    %4826 = vmatprep.subr.mxu0 0.0
    %4827 = vmatpush1.msra.mxu0 0.0
    %4828 = vmatprep.subr.mxu0 0.0
    %4829 = vmatpush1.msra.mxu0 0.0
    %4830 = vmatprep.subr.mxu0 0.0
    %4831 = vmatpush1.msra.mxu0 0.0
    %4832 = vmatprep.subr.mxu0 0.0
    %4833 = vmatpush1.msra.mxu0 0.0
    %4834 = vmatprep.subr.mxu0 0.0
    %4835 = vmatpush1.msra.mxu0 0.0
    %4836 = vmatprep.subr.mxu0 0.0
    %4837 = vmatpush1.msra.mxu0 0.0
    %4838 = vmatprep.subr.mxu0 0.0
    %4839 = vmatpush1.msra.mxu0 0.0
    %4840 = vmatprep.subr.mxu0 0.0
    %4841 = vmatpush1.msra.mxu0 0.0
    %4842 = vmatprep.subr.mxu0 0.0
    %4843 = vmatpush1.msra.mxu0 0.0
    %4844 = vmatprep.subr.mxu0 0.0
    %4845 = vmatpush1.msra.mxu0 0.0
    %4846 = vmatprep.subr.mxu0 0.0
    %4847 = vmatpush1.msra.mxu0 0.0
    %4848 = vmatprep.subr.mxu0 0.0
    %4849 = vmatpush1.msra.mxu0 0.0
    %4850 = vmatprep.subr.mxu0 0.0
    %4851 = vmatpush1.msra.mxu0 0.0
    %4852 = vmatprep.subr.mxu0 0.0
    %4853 = vmatpush1.msra.mxu0 0.0
    %4854 = vmatprep.subr.mxu0 0.0
    %4855 = vmatpush1.msra.mxu0 0.0
    %4856 = vmatprep.subr.mxu0 0.0
    %4857 = vmatpush1.msra.mxu0 0.0
    %4858 = vmatprep.subr.mxu0 0.0
    %4859 = vmatpush1.msra.mxu0 0.0
    %4860 = vmatprep.subr.mxu0 0.0
    %4861 = vmatpush1.msra.mxu0 0.0
    %4862 = vmatprep.subr.mxu0 0.0
    %4863 = vmatpush1.msra.mxu0 0.0
    %4864 = vmatprep.mubr.f32.mxu0 0.0
    %4865 = vmatmul.mubr.f32.gmra.mrb[0].mxu0 %v4796
    %v4866 = vpop.f32.mrb[0].mxu0
    %v4867 = vadd.f32 0.0, %v4866
    %v4868 = vpop.f32.mrb[0].mxu0
    %4869 = vdwg.mxu0
    %v4870 = vsel %vm3728, %v4580, %v4583
    %vm4871 = vcmask 261124
    %4872 = vst.msk [vmem:[#allocation46 - $0x4] sm:$0xf0] %vm4871, %v3704
    %vm4873 = vcmask 261120
    %4874 = vst.msk [vmem:[#allocation46 + $0x4] sm:$0xff] %vm4873, %v3705
    %vm4875 = vcmask 257024
    %4876 = vst.msk [vmem:[#allocation46 + $0xc] sm:$0xf] %vm4875, %v3999
    %4877 = vst.msk [vmem:[#allocation46 + $0xc] sm:$0xf0] %vm4871, %v3706
    %4878 = vst.msk [vmem:[#allocation46 + $0x14] sm:$0xff] %vm4873, %v3707
    %4879 = vst.msk [vmem:[#allocation46 + $0x1c] sm:$0xf] %vm4875, %v4288
    %4880 = vst.msk [vmem:[#allocation46 + $0x1c] sm:$0xf0] %vm4871, %v3708
    %4881 = vst.msk [vmem:[#allocation46 + $0x24] sm:$0xff] %vm4873, %v3709
    %4882 = vst.msk [vmem:[#allocation46 + $0x2c] sm:$0xf] %vm4875, %v4578
    %4883 = vst.msk [vmem:[#allocation46 + $0x2c] sm:$0xf0] %vm4871, %v3710
    %4884 = vst.msk [vmem:[#allocation46 + $0x34] sm:$0xff] %vm4873, %v3711
    %4885 = vst.msk [vmem:[#allocation46 + $0x3c] sm:$0xf] %vm4875, %v4870
    %4887 = vrot.lane.b32.xlu0 %v4285, 16
    %v4888 = vpop.permute.xlu0 %4887
    %4891 = vrot.lane.b32.xlu0 %v4575, 32
    %v4892 = vpop.permute.xlu0 %4891
    %4895 = vrot.lane.b32.xlu0 %v4867, 48
    %v4896 = vpop.permute.xlu0 %4895
    %v4898 = vsel %vm3728, %v3996, %v4888
    %v4899 = vsel %vm4873, %v4898, %v4892
    %vm4900 = vcmask 392192
    %v4901 = vsel %vm4900, %v4899, %v4896
    %v4902 = vld [vmem:[%s97] sm:$0xff]
    %v4903 = vld [vmem:[%s97 + $0x8] sm:$0xff]
    %v4904 = vld [vmem:[%s97 + $0x10] sm:$0xff]
    %v4905 = vld [vmem:[%s97 + $0x18] sm:$0xff]
    %v4906 = vld [vmem:[%s97 + $0x20] sm:$0xff]
    %v4907 = vld [vmem:[%s97 + $0x28] sm:$0xff]
    %v4908 = vld [vmem:[%s97 + $0x30] sm:$0xff]
    %v4909 = vld [vmem:[%s97 + $0x38] sm:$0xff]
    %v4911 = vsel %vm776, %v4901, 0
    %4913 = vmatprep.subr.mxu0 0.0
    %4914 = vmatpush1.msra.mxu0 %v4902
    %4915 = vmatprep.subr.mxu0 0.0
    %4916 = vmatpush1.msra.mxu0 %v4903
    %4917 = vmatprep.subr.mxu0 0.0
    %4918 = vmatpush1.msra.mxu0 %v4904
    %4919 = vmatprep.subr.mxu0 0.0
    %4920 = vmatpush1.msra.mxu0 %v4905
    %4921 = vmatprep.subr.mxu0 0.0
    %4922 = vmatpush1.msra.mxu0 %v4906
    %4923 = vmatprep.subr.mxu0 0.0
    %4924 = vmatpush1.msra.mxu0 %v4907
    %4925 = vmatprep.subr.mxu0 0.0
    %4926 = vmatpush1.msra.mxu0 %v4908
    %4927 = vmatprep.subr.mxu0 0.0
    %4928 = vmatpush1.msra.mxu0 %v4909
    %4929 = vmatprep.subr.mxu0 0.0
    %4930 = vmatpush1.msra.mxu0 0.0
    %4931 = vmatprep.subr.mxu0 0.0
    %4932 = vmatpush1.msra.mxu0 0.0
    %4933 = vmatprep.subr.mxu0 0.0
    %4934 = vmatpush1.msra.mxu0 0.0
    %4935 = vmatprep.subr.mxu0 0.0
    %4936 = vmatpush1.msra.mxu0 0.0
    %4937 = vmatprep.subr.mxu0 0.0
    %4938 = vmatpush1.msra.mxu0 0.0
    %4939 = vmatprep.subr.mxu0 0.0
    %4940 = vmatpush1.msra.mxu0 0.0
    %4941 = vmatprep.subr.mxu0 0.0
    %4942 = vmatpush1.msra.mxu0 0.0
    %4943 = vmatprep.subr.mxu0 0.0
    %4944 = vmatpush1.msra.mxu0 0.0
    %4945 = vmatprep.subr.mxu0 0.0
    %4946 = vmatpush1.msra.mxu0 0.0
    %4947 = vmatprep.subr.mxu0 0.0
    %4948 = vmatpush1.msra.mxu0 0.0
    %4949 = vmatprep.subr.mxu0 0.0
    %4950 = vmatpush1.msra.mxu0 0.0
    %4951 = vmatprep.subr.mxu0 0.0
    %4952 = vmatpush1.msra.mxu0 0.0
    %4953 = vmatprep.subr.mxu0 0.0
    %4954 = vmatpush1.msra.mxu0 0.0
    %4955 = vmatprep.subr.mxu0 0.0
    %4956 = vmatpush1.msra.mxu0 0.0
    %4957 = vmatprep.subr.mxu0 0.0
    %4958 = vmatpush1.msra.mxu0 0.0
    %4959 = vmatprep.subr.mxu0 0.0
    %4960 = vmatpush1.msra.mxu0 0.0
    %4961 = vmatprep.subr.mxu0 0.0
    %4962 = vmatpush1.msra.mxu0 0.0
    %4963 = vmatprep.subr.mxu0 0.0
    %4964 = vmatpush1.msra.mxu0 0.0
    %4965 = vmatprep.subr.mxu0 0.0
    %4966 = vmatpush1.msra.mxu0 0.0
    %4967 = vmatprep.subr.mxu0 0.0
    %4968 = vmatpush1.msra.mxu0 0.0
    %4969 = vmatprep.subr.mxu0 0.0
    %4970 = vmatpush1.msra.mxu0 0.0
    %4971 = vmatprep.subr.mxu0 0.0
    %4972 = vmatpush1.msra.mxu0 0.0
    %4973 = vmatprep.subr.mxu0 0.0
    %4974 = vmatpush1.msra.mxu0 0.0
    %4975 = vmatprep.subr.mxu0 0.0
    %4976 = vmatpush1.msra.mxu0 0.0
    %4977 = vmatprep.mubr.f32.mxu0 0.0
    %4978 = vmatmul.mubr.f32.gmra.mrb[0].mxu0 %v4911
    %v4979 = vpop.f32.mrb[0].mxu0
    %v4980 = vadd.f32 0.0, %v4979
    %v4981 = vpop.f32.mrb[0].mxu0
    %4982 = vdwg.mxu0
    %v4983 = vadd.f32 %v3319, %v4980
    %v4984 = vld [vmem:[#allocation16] sm:$0x1]
    %v4986 = vlaneseq
    %v4987 = vshrl.u32 %v4986, 7
    %v4988 = vsub.s32 0, %v4987
    %v4989 = vrot.slane %v4984, %v4988
    %v4991 = vadd.f32 %v4983, %v4989
    %v4992 = vld [vmem:[#allocation29] sm:$0x1]
    %v4993 = vld [vmem:[#allocation28] sm:$0x1]
    %v4994 = vsel %vm3101, %v4991, 0.0
    %4995 = vadd.xlane.f32.xlu0 %v4994
    %v4996 = vpop.xlane.xlu0 %4995
    %v4997 = vmul.f32 %v4996, %v3105
    %v4998 = vsub.f32 %v4991, %v4997
    %v4999 = vmul.f32 %v4998, %v4998
    %v5000 = vsel %vm3101, %v4999, 0.0
    %5001 = vadd.xlane.f32.xlu0 %v5000
    %v5002 = vpop.xlane.xlu0 %5001
    %v5003 = vmul.f32 %v5002, %v3105
    %v5004 = vadd.f32 %v5003, 1e-05
    %v5005 = vrsqrt.pop %v5004
    %v5006 = vmul.f32 %v4998, %v5005
    %v5008 = vlaneseq
    %v5009 = vshrl.u32 %v5008, 7
    %v5010 = vsub.s32 0, %v5009
    %v5011 = vrot.slane %v4992, %v5010
    %v5013 = vmul.f32 %v5006, %v5011
    %v5015 = vlaneseq
    %v5016 = vshrl.u32 %v5015, 7
    %v5017 = vsub.s32 0, %v5016
    %v5018 = vrot.slane %v4993, %v5017
    %v5020 = vadd.f32 %v5013, %v5018
    %v5021 = vld [vmem:[%s3] sm:$0x3f]
    %v5023 = vrot.slane %v5020, 2
    %vm5025 = vcmask 1045504
    %v5026 = vsel %vm5025, %v5021, %v5023
    %vm5027 = vcmask 523268
    %5028 = vst.msk [vmem:[%s109 - $0x4] sm:$0xf0] %vm5027, %v5026
    %vm5029 = vcmask 517120
    %5030 = vst.msk [vmem:[%s109 + $0x4] sm:$0x3] %vm5029, %v5023
    %v5031 = vld [vmem:[%s89] sm:$0xff]
    %v5032 = vld [vmem:[%s89 + $0x8] sm:$0xff]
    %v5033 = vld [vmem:[%s89 + $0x10] sm:$0xff]
    %v5034 = vld [vmem:[%s89 + $0x18] sm:$0xff]
    %v5035 = vld [vmem:[%s89 + $0x20] sm:$0xff]
    %v5036 = vld [vmem:[%s89 + $0x28] sm:$0xff]
    %v5037 = vld [vmem:[%s89 + $0x30] sm:$0xff]
    %v5038 = vld [vmem:[%s89 + $0x38] sm:$0xff]
    %v5039 = vld [vmem:[%s87] sm:$0x1]
    %v5041 = vlaneseq
    %v5042 = vshrl.u32 %v5041, 7
    %v5043 = vsub.s32 0, %v5042
    %v5044 = vrot.slane %v5039, %v5043
    %v5047 = vsel %vm776, %v5026, 0
    %v5049 = vsel %vm776, %v5023, 0
    %5051 = vmatprep.subr.mxu0 0.0
    %5052 = vmatpush1.msra.mxu0 %v5031
    %5053 = vmatprep.subr.mxu0 0.0
    %5054 = vmatpush1.msra.mxu0 %v5032
    %5055 = vmatprep.subr.mxu0 0.0
    %5056 = vmatpush1.msra.mxu0 %v5033
    %5057 = vmatprep.subr.mxu0 0.0
    %5058 = vmatpush1.msra.mxu0 %v5034
    %5059 = vmatprep.subr.mxu0 0.0
    %5060 = vmatpush1.msra.mxu0 %v5035
    %5061 = vmatprep.subr.mxu0 0.0
    %5062 = vmatpush1.msra.mxu0 %v5036
    %5063 = vmatprep.subr.mxu0 0.0
    %5064 = vmatpush1.msra.mxu0 %v5037
    %5065 = vmatprep.subr.mxu0 0.0
    %5066 = vmatpush1.msra.mxu0 %v5038
    %5067 = vmatprep.subr.mxu0 0.0
    %5068 = vmatpush1.msra.mxu0 0.0
    %5069 = vmatprep.subr.mxu0 0.0
    %5070 = vmatpush1.msra.mxu0 0.0
    %5071 = vmatprep.subr.mxu0 0.0
    %5072 = vmatpush1.msra.mxu0 0.0
    %5073 = vmatprep.subr.mxu0 0.0
    %5074 = vmatpush1.msra.mxu0 0.0
    %5075 = vmatprep.subr.mxu0 0.0
    %5076 = vmatpush1.msra.mxu0 0.0
    %5077 = vmatprep.subr.mxu0 0.0
    %5078 = vmatpush1.msra.mxu0 0.0
    %5079 = vmatprep.subr.mxu0 0.0
    %5080 = vmatpush1.msra.mxu0 0.0
    %5081 = vmatprep.subr.mxu0 0.0
    %5082 = vmatpush1.msra.mxu0 0.0
    %5083 = vmatprep.subr.mxu0 0.0
    %5084 = vmatpush1.msra.mxu0 0.0
    %5085 = vmatprep.subr.mxu0 0.0
    %5086 = vmatpush1.msra.mxu0 0.0
    %5087 = vmatprep.subr.mxu0 0.0
    %5088 = vmatpush1.msra.mxu0 0.0
    %5089 = vmatprep.subr.mxu0 0.0
    %5090 = vmatpush1.msra.mxu0 0.0
    %5091 = vmatprep.subr.mxu0 0.0
    %5092 = vmatpush1.msra.mxu0 0.0
    %5093 = vmatprep.subr.mxu0 0.0
    %5094 = vmatpush1.msra.mxu0 0.0
    %5095 = vmatprep.subr.mxu0 0.0
    %5096 = vmatpush1.msra.mxu0 0.0
    %5097 = vmatprep.subr.mxu0 0.0
    %5098 = vmatpush1.msra.mxu0 0.0
    %5099 = vmatprep.subr.mxu0 0.0
    %5100 = vmatpush1.msra.mxu0 0.0
    %5101 = vmatprep.subr.mxu0 0.0
    %5102 = vmatpush1.msra.mxu0 0.0
    %5103 = vmatprep.subr.mxu0 0.0
    %5104 = vmatpush1.msra.mxu0 0.0
    %5105 = vmatprep.subr.mxu0 0.0
    %5106 = vmatpush1.msra.mxu0 0.0
    %5107 = vmatprep.subr.mxu0 0.0
    %5108 = vmatpush1.msra.mxu0 0.0
    %5109 = vmatprep.subr.mxu0 0.0
    %5110 = vmatpush1.msra.mxu0 0.0
    %5111 = vmatprep.subr.mxu0 0.0
    %5112 = vmatpush1.msra.mxu0 0.0
    %5113 = vmatprep.subr.mxu0 0.0
    %5114 = vmatpush1.msra.mxu0 0.0
    %5115 = vmatprep.mubr.f32.mxu0 0.0
    %5116 = vmatmul.mubr.f32.gmra.mrb[0].mxu0 %v5047
    %v5117 = vpop.f32.mrb[0].mxu0
    %v5118 = vadd.f32 %v5044, %v5117
    %v5119 = vpop.f32.mrb[0].mxu0
    %5120 = vmatprep.mubr.f32.mxu0 0.0
    %5121 = vmatmul.mubr.f32.gmra.mrb[0].mxu0 %v5049
    %v5122 = vpop.f32.mrb[0].mxu0
    %v5123 = vadd.f32 %v5044, %v5122
    %v5124 = vpop.f32.mrb[0].mxu0
    %5125 = vdwg.mxu0
    %v5126 = vxor.u32 %v5118, 2147483648
    %v5127 = vxor.u32 %v5123, 2147483648
    %v5128 = vmul.f32 %v5126, 1.442695
    %v5129 = vpow.pop %v5128
    %v5130 = vmul.f32 %v5127, 1.442695
    %v5131 = vpow.pop %v5130
    %v5132 = vadd.f32 %v5129, 1.0
    %v5133 = vadd.f32 %v5131, 1.0
    %v5134 = vrcp.pop %v5132
    %v5135 = vmul.f32 1.0, %v5134
    %v5136 = vrcp.pop %v5133
    %v5137 = vmul.f32 1.0, %v5136
    %5140 = vrot.lane.b32.xlu0 %v5135, 64
    %v5141 = vpop.permute.xlu0 %5140
    %5142 = vrot.lane.b32.xlu0 %v5137, 64
    %v5143 = vpop.permute.xlu0 %5142
    %v5146 = vmul.f32 %v5118, %v5141
    %v5147 = vmul.f32 %v5123, %v5143
    %v5148 = vld [vmem:[%s45] sm:$0x7f]
    %v5149 = vlaneseq
    %v5150 = vshrl.u32 %v5149, 7
    %v5151 = vsub.s32 0, %v5150
    %v5152 = vrot.slane %v5148, %v5151
    %v5153 = vmul.f32 %v5146, %v5152
    %v5154 = vadd.f32 %v5153, 0.0
    %v5155 = vlaneseq
    %v5156 = vshrl.u32 %v5155, 7
    %v5157 = vsub.s32 1, %v5156
    %v5158 = vrot.slane %v5148, %v5157
    %v5159 = vmul.f32 %v5146, %v5158
    %v5161 = vrot.slane %v5159, 1
    %v5163 = vadd.f32 %v5154, %v5161
    %v5164 = vlaneseq
    %v5165 = vshrl.u32 %v5164, 7
    %v5166 = vsub.s32 2, %v5165
    %v5167 = vrot.slane %v5148, %v5166
    %v5168 = vmul.f32 %v5146, %v5167
    %v5170 = vrot.slane %v5168, 2
    %v5172 = vadd.f32 %v5163, %v5170
    %v5173 = vlaneseq
    %v5174 = vshrl.u32 %v5173, 7
    %v5175 = vsub.s32 3, %v5174
    %v5176 = vrot.slane %v5148, %v5175
    %v5177 = vmul.f32 %v5146, %v5176
    %v5179 = vrot.slane %v5177, 3
    %v5181 = vadd.f32 %v5172, %v5179
    %v5182 = vlaneseq
    %v5183 = vshrl.u32 %v5182, 7
    %v5184 = vsub.s32 4, %v5183
    %v5185 = vrot.slane %v5148, %v5184
    %v5186 = vmul.f32 %v5146, %v5185
    %v5188 = vrot.slane %v5186, 4
    %v5190 = vadd.f32 %v5181, %v5188
    %v5191 = vlaneseq
    %v5192 = vshrl.u32 %v5191, 7
    %v5193 = vsub.s32 5, %v5192
    %v5194 = vrot.slane %v5148, %v5193
    %v5195 = vmul.f32 %v5146, %v5194
    %v5196 = vmul.f32 %v5147, %v5194
    %v5199 = vrot.slane %v5195, 5
    %v5200 = vrot.slane %v5196, 5
    %v5201 = vsel %vm772, %v5199, %v5200
    %v5203 = vadd.f32 %v5190, %v5201
    %v5204 = vlaneseq
    %v5205 = vshrl.u32 %v5204, 7
    %v5206 = vsub.s32 6, %v5205
    %v5207 = vrot.slane %v5148, %v5206
    %v5208 = vmul.f32 %v5146, %v5207
    %v5209 = vmul.f32 %v5147, %v5207
    %v5212 = vrot.slane %v5208, 6
    %v5213 = vrot.slane %v5209, 6
    %v5214 = vsel %vm1349, %v5212, %v5213
    %v5216 = vadd.f32 %v5203, %v5214
    %v5217 = vld [vmem:[#allocation20] sm:$0x1]
    %v5219 = vlaneseq
    %v5220 = vshrl.u32 %v5219, 7
    %v5221 = vsub.s32 0, %v5220
    %v5222 = vrot.slane %v5217, %v5221
    %v5224 = vadd.f32 %v5216, %v5222
    %v5225 = vld [vmem:[#allocation13] sm:$0x1]
    %v5227 = vlaneseq
    %v5228 = vshrl.u32 %v5227, 7
    %v5229 = vsub.s32 0, %v5228
    %v5230 = vrot.slane %v5225, %v5229
    %v5232 = vmul.f32 %v5224, %v5230
    %v5233 = vld [vmem:[#allocation14] sm:$0x1]
    %v5235 = vlaneseq
    %v5236 = vshrl.u32 %v5235, 7
    %v5237 = vsub.s32 0, %v5236
    %v5238 = vrot.slane %v5233, %v5237
    %v5240 = vadd.f32 %v5232, %v5238
    %v5241 = vxor.u32 %v5240, 2147483648
    %v5242 = vmul.f32 %v5241, 1.442695
    %v5243 = vpow.pop %v5242
    %v5244 = vadd.f32 %v5243, 1.0
    %v5245 = vrcp.pop %v5244
    %v5246 = vmul.f32 1.0, %v5245
    %v5247 = vmul.f32 %v5240, %v5246
    %v5248 = vld [vmem:[%s93] sm:$0xff]
    %v5249 = vld [vmem:[%s93 + $0x8] sm:$0xff]
    %v5250 = vld [vmem:[%s93 + $0x10] sm:$0xff]
    %v5251 = vld [vmem:[%s93 + $0x18] sm:$0xff]
    %v5252 = vld [vmem:[%s93 + $0x20] sm:$0xff]
    %v5253 = vld [vmem:[%s93 + $0x28] sm:$0xff]
    %v5254 = vld [vmem:[%s93 + $0x30] sm:$0xff]
    %v5255 = vld [vmem:[%s93 + $0x38] sm:$0xff]
    %v5256 = vld [vmem:[%s91] sm:$0x1]
    %v5258 = vlaneseq
    %v5259 = vshrl.u32 %v5258, 7
    %v5260 = vsub.s32 0, %v5259
    %v5261 = vrot.slane %v5256, %v5260
    %v5264 = vsel %vm776, %v5247, 0
    %5266 = vmatprep.subr.mxu0 0.0
    %5267 = vmatpush1.msra.mxu0 %v5248
    %5268 = vmatprep.subr.mxu0 0.0
    %5269 = vmatpush1.msra.mxu0 %v5249
    %5270 = vmatprep.subr.mxu0 0.0
    %5271 = vmatpush1.msra.mxu0 %v5250
    %5272 = vmatprep.subr.mxu0 0.0
    %5273 = vmatpush1.msra.mxu0 %v5251
    %5274 = vmatprep.subr.mxu0 0.0
    %5275 = vmatpush1.msra.mxu0 %v5252
    %5276 = vmatprep.subr.mxu0 0.0
    %5277 = vmatpush1.msra.mxu0 %v5253
    %5278 = vmatprep.subr.mxu0 0.0
    %5279 = vmatpush1.msra.mxu0 %v5254
    %5280 = vmatprep.subr.mxu0 0.0
    %5281 = vmatpush1.msra.mxu0 %v5255
    %5282 = vmatprep.subr.mxu0 0.0
    %5283 = vmatpush1.msra.mxu0 0.0
    %5284 = vmatprep.subr.mxu0 0.0
    %5285 = vmatpush1.msra.mxu0 0.0
    %5286 = vmatprep.subr.mxu0 0.0
    %5287 = vmatpush1.msra.mxu0 0.0
    %5288 = vmatprep.subr.mxu0 0.0
    %5289 = vmatpush1.msra.mxu0 0.0
    %5290 = vmatprep.subr.mxu0 0.0
    %5291 = vmatpush1.msra.mxu0 0.0
    %5292 = vmatprep.subr.mxu0 0.0
    %5293 = vmatpush1.msra.mxu0 0.0
    %5294 = vmatprep.subr.mxu0 0.0
    %5295 = vmatpush1.msra.mxu0 0.0
    %5296 = vmatprep.subr.mxu0 0.0
    %5297 = vmatpush1.msra.mxu0 0.0
    %5298 = vmatprep.subr.mxu0 0.0
    %5299 = vmatpush1.msra.mxu0 0.0
    %5300 = vmatprep.subr.mxu0 0.0
    %5301 = vmatpush1.msra.mxu0 0.0
    %5302 = vmatprep.subr.mxu0 0.0
    %5303 = vmatpush1.msra.mxu0 0.0
    %5304 = vmatprep.subr.mxu0 0.0
    %5305 = vmatpush1.msra.mxu0 0.0
    %5306 = vmatprep.subr.mxu0 0.0
    %5307 = vmatpush1.msra.mxu0 0.0
    %5308 = vmatprep.subr.mxu0 0.0
    %5309 = vmatpush1.msra.mxu0 0.0
    %5310 = vmatprep.subr.mxu0 0.0
    %5311 = vmatpush1.msra.mxu0 0.0
    %5312 = vmatprep.subr.mxu0 0.0
    %5313 = vmatpush1.msra.mxu0 0.0
    %5314 = vmatprep.subr.mxu0 0.0
    %5315 = vmatpush1.msra.mxu0 0.0
    %5316 = vmatprep.subr.mxu0 0.0
    %5317 = vmatpush1.msra.mxu0 0.0
    %5318 = vmatprep.subr.mxu0 0.0
    %5319 = vmatpush1.msra.mxu0 0.0
    %5320 = vmatprep.subr.mxu0 0.0
    %5321 = vmatpush1.msra.mxu0 0.0
    %5322 = vmatprep.subr.mxu0 0.0
    %5323 = vmatpush1.msra.mxu0 0.0
    %5324 = vmatprep.subr.mxu0 0.0
    %5325 = vmatpush1.msra.mxu0 0.0
    %5326 = vmatprep.subr.mxu0 0.0
    %5327 = vmatpush1.msra.mxu0 0.0
    %5328 = vmatprep.subr.mxu0 0.0
    %5329 = vmatpush1.msra.mxu0 0.0
    %5330 = vmatprep.mubr.f32.mxu0 0.0
    %5331 = vmatmul.mubr.f32.gmra.mrb[0].mxu0 %v5264
    %v5332 = vpop.f32.mrb[0].mxu0
    %v5333 = vadd.f32 %v5261, %v5332
    %v5334 = vpop.f32.mrb[0].mxu0
    %5335 = vdwg.mxu0
    %v5336 = vadd.f32 %v4991, %v5333
    %v5337 = vld [vmem:[#allocation32] sm:$0x1]
    %v5338 = vld [vmem:[#allocation31] sm:$0x1]
    %v5339 = vsel %vm3101, %v5336, 0.0
    %5340 = vadd.xlane.f32.xlu0 %v5339
    %v5341 = vpop.xlane.xlu0 %5340
    %v5342 = vmul.f32 %v5341, %v3105
    %v5343 = vsub.f32 %v5336, %v5342
    %v5344 = vmul.f32 %v5343, %v5343
    %v5345 = vsel %vm3101, %v5344, 0.0
    %5346 = vadd.xlane.f32.xlu0 %v5345
    %v5347 = vpop.xlane.xlu0 %5346
    %v5348 = vmul.f32 %v5347, %v3105
    %v5349 = vadd.f32 %v5348, 1e-05
    %v5350 = vrsqrt.pop %v5349
    %v5351 = vmul.f32 %v5343, %v5350
    %v5353 = vlaneseq
    %v5354 = vshrl.u32 %v5353, 7
    %v5355 = vsub.s32 0, %v5354
    %v5356 = vrot.slane %v5337, %v5355
    %v5358 = vmul.f32 %v5351, %v5356
    %v5360 = vlaneseq
    %v5361 = vshrl.u32 %v5360, 7
    %v5362 = vsub.s32 0, %v5361
    %v5363 = vrot.slane %v5338, %v5362
    %v5365 = vadd.f32 %v5358, %v5363
    %v5366 = vld [vmem:[%s51] sm:$0xff]
    %v5367 = vld [vmem:[%s51 + $0x8] sm:$0xff]
    %v5368 = vld [vmem:[%s51 + $0x10] sm:$0xff]
    %v5369 = vld [vmem:[%s51 + $0x18] sm:$0xff]
    %v5370 = vld [vmem:[%s51 + $0x20] sm:$0xff]
    %v5371 = vld [vmem:[%s51 + $0x28] sm:$0xff]
    %v5372 = vld [vmem:[%s51 + $0x30] sm:$0xff]
    %v5373 = vld [vmem:[%s51 + $0x38] sm:$0xff]
    %v5374 = vld [vmem:[#allocation22] sm:$0x1]
    %v5376 = vlaneseq
    %v5377 = vshrl.u32 %v5376, 7
    %v5378 = vsub.s32 0, %v5377
    %v5379 = vrot.slane %v5374, %v5378
    %v5382 = vsel %vm776, %v5365, 0
    %5384 = vmatprep.subr.mxu0 0.0
    %5385 = vmatpush1.msra.mxu0 %v5366
    %5386 = vmatprep.subr.mxu0 0.0
    %5387 = vmatpush1.msra.mxu0 %v5367
    %5388 = vmatprep.subr.mxu0 0.0
    %5389 = vmatpush1.msra.mxu0 %v5368
    %5390 = vmatprep.subr.mxu0 0.0
    %5391 = vmatpush1.msra.mxu0 %v5369
    %5392 = vmatprep.subr.mxu0 0.0
    %5393 = vmatpush1.msra.mxu0 %v5370
    %5394 = vmatprep.subr.mxu0 0.0
    %5395 = vmatpush1.msra.mxu0 %v5371
    %5396 = vmatprep.subr.mxu0 0.0
    %5397 = vmatpush1.msra.mxu0 %v5372
    %5398 = vmatprep.subr.mxu0 0.0
    %5399 = vmatpush1.msra.mxu0 %v5373
    %5400 = vmatprep.subr.mxu0 0.0
    %5401 = vmatpush1.msra.mxu0 0.0
    %5402 = vmatprep.subr.mxu0 0.0
    %5403 = vmatpush1.msra.mxu0 0.0
    %5404 = vmatprep.subr.mxu0 0.0
    %5405 = vmatpush1.msra.mxu0 0.0
    %5406 = vmatprep.subr.mxu0 0.0
    %5407 = vmatpush1.msra.mxu0 0.0
    %5408 = vmatprep.subr.mxu0 0.0
    %5409 = vmatpush1.msra.mxu0 0.0
    %5410 = vmatprep.subr.mxu0 0.0
    %5411 = vmatpush1.msra.mxu0 0.0
    %5412 = vmatprep.subr.mxu0 0.0
    %5413 = vmatpush1.msra.mxu0 0.0
    %5414 = vmatprep.subr.mxu0 0.0
    %5415 = vmatpush1.msra.mxu0 0.0
    %5416 = vmatprep.subr.mxu0 0.0
    %5417 = vmatpush1.msra.mxu0 0.0
    %5418 = vmatprep.subr.mxu0 0.0
    %5419 = vmatpush1.msra.mxu0 0.0
    %5420 = vmatprep.subr.mxu0 0.0
    %5421 = vmatpush1.msra.mxu0 0.0
    %5422 = vmatprep.subr.mxu0 0.0
    %5423 = vmatpush1.msra.mxu0 0.0
    %5424 = vmatprep.subr.mxu0 0.0
    %5425 = vmatpush1.msra.mxu0 0.0
    %5426 = vmatprep.subr.mxu0 0.0
    %5427 = vmatpush1.msra.mxu0 0.0
    %5428 = vmatprep.subr.mxu0 0.0
    %5429 = vmatpush1.msra.mxu0 0.0
    %5430 = vmatprep.subr.mxu0 0.0
    %5431 = vmatpush1.msra.mxu0 0.0
    %5432 = vmatprep.subr.mxu0 0.0
    %5433 = vmatpush1.msra.mxu0 0.0
    %5434 = vmatprep.subr.mxu0 0.0
    %5435 = vmatpush1.msra.mxu0 0.0
    %5436 = vmatprep.subr.mxu0 0.0
    %5437 = vmatpush1.msra.mxu0 0.0
    %5438 = vmatprep.subr.mxu0 0.0
    %5439 = vmatpush1.msra.mxu0 0.0
    %5440 = vmatprep.subr.mxu0 0.0
    %5441 = vmatpush1.msra.mxu0 0.0
    %5442 = vmatprep.subr.mxu0 0.0
    %5443 = vmatpush1.msra.mxu0 0.0
    %5444 = vmatprep.subr.mxu0 0.0
    %5445 = vmatpush1.msra.mxu0 0.0
    %5446 = vmatprep.subr.mxu0 0.0
    %5447 = vmatpush1.msra.mxu0 0.0
    %5448 = vmatprep.mubr.f32.mxu0 0.0
    %5449 = vmatmul.mubr.f32.gmra.mrb[0].mxu0 %v5382
    %v5450 = vpop.f32.mrb[0].mxu0
    %v5451 = vadd.f32 %v5379, %v5450
    %v5452 = vpop.f32.mrb[0].mxu0
    %5453 = vdwg.mxu0
    %v5454 = vxor.u32 %v5451, 2147483648
    %v5455 = vmul.f32 %v5454, 1.442695
    %v5456 = vpow.pop %v5455
    %v5457 = vadd.f32 %v5456, 1.0
    %v5458 = vrcp.pop %v5457
    %v5459 = vmul.f32 1.0, %v5458
    %v5460 = vmul.f32 %v5451, %v5459
    %v5461 = vld [vmem:[%s53] sm:$0xff]
    %v5462 = vld [vmem:[%s53 + $0x8] sm:$0xff]
    %v5463 = vld [vmem:[%s53 + $0x10] sm:$0xff]
    %v5464 = vld [vmem:[%s53 + $0x18] sm:$0xff]
    %v5465 = vld [vmem:[%s53 + $0x20] sm:$0xff]
    %v5466 = vld [vmem:[%s53 + $0x28] sm:$0xff]
    %v5467 = vld [vmem:[%s53 + $0x30] sm:$0xff]
    %v5468 = vld [vmem:[%s53 + $0x38] sm:$0xff]
    %v5469 = vld [vmem:[%s53 + $0x40] sm:$0xff]
    %v5470 = vld [vmem:[%s53 + $0x48] sm:$0xff]
    %v5471 = vld [vmem:[%s53 + $0x50] sm:$0xff]
    %v5472 = vld [vmem:[%s53 + $0x58] sm:$0xff]
    %v5473 = vld [vmem:[%s53 + $0x60] sm:$0xff]
    %v5474 = vld [vmem:[%s53 + $0x68] sm:$0xff]
    %v5475 = vld [vmem:[%s53 + $0x70] sm:$0xff]
    %v5476 = vld [vmem:[%s53 + $0x78] sm:$0xff]
    %v5477 = vld [vmem:[#allocation23] sm:$0x1]
    %v5479 = vlaneseq
    %v5480 = vshrl.u32 %v5479, 7
    %v5481 = vsub.s32 0, %v5480
    %v5482 = vrot.slane %v5477, %v5481
    %5484 = vmatprep.subr.mxu0 0.0
    %5485 = vmatpush1.msra.mxu0 %v5461
    %5486 = vmatprep.subr.mxu0 0.0
    %5487 = vmatpush1.msra.mxu0 %v5462
    %5488 = vmatprep.subr.mxu0 0.0
    %5489 = vmatpush1.msra.mxu0 %v5463
    %5490 = vmatprep.subr.mxu0 0.0
    %5491 = vmatpush1.msra.mxu0 %v5464
    %5492 = vmatprep.subr.mxu0 0.0
    %5493 = vmatpush1.msra.mxu0 %v5465
    %5494 = vmatprep.subr.mxu0 0.0
    %5495 = vmatpush1.msra.mxu0 %v5466
    %5496 = vmatprep.subr.mxu0 0.0
    %5497 = vmatpush1.msra.mxu0 %v5467
    %5498 = vmatprep.subr.mxu0 0.0
    %5499 = vmatpush1.msra.mxu0 %v5468
    %5500 = vmatprep.subr.mxu0 0.0
    %5501 = vmatpush1.msra.mxu0 %v5469
    %5502 = vmatprep.subr.mxu0 0.0
    %5503 = vmatpush1.msra.mxu0 %v5470
    %5504 = vmatprep.subr.mxu0 0.0
    %5505 = vmatpush1.msra.mxu0 %v5471
    %5506 = vmatprep.subr.mxu0 0.0
    %5507 = vmatpush1.msra.mxu0 %v5472
    %5508 = vmatprep.subr.mxu0 0.0
    %5509 = vmatpush1.msra.mxu0 %v5473
    %5510 = vmatprep.subr.mxu0 0.0
    %5511 = vmatpush1.msra.mxu0 %v5474
    %5512 = vmatprep.subr.mxu0 0.0
    %5513 = vmatpush1.msra.mxu0 %v5475
    %5514 = vmatprep.subr.mxu0 0.0
    %5515 = vmatpush1.msra.mxu0 %v5476
    %5516 = vmatprep.subr.mxu0 0.0
    %5517 = vmatpush1.msra.mxu0 0.0
    %5518 = vmatprep.subr.mxu0 0.0
    %5519 = vmatpush1.msra.mxu0 0.0
    %5520 = vmatprep.subr.mxu0 0.0
    %5521 = vmatpush1.msra.mxu0 0.0
    %5522 = vmatprep.subr.mxu0 0.0
    %5523 = vmatpush1.msra.mxu0 0.0
    %5524 = vmatprep.subr.mxu0 0.0
    %5525 = vmatpush1.msra.mxu0 0.0
    %5526 = vmatprep.subr.mxu0 0.0
    %5527 = vmatpush1.msra.mxu0 0.0
    %5528 = vmatprep.subr.mxu0 0.0
    %5529 = vmatpush1.msra.mxu0 0.0
    %5530 = vmatprep.subr.mxu0 0.0
    %5531 = vmatpush1.msra.mxu0 0.0
    %5532 = vmatprep.subr.mxu0 0.0
    %5533 = vmatpush1.msra.mxu0 0.0
    %5534 = vmatprep.subr.mxu0 0.0
    %5535 = vmatpush1.msra.mxu0 0.0
    %5536 = vmatprep.subr.mxu0 0.0
    %5537 = vmatpush1.msra.mxu0 0.0
    %5538 = vmatprep.subr.mxu0 0.0
    %5539 = vmatpush1.msra.mxu0 0.0
    %5540 = vmatprep.subr.mxu0 0.0
    %5541 = vmatpush1.msra.mxu0 0.0
    %5542 = vmatprep.subr.mxu0 0.0
    %5543 = vmatpush1.msra.mxu0 0.0
    %5544 = vmatprep.subr.mxu0 0.0
    %5545 = vmatpush1.msra.mxu0 0.0
    %5546 = vmatprep.subr.mxu0 0.0
    %5547 = vmatpush1.msra.mxu0 0.0
    %5548 = vmatprep.mubr.f32.mxu0 0.0
    %5549 = vmatmul.mubr.f32.gmra.mrb[0].mxu0 %v5460
    %v5550 = vpop.f32.mrb[0].mxu0
    %v5551 = vadd.f32 %v5482, %v5550
    %v5552 = vpop.f32.mrb[0].mxu0
    %5553 = vdwg.mxu0
    %v5554 = vmul.f32 %v5551, 0.5
    %v5555 = vadd.f32 %v5336, %v5554
    %v5556 = vld [vmem:[#allocation38] sm:$0x1]
    %v5557 = vld [vmem:[#allocation37] sm:$0x1]
    %v5558 = vsel %vm3101, %v5555, 0.0
    %5559 = vadd.xlane.f32.xlu0 %v5558
    %v5560 = vpop.xlane.xlu0 %5559
    %v5561 = vmul.f32 %v5560, %v3105
    %v5562 = vsub.f32 %v5555, %v5561
    %v5563 = vmul.f32 %v5562, %v5562
    %v5564 = vsel %vm3101, %v5563, 0.0
    %5565 = vadd.xlane.f32.xlu0 %v5564
    %v5566 = vpop.xlane.xlu0 %5565
    %v5567 = vmul.f32 %v5566, %v3105
    %v5568 = vadd.f32 %v5567, 1e-05
    %v5569 = vrsqrt.pop %v5568
    %v5570 = vmul.f32 %v5562, %v5569
    %v5572 = vlaneseq
    %v5573 = vshrl.u32 %v5572, 7
    %v5574 = vsub.s32 0, %v5573
    %v5575 = vrot.slane %v5556, %v5574
    %v5577 = vmul.f32 %v5570, %v5575
    %v5579 = vlaneseq
    %v5580 = vshrl.u32 %v5579, 7
    %v5581 = vsub.s32 0, %v5580
    %v5582 = vrot.slane %v5557, %v5581
    %v5584 = vadd.f32 %v5577, %v5582
    %s5585 = scalar_lea.vmem [#allocation35], 1
    %v5586 = vld [vmem:[%s5585] sm:$0x1]
    %s5587 = scalar_lea.vmem [#allocation34], 1
    %v5588 = vld [vmem:[%s5587] sm:$0x1]
    %v5589 = vsel %vm3101, %v5584, 0.0
    %5590 = vadd.xlane.f32.xlu0 %v5589
    %v5591 = vpop.xlane.xlu0 %5590
    %v5592 = vmul.f32 %v5591, %v3105
    %v5593 = vsub.f32 %v5584, %v5592
    %v5594 = vmul.f32 %v5593, %v5593
    %v5595 = vsel %vm3101, %v5594, 0.0
    %5596 = vadd.xlane.f32.xlu0 %v5595
    %v5597 = vpop.xlane.xlu0 %5596
    %v5598 = vmul.f32 %v5597, %v3105
    %v5599 = vadd.f32 %v5598, 1e-05
    %v5600 = vrsqrt.pop %v5599
    %v5601 = vmul.f32 %v5593, %v5600
    %v5603 = vlaneseq
    %v5604 = vshrl.u32 %v5603, 7
    %v5605 = vsub.s32 0, %v5604
    %v5606 = vrot.slane %v5586, %v5605
    %v5608 = vmul.f32 %v5601, %v5606
    %v5610 = vlaneseq
    %v5611 = vshrl.u32 %v5610, 7
    %v5612 = vsub.s32 0, %v5611
    %v5613 = vrot.slane %v5588, %v5612
    %v5615 = vadd.f32 %v5608, %v5613
    %s5616 = scalar_lea.vmem %s59, 64
    %v5617 = vld [vmem:[%s5616] sm:$0xff]
    %v5618 = vld [vmem:[%s5616 + $0x8] sm:$0xff]
    %v5619 = vld [vmem:[%s5616 + $0x10] sm:$0xff]
    %v5620 = vld [vmem:[%s5616 + $0x18] sm:$0xff]
    %v5621 = vld [vmem:[%s5616 + $0x20] sm:$0xff]
    %v5622 = vld [vmem:[%s5616 + $0x28] sm:$0xff]
    %v5623 = vld [vmem:[%s5616 + $0x30] sm:$0xff]
    %v5624 = vld [vmem:[%s5616 + $0x38] sm:$0xff]
    %s5625 = scalar_lea.vmem [#allocation25], 1
    %v5626 = vld [vmem:[%s5625] sm:$0x1]
    %v5628 = vlaneseq
    %v5629 = vshrl.u32 %v5628, 7
    %v5630 = vsub.s32 0, %v5629
    %v5631 = vrot.slane %v5626, %v5630
    %v5634 = vsel %vm776, %v5615, 0
    %5636 = vmatprep.subr.mxu0 0.0
    %5637 = vmatpush1.msra.mxu0 %v5617
    %5638 = vmatprep.subr.mxu0 0.0
    %5639 = vmatpush1.msra.mxu0 %v5618
    %5640 = vmatprep.subr.mxu0 0.0
    %5641 = vmatpush1.msra.mxu0 %v5619
    %5642 = vmatprep.subr.mxu0 0.0
    %5643 = vmatpush1.msra.mxu0 %v5620
    %5644 = vmatprep.subr.mxu0 0.0
    %5645 = vmatpush1.msra.mxu0 %v5621
    %5646 = vmatprep.subr.mxu0 0.0
    %5647 = vmatpush1.msra.mxu0 %v5622
    %5648 = vmatprep.subr.mxu0 0.0
    %5649 = vmatpush1.msra.mxu0 %v5623
    %5650 = vmatprep.subr.mxu0 0.0
    %5651 = vmatpush1.msra.mxu0 %v5624
    %5652 = vmatprep.subr.mxu0 0.0
    %5653 = vmatpush1.msra.mxu0 0.0
    %5654 = vmatprep.subr.mxu0 0.0
    %5655 = vmatpush1.msra.mxu0 0.0
    %5656 = vmatprep.subr.mxu0 0.0
    %5657 = vmatpush1.msra.mxu0 0.0
    %5658 = vmatprep.subr.mxu0 0.0
    %5659 = vmatpush1.msra.mxu0 0.0
    %5660 = vmatprep.subr.mxu0 0.0
    %5661 = vmatpush1.msra.mxu0 0.0
    %5662 = vmatprep.subr.mxu0 0.0
    %5663 = vmatpush1.msra.mxu0 0.0
    %5664 = vmatprep.subr.mxu0 0.0
    %5665 = vmatpush1.msra.mxu0 0.0
    %5666 = vmatprep.subr.mxu0 0.0
    %5667 = vmatpush1.msra.mxu0 0.0
    %5668 = vmatprep.subr.mxu0 0.0
    %5669 = vmatpush1.msra.mxu0 0.0
    %5670 = vmatprep.subr.mxu0 0.0
    %5671 = vmatpush1.msra.mxu0 0.0
    %5672 = vmatprep.subr.mxu0 0.0
    %5673 = vmatpush1.msra.mxu0 0.0
    %5674 = vmatprep.subr.mxu0 0.0
    %5675 = vmatpush1.msra.mxu0 0.0
    %5676 = vmatprep.subr.mxu0 0.0
    %5677 = vmatpush1.msra.mxu0 0.0
    %5678 = vmatprep.subr.mxu0 0.0
    %5679 = vmatpush1.msra.mxu0 0.0
    %5680 = vmatprep.subr.mxu0 0.0
    %5681 = vmatpush1.msra.mxu0 0.0
    %5682 = vmatprep.subr.mxu0 0.0
    %5683 = vmatpush1.msra.mxu0 0.0
    %5684 = vmatprep.subr.mxu0 0.0
    %5685 = vmatpush1.msra.mxu0 0.0
    %5686 = vmatprep.subr.mxu0 0.0
    %5687 = vmatpush1.msra.mxu0 0.0
    %5688 = vmatprep.subr.mxu0 0.0
    %5689 = vmatpush1.msra.mxu0 0.0
    %5690 = vmatprep.subr.mxu0 0.0
    %5691 = vmatpush1.msra.mxu0 0.0
    %5692 = vmatprep.subr.mxu0 0.0
    %5693 = vmatpush1.msra.mxu0 0.0
    %5694 = vmatprep.subr.mxu0 0.0
    %5695 = vmatpush1.msra.mxu0 0.0
    %5696 = vmatprep.subr.mxu0 0.0
    %5697 = vmatpush1.msra.mxu0 0.0
    %5698 = vmatprep.subr.mxu0 0.0
    %5699 = vmatpush1.msra.mxu0 0.0
    %5700 = vmatprep.mubr.f32.mxu0 0.0
    %5701 = vmatmul.mubr.f32.gmra.mrb[0].mxu0 %v5634
    %v5702 = vpop.f32.mrb[0].mxu0
    %v5703 = vadd.f32 %v5631, %v5702
    %v5704 = vpop.f32.mrb[0].mxu0
    %5705 = vdwg.mxu0
    %v5706 = vxor.u32 %v5703, 2147483648
    %v5707 = vmul.f32 %v5706, 1.442695
    %v5708 = vpow.pop %v5707
    %v5709 = vadd.f32 %v5708, 1.0
    %v5710 = vrcp.pop %v5709
    %v5711 = vmul.f32 1.0, %v5710
    %v5712 = vmul.f32 %v5703, %v5711
    %s5713 = scalar_lea.vmem %s61, 128
    %v5714 = vld [vmem:[%s5713] sm:$0xff]
    %v5715 = vld [vmem:[%s5713 + $0x8] sm:$0xff]
    %v5716 = vld [vmem:[%s5713 + $0x10] sm:$0xff]
    %v5717 = vld [vmem:[%s5713 + $0x18] sm:$0xff]
    %v5718 = vld [vmem:[%s5713 + $0x20] sm:$0xff]
    %v5719 = vld [vmem:[%s5713 + $0x28] sm:$0xff]
    %v5720 = vld [vmem:[%s5713 + $0x30] sm:$0xff]
    %v5721 = vld [vmem:[%s5713 + $0x38] sm:$0xff]
    %v5722 = vld [vmem:[%s5713 + $0x40] sm:$0xff]
    %v5723 = vld [vmem:[%s5713 + $0x48] sm:$0xff]
    %v5724 = vld [vmem:[%s5713 + $0x50] sm:$0xff]
    %v5725 = vld [vmem:[%s5713 + $0x58] sm:$0xff]
    %v5726 = vld [vmem:[%s5713 + $0x60] sm:$0xff]
    %v5727 = vld [vmem:[%s5713 + $0x68] sm:$0xff]
    %v5728 = vld [vmem:[%s5713 + $0x70] sm:$0xff]
    %v5729 = vld [vmem:[%s5713 + $0x78] sm:$0xff]
    %s5730 = scalar_lea.vmem [#allocation26], 1
    %v5731 = vld [vmem:[%s5730] sm:$0x1]
    %v5733 = vlaneseq
    %v5734 = vshrl.u32 %v5733, 7
    %v5735 = vsub.s32 0, %v5734
    %v5736 = vrot.slane %v5731, %v5735
    %5738 = vmatprep.subr.mxu0 0.0
    %5739 = vmatpush1.msra.mxu0 %v5714
    %5740 = vmatprep.subr.mxu0 0.0
    %5741 = vmatpush1.msra.mxu0 %v5715
    %5742 = vmatprep.subr.mxu0 0.0
    %5743 = vmatpush1.msra.mxu0 %v5716
    %5744 = vmatprep.subr.mxu0 0.0
    %5745 = vmatpush1.msra.mxu0 %v5717
    %5746 = vmatprep.subr.mxu0 0.0
    %5747 = vmatpush1.msra.mxu0 %v5718
    %5748 = vmatprep.subr.mxu0 0.0
    %5749 = vmatpush1.msra.mxu0 %v5719
    %5750 = vmatprep.subr.mxu0 0.0
    %5751 = vmatpush1.msra.mxu0 %v5720
    %5752 = vmatprep.subr.mxu0 0.0
    %5753 = vmatpush1.msra.mxu0 %v5721
    %5754 = vmatprep.subr.mxu0 0.0
    %5755 = vmatpush1.msra.mxu0 %v5722
    %5756 = vmatprep.subr.mxu0 0.0
    %5757 = vmatpush1.msra.mxu0 %v5723
    %5758 = vmatprep.subr.mxu0 0.0
    %5759 = vmatpush1.msra.mxu0 %v5724
    %5760 = vmatprep.subr.mxu0 0.0
    %5761 = vmatpush1.msra.mxu0 %v5725
    %5762 = vmatprep.subr.mxu0 0.0
    %5763 = vmatpush1.msra.mxu0 %v5726
    %5764 = vmatprep.subr.mxu0 0.0
    %5765 = vmatpush1.msra.mxu0 %v5727
    %5766 = vmatprep.subr.mxu0 0.0
    %5767 = vmatpush1.msra.mxu0 %v5728
    %5768 = vmatprep.subr.mxu0 0.0
    %5769 = vmatpush1.msra.mxu0 %v5729
    %5770 = vmatprep.subr.mxu0 0.0
    %5771 = vmatpush1.msra.mxu0 0.0
    %5772 = vmatprep.subr.mxu0 0.0
    %5773 = vmatpush1.msra.mxu0 0.0
    %5774 = vmatprep.subr.mxu0 0.0
    %5775 = vmatpush1.msra.mxu0 0.0
    %5776 = vmatprep.subr.mxu0 0.0
    %5777 = vmatpush1.msra.mxu0 0.0
    %5778 = vmatprep.subr.mxu0 0.0
    %5779 = vmatpush1.msra.mxu0 0.0
    %5780 = vmatprep.subr.mxu0 0.0
    %5781 = vmatpush1.msra.mxu0 0.0
    %5782 = vmatprep.subr.mxu0 0.0
    %5783 = vmatpush1.msra.mxu0 0.0
    %5784 = vmatprep.subr.mxu0 0.0
    %5785 = vmatpush1.msra.mxu0 0.0
    %5786 = vmatprep.subr.mxu0 0.0
    %5787 = vmatpush1.msra.mxu0 0.0
    %5788 = vmatprep.subr.mxu0 0.0
    %5789 = vmatpush1.msra.mxu0 0.0
    %5790 = vmatprep.subr.mxu0 0.0
    %5791 = vmatpush1.msra.mxu0 0.0
    %5792 = vmatprep.subr.mxu0 0.0
    %5793 = vmatpush1.msra.mxu0 0.0
    %5794 = vmatprep.subr.mxu0 0.0
    %5795 = vmatpush1.msra.mxu0 0.0
    %5796 = vmatprep.subr.mxu0 0.0
    %5797 = vmatpush1.msra.mxu0 0.0
    %5798 = vmatprep.subr.mxu0 0.0
    %5799 = vmatpush1.msra.mxu0 0.0
    %5800 = vmatprep.subr.mxu0 0.0
    %5801 = vmatpush1.msra.mxu0 0.0
    %5802 = vmatprep.mubr.f32.mxu0 0.0
    %5803 = vmatmul.mubr.f32.gmra.mrb[0].mxu0 %v5712
    %v5804 = vpop.f32.mrb[0].mxu0
    %v5805 = vadd.f32 %v5736, %v5804
    %v5806 = vpop.f32.mrb[0].mxu0
    %5807 = vdwg.mxu0
    %v5808 = vmul.f32 %v5805, 0.5
    %v5809 = vadd.f32 %v5584, %v5808
    %s5810 = scalar_lea.vmem [#allocation41], 1
    %v5811 = vld [vmem:[%s5810] sm:$0x1]
    %s5812 = scalar_lea.vmem [#allocation40], 1
    %v5813 = vld [vmem:[%s5812] sm:$0x1]
    %v5814 = vsel %vm3101, %v5809, 0.0
    %5815 = vadd.xlane.f32.xlu0 %v5814
    %v5816 = vpop.xlane.xlu0 %5815
    %v5817 = vmul.f32 %v5816, %v3105
    %v5818 = vsub.f32 %v5809, %v5817
    %v5819 = vmul.f32 %v5818, %v5818
    %v5820 = vsel %vm3101, %v5819, 0.0
    %5821 = vadd.xlane.f32.xlu0 %v5820
    %v5822 = vpop.xlane.xlu0 %5821
    %v5823 = vmul.f32 %v5822, %v3105
    %v5824 = vadd.f32 %v5823, 1e-05
    %v5825 = vrsqrt.pop %v5824
    %v5826 = vmul.f32 %v5818, %v5825
    %v5828 = vlaneseq
    %v5829 = vshrl.u32 %v5828, 7
    %v5830 = vsub.s32 0, %v5829
    %v5831 = vrot.slane %v5811, %v5830
    %v5833 = vmul.f32 %v5826, %v5831
    %v5835 = vlaneseq
    %v5836 = vshrl.u32 %v5835, 7
    %v5837 = vsub.s32 0, %v5836
    %v5838 = vrot.slane %v5813, %v5837
    %v5840 = vadd.f32 %v5833, %v5838
    %s5841 = scalar_lea.vmem %s101, 64
    %v5842 = vld [vmem:[%s5841] sm:$0xff]
    %v5843 = vld [vmem:[%s5841 + $0x8] sm:$0xff]
    %v5844 = vld [vmem:[%s5841 + $0x10] sm:$0xff]
    %v5845 = vld [vmem:[%s5841 + $0x18] sm:$0xff]
    %v5846 = vld [vmem:[%s5841 + $0x20] sm:$0xff]
    %v5847 = vld [vmem:[%s5841 + $0x28] sm:$0xff]
    %v5848 = vld [vmem:[%s5841 + $0x30] sm:$0xff]
    %v5849 = vld [vmem:[%s5841 + $0x38] sm:$0xff]
    %s5850 = scalar_lea.vmem [#allocation17], 1
    %v5851 = vld [vmem:[%s5850] sm:$0x1]
    %v5853 = vlaneseq
    %v5854 = vshrl.u32 %v5853, 7
    %v5855 = vsub.s32 0, %v5854
    %v5856 = vrot.slane %v5851, %v5855
    %v5859 = vsel %vm776, %v5840, 0
    %5861 = vmatprep.subr.mxu0 0.0
    %5862 = vmatpush1.msra.mxu0 %v5842
    %5863 = vmatprep.subr.mxu0 0.0
    %5864 = vmatpush1.msra.mxu0 %v5843
    %5865 = vmatprep.subr.mxu0 0.0
    %5866 = vmatpush1.msra.mxu0 %v5844
    %5867 = vmatprep.subr.mxu0 0.0
    %5868 = vmatpush1.msra.mxu0 %v5845
    %5869 = vmatprep.subr.mxu0 0.0
    %5870 = vmatpush1.msra.mxu0 %v5846
    %5871 = vmatprep.subr.mxu0 0.0
    %5872 = vmatpush1.msra.mxu0 %v5847
    %5873 = vmatprep.subr.mxu0 0.0
    %5874 = vmatpush1.msra.mxu0 %v5848
    %5875 = vmatprep.subr.mxu0 0.0
    %5876 = vmatpush1.msra.mxu0 %v5849
    %5877 = vmatprep.subr.mxu0 0.0
    %5878 = vmatpush1.msra.mxu0 0.0
    %5879 = vmatprep.subr.mxu0 0.0
    %5880 = vmatpush1.msra.mxu0 0.0
    %5881 = vmatprep.subr.mxu0 0.0
    %5882 = vmatpush1.msra.mxu0 0.0
    %5883 = vmatprep.subr.mxu0 0.0
    %5884 = vmatpush1.msra.mxu0 0.0
    %5885 = vmatprep.subr.mxu0 0.0
    %5886 = vmatpush1.msra.mxu0 0.0
    %5887 = vmatprep.subr.mxu0 0.0
    %5888 = vmatpush1.msra.mxu0 0.0
    %5889 = vmatprep.subr.mxu0 0.0
    %5890 = vmatpush1.msra.mxu0 0.0
    %5891 = vmatprep.subr.mxu0 0.0
    %5892 = vmatpush1.msra.mxu0 0.0
    %5893 = vmatprep.subr.mxu0 0.0
    %5894 = vmatpush1.msra.mxu0 0.0
    %5895 = vmatprep.subr.mxu0 0.0
    %5896 = vmatpush1.msra.mxu0 0.0
    %5897 = vmatprep.subr.mxu0 0.0
    %5898 = vmatpush1.msra.mxu0 0.0
    %5899 = vmatprep.subr.mxu0 0.0
    %5900 = vmatpush1.msra.mxu0 0.0
    %5901 = vmatprep.subr.mxu0 0.0
    %5902 = vmatpush1.msra.mxu0 0.0
    %5903 = vmatprep.subr.mxu0 0.0
    %5904 = vmatpush1.msra.mxu0 0.0
    %5905 = vmatprep.subr.mxu0 0.0
    %5906 = vmatpush1.msra.mxu0 0.0
    %5907 = vmatprep.subr.mxu0 0.0
    %5908 = vmatpush1.msra.mxu0 0.0
    %5909 = vmatprep.subr.mxu0 0.0
    %5910 = vmatpush1.msra.mxu0 0.0
    %5911 = vmatprep.subr.mxu0 0.0
    %5912 = vmatpush1.msra.mxu0 0.0
    %5913 = vmatprep.subr.mxu0 0.0
    %5914 = vmatpush1.msra.mxu0 0.0
    %5915 = vmatprep.subr.mxu0 0.0
    %5916 = vmatpush1.msra.mxu0 0.0
    %5917 = vmatprep.subr.mxu0 0.0
    %5918 = vmatpush1.msra.mxu0 0.0
    %5919 = vmatprep.subr.mxu0 0.0
    %5920 = vmatpush1.msra.mxu0 0.0
    %5921 = vmatprep.subr.mxu0 0.0
    %5922 = vmatpush1.msra.mxu0 0.0
    %5923 = vmatprep.subr.mxu0 0.0
    %5924 = vmatpush1.msra.mxu0 0.0
    %5925 = vmatprep.mubr.f32.mxu0 0.0
    %5926 = vmatmul.mubr.f32.gmra.mrb[0].mxu0 %v5859
    %v5927 = vpop.f32.mrb[0].mxu0
    %v5928 = vadd.f32 %v5856, %v5927
    %v5929 = vpop.f32.mrb[0].mxu0
    %5930 = vdwg.mxu0
    %s5931 = scalar_lea.vmem %s95, 64
    %v5932 = vld [vmem:[%s5931] sm:$0xff]
    %v5933 = vld [vmem:[%s5931 + $0x8] sm:$0xff]
    %v5934 = vld [vmem:[%s5931 + $0x10] sm:$0xff]
    %v5935 = vld [vmem:[%s5931 + $0x18] sm:$0xff]
    %v5936 = vld [vmem:[%s5931 + $0x20] sm:$0xff]
    %v5937 = vld [vmem:[%s5931 + $0x28] sm:$0xff]
    %v5938 = vld [vmem:[%s5931 + $0x30] sm:$0xff]
    %v5939 = vld [vmem:[%s5931 + $0x38] sm:$0xff]
    %s5940 = scalar_lea.vmem [#allocation11], 1
    %v5941 = vld [vmem:[%s5940] sm:$0x1]
    %v5943 = vlaneseq
    %v5944 = vshrl.u32 %v5943, 7
    %v5945 = vsub.s32 0, %v5944
    %v5946 = vrot.slane %v5941, %v5945
    %5948 = vmatprep.subr.mxu0 0.0
    %5949 = vmatpush1.msra.mxu0 %v5932
    %5950 = vmatprep.subr.mxu0 0.0
    %5951 = vmatpush1.msra.mxu0 %v5933
    %5952 = vmatprep.subr.mxu0 0.0
    %5953 = vmatpush1.msra.mxu0 %v5934
    %5954 = vmatprep.subr.mxu0 0.0
    %5955 = vmatpush1.msra.mxu0 %v5935
    %5956 = vmatprep.subr.mxu0 0.0
    %5957 = vmatpush1.msra.mxu0 %v5936
    %5958 = vmatprep.subr.mxu0 0.0
    %5959 = vmatpush1.msra.mxu0 %v5937
    %5960 = vmatprep.subr.mxu0 0.0
    %5961 = vmatpush1.msra.mxu0 %v5938
    %5962 = vmatprep.subr.mxu0 0.0
    %5963 = vmatpush1.msra.mxu0 %v5939
    %5964 = vmatprep.subr.mxu0 0.0
    %5965 = vmatpush1.msra.mxu0 0.0
    %5966 = vmatprep.subr.mxu0 0.0
    %5967 = vmatpush1.msra.mxu0 0.0
    %5968 = vmatprep.subr.mxu0 0.0
    %5969 = vmatpush1.msra.mxu0 0.0
    %5970 = vmatprep.subr.mxu0 0.0
    %5971 = vmatpush1.msra.mxu0 0.0
    %5972 = vmatprep.subr.mxu0 0.0
    %5973 = vmatpush1.msra.mxu0 0.0
    %5974 = vmatprep.subr.mxu0 0.0
    %5975 = vmatpush1.msra.mxu0 0.0
    %5976 = vmatprep.subr.mxu0 0.0
    %5977 = vmatpush1.msra.mxu0 0.0
    %5978 = vmatprep.subr.mxu0 0.0
    %5979 = vmatpush1.msra.mxu0 0.0
    %5980 = vmatprep.subr.mxu0 0.0
    %5981 = vmatpush1.msra.mxu0 0.0
    %5982 = vmatprep.subr.mxu0 0.0
    %5983 = vmatpush1.msra.mxu0 0.0
    %5984 = vmatprep.subr.mxu0 0.0
    %5985 = vmatpush1.msra.mxu0 0.0
    %5986 = vmatprep.subr.mxu0 0.0
    %5987 = vmatpush1.msra.mxu0 0.0
    %5988 = vmatprep.subr.mxu0 0.0
    %5989 = vmatpush1.msra.mxu0 0.0
    %5990 = vmatprep.subr.mxu0 0.0
    %5991 = vmatpush1.msra.mxu0 0.0
    %5992 = vmatprep.subr.mxu0 0.0
    %5993 = vmatpush1.msra.mxu0 0.0
    %5994 = vmatprep.subr.mxu0 0.0
    %5995 = vmatpush1.msra.mxu0 0.0
    %5996 = vmatprep.subr.mxu0 0.0
    %5997 = vmatpush1.msra.mxu0 0.0
    %5998 = vmatprep.subr.mxu0 0.0
    %5999 = vmatpush1.msra.mxu0 0.0
    %6000 = vmatprep.subr.mxu0 0.0
    %6001 = vmatpush1.msra.mxu0 0.0
    %6002 = vmatprep.subr.mxu0 0.0
    %6003 = vmatpush1.msra.mxu0 0.0
    %6004 = vmatprep.subr.mxu0 0.0
    %6005 = vmatpush1.msra.mxu0 0.0
    %6006 = vmatprep.subr.mxu0 0.0
    %6007 = vmatpush1.msra.mxu0 0.0
    %6008 = vmatprep.subr.mxu0 0.0
    %6009 = vmatpush1.msra.mxu0 0.0
    %6010 = vmatprep.subr.mxu0 0.0
    %6011 = vmatpush1.msra.mxu0 0.0
    %6012 = vmatprep.mubr.f32.mxu0 0.0
    %6013 = vmatmul.mubr.f32.gmra.mrb[0].mxu0 %v5859
    %v6014 = vpop.f32.mrb[0].mxu0
    %v6015 = vadd.f32 %v5946, %v6014
    %v6016 = vpop.f32.mrb[0].mxu0
    %6017 = vdwg.mxu0
    %s6018 = scalar_lea.vmem %s103, 64
    %v6019 = vld [vmem:[%s6018] sm:$0xff]
    %v6020 = vld [vmem:[%s6018 + $0x8] sm:$0xff]
    %v6021 = vld [vmem:[%s6018 + $0x10] sm:$0xff]
    %v6022 = vld [vmem:[%s6018 + $0x18] sm:$0xff]
    %v6023 = vld [vmem:[%s6018 + $0x20] sm:$0xff]
    %v6024 = vld [vmem:[%s6018 + $0x28] sm:$0xff]
    %v6025 = vld [vmem:[%s6018 + $0x30] sm:$0xff]
    %v6026 = vld [vmem:[%s6018 + $0x38] sm:$0xff]
    %s6027 = scalar_lea.vmem [#allocation19], 1
    %v6028 = vld [vmem:[%s6027] sm:$0x1]
    %v6030 = vlaneseq
    %v6031 = vshrl.u32 %v6030, 7
    %v6032 = vsub.s32 0, %v6031
    %v6033 = vrot.slane %v6028, %v6032
    %6035 = vmatprep.subr.mxu0 0.0
    %6036 = vmatpush1.msra.mxu0 %v6019
    %6037 = vmatprep.subr.mxu0 0.0
    %6038 = vmatpush1.msra.mxu0 %v6020
    %6039 = vmatprep.subr.mxu0 0.0
    %6040 = vmatpush1.msra.mxu0 %v6021
    %6041 = vmatprep.subr.mxu0 0.0
    %6042 = vmatpush1.msra.mxu0 %v6022
    %6043 = vmatprep.subr.mxu0 0.0
    %6044 = vmatpush1.msra.mxu0 %v6023
    %6045 = vmatprep.subr.mxu0 0.0
    %6046 = vmatpush1.msra.mxu0 %v6024
    %6047 = vmatprep.subr.mxu0 0.0
    %6048 = vmatpush1.msra.mxu0 %v6025
    %6049 = vmatprep.subr.mxu0 0.0
    %6050 = vmatpush1.msra.mxu0 %v6026
    %6051 = vmatprep.subr.mxu0 0.0
    %6052 = vmatpush1.msra.mxu0 0.0
    %6053 = vmatprep.subr.mxu0 0.0
    %6054 = vmatpush1.msra.mxu0 0.0
    %6055 = vmatprep.subr.mxu0 0.0
    %6056 = vmatpush1.msra.mxu0 0.0
    %6057 = vmatprep.subr.mxu0 0.0
    %6058 = vmatpush1.msra.mxu0 0.0
    %6059 = vmatprep.subr.mxu0 0.0
    %6060 = vmatpush1.msra.mxu0 0.0
    %6061 = vmatprep.subr.mxu0 0.0
    %6062 = vmatpush1.msra.mxu0 0.0
    %6063 = vmatprep.subr.mxu0 0.0
    %6064 = vmatpush1.msra.mxu0 0.0
    %6065 = vmatprep.subr.mxu0 0.0
    %6066 = vmatpush1.msra.mxu0 0.0
    %6067 = vmatprep.subr.mxu0 0.0
    %6068 = vmatpush1.msra.mxu0 0.0
    %6069 = vmatprep.subr.mxu0 0.0
    %6070 = vmatpush1.msra.mxu0 0.0
    %6071 = vmatprep.subr.mxu0 0.0
    %6072 = vmatpush1.msra.mxu0 0.0
    %6073 = vmatprep.subr.mxu0 0.0
    %6074 = vmatpush1.msra.mxu0 0.0
    %6075 = vmatprep.subr.mxu0 0.0
    %6076 = vmatpush1.msra.mxu0 0.0
    %6077 = vmatprep.subr.mxu0 0.0
    %6078 = vmatpush1.msra.mxu0 0.0
    %6079 = vmatprep.subr.mxu0 0.0
    %6080 = vmatpush1.msra.mxu0 0.0
    %6081 = vmatprep.subr.mxu0 0.0
    %6082 = vmatpush1.msra.mxu0 0.0
    %6083 = vmatprep.subr.mxu0 0.0
    %6084 = vmatpush1.msra.mxu0 0.0
    %6085 = vmatprep.subr.mxu0 0.0
    %6086 = vmatpush1.msra.mxu0 0.0
    %6087 = vmatprep.subr.mxu0 0.0
    %6088 = vmatpush1.msra.mxu0 0.0
    %6089 = vmatprep.subr.mxu0 0.0
    %6090 = vmatpush1.msra.mxu0 0.0
    %6091 = vmatprep.subr.mxu0 0.0
    %6092 = vmatpush1.msra.mxu0 0.0
    %6093 = vmatprep.subr.mxu0 0.0
    %6094 = vmatpush1.msra.mxu0 0.0
    %6095 = vmatprep.subr.mxu0 0.0
    %6096 = vmatpush1.msra.mxu0 0.0
    %6097 = vmatprep.subr.mxu0 0.0
    %6098 = vmatpush1.msra.mxu0 0.0
    %6099 = vmatprep.mubr.f32.mxu0 0.0
    %6100 = vmatmul.mubr.f32.gmra.mrb[0].mxu0 %v5859
    %v6101 = vpop.f32.mrb[0].mxu0
    %v6102 = vadd.f32 %v6033, %v6101
    %v6103 = vpop.f32.mrb[0].mxu0
    %6104 = vdwg.mxu0
    %s6105 = scalar_lea.vmem %s99, 64
    %v6106 = vld [vmem:[%s6105] sm:$0xff]
    %v6107 = vld [vmem:[%s6105 + $0x8] sm:$0xff]
    %v6108 = vld [vmem:[%s6105 + $0x10] sm:$0xff]
    %v6109 = vld [vmem:[%s6105 + $0x18] sm:$0xff]
    %v6110 = vld [vmem:[%s6105 + $0x20] sm:$0xff]
    %v6111 = vld [vmem:[%s6105 + $0x28] sm:$0xff]
    %v6112 = vld [vmem:[%s6105 + $0x30] sm:$0xff]
    %v6113 = vld [vmem:[%s6105 + $0x38] sm:$0xff]
    %6114 = vmatprep.subr.mxu0 0.0
    %6115 = vmatpush1.msra.mxu0 %v6106
    %6116 = vmatprep.subr.mxu0 0.0
    %6117 = vmatpush1.msra.mxu0 %v6107
    %6118 = vmatprep.subr.mxu0 0.0
    %6119 = vmatpush1.msra.mxu0 %v6108
    %6120 = vmatprep.subr.mxu0 0.0
    %6121 = vmatpush1.msra.mxu0 %v6109
    %6122 = vmatprep.subr.mxu0 0.0
    %6123 = vmatpush1.msra.mxu0 %v6110
    %6124 = vmatprep.subr.mxu0 0.0
    %6125 = vmatpush1.msra.mxu0 %v6111
    %6126 = vmatprep.subr.mxu0 0.0
    %6127 = vmatpush1.msra.mxu0 %v6112
    %6128 = vmatprep.subr.mxu0 0.0
    %6129 = vmatpush1.msra.mxu0 %v6113
    %6130 = vmatprep.subr.mxu0 0.0
    %6131 = vmatpush1.msra.mxu0 0.0
    %6132 = vmatprep.subr.mxu0 0.0
    %6133 = vmatpush1.msra.mxu0 0.0
    %6134 = vmatprep.subr.mxu0 0.0
    %6135 = vmatpush1.msra.mxu0 0.0
    %6136 = vmatprep.subr.mxu0 0.0
    %6137 = vmatpush1.msra.mxu0 0.0
    %6138 = vmatprep.subr.mxu0 0.0
    %6139 = vmatpush1.msra.mxu0 0.0
    %6140 = vmatprep.subr.mxu0 0.0
    %6141 = vmatpush1.msra.mxu0 0.0
    %6142 = vmatprep.subr.mxu0 0.0
    %6143 = vmatpush1.msra.mxu0 0.0
    %6144 = vmatprep.subr.mxu0 0.0
    %6145 = vmatpush1.msra.mxu0 0.0
    %6146 = vmatprep.subr.mxu0 0.0
    %6147 = vmatpush1.msra.mxu0 0.0
    %6148 = vmatprep.subr.mxu0 0.0
    %6149 = vmatpush1.msra.mxu0 0.0
    %6150 = vmatprep.subr.mxu0 0.0
    %6151 = vmatpush1.msra.mxu0 0.0
    %6152 = vmatprep.subr.mxu0 0.0
    %6153 = vmatpush1.msra.mxu0 0.0
    %6154 = vmatprep.subr.mxu0 0.0
    %6155 = vmatpush1.msra.mxu0 0.0
    %6156 = vmatprep.subr.mxu0 0.0
    %6157 = vmatpush1.msra.mxu0 0.0
    %6158 = vmatprep.subr.mxu0 0.0
    %6159 = vmatpush1.msra.mxu0 0.0
    %6160 = vmatprep.subr.mxu0 0.0
    %6161 = vmatpush1.msra.mxu0 0.0
    %6162 = vmatprep.subr.mxu0 0.0
    %6163 = vmatpush1.msra.mxu0 0.0
    %6164 = vmatprep.subr.mxu0 0.0
    %6165 = vmatpush1.msra.mxu0 0.0
    %6166 = vmatprep.subr.mxu0 0.0
    %6167 = vmatpush1.msra.mxu0 0.0
    %6168 = vmatprep.subr.mxu0 0.0
    %6169 = vmatpush1.msra.mxu0 0.0
    %6170 = vmatprep.subr.mxu0 0.0
    %6171 = vmatpush1.msra.mxu0 0.0
    %6172 = vmatprep.subr.mxu0 0.0
    %6173 = vmatpush1.msra.mxu0 0.0
    %6174 = vmatprep.subr.mxu0 0.0
    %6175 = vmatpush1.msra.mxu0 0.0
    %6176 = vmatprep.subr.mxu0 0.0
    %6177 = vmatpush1.msra.mxu0 0.0
    %6178 = vmatprep.mubr.f32.mxu0 0.0
    %6179 = vmatmul.mubr.f32.gmra.mrb[0].mxu0 %v3616
    %v6180 = vpop.f32.mrb[0].mxu0
    %v6181 = vadd.f32 0.0, %v6180
    %v6182 = vpop.f32.mrb[0].mxu0
    %6183 = vmatprep.mubr.f32.mxu0 0.0
    %6184 = vmatmul.mubr.f32.gmra.mrb[0].mxu0 %v3619
    %v6185 = vpop.f32.mrb[0].mxu0
    %v6186 = vadd.f32 0.0, %v6185
    %v6187 = vpop.f32.mrb[0].mxu0
    %6188 = vmatprep.mubr.f32.mxu0 0.0
    %6189 = vmatmul.mubr.f32.gmra.mrb[0].mxu0 %v3622
    %v6190 = vpop.f32.mrb[0].mxu0
    %v6191 = vadd.f32 0.0, %v6190
    %v6192 = vpop.f32.mrb[0].mxu0
    %6193 = vdwg.mxu0
    %s6194 = scalar_lea.vmem %s1, 64
    %v6195 = vld [vmem:[%s6194] sm:$0xff]
    %v6196 = vld [vmem:[%s6194 + $0x8] sm:$0xff]
    %v6197 = vld [vmem:[%s6194 + $0x10] sm:$0xff]
    %v6198 = vld [vmem:[%s6194 + $0x18] sm:$0xff]
    %v6199 = vld [vmem:[%s6194 + $0x20] sm:$0xff]
    %v6200 = vld [vmem:[%s6194 + $0x28] sm:$0xff]
    %v6201 = vld [vmem:[%s6194 + $0x30] sm:$0xff]
    %v6202 = vld [vmem:[%s6194 + $0x38] sm:$0xff]
    %s6203 = scalar_lea.vmem [#allocation43], 4
    %v6204 = vld [vmem:[%s6203] sm:$0xf]
    %s6205 = scalar_lea.vmem [#allocation44], 4
    %v6206 = vld [vmem:[%s6205] sm:$0xf]
    %6208 = vrot.lane.b32.xlu0 %v6102, 16
    %v6209 = vpop.permute.xlu0 %6208
    %v6211 = vlaneseq
    %v6212 = vshrl.u32 %v6211, 7
    %v6213 = vsub.s32 0, %v6212
    %v6214 = vrot.slane %v6204, %v6213
    %v6215 = vadd.f32 %v5928, %v6214
    %v6216 = vlaneseq
    %v6217 = vshrl.u32 %v6216, 7
    %v6218 = vsub.s32 0, %v6217
    %v6219 = vrot.slane %v6206, %v6218
    %v6220 = vadd.f32 %v5928, %v6219
    %v6222 = vsel %vm3728, %v6220, 0
    %v6225 = vsel %vm3728, %v6181, 0
    %v6228 = vsel %vm3728, %v6186, 0
    %v6231 = vsel %vm3728, %v6191, 0
    %6233 = vmatprep.subr.mxu0 0.0
    %6234 = vmatpush1.xpose.msra.mxu0 %v6225
    %6235 = vmatprep.subr.mxu0 0.0
    %6236 = vmatpush1.xpose.msra.mxu0 %v6228
    %6237 = vmatprep.subr.mxu0 0.0
    %6238 = vmatpush1.xpose.msra.mxu0 %v6231
    %6239 = vmatprep.subr.mxu0 0.0
    %6240 = vmatpush1.xpose.msra.mxu0 0.0
    %6241 = vmatprep.subr.mxu0 0.0
    %6242 = vmatpush1.xpose.msra.mxu0 0.0
    %6243 = vmatprep.subr.mxu0 0.0
    %6244 = vmatpush1.xpose.msra.mxu0 0.0
    %6245 = vmatprep.subr.mxu0 0.0
    %6246 = vmatpush1.xpose.msra.mxu0 0.0
    %6247 = vmatprep.subr.mxu0 0.0
    %6248 = vmatpush1.xpose.msra.mxu0 0.0
    %6249 = vmatprep.subr.mxu0 0.0
    %6250 = vmatpush1.xpose.msra.mxu0 0.0
    %6251 = vmatprep.subr.mxu0 0.0
    %6252 = vmatpush1.xpose.msra.mxu0 0.0
    %6253 = vmatprep.subr.mxu0 0.0
    %6254 = vmatpush1.xpose.msra.mxu0 0.0
    %6255 = vmatprep.subr.mxu0 0.0
    %6256 = vmatpush1.xpose.msra.mxu0 0.0
    %6257 = vmatprep.subr.mxu0 0.0
    %6258 = vmatpush1.xpose.msra.mxu0 0.0
    %6259 = vmatprep.subr.mxu0 0.0
    %6260 = vmatpush1.xpose.msra.mxu0 0.0
    %6261 = vmatprep.subr.mxu0 0.0
    %6262 = vmatpush1.xpose.msra.mxu0 0.0
    %6263 = vmatprep.subr.mxu0 0.0
    %6264 = vmatpush1.xpose.msra.mxu0 0.0
    %6265 = vmatprep.subr.mxu0 0.0
    %6266 = vmatpush1.xpose.msra.mxu0 0.0
    %6267 = vmatprep.subr.mxu0 0.0
    %6268 = vmatpush1.xpose.msra.mxu0 0.0
    %6269 = vmatprep.subr.mxu0 0.0
    %6270 = vmatpush1.xpose.msra.mxu0 0.0
    %6271 = vmatprep.subr.mxu0 0.0
    %6272 = vmatpush1.xpose.msra.mxu0 0.0
    %6273 = vmatprep.subr.mxu0 0.0
    %6274 = vmatpush1.xpose.msra.mxu0 0.0
    %6275 = vmatprep.subr.mxu0 0.0
    %6276 = vmatpush1.xpose.msra.mxu0 0.0
    %6277 = vmatprep.subr.mxu0 0.0
    %6278 = vmatpush1.xpose.msra.mxu0 0.0
    %6279 = vmatprep.subr.mxu0 0.0
    %6280 = vmatpush1.xpose.msra.mxu0 0.0
    %6281 = vmatprep.subr.mxu0 0.0
    %6282 = vmatpush1.xpose.msra.mxu0 0.0
    %6283 = vmatprep.subr.mxu0 0.0
    %6284 = vmatpush1.xpose.msra.mxu0 0.0
    %6285 = vmatprep.subr.mxu0 0.0
    %6286 = vmatpush1.xpose.msra.mxu0 0.0
    %6287 = vmatprep.subr.mxu0 0.0
    %6288 = vmatpush1.xpose.msra.mxu0 0.0
    %6289 = vmatprep.subr.mxu0 0.0
    %6290 = vmatpush1.xpose.msra.mxu0 0.0
    %6291 = vmatprep.subr.mxu0 0.0
    %6292 = vmatpush1.xpose.msra.mxu0 0.0
    %6293 = vmatprep.subr.mxu0 0.0
    %6294 = vmatpush1.xpose.msra.mxu0 0.0
    %6295 = vmatprep.subr.mxu0 0.0
    %6296 = vmatpush1.xpose.msra.mxu0 0.0
    %6297 = vmatprep.mubr.f32.mxu0 0.0
    %6298 = vmatmul.mubr.f32.gmra.mrb[0].mxu0 %v6222
    %v6299 = vpop.f32.mrb[0].mxu0
    %v6300 = vadd.f32 0.0, %v6299
    %v6301 = vpop.f32.mrb[0].mxu0
    %6302 = vdwg.mxu0
    %v6304 = vsel %vm3728, %v6215, 0
    %v6307 = vsel %vm3728, %v6195, 0
    %v6310 = vsel %vm3728, %v6196, 0
    %v6313 = vsel %vm3728, %v6015, 0
    %6315 = vmatprep.subr.mxu0 0.0
    %6316 = vmatpush1.xpose.msra.mxu0 %v6307
    %6317 = vmatprep.subr.mxu0 0.0
    %6318 = vmatpush1.xpose.msra.mxu0 %v6310
    %6319 = vmatprep.subr.mxu0 0.0
    %6320 = vmatpush1.xpose.msra.mxu0 %v6313
    %6321 = vmatprep.subr.mxu0 0.0
    %6322 = vmatpush1.xpose.msra.mxu0 0.0
    %6323 = vmatprep.subr.mxu0 0.0
    %6324 = vmatpush1.xpose.msra.mxu0 0.0
    %6325 = vmatprep.subr.mxu0 0.0
    %6326 = vmatpush1.xpose.msra.mxu0 0.0
    %6327 = vmatprep.subr.mxu0 0.0
    %6328 = vmatpush1.xpose.msra.mxu0 0.0
    %6329 = vmatprep.subr.mxu0 0.0
    %6330 = vmatpush1.xpose.msra.mxu0 0.0
    %6331 = vmatprep.subr.mxu0 0.0
    %6332 = vmatpush1.xpose.msra.mxu0 0.0
    %6333 = vmatprep.subr.mxu0 0.0
    %6334 = vmatpush1.xpose.msra.mxu0 0.0
    %6335 = vmatprep.subr.mxu0 0.0
    %6336 = vmatpush1.xpose.msra.mxu0 0.0
    %6337 = vmatprep.subr.mxu0 0.0
    %6338 = vmatpush1.xpose.msra.mxu0 0.0
    %6339 = vmatprep.subr.mxu0 0.0
    %6340 = vmatpush1.xpose.msra.mxu0 0.0
    %6341 = vmatprep.subr.mxu0 0.0
    %6342 = vmatpush1.xpose.msra.mxu0 0.0
    %6343 = vmatprep.subr.mxu0 0.0
    %6344 = vmatpush1.xpose.msra.mxu0 0.0
    %6345 = vmatprep.subr.mxu0 0.0
    %6346 = vmatpush1.xpose.msra.mxu0 0.0
    %6347 = vmatprep.subr.mxu0 0.0
    %6348 = vmatpush1.xpose.msra.mxu0 0.0
    %6349 = vmatprep.subr.mxu0 0.0
    %6350 = vmatpush1.xpose.msra.mxu0 0.0
    %6351 = vmatprep.subr.mxu0 0.0
    %6352 = vmatpush1.xpose.msra.mxu0 0.0
    %6353 = vmatprep.subr.mxu0 0.0
    %6354 = vmatpush1.xpose.msra.mxu0 0.0
    %6355 = vmatprep.subr.mxu0 0.0
    %6356 = vmatpush1.xpose.msra.mxu0 0.0
    %6357 = vmatprep.subr.mxu0 0.0
    %6358 = vmatpush1.xpose.msra.mxu0 0.0
    %6359 = vmatprep.subr.mxu0 0.0
    %6360 = vmatpush1.xpose.msra.mxu0 0.0
    %6361 = vmatprep.subr.mxu0 0.0
    %6362 = vmatpush1.xpose.msra.mxu0 0.0
    %6363 = vmatprep.subr.mxu0 0.0
    %6364 = vmatpush1.xpose.msra.mxu0 0.0
    %6365 = vmatprep.subr.mxu0 0.0
    %6366 = vmatpush1.xpose.msra.mxu0 0.0
    %6367 = vmatprep.subr.mxu0 0.0
    %6368 = vmatpush1.xpose.msra.mxu0 0.0
    %6369 = vmatprep.subr.mxu0 0.0
    %6370 = vmatpush1.xpose.msra.mxu0 0.0
    %6371 = vmatprep.subr.mxu0 0.0
    %6372 = vmatpush1.xpose.msra.mxu0 0.0
    %6373 = vmatprep.subr.mxu0 0.0
    %6374 = vmatpush1.xpose.msra.mxu0 0.0
    %6375 = vmatprep.subr.mxu0 0.0
    %6376 = vmatpush1.xpose.msra.mxu0 0.0
    %6377 = vmatprep.subr.mxu0 0.0
    %6378 = vmatpush1.xpose.msra.mxu0 0.0
    %6379 = vmatprep.mubr.f32.mxu0 0.0
    %6380 = vmatmul.mubr.f32.gmra.mrb[0].mxu0 %v6304
    %v6381 = vpop.f32.mrb[0].mxu0
    %v6382 = vadd.f32 %v6300, %v6381
    %v6383 = vpop.f32.mrb[0].mxu0
    %6384 = vdwg.mxu0
    %v6385 = vmul.f32 %v6382, 0.25
    %v6386 = vsel %vm3899, %v6385, -1e+30
    %v6387 = vsel %vm3901, %v6386, -inf
    %6388 = vmax.xlane.f32.xlu0 %v6387
    %v6389 = vpop.xlane.xlu0 %6388
    %v6390 = vsub.f32 %v6386, %v6389
    %v6391 = vmul.f32 %v6390, 1.442695
    %v6392 = vpow.pop %v6391
    %v6393 = vsel %vm3899, %v6392, 0.0
    %v6394 = vsel %vm3901, %v6393, 0.0
    %6395 = vadd.xlane.f32.xlu0 %v6394
    %v6396 = vpop.xlane.xlu0 %6395
    %v6397 = vrcp.pop %v6396
    %v6398 = vmul.f32 %v6393, %v6397
    %6399 = vrot.lane.b32.xlu0 %v6195, 112
    %v6400 = vpop.permute.xlu0 %6399
    %6401 = vrot.lane.b32.xlu0 %v6196, 112
    %v6402 = vpop.permute.xlu0 %6401
    %6403 = vrot.lane.b32.xlu0 %v6209, 112
    %v6404 = vpop.permute.xlu0 %6403
    %v6408 = vsel %vm3922, %v6398, 0
    %v6410 = vsel %vm3926, %v6404, 0
    %6412 = vmatprep.subr.mxu0 0.0
    %6413 = vmatpush1.msra.mxu0 %v6400
    %6414 = vmatprep.subr.mxu0 0.0
    %6415 = vmatpush1.msra.mxu0 %v6402
    %6416 = vmatprep.subr.mxu0 0.0
    %6417 = vmatpush1.msra.mxu0 %v6410
    %6418 = vmatprep.subr.mxu0 0.0
    %6419 = vmatpush1.msra.mxu0 0.0
    %6420 = vmatprep.subr.mxu0 0.0
    %6421 = vmatpush1.msra.mxu0 0.0
    %6422 = vmatprep.subr.mxu0 0.0
    %6423 = vmatpush1.msra.mxu0 0.0
    %6424 = vmatprep.subr.mxu0 0.0
    %6425 = vmatpush1.msra.mxu0 0.0
    %6426 = vmatprep.subr.mxu0 0.0
    %6427 = vmatpush1.msra.mxu0 0.0
    %6428 = vmatprep.subr.mxu0 0.0
    %6429 = vmatpush1.msra.mxu0 0.0
    %6430 = vmatprep.subr.mxu0 0.0
    %6431 = vmatpush1.msra.mxu0 0.0
    %6432 = vmatprep.subr.mxu0 0.0
    %6433 = vmatpush1.msra.mxu0 0.0
    %6434 = vmatprep.subr.mxu0 0.0
    %6435 = vmatpush1.msra.mxu0 0.0
    %6436 = vmatprep.subr.mxu0 0.0
    %6437 = vmatpush1.msra.mxu0 0.0
    %6438 = vmatprep.subr.mxu0 0.0
    %6439 = vmatpush1.msra.mxu0 0.0
    %6440 = vmatprep.subr.mxu0 0.0
    %6441 = vmatpush1.msra.mxu0 0.0
    %6442 = vmatprep.subr.mxu0 0.0
    %6443 = vmatpush1.msra.mxu0 0.0
    %6444 = vmatprep.subr.mxu0 0.0
    %6445 = vmatpush1.msra.mxu0 0.0
    %6446 = vmatprep.subr.mxu0 0.0
    %6447 = vmatpush1.msra.mxu0 0.0
    %6448 = vmatprep.subr.mxu0 0.0
    %6449 = vmatpush1.msra.mxu0 0.0
    %6450 = vmatprep.subr.mxu0 0.0
    %6451 = vmatpush1.msra.mxu0 0.0
    %6452 = vmatprep.subr.mxu0 0.0
    %6453 = vmatpush1.msra.mxu0 0.0
    %6454 = vmatprep.subr.mxu0 0.0
    %6455 = vmatpush1.msra.mxu0 0.0
    %6456 = vmatprep.subr.mxu0 0.0
    %6457 = vmatpush1.msra.mxu0 0.0
    %6458 = vmatprep.subr.mxu0 0.0
    %6459 = vmatpush1.msra.mxu0 0.0
    %6460 = vmatprep.subr.mxu0 0.0
    %6461 = vmatpush1.msra.mxu0 0.0
    %6462 = vmatprep.subr.mxu0 0.0
    %6463 = vmatpush1.msra.mxu0 0.0
    %6464 = vmatprep.subr.mxu0 0.0
    %6465 = vmatpush1.msra.mxu0 0.0
    %6466 = vmatprep.subr.mxu0 0.0
    %6467 = vmatpush1.msra.mxu0 0.0
    %6468 = vmatprep.subr.mxu0 0.0
    %6469 = vmatpush1.msra.mxu0 0.0
    %6470 = vmatprep.subr.mxu0 0.0
    %6471 = vmatpush1.msra.mxu0 0.0
    %6472 = vmatprep.subr.mxu0 0.0
    %6473 = vmatpush1.msra.mxu0 0.0
    %6474 = vmatprep.subr.mxu0 0.0
    %6475 = vmatpush1.msra.mxu0 0.0
    %6476 = vmatprep.mubr.f32.mxu0 0.0
    %6477 = vmatmul.mubr.f32.gmra.mrb[0].mxu0 %v6408
    %v6478 = vpop.f32.mrb[0].mxu0
    %v6479 = vadd.f32 0.0, %v6478
    %v6480 = vpop.f32.mrb[0].mxu0
    %6481 = vdwg.mxu0
    %v6482 = vsel %vm3728, %v6015, %v6209
    %6483 = vrot.lane.b32.xlu0 %v6015, 112
    %v6484 = vpop.permute.xlu0 %6483
    %v6486 = vlaneseq
    %v6487 = vshrl.u32 %v6486, 7
    %v6488 = vsub.s32 1, %v6487
    %v6489 = vrot.slane %v6204, %v6488
    %6491 = vrot.lane.b32.xlu0 %v6489, 16
    %v6492 = vpop.permute.xlu0 %6491
    %v6494 = vadd.f32 %v5928, %v6492
    %v6495 = vlaneseq
    %v6496 = vshrl.u32 %v6495, 7
    %v6497 = vsub.s32 1, %v6496
    %v6498 = vrot.slane %v6206, %v6497
    %6500 = vrot.lane.b32.xlu0 %v6498, 16
    %v6501 = vpop.permute.xlu0 %6500
    %v6503 = vadd.f32 %v5928, %v6501
    %6505 = vrot.lane.b32.xlu0 %v6503, 112
    %v6506 = vpop.permute.xlu0 %6505
    %6507 = vrot.lane.b32.xlu0 %v6181, 112
    %v6508 = vpop.permute.xlu0 %6507
    %6509 = vrot.lane.b32.xlu0 %v6186, 112
    %v6510 = vpop.permute.xlu0 %6509
    %6511 = vrot.lane.b32.xlu0 %v6191, 112
    %v6512 = vpop.permute.xlu0 %6511
    %v6513 = vsel %vm3728, %v6506, 0
    %v6515 = vsel %vm3728, %v6508, 0
    %v6517 = vsel %vm3728, %v6510, 0
    %v6519 = vsel %vm3728, %v6512, 0
    %6521 = vmatprep.subr.mxu0 0.0
    %6522 = vmatpush1.xpose.msra.mxu0 %v6515
    %6523 = vmatprep.subr.mxu0 0.0
    %6524 = vmatpush1.xpose.msra.mxu0 %v6517
    %6525 = vmatprep.subr.mxu0 0.0
    %6526 = vmatpush1.xpose.msra.mxu0 %v6519
    %6527 = vmatprep.subr.mxu0 0.0
    %6528 = vmatpush1.xpose.msra.mxu0 0.0
    %6529 = vmatprep.subr.mxu0 0.0
    %6530 = vmatpush1.xpose.msra.mxu0 0.0
    %6531 = vmatprep.subr.mxu0 0.0
    %6532 = vmatpush1.xpose.msra.mxu0 0.0
    %6533 = vmatprep.subr.mxu0 0.0
    %6534 = vmatpush1.xpose.msra.mxu0 0.0
    %6535 = vmatprep.subr.mxu0 0.0
    %6536 = vmatpush1.xpose.msra.mxu0 0.0
    %6537 = vmatprep.subr.mxu0 0.0
    %6538 = vmatpush1.xpose.msra.mxu0 0.0
    %6539 = vmatprep.subr.mxu0 0.0
    %6540 = vmatpush1.xpose.msra.mxu0 0.0
    %6541 = vmatprep.subr.mxu0 0.0
    %6542 = vmatpush1.xpose.msra.mxu0 0.0
    %6543 = vmatprep.subr.mxu0 0.0
    %6544 = vmatpush1.xpose.msra.mxu0 0.0
    %6545 = vmatprep.subr.mxu0 0.0
    %6546 = vmatpush1.xpose.msra.mxu0 0.0
    %6547 = vmatprep.subr.mxu0 0.0
    %6548 = vmatpush1.xpose.msra.mxu0 0.0
    %6549 = vmatprep.subr.mxu0 0.0
    %6550 = vmatpush1.xpose.msra.mxu0 0.0
    %6551 = vmatprep.subr.mxu0 0.0
    %6552 = vmatpush1.xpose.msra.mxu0 0.0
    %6553 = vmatprep.subr.mxu0 0.0
    %6554 = vmatpush1.xpose.msra.mxu0 0.0
    %6555 = vmatprep.subr.mxu0 0.0
    %6556 = vmatpush1.xpose.msra.mxu0 0.0
    %6557 = vmatprep.subr.mxu0 0.0
    %6558 = vmatpush1.xpose.msra.mxu0 0.0
    %6559 = vmatprep.subr.mxu0 0.0
    %6560 = vmatpush1.xpose.msra.mxu0 0.0
    %6561 = vmatprep.subr.mxu0 0.0
    %6562 = vmatpush1.xpose.msra.mxu0 0.0
    %6563 = vmatprep.subr.mxu0 0.0
    %6564 = vmatpush1.xpose.msra.mxu0 0.0
    %6565 = vmatprep.subr.mxu0 0.0
    %6566 = vmatpush1.xpose.msra.mxu0 0.0
    %6567 = vmatprep.subr.mxu0 0.0
    %6568 = vmatpush1.xpose.msra.mxu0 0.0
    %6569 = vmatprep.subr.mxu0 0.0
    %6570 = vmatpush1.xpose.msra.mxu0 0.0
    %6571 = vmatprep.subr.mxu0 0.0
    %6572 = vmatpush1.xpose.msra.mxu0 0.0
    %6573 = vmatprep.subr.mxu0 0.0
    %6574 = vmatpush1.xpose.msra.mxu0 0.0
    %6575 = vmatprep.subr.mxu0 0.0
    %6576 = vmatpush1.xpose.msra.mxu0 0.0
    %6577 = vmatprep.subr.mxu0 0.0
    %6578 = vmatpush1.xpose.msra.mxu0 0.0
    %6579 = vmatprep.subr.mxu0 0.0
    %6580 = vmatpush1.xpose.msra.mxu0 0.0
    %6581 = vmatprep.subr.mxu0 0.0
    %6582 = vmatpush1.xpose.msra.mxu0 0.0
    %6583 = vmatprep.subr.mxu0 0.0
    %6584 = vmatpush1.xpose.msra.mxu0 0.0
    %6585 = vmatprep.mubr.f32.mxu0 0.0
    %6586 = vmatmul.mubr.f32.gmra.mrb[0].mxu0 %v6513
    %v6587 = vpop.f32.mrb[0].mxu0
    %v6588 = vadd.f32 0.0, %v6587
    %v6589 = vpop.f32.mrb[0].mxu0
    %6590 = vdwg.mxu0
    %6592 = vrot.lane.b32.xlu0 %v6494, 112
    %v6593 = vpop.permute.xlu0 %6592
    %v6594 = vsel %vm3728, %v6593, 0
    %v6597 = vsel %vm3728, %v6197, 0
    %v6600 = vsel %vm3728, %v6198, 0
    %v6602 = vsel %vm3728, %v6484, 0
    %6604 = vmatprep.subr.mxu0 0.0
    %6605 = vmatpush1.xpose.msra.mxu0 %v6597
    %6606 = vmatprep.subr.mxu0 0.0
    %6607 = vmatpush1.xpose.msra.mxu0 %v6600
    %6608 = vmatprep.subr.mxu0 0.0
    %6609 = vmatpush1.xpose.msra.mxu0 %v6602
    %6610 = vmatprep.subr.mxu0 0.0
    %6611 = vmatpush1.xpose.msra.mxu0 0.0
    %6612 = vmatprep.subr.mxu0 0.0
    %6613 = vmatpush1.xpose.msra.mxu0 0.0
    %6614 = vmatprep.subr.mxu0 0.0
    %6615 = vmatpush1.xpose.msra.mxu0 0.0
    %6616 = vmatprep.subr.mxu0 0.0
    %6617 = vmatpush1.xpose.msra.mxu0 0.0
    %6618 = vmatprep.subr.mxu0 0.0
    %6619 = vmatpush1.xpose.msra.mxu0 0.0
    %6620 = vmatprep.subr.mxu0 0.0
    %6621 = vmatpush1.xpose.msra.mxu0 0.0
    %6622 = vmatprep.subr.mxu0 0.0
    %6623 = vmatpush1.xpose.msra.mxu0 0.0
    %6624 = vmatprep.subr.mxu0 0.0
    %6625 = vmatpush1.xpose.msra.mxu0 0.0
    %6626 = vmatprep.subr.mxu0 0.0
    %6627 = vmatpush1.xpose.msra.mxu0 0.0
    %6628 = vmatprep.subr.mxu0 0.0
    %6629 = vmatpush1.xpose.msra.mxu0 0.0
    %6630 = vmatprep.subr.mxu0 0.0
    %6631 = vmatpush1.xpose.msra.mxu0 0.0
    %6632 = vmatprep.subr.mxu0 0.0
    %6633 = vmatpush1.xpose.msra.mxu0 0.0
    %6634 = vmatprep.subr.mxu0 0.0
    %6635 = vmatpush1.xpose.msra.mxu0 0.0
    %6636 = vmatprep.subr.mxu0 0.0
    %6637 = vmatpush1.xpose.msra.mxu0 0.0
    %6638 = vmatprep.subr.mxu0 0.0
    %6639 = vmatpush1.xpose.msra.mxu0 0.0
    %6640 = vmatprep.subr.mxu0 0.0
    %6641 = vmatpush1.xpose.msra.mxu0 0.0
    %6642 = vmatprep.subr.mxu0 0.0
    %6643 = vmatpush1.xpose.msra.mxu0 0.0
    %6644 = vmatprep.subr.mxu0 0.0
    %6645 = vmatpush1.xpose.msra.mxu0 0.0
    %6646 = vmatprep.subr.mxu0 0.0
    %6647 = vmatpush1.xpose.msra.mxu0 0.0
    %6648 = vmatprep.subr.mxu0 0.0
    %6649 = vmatpush1.xpose.msra.mxu0 0.0
    %6650 = vmatprep.subr.mxu0 0.0
    %6651 = vmatpush1.xpose.msra.mxu0 0.0
    %6652 = vmatprep.subr.mxu0 0.0
    %6653 = vmatpush1.xpose.msra.mxu0 0.0
    %6654 = vmatprep.subr.mxu0 0.0
    %6655 = vmatpush1.xpose.msra.mxu0 0.0
    %6656 = vmatprep.subr.mxu0 0.0
    %6657 = vmatpush1.xpose.msra.mxu0 0.0
    %6658 = vmatprep.subr.mxu0 0.0
    %6659 = vmatpush1.xpose.msra.mxu0 0.0
    %6660 = vmatprep.subr.mxu0 0.0
    %6661 = vmatpush1.xpose.msra.mxu0 0.0
    %6662 = vmatprep.subr.mxu0 0.0
    %6663 = vmatpush1.xpose.msra.mxu0 0.0
    %6664 = vmatprep.subr.mxu0 0.0
    %6665 = vmatpush1.xpose.msra.mxu0 0.0
    %6666 = vmatprep.subr.mxu0 0.0
    %6667 = vmatpush1.xpose.msra.mxu0 0.0
    %6668 = vmatprep.mubr.f32.mxu0 0.0
    %6669 = vmatmul.mubr.f32.gmra.mrb[0].mxu0 %v6594
    %v6670 = vpop.f32.mrb[0].mxu0
    %v6671 = vadd.f32 %v6588, %v6670
    %v6672 = vpop.f32.mrb[0].mxu0
    %6673 = vdwg.mxu0
    %v6674 = vmul.f32 %v6671, 0.25
    %v6675 = vsel %vm3899, %v6674, -1e+30
    %v6676 = vsel %vm3901, %v6675, -inf
    %6677 = vmax.xlane.f32.xlu0 %v6676
    %v6678 = vpop.xlane.xlu0 %6677
    %v6679 = vsub.f32 %v6675, %v6678
    %v6680 = vmul.f32 %v6679, 1.442695
    %v6681 = vpow.pop %v6680
    %v6682 = vsel %vm3899, %v6681, 0.0
    %v6683 = vsel %vm3901, %v6682, 0.0
    %6684 = vadd.xlane.f32.xlu0 %v6683
    %v6685 = vpop.xlane.xlu0 %6684
    %v6686 = vrcp.pop %v6685
    %v6687 = vmul.f32 %v6682, %v6686
    %6688 = vrot.lane.b32.xlu0 %v6197, 112
    %v6689 = vpop.permute.xlu0 %6688
    %6690 = vrot.lane.b32.xlu0 %v6198, 112
    %v6691 = vpop.permute.xlu0 %6690
    %6692 = vrot.lane.b32.xlu0 %v6102, 112
    %v6693 = vpop.permute.xlu0 %6692
    %v6697 = vsel %vm3922, %v6687, 0
    %v6699 = vsel %vm3926, %v6693, 0
    %6701 = vmatprep.subr.mxu0 0.0
    %6702 = vmatpush1.msra.mxu0 %v6689
    %6703 = vmatprep.subr.mxu0 0.0
    %6704 = vmatpush1.msra.mxu0 %v6691
    %6705 = vmatprep.subr.mxu0 0.0
    %6706 = vmatpush1.msra.mxu0 %v6699
    %6707 = vmatprep.subr.mxu0 0.0
    %6708 = vmatpush1.msra.mxu0 0.0
    %6709 = vmatprep.subr.mxu0 0.0
    %6710 = vmatpush1.msra.mxu0 0.0
    %6711 = vmatprep.subr.mxu0 0.0
    %6712 = vmatpush1.msra.mxu0 0.0
    %6713 = vmatprep.subr.mxu0 0.0
    %6714 = vmatpush1.msra.mxu0 0.0
    %6715 = vmatprep.subr.mxu0 0.0
    %6716 = vmatpush1.msra.mxu0 0.0
    %6717 = vmatprep.subr.mxu0 0.0
    %6718 = vmatpush1.msra.mxu0 0.0
    %6719 = vmatprep.subr.mxu0 0.0
    %6720 = vmatpush1.msra.mxu0 0.0
    %6721 = vmatprep.subr.mxu0 0.0
    %6722 = vmatpush1.msra.mxu0 0.0
    %6723 = vmatprep.subr.mxu0 0.0
    %6724 = vmatpush1.msra.mxu0 0.0
    %6725 = vmatprep.subr.mxu0 0.0
    %6726 = vmatpush1.msra.mxu0 0.0
    %6727 = vmatprep.subr.mxu0 0.0
    %6728 = vmatpush1.msra.mxu0 0.0
    %6729 = vmatprep.subr.mxu0 0.0
    %6730 = vmatpush1.msra.mxu0 0.0
    %6731 = vmatprep.subr.mxu0 0.0
    %6732 = vmatpush1.msra.mxu0 0.0
    %6733 = vmatprep.subr.mxu0 0.0
    %6734 = vmatpush1.msra.mxu0 0.0
    %6735 = vmatprep.subr.mxu0 0.0
    %6736 = vmatpush1.msra.mxu0 0.0
    %6737 = vmatprep.subr.mxu0 0.0
    %6738 = vmatpush1.msra.mxu0 0.0
    %6739 = vmatprep.subr.mxu0 0.0
    %6740 = vmatpush1.msra.mxu0 0.0
    %6741 = vmatprep.subr.mxu0 0.0
    %6742 = vmatpush1.msra.mxu0 0.0
    %6743 = vmatprep.subr.mxu0 0.0
    %6744 = vmatpush1.msra.mxu0 0.0
    %6745 = vmatprep.subr.mxu0 0.0
    %6746 = vmatpush1.msra.mxu0 0.0
    %6747 = vmatprep.subr.mxu0 0.0
    %6748 = vmatpush1.msra.mxu0 0.0
    %6749 = vmatprep.subr.mxu0 0.0
    %6750 = vmatpush1.msra.mxu0 0.0
    %6751 = vmatprep.subr.mxu0 0.0
    %6752 = vmatpush1.msra.mxu0 0.0
    %6753 = vmatprep.subr.mxu0 0.0
    %6754 = vmatpush1.msra.mxu0 0.0
    %6755 = vmatprep.subr.mxu0 0.0
    %6756 = vmatpush1.msra.mxu0 0.0
    %6757 = vmatprep.subr.mxu0 0.0
    %6758 = vmatpush1.msra.mxu0 0.0
    %6759 = vmatprep.subr.mxu0 0.0
    %6760 = vmatpush1.msra.mxu0 0.0
    %6761 = vmatprep.subr.mxu0 0.0
    %6762 = vmatpush1.msra.mxu0 0.0
    %6763 = vmatprep.subr.mxu0 0.0
    %6764 = vmatpush1.msra.mxu0 0.0
    %6765 = vmatprep.mubr.f32.mxu0 0.0
    %6766 = vmatmul.mubr.f32.gmra.mrb[0].mxu0 %v6697
    %v6767 = vpop.f32.mrb[0].mxu0
    %v6768 = vadd.f32 0.0, %v6767
    %v6769 = vpop.f32.mrb[0].mxu0
    %6770 = vdwg.mxu0
    %v6771 = vsel %vm3728, %v6484, %v6102
    %6772 = vrot.lane.b32.xlu0 %v6015, 96
    %v6773 = vpop.permute.xlu0 %6772
    %v6776 = vlaneseq
    %v6777 = vshrl.u32 %v6776, 7
    %v6778 = vsub.s32 2, %v6777
    %v6779 = vrot.slane %v6204, %v6778
    %6781 = vrot.lane.b32.xlu0 %v6779, 32
    %v6782 = vpop.permute.xlu0 %6781
    %v6784 = vadd.f32 %v5928, %v6782
    %v6785 = vlaneseq
    %v6786 = vshrl.u32 %v6785, 7
    %v6787 = vsub.s32 2, %v6786
    %v6788 = vrot.slane %v6206, %v6787
    %6790 = vrot.lane.b32.xlu0 %v6788, 32
    %v6791 = vpop.permute.xlu0 %6790
    %v6793 = vadd.f32 %v5928, %v6791
    %6795 = vrot.lane.b32.xlu0 %v6793, 96
    %v6796 = vpop.permute.xlu0 %6795
    %6797 = vrot.lane.b32.xlu0 %v6181, 96
    %v6798 = vpop.permute.xlu0 %6797
    %6799 = vrot.lane.b32.xlu0 %v6186, 96
    %v6800 = vpop.permute.xlu0 %6799
    %6801 = vrot.lane.b32.xlu0 %v6191, 96
    %v6802 = vpop.permute.xlu0 %6801
    %v6803 = vsel %vm3728, %v6796, 0
    %v6805 = vsel %vm3728, %v6798, 0
    %v6807 = vsel %vm3728, %v6800, 0
    %v6809 = vsel %vm3728, %v6802, 0
    %6811 = vmatprep.subr.mxu0 0.0
    %6812 = vmatpush1.xpose.msra.mxu0 %v6805
    %6813 = vmatprep.subr.mxu0 0.0
    %6814 = vmatpush1.xpose.msra.mxu0 %v6807
    %6815 = vmatprep.subr.mxu0 0.0
    %6816 = vmatpush1.xpose.msra.mxu0 %v6809
    %6817 = vmatprep.subr.mxu0 0.0
    %6818 = vmatpush1.xpose.msra.mxu0 0.0
    %6819 = vmatprep.subr.mxu0 0.0
    %6820 = vmatpush1.xpose.msra.mxu0 0.0
    %6821 = vmatprep.subr.mxu0 0.0
    %6822 = vmatpush1.xpose.msra.mxu0 0.0
    %6823 = vmatprep.subr.mxu0 0.0
    %6824 = vmatpush1.xpose.msra.mxu0 0.0
    %6825 = vmatprep.subr.mxu0 0.0
    %6826 = vmatpush1.xpose.msra.mxu0 0.0
    %6827 = vmatprep.subr.mxu0 0.0
    %6828 = vmatpush1.xpose.msra.mxu0 0.0
    %6829 = vmatprep.subr.mxu0 0.0
    %6830 = vmatpush1.xpose.msra.mxu0 0.0
    %6831 = vmatprep.subr.mxu0 0.0
    %6832 = vmatpush1.xpose.msra.mxu0 0.0
    %6833 = vmatprep.subr.mxu0 0.0
    %6834 = vmatpush1.xpose.msra.mxu0 0.0
    %6835 = vmatprep.subr.mxu0 0.0
    %6836 = vmatpush1.xpose.msra.mxu0 0.0
    %6837 = vmatprep.subr.mxu0 0.0
    %6838 = vmatpush1.xpose.msra.mxu0 0.0
    %6839 = vmatprep.subr.mxu0 0.0
    %6840 = vmatpush1.xpose.msra.mxu0 0.0
    %6841 = vmatprep.subr.mxu0 0.0
    %6842 = vmatpush1.xpose.msra.mxu0 0.0
    %6843 = vmatprep.subr.mxu0 0.0
    %6844 = vmatpush1.xpose.msra.mxu0 0.0
    %6845 = vmatprep.subr.mxu0 0.0
    %6846 = vmatpush1.xpose.msra.mxu0 0.0
    %6847 = vmatprep.subr.mxu0 0.0
    %6848 = vmatpush1.xpose.msra.mxu0 0.0
    %6849 = vmatprep.subr.mxu0 0.0
    %6850 = vmatpush1.xpose.msra.mxu0 0.0
    %6851 = vmatprep.subr.mxu0 0.0
    %6852 = vmatpush1.xpose.msra.mxu0 0.0
    %6853 = vmatprep.subr.mxu0 0.0
    %6854 = vmatpush1.xpose.msra.mxu0 0.0
    %6855 = vmatprep.subr.mxu0 0.0
    %6856 = vmatpush1.xpose.msra.mxu0 0.0
    %6857 = vmatprep.subr.mxu0 0.0
    %6858 = vmatpush1.xpose.msra.mxu0 0.0
    %6859 = vmatprep.subr.mxu0 0.0
    %6860 = vmatpush1.xpose.msra.mxu0 0.0
    %6861 = vmatprep.subr.mxu0 0.0
    %6862 = vmatpush1.xpose.msra.mxu0 0.0
    %6863 = vmatprep.subr.mxu0 0.0
    %6864 = vmatpush1.xpose.msra.mxu0 0.0
    %6865 = vmatprep.subr.mxu0 0.0
    %6866 = vmatpush1.xpose.msra.mxu0 0.0
    %6867 = vmatprep.subr.mxu0 0.0
    %6868 = vmatpush1.xpose.msra.mxu0 0.0
    %6869 = vmatprep.subr.mxu0 0.0
    %6870 = vmatpush1.xpose.msra.mxu0 0.0
    %6871 = vmatprep.subr.mxu0 0.0
    %6872 = vmatpush1.xpose.msra.mxu0 0.0
    %6873 = vmatprep.subr.mxu0 0.0
    %6874 = vmatpush1.xpose.msra.mxu0 0.0
    %6875 = vmatprep.mubr.f32.mxu0 0.0
    %6876 = vmatmul.mubr.f32.gmra.mrb[0].mxu0 %v6803
    %v6877 = vpop.f32.mrb[0].mxu0
    %v6878 = vadd.f32 0.0, %v6877
    %v6879 = vpop.f32.mrb[0].mxu0
    %6880 = vdwg.mxu0
    %6882 = vrot.lane.b32.xlu0 %v6784, 96
    %v6883 = vpop.permute.xlu0 %6882
    %v6884 = vsel %vm3728, %v6883, 0
    %v6887 = vsel %vm3728, %v6199, 0
    %v6890 = vsel %vm3728, %v6200, 0
    %v6892 = vsel %vm3728, %v6773, 0
    %6894 = vmatprep.subr.mxu0 0.0
    %6895 = vmatpush1.xpose.msra.mxu0 %v6887
    %6896 = vmatprep.subr.mxu0 0.0
    %6897 = vmatpush1.xpose.msra.mxu0 %v6890
    %6898 = vmatprep.subr.mxu0 0.0
    %6899 = vmatpush1.xpose.msra.mxu0 %v6892
    %6900 = vmatprep.subr.mxu0 0.0
    %6901 = vmatpush1.xpose.msra.mxu0 0.0
    %6902 = vmatprep.subr.mxu0 0.0
    %6903 = vmatpush1.xpose.msra.mxu0 0.0
    %6904 = vmatprep.subr.mxu0 0.0
    %6905 = vmatpush1.xpose.msra.mxu0 0.0
    %6906 = vmatprep.subr.mxu0 0.0
    %6907 = vmatpush1.xpose.msra.mxu0 0.0
    %6908 = vmatprep.subr.mxu0 0.0
    %6909 = vmatpush1.xpose.msra.mxu0 0.0
    %6910 = vmatprep.subr.mxu0 0.0
    %6911 = vmatpush1.xpose.msra.mxu0 0.0
    %6912 = vmatprep.subr.mxu0 0.0
    %6913 = vmatpush1.xpose.msra.mxu0 0.0
    %6914 = vmatprep.subr.mxu0 0.0
    %6915 = vmatpush1.xpose.msra.mxu0 0.0
    %6916 = vmatprep.subr.mxu0 0.0
    %6917 = vmatpush1.xpose.msra.mxu0 0.0
    %6918 = vmatprep.subr.mxu0 0.0
    %6919 = vmatpush1.xpose.msra.mxu0 0.0
    %6920 = vmatprep.subr.mxu0 0.0
    %6921 = vmatpush1.xpose.msra.mxu0 0.0
    %6922 = vmatprep.subr.mxu0 0.0
    %6923 = vmatpush1.xpose.msra.mxu0 0.0
    %6924 = vmatprep.subr.mxu0 0.0
    %6925 = vmatpush1.xpose.msra.mxu0 0.0
    %6926 = vmatprep.subr.mxu0 0.0
    %6927 = vmatpush1.xpose.msra.mxu0 0.0
    %6928 = vmatprep.subr.mxu0 0.0
    %6929 = vmatpush1.xpose.msra.mxu0 0.0
    %6930 = vmatprep.subr.mxu0 0.0
    %6931 = vmatpush1.xpose.msra.mxu0 0.0
    %6932 = vmatprep.subr.mxu0 0.0
    %6933 = vmatpush1.xpose.msra.mxu0 0.0
    %6934 = vmatprep.subr.mxu0 0.0
    %6935 = vmatpush1.xpose.msra.mxu0 0.0
    %6936 = vmatprep.subr.mxu0 0.0
    %6937 = vmatpush1.xpose.msra.mxu0 0.0
    %6938 = vmatprep.subr.mxu0 0.0
    %6939 = vmatpush1.xpose.msra.mxu0 0.0
    %6940 = vmatprep.subr.mxu0 0.0
    %6941 = vmatpush1.xpose.msra.mxu0 0.0
    %6942 = vmatprep.subr.mxu0 0.0
    %6943 = vmatpush1.xpose.msra.mxu0 0.0
    %6944 = vmatprep.subr.mxu0 0.0
    %6945 = vmatpush1.xpose.msra.mxu0 0.0
    %6946 = vmatprep.subr.mxu0 0.0
    %6947 = vmatpush1.xpose.msra.mxu0 0.0
    %6948 = vmatprep.subr.mxu0 0.0
    %6949 = vmatpush1.xpose.msra.mxu0 0.0
    %6950 = vmatprep.subr.mxu0 0.0
    %6951 = vmatpush1.xpose.msra.mxu0 0.0
    %6952 = vmatprep.subr.mxu0 0.0
    %6953 = vmatpush1.xpose.msra.mxu0 0.0
    %6954 = vmatprep.subr.mxu0 0.0
    %6955 = vmatpush1.xpose.msra.mxu0 0.0
    %6956 = vmatprep.subr.mxu0 0.0
    %6957 = vmatpush1.xpose.msra.mxu0 0.0
    %6958 = vmatprep.mubr.f32.mxu0 0.0
    %6959 = vmatmul.mubr.f32.gmra.mrb[0].mxu0 %v6884
    %v6960 = vpop.f32.mrb[0].mxu0
    %v6961 = vadd.f32 %v6878, %v6960
    %v6962 = vpop.f32.mrb[0].mxu0
    %6963 = vdwg.mxu0
    %v6964 = vmul.f32 %v6961, 0.25
    %v6965 = vsel %vm3899, %v6964, -1e+30
    %v6966 = vsel %vm3901, %v6965, -inf
    %6967 = vmax.xlane.f32.xlu0 %v6966
    %v6968 = vpop.xlane.xlu0 %6967
    %v6969 = vsub.f32 %v6965, %v6968
    %v6970 = vmul.f32 %v6969, 1.442695
    %v6971 = vpow.pop %v6970
    %v6972 = vsel %vm3899, %v6971, 0.0
    %v6973 = vsel %vm3901, %v6972, 0.0
    %6974 = vadd.xlane.f32.xlu0 %v6973
    %v6975 = vpop.xlane.xlu0 %6974
    %v6976 = vrcp.pop %v6975
    %v6977 = vmul.f32 %v6972, %v6976
    %6978 = vrot.lane.b32.xlu0 %v6199, 112
    %v6979 = vpop.permute.xlu0 %6978
    %6980 = vrot.lane.b32.xlu0 %v6200, 112
    %v6981 = vpop.permute.xlu0 %6980
    %6982 = vrot.lane.b32.xlu0 %v6693, 112
    %v6983 = vpop.permute.xlu0 %6982
    %v6987 = vsel %vm3922, %v6977, 0
    %v6989 = vsel %vm3926, %v6983, 0
    %6991 = vmatprep.subr.mxu0 0.0
    %6992 = vmatpush1.msra.mxu0 %v6979
    %6993 = vmatprep.subr.mxu0 0.0
    %6994 = vmatpush1.msra.mxu0 %v6981
    %6995 = vmatprep.subr.mxu0 0.0
    %6996 = vmatpush1.msra.mxu0 %v6989
    %6997 = vmatprep.subr.mxu0 0.0
    %6998 = vmatpush1.msra.mxu0 0.0
    %6999 = vmatprep.subr.mxu0 0.0
    %7000 = vmatpush1.msra.mxu0 0.0
    %7001 = vmatprep.subr.mxu0 0.0
    %7002 = vmatpush1.msra.mxu0 0.0
    %7003 = vmatprep.subr.mxu0 0.0
    %7004 = vmatpush1.msra.mxu0 0.0
    %7005 = vmatprep.subr.mxu0 0.0
    %7006 = vmatpush1.msra.mxu0 0.0
    %7007 = vmatprep.subr.mxu0 0.0
    %7008 = vmatpush1.msra.mxu0 0.0
    %7009 = vmatprep.subr.mxu0 0.0
    %7010 = vmatpush1.msra.mxu0 0.0
    %7011 = vmatprep.subr.mxu0 0.0
    %7012 = vmatpush1.msra.mxu0 0.0
    %7013 = vmatprep.subr.mxu0 0.0
    %7014 = vmatpush1.msra.mxu0 0.0
    %7015 = vmatprep.subr.mxu0 0.0
    %7016 = vmatpush1.msra.mxu0 0.0
    %7017 = vmatprep.subr.mxu0 0.0
    %7018 = vmatpush1.msra.mxu0 0.0
    %7019 = vmatprep.subr.mxu0 0.0
    %7020 = vmatpush1.msra.mxu0 0.0
    %7021 = vmatprep.subr.mxu0 0.0
    %7022 = vmatpush1.msra.mxu0 0.0
    %7023 = vmatprep.subr.mxu0 0.0
    %7024 = vmatpush1.msra.mxu0 0.0
    %7025 = vmatprep.subr.mxu0 0.0
    %7026 = vmatpush1.msra.mxu0 0.0
    %7027 = vmatprep.subr.mxu0 0.0
    %7028 = vmatpush1.msra.mxu0 0.0
    %7029 = vmatprep.subr.mxu0 0.0
    %7030 = vmatpush1.msra.mxu0 0.0
    %7031 = vmatprep.subr.mxu0 0.0
    %7032 = vmatpush1.msra.mxu0 0.0
    %7033 = vmatprep.subr.mxu0 0.0
    %7034 = vmatpush1.msra.mxu0 0.0
    %7035 = vmatprep.subr.mxu0 0.0
    %7036 = vmatpush1.msra.mxu0 0.0
    %7037 = vmatprep.subr.mxu0 0.0
    %7038 = vmatpush1.msra.mxu0 0.0
    %7039 = vmatprep.subr.mxu0 0.0
    %7040 = vmatpush1.msra.mxu0 0.0
    %7041 = vmatprep.subr.mxu0 0.0
    %7042 = vmatpush1.msra.mxu0 0.0
    %7043 = vmatprep.subr.mxu0 0.0
    %7044 = vmatpush1.msra.mxu0 0.0
    %7045 = vmatprep.subr.mxu0 0.0
    %7046 = vmatpush1.msra.mxu0 0.0
    %7047 = vmatprep.subr.mxu0 0.0
    %7048 = vmatpush1.msra.mxu0 0.0
    %7049 = vmatprep.subr.mxu0 0.0
    %7050 = vmatpush1.msra.mxu0 0.0
    %7051 = vmatprep.subr.mxu0 0.0
    %7052 = vmatpush1.msra.mxu0 0.0
    %7053 = vmatprep.subr.mxu0 0.0
    %7054 = vmatpush1.msra.mxu0 0.0
    %7055 = vmatprep.mubr.f32.mxu0 0.0
    %7056 = vmatmul.mubr.f32.gmra.mrb[0].mxu0 %v6987
    %v7057 = vpop.f32.mrb[0].mxu0
    %v7058 = vadd.f32 0.0, %v7057
    %v7059 = vpop.f32.mrb[0].mxu0
    %7060 = vdwg.mxu0
    %v7061 = vsel %vm3728, %v6773, %v6693
    %7062 = vrot.lane.b32.xlu0 %v6015, 80
    %v7063 = vpop.permute.xlu0 %7062
    %7065 = vrot.lane.b32.xlu0 %v6102, 96
    %v7066 = vpop.permute.xlu0 %7065
    %v7068 = vlaneseq
    %v7069 = vshrl.u32 %v7068, 7
    %v7070 = vsub.s32 3, %v7069
    %v7071 = vrot.slane %v6204, %v7070
    %7073 = vrot.lane.b32.xlu0 %v7071, 48
    %v7074 = vpop.permute.xlu0 %7073
    %v7076 = vadd.f32 %v5928, %v7074
    %v7077 = vlaneseq
    %v7078 = vshrl.u32 %v7077, 7
    %v7079 = vsub.s32 3, %v7078
    %v7080 = vrot.slane %v6206, %v7079
    %7082 = vrot.lane.b32.xlu0 %v7080, 48
    %v7083 = vpop.permute.xlu0 %7082
    %v7085 = vadd.f32 %v5928, %v7083
    %7087 = vrot.lane.b32.xlu0 %v7085, 80
    %v7088 = vpop.permute.xlu0 %7087
    %7089 = vrot.lane.b32.xlu0 %v6181, 80
    %v7090 = vpop.permute.xlu0 %7089
    %7091 = vrot.lane.b32.xlu0 %v6186, 80
    %v7092 = vpop.permute.xlu0 %7091
    %7093 = vrot.lane.b32.xlu0 %v6191, 80
    %v7094 = vpop.permute.xlu0 %7093
    %v7095 = vsel %vm3728, %v7088, 0
    %v7097 = vsel %vm3728, %v7090, 0
    %v7099 = vsel %vm3728, %v7092, 0
    %v7101 = vsel %vm3728, %v7094, 0
    %7103 = vmatprep.subr.mxu0 0.0
    %7104 = vmatpush1.xpose.msra.mxu0 %v7097
    %7105 = vmatprep.subr.mxu0 0.0
    %7106 = vmatpush1.xpose.msra.mxu0 %v7099
    %7107 = vmatprep.subr.mxu0 0.0
    %7108 = vmatpush1.xpose.msra.mxu0 %v7101
    %7109 = vmatprep.subr.mxu0 0.0
    %7110 = vmatpush1.xpose.msra.mxu0 0.0
    %7111 = vmatprep.subr.mxu0 0.0
    %7112 = vmatpush1.xpose.msra.mxu0 0.0
    %7113 = vmatprep.subr.mxu0 0.0
    %7114 = vmatpush1.xpose.msra.mxu0 0.0
    %7115 = vmatprep.subr.mxu0 0.0
    %7116 = vmatpush1.xpose.msra.mxu0 0.0
    %7117 = vmatprep.subr.mxu0 0.0
    %7118 = vmatpush1.xpose.msra.mxu0 0.0
    %7119 = vmatprep.subr.mxu0 0.0
    %7120 = vmatpush1.xpose.msra.mxu0 0.0
    %7121 = vmatprep.subr.mxu0 0.0
    %7122 = vmatpush1.xpose.msra.mxu0 0.0
    %7123 = vmatprep.subr.mxu0 0.0
    %7124 = vmatpush1.xpose.msra.mxu0 0.0
    %7125 = vmatprep.subr.mxu0 0.0
    %7126 = vmatpush1.xpose.msra.mxu0 0.0
    %7127 = vmatprep.subr.mxu0 0.0
    %7128 = vmatpush1.xpose.msra.mxu0 0.0
    %7129 = vmatprep.subr.mxu0 0.0
    %7130 = vmatpush1.xpose.msra.mxu0 0.0
    %7131 = vmatprep.subr.mxu0 0.0
    %7132 = vmatpush1.xpose.msra.mxu0 0.0
    %7133 = vmatprep.subr.mxu0 0.0
    %7134 = vmatpush1.xpose.msra.mxu0 0.0
    %7135 = vmatprep.subr.mxu0 0.0
    %7136 = vmatpush1.xpose.msra.mxu0 0.0
    %7137 = vmatprep.subr.mxu0 0.0
    %7138 = vmatpush1.xpose.msra.mxu0 0.0
    %7139 = vmatprep.subr.mxu0 0.0
    %7140 = vmatpush1.xpose.msra.mxu0 0.0
    %7141 = vmatprep.subr.mxu0 0.0
    %7142 = vmatpush1.xpose.msra.mxu0 0.0
    %7143 = vmatprep.subr.mxu0 0.0
    %7144 = vmatpush1.xpose.msra.mxu0 0.0
    %7145 = vmatprep.subr.mxu0 0.0
    %7146 = vmatpush1.xpose.msra.mxu0 0.0
    %7147 = vmatprep.subr.mxu0 0.0
    %7148 = vmatpush1.xpose.msra.mxu0 0.0
    %7149 = vmatprep.subr.mxu0 0.0
    %7150 = vmatpush1.xpose.msra.mxu0 0.0
    %7151 = vmatprep.subr.mxu0 0.0
    %7152 = vmatpush1.xpose.msra.mxu0 0.0
    %7153 = vmatprep.subr.mxu0 0.0
    %7154 = vmatpush1.xpose.msra.mxu0 0.0
    %7155 = vmatprep.subr.mxu0 0.0
    %7156 = vmatpush1.xpose.msra.mxu0 0.0
    %7157 = vmatprep.subr.mxu0 0.0
    %7158 = vmatpush1.xpose.msra.mxu0 0.0
    %7159 = vmatprep.subr.mxu0 0.0
    %7160 = vmatpush1.xpose.msra.mxu0 0.0
    %7161 = vmatprep.subr.mxu0 0.0
    %7162 = vmatpush1.xpose.msra.mxu0 0.0
    %7163 = vmatprep.subr.mxu0 0.0
    %7164 = vmatpush1.xpose.msra.mxu0 0.0
    %7165 = vmatprep.subr.mxu0 0.0
    %7166 = vmatpush1.xpose.msra.mxu0 0.0
    %7167 = vmatprep.mubr.f32.mxu0 0.0
    %7168 = vmatmul.mubr.f32.gmra.mrb[0].mxu0 %v7095
    %v7169 = vpop.f32.mrb[0].mxu0
    %v7170 = vadd.f32 0.0, %v7169
    %v7171 = vpop.f32.mrb[0].mxu0
    %7172 = vdwg.mxu0
    %7174 = vrot.lane.b32.xlu0 %v7076, 80
    %v7175 = vpop.permute.xlu0 %7174
    %v7176 = vsel %vm3728, %v7175, 0
    %v7179 = vsel %vm3728, %v6201, 0
    %v7182 = vsel %vm3728, %v6202, 0
    %v7184 = vsel %vm3728, %v7063, 0
    %7186 = vmatprep.subr.mxu0 0.0
    %7187 = vmatpush1.xpose.msra.mxu0 %v7179
    %7188 = vmatprep.subr.mxu0 0.0
    %7189 = vmatpush1.xpose.msra.mxu0 %v7182
    %7190 = vmatprep.subr.mxu0 0.0
    %7191 = vmatpush1.xpose.msra.mxu0 %v7184
    %7192 = vmatprep.subr.mxu0 0.0
    %7193 = vmatpush1.xpose.msra.mxu0 0.0
    %7194 = vmatprep.subr.mxu0 0.0
    %7195 = vmatpush1.xpose.msra.mxu0 0.0
    %7196 = vmatprep.subr.mxu0 0.0
    %7197 = vmatpush1.xpose.msra.mxu0 0.0
    %7198 = vmatprep.subr.mxu0 0.0
    %7199 = vmatpush1.xpose.msra.mxu0 0.0
    %7200 = vmatprep.subr.mxu0 0.0
    %7201 = vmatpush1.xpose.msra.mxu0 0.0
    %7202 = vmatprep.subr.mxu0 0.0
    %7203 = vmatpush1.xpose.msra.mxu0 0.0
    %7204 = vmatprep.subr.mxu0 0.0
    %7205 = vmatpush1.xpose.msra.mxu0 0.0
    %7206 = vmatprep.subr.mxu0 0.0
    %7207 = vmatpush1.xpose.msra.mxu0 0.0
    %7208 = vmatprep.subr.mxu0 0.0
    %7209 = vmatpush1.xpose.msra.mxu0 0.0
    %7210 = vmatprep.subr.mxu0 0.0
    %7211 = vmatpush1.xpose.msra.mxu0 0.0
    %7212 = vmatprep.subr.mxu0 0.0
    %7213 = vmatpush1.xpose.msra.mxu0 0.0
    %7214 = vmatprep.subr.mxu0 0.0
    %7215 = vmatpush1.xpose.msra.mxu0 0.0
    %7216 = vmatprep.subr.mxu0 0.0
    %7217 = vmatpush1.xpose.msra.mxu0 0.0
    %7218 = vmatprep.subr.mxu0 0.0
    %7219 = vmatpush1.xpose.msra.mxu0 0.0
    %7220 = vmatprep.subr.mxu0 0.0
    %7221 = vmatpush1.xpose.msra.mxu0 0.0
    %7222 = vmatprep.subr.mxu0 0.0
    %7223 = vmatpush1.xpose.msra.mxu0 0.0
    %7224 = vmatprep.subr.mxu0 0.0
    %7225 = vmatpush1.xpose.msra.mxu0 0.0
    %7226 = vmatprep.subr.mxu0 0.0
    %7227 = vmatpush1.xpose.msra.mxu0 0.0
    %7228 = vmatprep.subr.mxu0 0.0
    %7229 = vmatpush1.xpose.msra.mxu0 0.0
    %7230 = vmatprep.subr.mxu0 0.0
    %7231 = vmatpush1.xpose.msra.mxu0 0.0
    %7232 = vmatprep.subr.mxu0 0.0
    %7233 = vmatpush1.xpose.msra.mxu0 0.0
    %7234 = vmatprep.subr.mxu0 0.0
    %7235 = vmatpush1.xpose.msra.mxu0 0.0
    %7236 = vmatprep.subr.mxu0 0.0
    %7237 = vmatpush1.xpose.msra.mxu0 0.0
    %7238 = vmatprep.subr.mxu0 0.0
    %7239 = vmatpush1.xpose.msra.mxu0 0.0
    %7240 = vmatprep.subr.mxu0 0.0
    %7241 = vmatpush1.xpose.msra.mxu0 0.0
    %7242 = vmatprep.subr.mxu0 0.0
    %7243 = vmatpush1.xpose.msra.mxu0 0.0
    %7244 = vmatprep.subr.mxu0 0.0
    %7245 = vmatpush1.xpose.msra.mxu0 0.0
    %7246 = vmatprep.subr.mxu0 0.0
    %7247 = vmatpush1.xpose.msra.mxu0 0.0
    %7248 = vmatprep.subr.mxu0 0.0
    %7249 = vmatpush1.xpose.msra.mxu0 0.0
    %7250 = vmatprep.mubr.f32.mxu0 0.0
    %7251 = vmatmul.mubr.f32.gmra.mrb[0].mxu0 %v7176
    %v7252 = vpop.f32.mrb[0].mxu0
    %v7253 = vadd.f32 %v7170, %v7252
    %v7254 = vpop.f32.mrb[0].mxu0
    %7255 = vdwg.mxu0
    %v7256 = vmul.f32 %v7253, 0.25
    %v7257 = vsel %vm3899, %v7256, -1e+30
    %v7258 = vsel %vm3901, %v7257, -inf
    %7259 = vmax.xlane.f32.xlu0 %v7258
    %v7260 = vpop.xlane.xlu0 %7259
    %v7261 = vsub.f32 %v7257, %v7260
    %v7262 = vmul.f32 %v7261, 1.442695
    %v7263 = vpow.pop %v7262
    %v7264 = vsel %vm3899, %v7263, 0.0
    %v7265 = vsel %vm3901, %v7264, 0.0
    %7266 = vadd.xlane.f32.xlu0 %v7265
    %v7267 = vpop.xlane.xlu0 %7266
    %v7268 = vrcp.pop %v7267
    %v7269 = vmul.f32 %v7264, %v7268
    %7270 = vrot.lane.b32.xlu0 %v6201, 112
    %v7271 = vpop.permute.xlu0 %7270
    %7272 = vrot.lane.b32.xlu0 %v6202, 112
    %v7273 = vpop.permute.xlu0 %7272
    %7274 = vrot.lane.b32.xlu0 %v7066, 112
    %v7275 = vpop.permute.xlu0 %7274
    %v7279 = vsel %vm3922, %v7269, 0
    %v7281 = vsel %vm3926, %v7275, 0
    %7283 = vmatprep.subr.mxu0 0.0
    %7284 = vmatpush1.msra.mxu0 %v7271
    %7285 = vmatprep.subr.mxu0 0.0
    %7286 = vmatpush1.msra.mxu0 %v7273
    %7287 = vmatprep.subr.mxu0 0.0
    %7288 = vmatpush1.msra.mxu0 %v7281
    %7289 = vmatprep.subr.mxu0 0.0
    %7290 = vmatpush1.msra.mxu0 0.0
    %7291 = vmatprep.subr.mxu0 0.0
    %7292 = vmatpush1.msra.mxu0 0.0
    %7293 = vmatprep.subr.mxu0 0.0
    %7294 = vmatpush1.msra.mxu0 0.0
    %7295 = vmatprep.subr.mxu0 0.0
    %7296 = vmatpush1.msra.mxu0 0.0
    %7297 = vmatprep.subr.mxu0 0.0
    %7298 = vmatpush1.msra.mxu0 0.0
    %7299 = vmatprep.subr.mxu0 0.0
    %7300 = vmatpush1.msra.mxu0 0.0
    %7301 = vmatprep.subr.mxu0 0.0
    %7302 = vmatpush1.msra.mxu0 0.0
    %7303 = vmatprep.subr.mxu0 0.0
    %7304 = vmatpush1.msra.mxu0 0.0
    %7305 = vmatprep.subr.mxu0 0.0
    %7306 = vmatpush1.msra.mxu0 0.0
    %7307 = vmatprep.subr.mxu0 0.0
    %7308 = vmatpush1.msra.mxu0 0.0
    %7309 = vmatprep.subr.mxu0 0.0
    %7310 = vmatpush1.msra.mxu0 0.0
    %7311 = vmatprep.subr.mxu0 0.0
    %7312 = vmatpush1.msra.mxu0 0.0
    %7313 = vmatprep.subr.mxu0 0.0
    %7314 = vmatpush1.msra.mxu0 0.0
    %7315 = vmatprep.subr.mxu0 0.0
    %7316 = vmatpush1.msra.mxu0 0.0
    %7317 = vmatprep.subr.mxu0 0.0
    %7318 = vmatpush1.msra.mxu0 0.0
    %7319 = vmatprep.subr.mxu0 0.0
    %7320 = vmatpush1.msra.mxu0 0.0
    %7321 = vmatprep.subr.mxu0 0.0
    %7322 = vmatpush1.msra.mxu0 0.0
    %7323 = vmatprep.subr.mxu0 0.0
    %7324 = vmatpush1.msra.mxu0 0.0
    %7325 = vmatprep.subr.mxu0 0.0
    %7326 = vmatpush1.msra.mxu0 0.0
    %7327 = vmatprep.subr.mxu0 0.0
    %7328 = vmatpush1.msra.mxu0 0.0
    %7329 = vmatprep.subr.mxu0 0.0
    %7330 = vmatpush1.msra.mxu0 0.0
    %7331 = vmatprep.subr.mxu0 0.0
    %7332 = vmatpush1.msra.mxu0 0.0
    %7333 = vmatprep.subr.mxu0 0.0
    %7334 = vmatpush1.msra.mxu0 0.0
    %7335 = vmatprep.subr.mxu0 0.0
    %7336 = vmatpush1.msra.mxu0 0.0
    %7337 = vmatprep.subr.mxu0 0.0
    %7338 = vmatpush1.msra.mxu0 0.0
    %7339 = vmatprep.subr.mxu0 0.0
    %7340 = vmatpush1.msra.mxu0 0.0
    %7341 = vmatprep.subr.mxu0 0.0
    %7342 = vmatpush1.msra.mxu0 0.0
    %7343 = vmatprep.subr.mxu0 0.0
    %7344 = vmatpush1.msra.mxu0 0.0
    %7345 = vmatprep.subr.mxu0 0.0
    %7346 = vmatpush1.msra.mxu0 0.0
    %7347 = vmatprep.mubr.f32.mxu0 0.0
    %7348 = vmatmul.mubr.f32.gmra.mrb[0].mxu0 %v7279
    %v7349 = vpop.f32.mrb[0].mxu0
    %v7350 = vadd.f32 0.0, %v7349
    %v7351 = vpop.f32.mrb[0].mxu0
    %7352 = vdwg.mxu0
    %v7353 = vsel %vm3728, %v7063, %v7066
    %s7354 = scalar_lea.vmem [#allocation46], 64
    %7355 = vst.msk [vmem:[%s7354 - $0x4] sm:$0xf0] %vm4871, %v6195
    %7356 = vst.msk [vmem:[%s7354 + $0x4] sm:$0xff] %vm4873, %v6196
    %7357 = vst.msk [vmem:[%s7354 + $0xc] sm:$0xf] %vm4875, %v6482
    %7358 = vst.msk [vmem:[%s7354 + $0xc] sm:$0xf0] %vm4871, %v6197
    %7359 = vst.msk [vmem:[%s7354 + $0x14] sm:$0xff] %vm4873, %v6198
    %7360 = vst.msk [vmem:[%s7354 + $0x1c] sm:$0xf] %vm4875, %v6771
    %7361 = vst.msk [vmem:[%s7354 + $0x1c] sm:$0xf0] %vm4871, %v6199
    %7362 = vst.msk [vmem:[%s7354 + $0x24] sm:$0xff] %vm4873, %v6200
    %7363 = vst.msk [vmem:[%s7354 + $0x2c] sm:$0xf] %vm4875, %v7061
    %7364 = vst.msk [vmem:[%s7354 + $0x2c] sm:$0xf0] %vm4871, %v6201
    %7365 = vst.msk [vmem:[%s7354 + $0x34] sm:$0xff] %vm4873, %v6202
    %7366 = vst.msk [vmem:[%s7354 + $0x3c] sm:$0xf] %vm4875, %v7353
    %7368 = vrot.lane.b32.xlu0 %v6768, 16
    %v7369 = vpop.permute.xlu0 %7368
    %7372 = vrot.lane.b32.xlu0 %v7058, 32
    %v7373 = vpop.permute.xlu0 %7372
    %7376 = vrot.lane.b32.xlu0 %v7350, 48
    %v7377 = vpop.permute.xlu0 %7376
    %v7379 = vsel %vm3728, %v6479, %v7369
    %v7380 = vsel %vm4873, %v7379, %v7373
    %v7381 = vsel %vm4900, %v7380, %v7377
    %s7382 = scalar_lea.vmem %s97, 64
    %v7383 = vld [vmem:[%s7382] sm:$0xff]
    %v7384 = vld [vmem:[%s7382 + $0x8] sm:$0xff]
    %v7385 = vld [vmem:[%s7382 + $0x10] sm:$0xff]
    %v7386 = vld [vmem:[%s7382 + $0x18] sm:$0xff]
    %v7387 = vld [vmem:[%s7382 + $0x20] sm:$0xff]
    %v7388 = vld [vmem:[%s7382 + $0x28] sm:$0xff]
    %v7389 = vld [vmem:[%s7382 + $0x30] sm:$0xff]
    %v7390 = vld [vmem:[%s7382 + $0x38] sm:$0xff]
    %v7392 = vsel %vm776, %v7381, 0
    %7394 = vmatprep.subr.mxu0 0.0
    %7395 = vmatpush1.msra.mxu0 %v7383
    %7396 = vmatprep.subr.mxu0 0.0
    %7397 = vmatpush1.msra.mxu0 %v7384
    %7398 = vmatprep.subr.mxu0 0.0
    %7399 = vmatpush1.msra.mxu0 %v7385
    %7400 = vmatprep.subr.mxu0 0.0
    %7401 = vmatpush1.msra.mxu0 %v7386
    %7402 = vmatprep.subr.mxu0 0.0
    %7403 = vmatpush1.msra.mxu0 %v7387
    %7404 = vmatprep.subr.mxu0 0.0
    %7405 = vmatpush1.msra.mxu0 %v7388
    %7406 = vmatprep.subr.mxu0 0.0
    %7407 = vmatpush1.msra.mxu0 %v7389
    %7408 = vmatprep.subr.mxu0 0.0
    %7409 = vmatpush1.msra.mxu0 %v7390
    %7410 = vmatprep.subr.mxu0 0.0
    %7411 = vmatpush1.msra.mxu0 0.0
    %7412 = vmatprep.subr.mxu0 0.0
    %7413 = vmatpush1.msra.mxu0 0.0
    %7414 = vmatprep.subr.mxu0 0.0
    %7415 = vmatpush1.msra.mxu0 0.0
    %7416 = vmatprep.subr.mxu0 0.0
    %7417 = vmatpush1.msra.mxu0 0.0
    %7418 = vmatprep.subr.mxu0 0.0
    %7419 = vmatpush1.msra.mxu0 0.0
    %7420 = vmatprep.subr.mxu0 0.0
    %7421 = vmatpush1.msra.mxu0 0.0
    %7422 = vmatprep.subr.mxu0 0.0
    %7423 = vmatpush1.msra.mxu0 0.0
    %7424 = vmatprep.subr.mxu0 0.0
    %7425 = vmatpush1.msra.mxu0 0.0
    %7426 = vmatprep.subr.mxu0 0.0
    %7427 = vmatpush1.msra.mxu0 0.0
    %7428 = vmatprep.subr.mxu0 0.0
    %7429 = vmatpush1.msra.mxu0 0.0
    %7430 = vmatprep.subr.mxu0 0.0
    %7431 = vmatpush1.msra.mxu0 0.0
    %7432 = vmatprep.subr.mxu0 0.0
    %7433 = vmatpush1.msra.mxu0 0.0
    %7434 = vmatprep.subr.mxu0 0.0
    %7435 = vmatpush1.msra.mxu0 0.0
    %7436 = vmatprep.subr.mxu0 0.0
    %7437 = vmatpush1.msra.mxu0 0.0
    %7438 = vmatprep.subr.mxu0 0.0
    %7439 = vmatpush1.msra.mxu0 0.0
    %7440 = vmatprep.subr.mxu0 0.0
    %7441 = vmatpush1.msra.mxu0 0.0
    %7442 = vmatprep.subr.mxu0 0.0
    %7443 = vmatpush1.msra.mxu0 0.0
    %7444 = vmatprep.subr.mxu0 0.0
    %7445 = vmatpush1.msra.mxu0 0.0
    %7446 = vmatprep.subr.mxu0 0.0
    %7447 = vmatpush1.msra.mxu0 0.0
    %7448 = vmatprep.subr.mxu0 0.0
    %7449 = vmatpush1.msra.mxu0 0.0
    %7450 = vmatprep.subr.mxu0 0.0
    %7451 = vmatpush1.msra.mxu0 0.0
    %7452 = vmatprep.subr.mxu0 0.0
    %7453 = vmatpush1.msra.mxu0 0.0
    %7454 = vmatprep.subr.mxu0 0.0
    %7455 = vmatpush1.msra.mxu0 0.0
    %7456 = vmatprep.subr.mxu0 0.0
    %7457 = vmatpush1.msra.mxu0 0.0
    %7458 = vmatprep.mubr.f32.mxu0 0.0
    %7459 = vmatmul.mubr.f32.gmra.mrb[0].mxu0 %v7392
    %v7460 = vpop.f32.mrb[0].mxu0
    %v7461 = vadd.f32 0.0, %v7460
    %v7462 = vpop.f32.mrb[0].mxu0
    %7463 = vdwg.mxu0
    %v7464 = vadd.f32 %v5809, %v7461
    %s7465 = scalar_lea.vmem [#allocation16], 1
    %v7466 = vld [vmem:[%s7465] sm:$0x1]
    %v7468 = vlaneseq
    %v7469 = vshrl.u32 %v7468, 7
    %v7470 = vsub.s32 0, %v7469
    %v7471 = vrot.slane %v7466, %v7470
    %v7473 = vadd.f32 %v7464, %v7471
    %s7474 = scalar_lea.vmem [#allocation29], 1
    %v7475 = vld [vmem:[%s7474] sm:$0x1]
    %s7476 = scalar_lea.vmem [#allocation28], 1
    %v7477 = vld [vmem:[%s7476] sm:$0x1]
    %v7478 = vsel %vm3101, %v7473, 0.0
    %7479 = vadd.xlane.f32.xlu0 %v7478
    %v7480 = vpop.xlane.xlu0 %7479
    %v7481 = vmul.f32 %v7480, %v3105
    %v7482 = vsub.f32 %v7473, %v7481
    %v7483 = vmul.f32 %v7482, %v7482
    %v7484 = vsel %vm3101, %v7483, 0.0
    %7485 = vadd.xlane.f32.xlu0 %v7484
    %v7486 = vpop.xlane.xlu0 %7485
    %v7487 = vmul.f32 %v7486, %v3105
    %v7488 = vadd.f32 %v7487, 1e-05
    %v7489 = vrsqrt.pop %v7488
    %v7490 = vmul.f32 %v7482, %v7489
    %v7492 = vlaneseq
    %v7493 = vshrl.u32 %v7492, 7
    %v7494 = vsub.s32 0, %v7493
    %v7495 = vrot.slane %v7475, %v7494
    %v7497 = vmul.f32 %v7490, %v7495
    %v7499 = vlaneseq
    %v7500 = vshrl.u32 %v7499, 7
    %v7501 = vsub.s32 0, %v7500
    %v7502 = vrot.slane %v7477, %v7501
    %v7504 = vadd.f32 %v7497, %v7502
    %s7505 = scalar_lea.vmem %s3, 8
    %v7506 = vld [vmem:[%s7505] sm:$0x3f]
    %v7508 = vrot.slane %v7504, 2
    %v7510 = vsel %vm5025, %v7506, %v7508
    %s7511 = scalar_lea.vmem %s109, 8
    %7512 = vst.msk [vmem:[%s7511 - $0x4] sm:$0xf0] %vm5027, %v7510
    %7513 = vst.msk [vmem:[%s7511 + $0x4] sm:$0x3] %vm5029, %v7508
    %s7514 = scalar_lea.vmem %s89, 64
    %v7515 = vld [vmem:[%s7514] sm:$0xff]
    %v7516 = vld [vmem:[%s7514 + $0x8] sm:$0xff]
    %v7517 = vld [vmem:[%s7514 + $0x10] sm:$0xff]
    %v7518 = vld [vmem:[%s7514 + $0x18] sm:$0xff]
    %v7519 = vld [vmem:[%s7514 + $0x20] sm:$0xff]
    %v7520 = vld [vmem:[%s7514 + $0x28] sm:$0xff]
    %v7521 = vld [vmem:[%s7514 + $0x30] sm:$0xff]
    %v7522 = vld [vmem:[%s7514 + $0x38] sm:$0xff]
    %s7523 = scalar_lea.vmem %s87, 1
    %v7524 = vld [vmem:[%s7523] sm:$0x1]
    %v7526 = vlaneseq
    %v7527 = vshrl.u32 %v7526, 7
    %v7528 = vsub.s32 0, %v7527
    %v7529 = vrot.slane %v7524, %v7528
    %v7532 = vsel %vm776, %v7510, 0
    %v7534 = vsel %vm776, %v7508, 0
    %7536 = vmatprep.subr.mxu0 0.0
    %7537 = vmatpush1.msra.mxu0 %v7515
    %7538 = vmatprep.subr.mxu0 0.0
    %7539 = vmatpush1.msra.mxu0 %v7516
    %7540 = vmatprep.subr.mxu0 0.0
    %7541 = vmatpush1.msra.mxu0 %v7517
    %7542 = vmatprep.subr.mxu0 0.0
    %7543 = vmatpush1.msra.mxu0 %v7518
    %7544 = vmatprep.subr.mxu0 0.0
    %7545 = vmatpush1.msra.mxu0 %v7519
    %7546 = vmatprep.subr.mxu0 0.0
    %7547 = vmatpush1.msra.mxu0 %v7520
    %7548 = vmatprep.subr.mxu0 0.0
    %7549 = vmatpush1.msra.mxu0 %v7521
    %7550 = vmatprep.subr.mxu0 0.0
    %7551 = vmatpush1.msra.mxu0 %v7522
    %7552 = vmatprep.subr.mxu0 0.0
    %7553 = vmatpush1.msra.mxu0 0.0
    %7554 = vmatprep.subr.mxu0 0.0
    %7555 = vmatpush1.msra.mxu0 0.0
    %7556 = vmatprep.subr.mxu0 0.0
    %7557 = vmatpush1.msra.mxu0 0.0
    %7558 = vmatprep.subr.mxu0 0.0
    %7559 = vmatpush1.msra.mxu0 0.0
    %7560 = vmatprep.subr.mxu0 0.0
    %7561 = vmatpush1.msra.mxu0 0.0
    %7562 = vmatprep.subr.mxu0 0.0
    %7563 = vmatpush1.msra.mxu0 0.0
    %7564 = vmatprep.subr.mxu0 0.0
    %7565 = vmatpush1.msra.mxu0 0.0
    %7566 = vmatprep.subr.mxu0 0.0
    %7567 = vmatpush1.msra.mxu0 0.0
    %7568 = vmatprep.subr.mxu0 0.0
    %7569 = vmatpush1.msra.mxu0 0.0
    %7570 = vmatprep.subr.mxu0 0.0
    %7571 = vmatpush1.msra.mxu0 0.0
    %7572 = vmatprep.subr.mxu0 0.0
    %7573 = vmatpush1.msra.mxu0 0.0
    %7574 = vmatprep.subr.mxu0 0.0
    %7575 = vmatpush1.msra.mxu0 0.0
    %7576 = vmatprep.subr.mxu0 0.0
    %7577 = vmatpush1.msra.mxu0 0.0
    %7578 = vmatprep.subr.mxu0 0.0
    %7579 = vmatpush1.msra.mxu0 0.0
    %7580 = vmatprep.subr.mxu0 0.0
    %7581 = vmatpush1.msra.mxu0 0.0
    %7582 = vmatprep.subr.mxu0 0.0
    %7583 = vmatpush1.msra.mxu0 0.0
    %7584 = vmatprep.subr.mxu0 0.0
    %7585 = vmatpush1.msra.mxu0 0.0
    %7586 = vmatprep.subr.mxu0 0.0
    %7587 = vmatpush1.msra.mxu0 0.0
    %7588 = vmatprep.subr.mxu0 0.0
    %7589 = vmatpush1.msra.mxu0 0.0
    %7590 = vmatprep.subr.mxu0 0.0
    %7591 = vmatpush1.msra.mxu0 0.0
    %7592 = vmatprep.subr.mxu0 0.0
    %7593 = vmatpush1.msra.mxu0 0.0
    %7594 = vmatprep.subr.mxu0 0.0
    %7595 = vmatpush1.msra.mxu0 0.0
    %7596 = vmatprep.subr.mxu0 0.0
    %7597 = vmatpush1.msra.mxu0 0.0
    %7598 = vmatprep.subr.mxu0 0.0
    %7599 = vmatpush1.msra.mxu0 0.0
    %7600 = vmatprep.mubr.f32.mxu0 0.0
    %7601 = vmatmul.mubr.f32.gmra.mrb[0].mxu0 %v7532
    %v7602 = vpop.f32.mrb[0].mxu0
    %v7603 = vadd.f32 %v7529, %v7602
    %v7604 = vpop.f32.mrb[0].mxu0
    %7605 = vmatprep.mubr.f32.mxu0 0.0
    %7606 = vmatmul.mubr.f32.gmra.mrb[0].mxu0 %v7534
    %v7607 = vpop.f32.mrb[0].mxu0
    %v7608 = vadd.f32 %v7529, %v7607
    %v7609 = vpop.f32.mrb[0].mxu0
    %7610 = vdwg.mxu0
    %v7611 = vxor.u32 %v7603, 2147483648
    %v7612 = vxor.u32 %v7608, 2147483648
    %v7613 = vmul.f32 %v7611, 1.442695
    %v7614 = vpow.pop %v7613
    %v7615 = vmul.f32 %v7612, 1.442695
    %v7616 = vpow.pop %v7615
    %v7617 = vadd.f32 %v7614, 1.0
    %v7618 = vadd.f32 %v7616, 1.0
    %v7619 = vrcp.pop %v7617
    %v7620 = vmul.f32 1.0, %v7619
    %v7621 = vrcp.pop %v7618
    %v7622 = vmul.f32 1.0, %v7621
    %7625 = vrot.lane.b32.xlu0 %v7620, 64
    %v7626 = vpop.permute.xlu0 %7625
    %7627 = vrot.lane.b32.xlu0 %v7622, 64
    %v7628 = vpop.permute.xlu0 %7627
    %v7631 = vmul.f32 %v7603, %v7626
    %v7632 = vmul.f32 %v7608, %v7628
    %s7633 = scalar_lea.vmem %s45, 8
    %v7634 = vld [vmem:[%s7633] sm:$0x7f]
    %v7635 = vlaneseq
    %v7636 = vshrl.u32 %v7635, 7
    %v7637 = vsub.s32 0, %v7636
    %v7638 = vrot.slane %v7634, %v7637
    %v7639 = vmul.f32 %v7631, %v7638
    %v7640 = vadd.f32 %v7639, 0.0
    %v7641 = vlaneseq
    %v7642 = vshrl.u32 %v7641, 7
    %v7643 = vsub.s32 1, %v7642
    %v7644 = vrot.slane %v7634, %v7643
    %v7645 = vmul.f32 %v7631, %v7644
    %v7647 = vrot.slane %v7645, 1
    %v7649 = vadd.f32 %v7640, %v7647
    %v7650 = vlaneseq
    %v7651 = vshrl.u32 %v7650, 7
    %v7652 = vsub.s32 2, %v7651
    %v7653 = vrot.slane %v7634, %v7652
    %v7654 = vmul.f32 %v7631, %v7653
    %v7656 = vrot.slane %v7654, 2
    %v7658 = vadd.f32 %v7649, %v7656
    %v7659 = vlaneseq
    %v7660 = vshrl.u32 %v7659, 7
    %v7661 = vsub.s32 3, %v7660
    %v7662 = vrot.slane %v7634, %v7661
    %v7663 = vmul.f32 %v7631, %v7662
    %v7665 = vrot.slane %v7663, 3
    %v7667 = vadd.f32 %v7658, %v7665
    %v7668 = vlaneseq
    %v7669 = vshrl.u32 %v7668, 7
    %v7670 = vsub.s32 4, %v7669
    %v7671 = vrot.slane %v7634, %v7670
    %v7672 = vmul.f32 %v7631, %v7671
    %v7674 = vrot.slane %v7672, 4
    %v7676 = vadd.f32 %v7667, %v7674
    %v7677 = vlaneseq
    %v7678 = vshrl.u32 %v7677, 7
    %v7679 = vsub.s32 5, %v7678
    %v7680 = vrot.slane %v7634, %v7679
    %v7681 = vmul.f32 %v7631, %v7680
    %v7682 = vmul.f32 %v7632, %v7680
    %v7685 = vrot.slane %v7681, 5
    %v7686 = vrot.slane %v7682, 5
    %v7687 = vsel %vm772, %v7685, %v7686
    %v7689 = vadd.f32 %v7676, %v7687
    %v7690 = vlaneseq
    %v7691 = vshrl.u32 %v7690, 7
    %v7692 = vsub.s32 6, %v7691
    %v7693 = vrot.slane %v7634, %v7692
    %v7694 = vmul.f32 %v7631, %v7693
    %v7695 = vmul.f32 %v7632, %v7693
    %v7698 = vrot.slane %v7694, 6
    %v7699 = vrot.slane %v7695, 6
    %v7700 = vsel %vm1349, %v7698, %v7699
    %v7702 = vadd.f32 %v7689, %v7700
    %s7703 = scalar_lea.vmem [#allocation20], 1
    %v7704 = vld [vmem:[%s7703] sm:$0x1]
    %v7706 = vlaneseq
    %v7707 = vshrl.u32 %v7706, 7
    %v7708 = vsub.s32 0, %v7707
    %v7709 = vrot.slane %v7704, %v7708
    %v7711 = vadd.f32 %v7702, %v7709
    %s7712 = scalar_lea.vmem [#allocation13], 1
    %v7713 = vld [vmem:[%s7712] sm:$0x1]
    %v7715 = vlaneseq
    %v7716 = vshrl.u32 %v7715, 7
    %v7717 = vsub.s32 0, %v7716
    %v7718 = vrot.slane %v7713, %v7717
    %v7720 = vmul.f32 %v7711, %v7718
    %s7721 = scalar_lea.vmem [#allocation14], 1
    %v7722 = vld [vmem:[%s7721] sm:$0x1]
    %v7724 = vlaneseq
    %v7725 = vshrl.u32 %v7724, 7
    %v7726 = vsub.s32 0, %v7725
    %v7727 = vrot.slane %v7722, %v7726
    %v7729 = vadd.f32 %v7720, %v7727
    %v7730 = vxor.u32 %v7729, 2147483648
    %v7731 = vmul.f32 %v7730, 1.442695
    %v7732 = vpow.pop %v7731
    %v7733 = vadd.f32 %v7732, 1.0
    %v7734 = vrcp.pop %v7733
    %v7735 = vmul.f32 1.0, %v7734
    %v7736 = vmul.f32 %v7729, %v7735
    %s7737 = scalar_lea.vmem %s93, 64
    %v7738 = vld [vmem:[%s7737] sm:$0xff]
    %v7739 = vld [vmem:[%s7737 + $0x8] sm:$0xff]
    %v7740 = vld [vmem:[%s7737 + $0x10] sm:$0xff]
    %v7741 = vld [vmem:[%s7737 + $0x18] sm:$0xff]
    %v7742 = vld [vmem:[%s7737 + $0x20] sm:$0xff]
    %v7743 = vld [vmem:[%s7737 + $0x28] sm:$0xff]
    %v7744 = vld [vmem:[%s7737 + $0x30] sm:$0xff]
    %v7745 = vld [vmem:[%s7737 + $0x38] sm:$0xff]
    %s7746 = scalar_lea.vmem %s91, 1
    %v7747 = vld [vmem:[%s7746] sm:$0x1]
    %v7749 = vlaneseq
    %v7750 = vshrl.u32 %v7749, 7
    %v7751 = vsub.s32 0, %v7750
    %v7752 = vrot.slane %v7747, %v7751
    %v7755 = vsel %vm776, %v7736, 0
    %7757 = vmatprep.subr.mxu0 0.0
    %7758 = vmatpush1.msra.mxu0 %v7738
    %7759 = vmatprep.subr.mxu0 0.0
    %7760 = vmatpush1.msra.mxu0 %v7739
    %7761 = vmatprep.subr.mxu0 0.0
    %7762 = vmatpush1.msra.mxu0 %v7740
    %7763 = vmatprep.subr.mxu0 0.0
    %7764 = vmatpush1.msra.mxu0 %v7741
    %7765 = vmatprep.subr.mxu0 0.0
    %7766 = vmatpush1.msra.mxu0 %v7742
    %7767 = vmatprep.subr.mxu0 0.0
    %7768 = vmatpush1.msra.mxu0 %v7743
    %7769 = vmatprep.subr.mxu0 0.0
    %7770 = vmatpush1.msra.mxu0 %v7744
    %7771 = vmatprep.subr.mxu0 0.0
    %7772 = vmatpush1.msra.mxu0 %v7745
    %7773 = vmatprep.subr.mxu0 0.0
    %7774 = vmatpush1.msra.mxu0 0.0
    %7775 = vmatprep.subr.mxu0 0.0
    %7776 = vmatpush1.msra.mxu0 0.0
    %7777 = vmatprep.subr.mxu0 0.0
    %7778 = vmatpush1.msra.mxu0 0.0
    %7779 = vmatprep.subr.mxu0 0.0
    %7780 = vmatpush1.msra.mxu0 0.0
    %7781 = vmatprep.subr.mxu0 0.0
    %7782 = vmatpush1.msra.mxu0 0.0
    %7783 = vmatprep.subr.mxu0 0.0
    %7784 = vmatpush1.msra.mxu0 0.0
    %7785 = vmatprep.subr.mxu0 0.0
    %7786 = vmatpush1.msra.mxu0 0.0
    %7787 = vmatprep.subr.mxu0 0.0
    %7788 = vmatpush1.msra.mxu0 0.0
    %7789 = vmatprep.subr.mxu0 0.0
    %7790 = vmatpush1.msra.mxu0 0.0
    %7791 = vmatprep.subr.mxu0 0.0
    %7792 = vmatpush1.msra.mxu0 0.0
    %7793 = vmatprep.subr.mxu0 0.0
    %7794 = vmatpush1.msra.mxu0 0.0
    %7795 = vmatprep.subr.mxu0 0.0
    %7796 = vmatpush1.msra.mxu0 0.0
    %7797 = vmatprep.subr.mxu0 0.0
    %7798 = vmatpush1.msra.mxu0 0.0
    %7799 = vmatprep.subr.mxu0 0.0
    %7800 = vmatpush1.msra.mxu0 0.0
    %7801 = vmatprep.subr.mxu0 0.0
    %7802 = vmatpush1.msra.mxu0 0.0
    %7803 = vmatprep.subr.mxu0 0.0
    %7804 = vmatpush1.msra.mxu0 0.0
    %7805 = vmatprep.subr.mxu0 0.0
    %7806 = vmatpush1.msra.mxu0 0.0
    %7807 = vmatprep.subr.mxu0 0.0
    %7808 = vmatpush1.msra.mxu0 0.0
    %7809 = vmatprep.subr.mxu0 0.0
    %7810 = vmatpush1.msra.mxu0 0.0
    %7811 = vmatprep.subr.mxu0 0.0
    %7812 = vmatpush1.msra.mxu0 0.0
    %7813 = vmatprep.subr.mxu0 0.0
    %7814 = vmatpush1.msra.mxu0 0.0
    %7815 = vmatprep.subr.mxu0 0.0
    %7816 = vmatpush1.msra.mxu0 0.0
    %7817 = vmatprep.subr.mxu0 0.0
    %7818 = vmatpush1.msra.mxu0 0.0
    %7819 = vmatprep.subr.mxu0 0.0
    %7820 = vmatpush1.msra.mxu0 0.0
    %7821 = vmatprep.mubr.f32.mxu0 0.0
    %7822 = vmatmul.mubr.f32.gmra.mrb[0].mxu0 %v7755
    %v7823 = vpop.f32.mrb[0].mxu0
    %v7824 = vadd.f32 %v7752, %v7823
    %v7825 = vpop.f32.mrb[0].mxu0
    %7826 = vdwg.mxu0
    %v7827 = vadd.f32 %v7473, %v7824
    %s7828 = scalar_lea.vmem [#allocation32], 1
    %v7829 = vld [vmem:[%s7828] sm:$0x1]
    %s7830 = scalar_lea.vmem [#allocation31], 1
    %v7831 = vld [vmem:[%s7830] sm:$0x1]
    %v7832 = vsel %vm3101, %v7827, 0.0
    %7833 = vadd.xlane.f32.xlu0 %v7832
    %v7834 = vpop.xlane.xlu0 %7833
    %v7835 = vmul.f32 %v7834, %v3105
    %v7836 = vsub.f32 %v7827, %v7835
    %v7837 = vmul.f32 %v7836, %v7836
    %v7838 = vsel %vm3101, %v7837, 0.0
    %7839 = vadd.xlane.f32.xlu0 %v7838
    %v7840 = vpop.xlane.xlu0 %7839
    %v7841 = vmul.f32 %v7840, %v3105
    %v7842 = vadd.f32 %v7841, 1e-05
    %v7843 = vrsqrt.pop %v7842
    %v7844 = vmul.f32 %v7836, %v7843
    %v7846 = vlaneseq
    %v7847 = vshrl.u32 %v7846, 7
    %v7848 = vsub.s32 0, %v7847
    %v7849 = vrot.slane %v7829, %v7848
    %v7851 = vmul.f32 %v7844, %v7849
    %v7853 = vlaneseq
    %v7854 = vshrl.u32 %v7853, 7
    %v7855 = vsub.s32 0, %v7854
    %v7856 = vrot.slane %v7831, %v7855
    %v7858 = vadd.f32 %v7851, %v7856
    %s7859 = scalar_lea.vmem %s51, 64
    %v7860 = vld [vmem:[%s7859] sm:$0xff]
    %v7861 = vld [vmem:[%s7859 + $0x8] sm:$0xff]
    %v7862 = vld [vmem:[%s7859 + $0x10] sm:$0xff]
    %v7863 = vld [vmem:[%s7859 + $0x18] sm:$0xff]
    %v7864 = vld [vmem:[%s7859 + $0x20] sm:$0xff]
    %v7865 = vld [vmem:[%s7859 + $0x28] sm:$0xff]
    %v7866 = vld [vmem:[%s7859 + $0x30] sm:$0xff]
    %v7867 = vld [vmem:[%s7859 + $0x38] sm:$0xff]
    %s7868 = scalar_lea.vmem [#allocation22], 1
    %v7869 = vld [vmem:[%s7868] sm:$0x1]
    %v7871 = vlaneseq
    %v7872 = vshrl.u32 %v7871, 7
    %v7873 = vsub.s32 0, %v7872
    %v7874 = vrot.slane %v7869, %v7873
    %v7877 = vsel %vm776, %v7858, 0
    %7879 = vmatprep.subr.mxu0 0.0
    %7880 = vmatpush1.msra.mxu0 %v7860
    %7881 = vmatprep.subr.mxu0 0.0
    %7882 = vmatpush1.msra.mxu0 %v7861
    %7883 = vmatprep.subr.mxu0 0.0
    %7884 = vmatpush1.msra.mxu0 %v7862
    %7885 = vmatprep.subr.mxu0 0.0
    %7886 = vmatpush1.msra.mxu0 %v7863
    %7887 = vmatprep.subr.mxu0 0.0
    %7888 = vmatpush1.msra.mxu0 %v7864
    %7889 = vmatprep.subr.mxu0 0.0
    %7890 = vmatpush1.msra.mxu0 %v7865
    %7891 = vmatprep.subr.mxu0 0.0
    %7892 = vmatpush1.msra.mxu0 %v7866
    %7893 = vmatprep.subr.mxu0 0.0
    %7894 = vmatpush1.msra.mxu0 %v7867
    %7895 = vmatprep.subr.mxu0 0.0
    %7896 = vmatpush1.msra.mxu0 0.0
    %7897 = vmatprep.subr.mxu0 0.0
    %7898 = vmatpush1.msra.mxu0 0.0
    %7899 = vmatprep.subr.mxu0 0.0
    %7900 = vmatpush1.msra.mxu0 0.0
    %7901 = vmatprep.subr.mxu0 0.0
    %7902 = vmatpush1.msra.mxu0 0.0
    %7903 = vmatprep.subr.mxu0 0.0
    %7904 = vmatpush1.msra.mxu0 0.0
    %7905 = vmatprep.subr.mxu0 0.0
    %7906 = vmatpush1.msra.mxu0 0.0
    %7907 = vmatprep.subr.mxu0 0.0
    %7908 = vmatpush1.msra.mxu0 0.0
    %7909 = vmatprep.subr.mxu0 0.0
    %7910 = vmatpush1.msra.mxu0 0.0
    %7911 = vmatprep.subr.mxu0 0.0
    %7912 = vmatpush1.msra.mxu0 0.0
    %7913 = vmatprep.subr.mxu0 0.0
    %7914 = vmatpush1.msra.mxu0 0.0
    %7915 = vmatprep.subr.mxu0 0.0
    %7916 = vmatpush1.msra.mxu0 0.0
    %7917 = vmatprep.subr.mxu0 0.0
    %7918 = vmatpush1.msra.mxu0 0.0
    %7919 = vmatprep.subr.mxu0 0.0
    %7920 = vmatpush1.msra.mxu0 0.0
    %7921 = vmatprep.subr.mxu0 0.0
    %7922 = vmatpush1.msra.mxu0 0.0
    %7923 = vmatprep.subr.mxu0 0.0
    %7924 = vmatpush1.msra.mxu0 0.0
    %7925 = vmatprep.subr.mxu0 0.0
    %7926 = vmatpush1.msra.mxu0 0.0
    %7927 = vmatprep.subr.mxu0 0.0
    %7928 = vmatpush1.msra.mxu0 0.0
    %7929 = vmatprep.subr.mxu0 0.0
    %7930 = vmatpush1.msra.mxu0 0.0
    %7931 = vmatprep.subr.mxu0 0.0
    %7932 = vmatpush1.msra.mxu0 0.0
    %7933 = vmatprep.subr.mxu0 0.0
    %7934 = vmatpush1.msra.mxu0 0.0
    %7935 = vmatprep.subr.mxu0 0.0
    %7936 = vmatpush1.msra.mxu0 0.0
    %7937 = vmatprep.subr.mxu0 0.0
    %7938 = vmatpush1.msra.mxu0 0.0
    %7939 = vmatprep.subr.mxu0 0.0
    %7940 = vmatpush1.msra.mxu0 0.0
    %7941 = vmatprep.subr.mxu0 0.0
    %7942 = vmatpush1.msra.mxu0 0.0
    %7943 = vmatprep.mubr.f32.mxu0 0.0
    %7944 = vmatmul.mubr.f32.gmra.mrb[0].mxu0 %v7877
    %v7945 = vpop.f32.mrb[0].mxu0
    %v7946 = vadd.f32 %v7874, %v7945
    %v7947 = vpop.f32.mrb[0].mxu0
    %7948 = vdwg.mxu0
    %v7949 = vxor.u32 %v7946, 2147483648
    %v7950 = vmul.f32 %v7949, 1.442695
    %v7951 = vpow.pop %v7950
    %v7952 = vadd.f32 %v7951, 1.0
    %v7953 = vrcp.pop %v7952
    %v7954 = vmul.f32 1.0, %v7953
    %v7955 = vmul.f32 %v7946, %v7954
    %s7956 = scalar_lea.vmem %s53, 128
    %v7957 = vld [vmem:[%s7956] sm:$0xff]
    %v7958 = vld [vmem:[%s7956 + $0x8] sm:$0xff]
    %v7959 = vld [vmem:[%s7956 + $0x10] sm:$0xff]
    %v7960 = vld [vmem:[%s7956 + $0x18] sm:$0xff]
    %v7961 = vld [vmem:[%s7956 + $0x20] sm:$0xff]
    %v7962 = vld [vmem:[%s7956 + $0x28] sm:$0xff]
    %v7963 = vld [vmem:[%s7956 + $0x30] sm:$0xff]
    %v7964 = vld [vmem:[%s7956 + $0x38] sm:$0xff]
    %v7965 = vld [vmem:[%s7956 + $0x40] sm:$0xff]
    %v7966 = vld [vmem:[%s7956 + $0x48] sm:$0xff]
    %v7967 = vld [vmem:[%s7956 + $0x50] sm:$0xff]
    %v7968 = vld [vmem:[%s7956 + $0x58] sm:$0xff]
    %v7969 = vld [vmem:[%s7956 + $0x60] sm:$0xff]
    %v7970 = vld [vmem:[%s7956 + $0x68] sm:$0xff]
    %v7971 = vld [vmem:[%s7956 + $0x70] sm:$0xff]
    %v7972 = vld [vmem:[%s7956 + $0x78] sm:$0xff]
    %s7973 = scalar_lea.vmem [#allocation23], 1
    %v7974 = vld [vmem:[%s7973] sm:$0x1]
    %v7976 = vlaneseq
    %v7977 = vshrl.u32 %v7976, 7
    %v7978 = vsub.s32 0, %v7977
    %v7979 = vrot.slane %v7974, %v7978
    %7981 = vmatprep.subr.mxu0 0.0
    %7982 = vmatpush1.msra.mxu0 %v7957
    %7983 = vmatprep.subr.mxu0 0.0
    %7984 = vmatpush1.msra.mxu0 %v7958
    %7985 = vmatprep.subr.mxu0 0.0
    %7986 = vmatpush1.msra.mxu0 %v7959
    %7987 = vmatprep.subr.mxu0 0.0
    %7988 = vmatpush1.msra.mxu0 %v7960
    %7989 = vmatprep.subr.mxu0 0.0
    %7990 = vmatpush1.msra.mxu0 %v7961
    %7991 = vmatprep.subr.mxu0 0.0
    %7992 = vmatpush1.msra.mxu0 %v7962
    %7993 = vmatprep.subr.mxu0 0.0
    %7994 = vmatpush1.msra.mxu0 %v7963
    %7995 = vmatprep.subr.mxu0 0.0
    %7996 = vmatpush1.msra.mxu0 %v7964
    %7997 = vmatprep.subr.mxu0 0.0
    %7998 = vmatpush1.msra.mxu0 %v7965
    %7999 = vmatprep.subr.mxu0 0.0
    %8000 = vmatpush1.msra.mxu0 %v7966
    %8001 = vmatprep.subr.mxu0 0.0
    %8002 = vmatpush1.msra.mxu0 %v7967
    %8003 = vmatprep.subr.mxu0 0.0
    %8004 = vmatpush1.msra.mxu0 %v7968
    %8005 = vmatprep.subr.mxu0 0.0
    %8006 = vmatpush1.msra.mxu0 %v7969
    %8007 = vmatprep.subr.mxu0 0.0
    %8008 = vmatpush1.msra.mxu0 %v7970
    %8009 = vmatprep.subr.mxu0 0.0
    %8010 = vmatpush1.msra.mxu0 %v7971
    %8011 = vmatprep.subr.mxu0 0.0
    %8012 = vmatpush1.msra.mxu0 %v7972
    %8013 = vmatprep.subr.mxu0 0.0
    %8014 = vmatpush1.msra.mxu0 0.0
    %8015 = vmatprep.subr.mxu0 0.0
    %8016 = vmatpush1.msra.mxu0 0.0
    %8017 = vmatprep.subr.mxu0 0.0
    %8018 = vmatpush1.msra.mxu0 0.0
    %8019 = vmatprep.subr.mxu0 0.0
    %8020 = vmatpush1.msra.mxu0 0.0
    %8021 = vmatprep.subr.mxu0 0.0
    %8022 = vmatpush1.msra.mxu0 0.0
    %8023 = vmatprep.subr.mxu0 0.0
    %8024 = vmatpush1.msra.mxu0 0.0
    %8025 = vmatprep.subr.mxu0 0.0
    %8026 = vmatpush1.msra.mxu0 0.0
    %8027 = vmatprep.subr.mxu0 0.0
    %8028 = vmatpush1.msra.mxu0 0.0
    %8029 = vmatprep.subr.mxu0 0.0
    %8030 = vmatpush1.msra.mxu0 0.0
    %8031 = vmatprep.subr.mxu0 0.0
    %8032 = vmatpush1.msra.mxu0 0.0
    %8033 = vmatprep.subr.mxu0 0.0
    %8034 = vmatpush1.msra.mxu0 0.0
    %8035 = vmatprep.subr.mxu0 0.0
    %8036 = vmatpush1.msra.mxu0 0.0
    %8037 = vmatprep.subr.mxu0 0.0
    %8038 = vmatpush1.msra.mxu0 0.0
    %8039 = vmatprep.subr.mxu0 0.0
    %8040 = vmatpush1.msra.mxu0 0.0
    %8041 = vmatprep.subr.mxu0 0.0
    %8042 = vmatpush1.msra.mxu0 0.0
    %8043 = vmatprep.subr.mxu0 0.0
    %8044 = vmatpush1.msra.mxu0 0.0
    %8045 = vmatprep.mubr.f32.mxu0 0.0
    %8046 = vmatmul.mubr.f32.gmra.mrb[0].mxu0 %v7955
    %v8047 = vpop.f32.mrb[0].mxu0
    %v8048 = vadd.f32 %v7979, %v8047
    %v8049 = vpop.f32.mrb[0].mxu0
    %8050 = vdwg.mxu0
    %v8051 = vmul.f32 %v8048, 0.5
    %v8052 = vadd.f32 %v7827, %v8051
    %s8053 = scalar_lea.vmem [#allocation38], 1
    %v8054 = vld [vmem:[%s8053] sm:$0x1]
    %s8055 = scalar_lea.vmem [#allocation37], 1
    %v8056 = vld [vmem:[%s8055] sm:$0x1]
    %v8057 = vsel %vm3101, %v8052, 0.0
    %8058 = vadd.xlane.f32.xlu0 %v8057
    %v8059 = vpop.xlane.xlu0 %8058
    %v8060 = vmul.f32 %v8059, %v3105
    %v8061 = vsub.f32 %v8052, %v8060
    %v8062 = vmul.f32 %v8061, %v8061
    %v8063 = vsel %vm3101, %v8062, 0.0
    %8064 = vadd.xlane.f32.xlu0 %v8063
    %v8065 = vpop.xlane.xlu0 %8064
    %v8066 = vmul.f32 %v8065, %v3105
    %v8067 = vadd.f32 %v8066, 1e-05
    %v8068 = vrsqrt.pop %v8067
    %v8069 = vmul.f32 %v8061, %v8068
    %v8071 = vlaneseq
    %v8072 = vshrl.u32 %v8071, 7
    %v8073 = vsub.s32 0, %v8072
    %v8074 = vrot.slane %v8054, %v8073
    %v8076 = vmul.f32 %v8069, %v8074
    %v8078 = vlaneseq
    %v8079 = vshrl.u32 %v8078, 7
    %v8080 = vsub.s32 0, %v8079
    %v8081 = vrot.slane %v8056, %v8080
    %v8083 = vadd.f32 %v8076, %v8081
    %v8084 = vld [vmem:[#allocation2] sm:$0x1]
    %v8085 = vld [vmem:[%s11] sm:$0x1]
    %v8086 = vsel %vm3101, %v8083, 0.0
    %8087 = vadd.xlane.f32.xlu0 %v8086
    %v8088 = vpop.xlane.xlu0 %8087
    %v8089 = vmul.f32 %v8088, %v3105
    %v8090 = vsub.f32 %v8083, %v8089
    %v8091 = vmul.f32 %v8090, %v8090
    %v8092 = vsel %vm3101, %v8091, 0.0
    %8093 = vadd.xlane.f32.xlu0 %v8092
    %v8094 = vpop.xlane.xlu0 %8093
    %v8095 = vmul.f32 %v8094, %v3105
    %v8096 = vadd.f32 %v8095, 1e-05
    %v8097 = vrsqrt.pop %v8096
    %v8098 = vmul.f32 %v8090, %v8097
    %v8100 = vlaneseq
    %v8101 = vshrl.u32 %v8100, 7
    %v8102 = vsub.s32 0, %v8101
    %v8103 = vrot.slane %v8084, %v8102
    %v8105 = vmul.f32 %v8098, %v8103
    %v8107 = vlaneseq
    %v8108 = vshrl.u32 %v8107, 7
    %v8109 = vsub.s32 0, %v8108
    %v8110 = vrot.slane %v8085, %v8109
    %v8112 = vadd.f32 %v8105, %v8110
    %v8113 = vld [vmem:[%s21] sm:$0xff]
    %v8114 = vld [vmem:[%s21 + $0x8] sm:$0xff]
    %v8115 = vld [vmem:[%s21 + $0x10] sm:$0xff]
    %v8116 = vld [vmem:[%s21 + $0x18] sm:$0xff]
    %v8117 = vld [vmem:[%s21 + $0x20] sm:$0xff]
    %v8118 = vld [vmem:[%s21 + $0x28] sm:$0xff]
    %v8119 = vld [vmem:[%s21 + $0x30] sm:$0xff]
    %v8120 = vld [vmem:[%s21 + $0x38] sm:$0xff]
    %v8121 = vld [vmem:[#allocation8] sm:$0x1]
    %v8123 = vlaneseq
    %v8124 = vshrl.u32 %v8123, 7
    %v8125 = vsub.s32 0, %v8124
    %v8126 = vrot.slane %v8121, %v8125
    %v8129 = vsel %vm776, %v8112, 0
    %8131 = vmatprep.subr.mxu0 0.0
    %8132 = vmatpush1.msra.mxu0 %v8113
    %8133 = vmatprep.subr.mxu0 0.0
    %8134 = vmatpush1.msra.mxu0 %v8114
    %8135 = vmatprep.subr.mxu0 0.0
    %8136 = vmatpush1.msra.mxu0 %v8115
    %8137 = vmatprep.subr.mxu0 0.0
    %8138 = vmatpush1.msra.mxu0 %v8116
    %8139 = vmatprep.subr.mxu0 0.0
    %8140 = vmatpush1.msra.mxu0 %v8117
    %8141 = vmatprep.subr.mxu0 0.0
    %8142 = vmatpush1.msra.mxu0 %v8118
    %8143 = vmatprep.subr.mxu0 0.0
    %8144 = vmatpush1.msra.mxu0 %v8119
    %8145 = vmatprep.subr.mxu0 0.0
    %8146 = vmatpush1.msra.mxu0 %v8120
    %8147 = vmatprep.subr.mxu0 0.0
    %8148 = vmatpush1.msra.mxu0 0.0
    %8149 = vmatprep.subr.mxu0 0.0
    %8150 = vmatpush1.msra.mxu0 0.0
    %8151 = vmatprep.subr.mxu0 0.0
    %8152 = vmatpush1.msra.mxu0 0.0
    %8153 = vmatprep.subr.mxu0 0.0
    %8154 = vmatpush1.msra.mxu0 0.0
    %8155 = vmatprep.subr.mxu0 0.0
    %8156 = vmatpush1.msra.mxu0 0.0
    %8157 = vmatprep.subr.mxu0 0.0
    %8158 = vmatpush1.msra.mxu0 0.0
    %8159 = vmatprep.subr.mxu0 0.0
    %8160 = vmatpush1.msra.mxu0 0.0
    %8161 = vmatprep.subr.mxu0 0.0
    %8162 = vmatpush1.msra.mxu0 0.0
    %8163 = vmatprep.subr.mxu0 0.0
    %8164 = vmatpush1.msra.mxu0 0.0
    %8165 = vmatprep.subr.mxu0 0.0
    %8166 = vmatpush1.msra.mxu0 0.0
    %8167 = vmatprep.subr.mxu0 0.0
    %8168 = vmatpush1.msra.mxu0 0.0
    %8169 = vmatprep.subr.mxu0 0.0
    %8170 = vmatpush1.msra.mxu0 0.0
    %8171 = vmatprep.subr.mxu0 0.0
    %8172 = vmatpush1.msra.mxu0 0.0
    %8173 = vmatprep.subr.mxu0 0.0
    %8174 = vmatpush1.msra.mxu0 0.0
    %8175 = vmatprep.subr.mxu0 0.0
    %8176 = vmatpush1.msra.mxu0 0.0
    %8177 = vmatprep.subr.mxu0 0.0
    %8178 = vmatpush1.msra.mxu0 0.0
    %8179 = vmatprep.subr.mxu0 0.0
    %8180 = vmatpush1.msra.mxu0 0.0
    %8181 = vmatprep.subr.mxu0 0.0
    %8182 = vmatpush1.msra.mxu0 0.0
    %8183 = vmatprep.subr.mxu0 0.0
    %8184 = vmatpush1.msra.mxu0 0.0
    %8185 = vmatprep.subr.mxu0 0.0
    %8186 = vmatpush1.msra.mxu0 0.0
    %8187 = vmatprep.subr.mxu0 0.0
    %8188 = vmatpush1.msra.mxu0 0.0
    %8189 = vmatprep.subr.mxu0 0.0
    %8190 = vmatpush1.msra.mxu0 0.0
    %8191 = vmatprep.subr.mxu0 0.0
    %8192 = vmatpush1.msra.mxu0 0.0
    %8193 = vmatprep.subr.mxu0 0.0
    %8194 = vmatpush1.msra.mxu0 0.0
    %8195 = vmatprep.mubr.f32.mxu0 0.0
    %8196 = vmatmul.mubr.f32.gmra.mrb[0].mxu0 %v8129
    %v8197 = vpop.f32.mrb[0].mxu0
    %v8198 = vadd.f32 %v8126, %v8197
    %v8199 = vpop.f32.mrb[0].mxu0
    %8200 = vdwg.mxu0
    %v8201 = vsel %vm3926, %v8198, -inf
    %8202 = vmax.xlane.f32.xlu0 %v8201
    %v8203 = vpop.xlane.xlu0 %8202
    %v8204 = vsub.f32 %v8198, %v8203
    %v8205 = vmul.f32 %v8204, 1.442695
    %v8206 = vpow.pop %v8205
    %v8207 = vsel %vm3926, %v8206, 0.0
    %8208 = vadd.xlane.f32.xlu0 %v8207
    %v8209 = vpop.xlane.xlu0 %8208
    %v8210 = vlog2.pop %v8209
    %v8211 = vmul.f32 %v8210, 0.6931472
    %v8212 = vsub.f32 %v8204, %v8211
    %8213 = vst [vmem:[%s105] sm:$0xf] %v8212
    // Predicated region
    $region322: #{forward.1} parent=1 // pred_check
      _
    $region323: #{forward.1} parent=1 // pred_check_branch
      %8215 = sbr.rel (0) target = $region325
    $region324: #{forward.1} parent=1 // pred_region
      _
    $region325: #{forward.1} parent=1 // pred_fallthru
      _
    // Predicated region
    $region326: #{forward.1} parent=1 // pred_check
      _
    $region327: #{forward.1} parent=1 // pred_check_branch
      %8217 = sbr.rel (0) target = $region329
    $region328: #{forward.1} parent=1 // pred_region
      %s8219 = ssub.s32 2048, 2048
      %8220 = vsyncadd [#allocation4], %s8219
      %s8221 = sshll.u32 [#allocation46], 4
      %s8222 = int_to_ptr.vmem [resolvable:$true] %s8221
      %8227 = dma.vmem_to_hbm [thread:$0]  %s8222, 2048, %s107, [#allocation4], 128, 128, 8
    $region329: #{forward.1} parent=1 // pred_fallthru
      _
    // Predicated region
    $region330: #{forward.1} parent=1 // pred_check
      _
    $region331: #{forward.1} parent=1 // pred_check_branch
      %8229 = sbr.rel (0) target = $region333
    $region332: #{forward.1} parent=1 // pred_region
      _
    $region333: #{forward.1} parent=1 // pred_fallthru
      _
    // Predicated region
    $region334: #{forward.1} parent=1 // pred_check
      _
    $region335: #{forward.1} parent=1 // pred_check_branch
      %8231 = sbr.rel (0) target = $region337
    $region336: #{forward.1} parent=1 // pred_region
      _
    $region337: #{forward.1} parent=1 // pred_fallthru
      _
    // Predicated region
    $region338: #{forward.1} parent=1 // pred_check
      _
    $region339: #{forward.1} parent=1 // pred_check_branch
      %8233 = sbr.rel (0) target = $region341
    $region340: #{forward.1} parent=1 // pred_region
      %8234 = dma.done [#allocation4], 2048
    $region341: #{forward.1} parent=1 // pred_fallthru
      _
    // Predicated region
    $region342: #{forward.1} parent=1 // pred_check
      _
    $region343: #{forward.1} parent=1 // pred_check_branch
      %8236 = sbr.rel (0) target = $region345
    $region344: #{forward.1} parent=1 // pred_region
      _
    $region345: #{forward.1} parent=1 // pred_fallthru
      _
    %8237 = vsyncpa [#allocation3], 1
    %8238 = vsyncpa [#allocation6], 1
    %8239 = vsyncpa [#allocation9], 1
    %8240 = vsyncpa [#allocation12], 1
    %8241 = vsyncpa [#allocation15], 1
    %8242 = vsyncpa [#allocation18], 1
    %8243 = vsyncpa [#allocation21], 1
    %8244 = vsyncpa [#allocation24], 1
    %8245 = vsyncpa [#allocation27], 1
    %8246 = vsyncpa [#allocation30], 1
    %8247 = vsyncpa [#allocation33], 1
    %8248 = vsyncpa [#allocation36], 1
    %8249 = vsyncpa [#allocation39], 1
    %8250 = vsyncpa [#allocation42], 1
    %8251 = vsyncpa [#allocation45], 1
    %8252 = vsyncpa [#allocation4], 1

</llo_original>
